<compile_context>
chip_gen: v6e
topology: v6e:2x2x1
jax: 0.10.0
libtpu: 0.0.40
codegen_flags: <defaults>
</compile_context>

<pallas_src>
import functools

import jax
import jax.numpy as jnp
from jax.experimental import pallas as pl
from jax.experimental.pallas import tpu as pltpu


# ----------------------------------------------------------------------------
# Pallas kernels
# ----------------------------------------------------------------------------
def _conv_taps_kernel(x_ref, w_ref, b_ref, o_ref, *, offsets, rows):
    """One image: out = relu(sum_t x[off_t : off_t+rows, :] @ w[t] + b).

    x_ref: (1, R_in, D) f32, w_ref: (T, D, OC) bf16, b_ref: (1, OC) f32,
    o_ref: (1, rows, OC) f32.  All slices are contiguous; matmuls are 2-D.
    """
    acc = None
    for t, off in enumerate(offsets):
        patch = x_ref[0, off:off + rows, :].astype(jnp.bfloat16)
        part = jnp.dot(patch, w_ref[t], preferred_element_type=jnp.float32)
        acc = part if acc is None else acc + part
    acc = jnp.maximum(acc + b_ref[...], 0.0)
    o_ref[0] = acc.astype(o_ref.dtype)


def _fc_fused_kernel(x_ref, w1_ref, b1_ref, w2_ref, b2_ref, o_ref):
    """out = relu(x @ w1 + b1) @ w2 + b2, fully resident in VMEM."""
    h = jnp.dot(x_ref[...].astype(jnp.bfloat16), w1_ref[...],
                preferred_element_type=jnp.float32)
    h = jnp.maximum(h + b1_ref[...], 0.0)
    y = jnp.dot(h.astype(jnp.bfloat16), w2_ref[...],
                preferred_element_type=jnp.float32)
    o_ref[...] = (y + b2_ref[...]).astype(o_ref.dtype)


# ----------------------------------------------------------------------------
# pallas_call wrappers
# ----------------------------------------------------------------------------
def _conv_taps_call(x_flat, w_taps, b, offsets, rows):
    n, rin, d = x_flat.shape
    t, d2, oc = w_taps.shape
    assert d == d2
    kernel = functools.partial(_conv_taps_kernel,
                               offsets=tuple(offsets), rows=rows)
    return pl.pallas_call(
        kernel,
        out_shape=jax.ShapeDtypeStruct((n, rows, oc), jnp.float32),
        grid=(n,),
        in_specs=[
            pl.BlockSpec((1, rin, d), lambda i: (i, 0, 0)),
            pl.BlockSpec((t, d2, oc), lambda i: (0, 0, 0)),
            pl.BlockSpec((1, oc), lambda i: (0, 0)),
        ],
        out_specs=pl.BlockSpec((1, rows, oc), lambda i: (i, 0, 0)),
        compiler_params=pltpu.CompilerParams(
            dimension_semantics=("parallel",)),
    )(x_flat, w_taps, b.reshape(1, oc))


def _fc_fused_call(x, w1, b1, w2, b2):
    n, k = x.shape
    h = w1.shape[1]
    a = w2.shape[1]
    return pl.pallas_call(
        _fc_fused_kernel,
        out_shape=jax.ShapeDtypeStruct((n, a), jnp.float32),
        grid=(1,),
        in_specs=[
            pl.BlockSpec((n, k), lambda i: (0, 0)),
            pl.BlockSpec((k, h), lambda i: (0, 0)),
            pl.BlockSpec((1, h), lambda i: (0, 0)),
            pl.BlockSpec((h, a), lambda i: (0, 0)),
            pl.BlockSpec((1, a), lambda i: (0, 0)),
        ],
        out_specs=pl.BlockSpec((n, a), lambda i: (0, 0)),
        compiler_params=pltpu.CompilerParams(
            dimension_semantics=("arbitrary",)),
    )(x, w1, b1.reshape(1, h), w2, b2.reshape(1, a))


# ----------------------------------------------------------------------------
# Layout glue (plain JAX, same byte count — no im2col blow-up)
# ----------------------------------------------------------------------------
def _space_to_depth(x, block):
    """NHWC (N,H,W,C) -> (N, H/b, W/b, b*b*C), depth ordered as (r, s, c)."""
    n, h, w, c = x.shape
    x = x.reshape(n, h // block, block, w // block, block, c)
    x = jnp.transpose(x, (0, 1, 3, 2, 4, 5))
    return x.reshape(n, h // block, w // block, block * block * c)


def _conv_layer(x_sp, w_taps, b, ke):
    """Valid stride-1 conv (effective kernel ke x ke) on (N, He, We, D)."""
    n, he, we, d = x_sp.shape
    oh, ow = he - ke + 1, we - ke + 1
    rows = oh * we                                   # full-width output rows
    offsets = [bi * we + bj for bi in range(ke) for bj in range(ke)]
    needed = rows + offsets[-1]
    x_flat = x_sp.reshape(n, he * we, d)
    pad_to = -(-max(needed, he * we) // 8) * 8
    if pad_to > he * we:
        x_flat = jnp.pad(x_flat, ((0, 0), (0, pad_to - he * we), (0, 0)))
    out_full = _conv_taps_call(x_flat, w_taps, b, offsets, rows)
    oc = w_taps.shape[-1]
    # Drop the phantom columns (flattened-shift artifacts) -> (N, OH, OW, OC).
    return out_full.reshape(n, oh, we, oc)[:, :, :ow, :]


# ----------------------------------------------------------------------------
# Parameters (PyTorch layout) + one-time layout/bf16 prep
# ----------------------------------------------------------------------------
def _conv_w_to_taps(w, s):
    """(OC, IC, KH, KW) stride-s conv weight -> (taps, s*s*IC, OC) matching the
    space-to-depth(s) input layout."""
    oc, ic, kh, kw = w.shape
    assert kh % s == 0 and kw % s == 0
    wt = jnp.transpose(w, (2, 3, 1, 0))              # (KH, KW, IC, OC)
    wt = wt.reshape(kh // s, s, kw // s, s, ic, oc)  # (bi, r, bj, sdx, ic, oc)
    wt = jnp.transpose(wt, (0, 2, 1, 3, 4, 5))       # (bi, bj, r, sdx, ic, oc)
    return wt.reshape((kh // s) * (kw // s), s * s * ic, oc)


def init_dqn_params(key, in_channels, num_actions, h_dimension):
    ks = jax.random.split(key, 10)

    def w(k, shape, fan_in):
        return jax.random.normal(k, shape, jnp.float32) / jnp.sqrt(fan_in)

    return {
        "conv1_w": w(ks[0], (32, in_channels, 8, 8), in_channels * 64),
        "conv1_b": 0.01 * jax.random.normal(ks[1], (32,), jnp.float32),
        "conv2_w": w(ks[2], (64, 32, 4, 4), 32 * 16),
        "conv2_b": 0.01 * jax.random.normal(ks[3], (64,), jnp.float32),
        "conv3_w": w(ks[4], (64, 64, 3, 3), 64 * 9),
        "conv3_b": 0.01 * jax.random.normal(ks[5], (64,), jnp.float32),
        # fc1_w rows are in NHWC (H, W, C) flatten order (see header comment).
        "fc1_w": w(ks[6], (3136, h_dimension), 3136),
        "fc1_b": 0.01 * jax.random.normal(ks[7], (h_dimension,), jnp.float32),
        "fc2_w": w(ks[8], (h_dimension, num_actions), h_dimension),
        "fc2_b": 0.01 * jax.random.normal(ks[9], (num_actions,), jnp.float32),
    }


def prepare_dqn_params(params):
    """One-time tap-layout transform + bf16 cast of the weights."""
    return {
        "w1t": _conv_w_to_taps(params["conv1_w"], 4).astype(jnp.bfloat16),
        "b1": params["conv1_b"],
        "w2t": _conv_w_to_taps(params["conv2_w"], 2).astype(jnp.bfloat16),
        "b2": params["conv2_b"],
        "w3t": _conv_w_to_taps(params["conv3_w"], 1).astype(jnp.bfloat16),
        "b3": params["conv3_b"],
        "wfc1": params["fc1_w"].astype(jnp.bfloat16),
        "bfc1": params["fc1_b"],
        "wfc2": params["fc2_w"].astype(jnp.bfloat16),
        "bfc2": params["fc2_b"],
    }


# ----------------------------------------------------------------------------
# Forward pass
# ----------------------------------------------------------------------------
def dqn_forward(p, x):
    """x: NCHW float32 (N, in_channels, 84, 84) -> (N, num_actions)."""
    n, _, hh, ww = x.shape
    assert (hh, ww) == (84, 84), "Linear(3136, h) pins the input to 84x84"
    xh = jnp.transpose(x, (0, 2, 3, 1))                               # tiny NHWC input
    h1 = _conv_layer(_space_to_depth(xh, 4), p["w1t"], p["b1"], 2)    # (N,20,20,32)
    h2 = _conv_layer(_space_to_depth(h1, 2), p["w2t"], p["b2"], 2)    # (N,9,9,64)
    h3 = _conv_layer(h2, p["w3t"], p["b3"], 3)                        # (N,7,7,64)
    feat = h3.reshape(n, -1)                                          # (N,3136) HWC order
    return _fc_fused_call(feat, p["wfc1"], p["bfc1"], p["wfc2"], p["bfc2"])


if __name__ == "__main__":
    # Shapes implied by the module: Linear(3136, h) => conv stack output
    # 64*7*7, i.e. the canonical 84x84 Atari frame.
    batch, in_channels, num_actions, h_dimension = 2, 4, 6, 32
    key = jax.random.PRNGKey(0)
    k_params, k_x = jax.random.split(key)

    params = init_dqn_params(k_params, in_channels, num_actions, h_dimension)
    pparams = prepare_dqn_params(params)
    x = jax.random.normal(k_x, (batch, in_channels, 84, 84), jnp.float32)

    fwd = jax.jit(dqn_forward)
    out = fwd(pparams, x)
    jax.block_until_ready(out)
    assert out.shape == (batch, num_actions), out.shape
    print("KERNEL_OK")
</pallas_src>

<mosaic_0001>
module attributes {stable_mosaic.version = 11 : i64} {
  func.func @_conv_taps_kernel(%arg0: i32, %arg1: memref<1x448x64xf32, #tpu.memory_space<vmem>>, %arg2: memref<4x64x32xbf16, #tpu.memory_space<vmem>>, %arg3: memref<1x32xf32, #tpu.memory_space<vmem>>, %arg4: memref<1x420x32xf32, #tpu.memory_space<vmem>>) attributes {dimension_semantics = [#tpu.dimension_semantics<parallel>], iteration_bounds = array<i64: 2>, scalar_prefetch = 0 : i64, scratch_operands = 0 : i64, tpu.core_type = #tpu.core_type<tc>, window_params = [{transform_indices = @transform_0, window_bounds = array<i64: 1, 448, 64>}, {pipeline_mode = #tpu.pipeline_mode<synchronous>, transform_indices = @transform_1, window_bounds = array<i64: 4, 64, 32>}, {pipeline_mode = #tpu.pipeline_mode<synchronous>, transform_indices = @transform_2, window_bounds = array<i64: 1, 32>}, {transform_indices = @transform_3, window_bounds = array<i64: 1, 420, 32>}]} {
    %c0 = arith.constant 0 : index
    %c0_0 = arith.constant 0 : index
    %c0_1 = arith.constant 0 : index
    %0 = vector.load %arg1[%c0, %c0_0, %c0_1] : memref<1x448x64xf32, #tpu.memory_space<vmem>>, vector<1x420x64xf32>
    %1 = vector.shape_cast %0 : vector<1x420x64xf32> to vector<420x64xf32>
    %2 = arith.truncf %1 : vector<420x64xf32> to vector<420x64xbf16>
    %c0_2 = arith.constant 0 : index
    %c0_3 = arith.constant 0 : index
    %c0_4 = arith.constant 0 : index
    %3 = vector.load %arg2[%c0_2, %c0_3, %c0_4] : memref<4x64x32xbf16, #tpu.memory_space<vmem>>, vector<1x64x32xbf16>
    %4 = vector.shape_cast %3 : vector<1x64x32xbf16> to vector<64x32xbf16>
    %cst = arith.constant dense<0.000000e+00> : vector<420x32xf32>
    %5 = tpu.matmul %2, %4, %cst {dimension_numbers = #tpu.dot_dimension_numbers<[1], [0], [0], [1], [0, 0, 1, 1], [], []>} : vector<420x64xbf16>, vector<64x32xbf16>, vector<420x32xf32> -> vector<420x32xf32>
    %c0_5 = arith.constant 0 : index
    %c1 = arith.constant 1 : index
    %c0_6 = arith.constant 0 : index
    %6 = vector.load %arg1[%c0_5, %c1, %c0_6] : memref<1x448x64xf32, #tpu.memory_space<vmem>>, vector<1x420x64xf32>
    %7 = vector.shape_cast %6 : vector<1x420x64xf32> to vector<420x64xf32>
    %8 = arith.truncf %7 : vector<420x64xf32> to vector<420x64xbf16>
    %c1_7 = arith.constant 1 : index
    %c0_8 = arith.constant 0 : index
    %c0_9 = arith.constant 0 : index
    %9 = vector.load %arg2[%c1_7, %c0_8, %c0_9] : memref<4x64x32xbf16, #tpu.memory_space<vmem>>, vector<1x64x32xbf16>
    %10 = vector.shape_cast %9 : vector<1x64x32xbf16> to vector<64x32xbf16>
    %cst_10 = arith.constant dense<0.000000e+00> : vector<420x32xf32>
    %11 = tpu.matmul %8, %10, %cst_10 {dimension_numbers = #tpu.dot_dimension_numbers<[1], [0], [0], [1], [0, 0, 1, 1], [], []>} : vector<420x64xbf16>, vector<64x32xbf16>, vector<420x32xf32> -> vector<420x32xf32>
    %12 = arith.addf %5, %11 : vector<420x32xf32>
    %c0_11 = arith.constant 0 : index
    %c21 = arith.constant 21 : index
    %c0_12 = arith.constant 0 : index
    %13 = vector.load %arg1[%c0_11, %c21, %c0_12] : memref<1x448x64xf32, #tpu.memory_space<vmem>>, vector<1x420x64xf32>
    %14 = vector.shape_cast %13 : vector<1x420x64xf32> to vector<420x64xf32>
    %15 = arith.truncf %14 : vector<420x64xf32> to vector<420x64xbf16>
    %c2 = arith.constant 2 : index
    %c0_13 = arith.constant 0 : index
    %c0_14 = arith.constant 0 : index
    %16 = vector.load %arg2[%c2, %c0_13, %c0_14] : memref<4x64x32xbf16, #tpu.memory_space<vmem>>, vector<1x64x32xbf16>
    %17 = vector.shape_cast %16 : vector<1x64x32xbf16> to vector<64x32xbf16>
    %cst_15 = arith.constant dense<0.000000e+00> : vector<420x32xf32>
    %18 = tpu.matmul %15, %17, %cst_15 {dimension_numbers = #tpu.dot_dimension_numbers<[1], [0], [0], [1], [0, 0, 1, 1], [], []>} : vector<420x64xbf16>, vector<64x32xbf16>, vector<420x32xf32> -> vector<420x32xf32>
    %19 = arith.addf %12, %18 : vector<420x32xf32>
    %c0_16 = arith.constant 0 : index
    %c22 = arith.constant 22 : index
    %c0_17 = arith.constant 0 : index
    %20 = vector.load %arg1[%c0_16, %c22, %c0_17] : memref<1x448x64xf32, #tpu.memory_space<vmem>>, vector<1x420x64xf32>
    %21 = vector.shape_cast %20 : vector<1x420x64xf32> to vector<420x64xf32>
    %22 = arith.truncf %21 : vector<420x64xf32> to vector<420x64xbf16>
    %c3 = arith.constant 3 : index
    %c0_18 = arith.constant 0 : index
    %c0_19 = arith.constant 0 : index
    %23 = vector.load %arg2[%c3, %c0_18, %c0_19] : memref<4x64x32xbf16, #tpu.memory_space<vmem>>, vector<1x64x32xbf16>
    %24 = vector.shape_cast %23 : vector<1x64x32xbf16> to vector<64x32xbf16>
    %cst_20 = arith.constant dense<0.000000e+00> : vector<420x32xf32>
    %25 = tpu.matmul %22, %24, %cst_20 {dimension_numbers = #tpu.dot_dimension_numbers<[1], [0], [0], [1], [0, 0, 1, 1], [], []>} : vector<420x64xbf16>, vector<64x32xbf16>, vector<420x32xf32> -> vector<420x32xf32>
    %26 = arith.addf %19, %25 : vector<420x32xf32>
    %c0_21 = arith.constant 0 : index
    %c0_22 = arith.constant 0 : index
    %27 = vector.load %arg3[%c0_21, %c0_22] : memref<1x32xf32, #tpu.memory_space<vmem>>, vector<1x32xf32>
    %28 = vector.broadcast %27 : vector<1x32xf32> to vector<420x32xf32>
    %29 = arith.addf %26, %28 : vector<420x32xf32>
    %cst_23 = arith.constant 0.000000e+00 : f32
    %30 = vector.broadcast %cst_23 : f32 to vector<420x32xf32>
    %31 = arith.maximumf %29, %30 : vector<420x32xf32>
    %c0_24 = arith.constant 0 : index
    %c0_25 = arith.constant 0 : index
    %c0_26 = arith.constant 0 : index
    %32 = vector.load %arg4[%c0_24, %c0_25, %c0_26] : memref<1x420x32xf32, #tpu.memory_space<vmem>>, vector<1x420x32xf32>
    %33 = vector.shape_cast %32 : vector<1x420x32xf32> to vector<420x32xf32>
    %34 = vector.shape_cast %31 : vector<420x32xf32> to vector<1x420x32xf32>
    tpu.vector_store %arg4[%c0_24, %c0_25, %c0_26], %34 {strides = array<i32>} : memref<1x420x32xf32, #tpu.memory_space<vmem>>, vector<1x420x32xf32>,
    return
  }
  func.func @transform_0(%arg0: i32) -> (i32, i32, i32) {
    %c0_i32 = arith.constant 0 : i32
    %c0_i32_0 = arith.constant 0 : i32
    %c0_i32_1 = arith.constant 0 : i32
    return %arg0, %c0_i32, %c0_i32_0 : i32, i32, i32
  }
  func.func @transform_1(%arg0: i32) -> (i32, i32, i32) {
    %c0_i32 = arith.constant 0 : i32
    %c0_i32_0 = arith.constant 0 : i32
    %c0_i32_1 = arith.constant 0 : i32
    %c0_i32_2 = arith.constant 0 : i32
    return %c0_i32, %c0_i32_0, %c0_i32_1 : i32, i32, i32
  }
  func.func @transform_2(%arg0: i32) -> (i32, i32) {
    %c0_i32 = arith.constant 0 : i32
    %c0_i32_0 = arith.constant 0 : i32
    %c0_i32_1 = arith.constant 0 : i32
    return %c0_i32, %c0_i32_0 : i32, i32
  }
  func.func @transform_3(%arg0: i32) -> (i32, i32, i32) {
    %c0_i32 = arith.constant 0 : i32
    %c0_i32_0 = arith.constant 0 : i32
    %c0_i32_1 = arith.constant 0 : i32
    return %arg0, %c0_i32, %c0_i32_0 : i32, i32, i32
  }
}

module attributes {stable_mosaic.version = 11 : i64} {
  func.func @_conv_taps_kernel(%arg0: i32, %arg1: memref<1x104x128xf32, #tpu.memory_space<vmem>>, %arg2: memref<4x128x64xbf16, #tpu.memory_space<vmem>>, %arg3: memref<1x64xf32, #tpu.memory_space<vmem>>, %arg4: memref<1x90x64xf32, #tpu.memory_space<vmem>>) attributes {dimension_semantics = [#tpu.dimension_semantics<parallel>], iteration_bounds = array<i64: 2>, scalar_prefetch = 0 : i64, scratch_operands = 0 : i64, tpu.core_type = #tpu.core_type<tc>, window_params = [{transform_indices = @transform_0, window_bounds = array<i64: 1, 104, 128>}, {pipeline_mode = #tpu.pipeline_mode<synchronous>, transform_indices = @transform_1, window_bounds = array<i64: 4, 128, 64>}, {pipeline_mode = #tpu.pipeline_mode<synchronous>, transform_indices = @transform_2, window_bounds = array<i64: 1, 64>}, {transform_indices = @transform_3, window_bounds = array<i64: 1, 90, 64>}]} {
    %c0 = arith.constant 0 : index
    %c0_0 = arith.constant 0 : index
    %c0_1 = arith.constant 0 : index
    %0 = vector.load %arg1[%c0, %c0_0, %c0_1] : memref<1x104x128xf32, #tpu.memory_space<vmem>>, vector<1x90x128xf32>
    %1 = vector.shape_cast %0 : vector<1x90x128xf32> to vector<90x128xf32>
    %2 = arith.truncf %1 : vector<90x128xf32> to vector<90x128xbf16>
    %c0_2 = arith.constant 0 : index
    %c0_3 = arith.constant 0 : index
    %c0_4 = arith.constant 0 : index
    %3 = vector.load %arg2[%c0_2, %c0_3, %c0_4] : memref<4x128x64xbf16, #tpu.memory_space<vmem>>, vector<1x128x64xbf16>
    %4 = vector.shape_cast %3 : vector<1x128x64xbf16> to vector<128x64xbf16>
    %cst = arith.constant dense<0.000000e+00> : vector<90x64xf32>
    %5 = tpu.matmul %2, %4, %cst {dimension_numbers = #tpu.dot_dimension_numbers<[1], [0], [0], [1], [0, 0, 1, 1], [], []>} : vector<90x128xbf16>, vector<128x64xbf16>, vector<90x64xf32> -> vector<90x64xf32>
    %c0_5 = arith.constant 0 : index
    %c1 = arith.constant 1 : index
    %c0_6 = arith.constant 0 : index
    %6 = vector.load %arg1[%c0_5, %c1, %c0_6] : memref<1x104x128xf32, #tpu.memory_space<vmem>>, vector<1x90x128xf32>
    %7 = vector.shape_cast %6 : vector<1x90x128xf32> to vector<90x128xf32>
    %8 = arith.truncf %7 : vector<90x128xf32> to vector<90x128xbf16>
    %c1_7 = arith.constant 1 : index
    %c0_8 = arith.constant 0 : index
    %c0_9 = arith.constant 0 : index
    %9 = vector.load %arg2[%c1_7, %c0_8, %c0_9] : memref<4x128x64xbf16, #tpu.memory_space<vmem>>, vector<1x128x64xbf16>
    %10 = vector.shape_cast %9 : vector<1x128x64xbf16> to vector<128x64xbf16>
    %cst_10 = arith.constant dense<0.000000e+00> : vector<90x64xf32>
    %11 = tpu.matmul %8, %10, %cst_10 {dimension_numbers = #tpu.dot_dimension_numbers<[1], [0], [0], [1], [0, 0, 1, 1], [], []>} : vector<90x128xbf16>, vector<128x64xbf16>, vector<90x64xf32> -> vector<90x64xf32>
    %12 = arith.addf %5, %11 : vector<90x64xf32>
    %c0_11 = arith.constant 0 : index
    %c10 = arith.constant 10 : index
    %c0_12 = arith.constant 0 : index
    %13 = vector.load %arg1[%c0_11, %c10, %c0_12] : memref<1x104x128xf32, #tpu.memory_space<vmem>>, vector<1x90x128xf32>
    %14 = vector.shape_cast %13 : vector<1x90x128xf32> to vector<90x128xf32>
    %15 = arith.truncf %14 : vector<90x128xf32> to vector<90x128xbf16>
    %c2 = arith.constant 2 : index
    %c0_13 = arith.constant 0 : index
    %c0_14 = arith.constant 0 : index
    %16 = vector.load %arg2[%c2, %c0_13, %c0_14] : memref<4x128x64xbf16, #tpu.memory_space<vmem>>, vector<1x128x64xbf16>
    %17 = vector.shape_cast %16 : vector<1x128x64xbf16> to vector<128x64xbf16>
    %cst_15 = arith.constant dense<0.000000e+00> : vector<90x64xf32>
    %18 = tpu.matmul %15, %17, %cst_15 {dimension_numbers = #tpu.dot_dimension_numbers<[1], [0], [0], [1], [0, 0, 1, 1], [], []>} : vector<90x128xbf16>, vector<128x64xbf16>, vector<90x64xf32> -> vector<90x64xf32>
    %19 = arith.addf %12, %18 : vector<90x64xf32>
    %c0_16 = arith.constant 0 : index
    %c11 = arith.constant 11 : index
    %c0_17 = arith.constant 0 : index
    %20 = vector.load %arg1[%c0_16, %c11, %c0_17] : memref<1x104x128xf32, #tpu.memory_space<vmem>>, vector<1x90x128xf32>
    %21 = vector.shape_cast %20 : vector<1x90x128xf32> to vector<90x128xf32>
    %22 = arith.truncf %21 : vector<90x128xf32> to vector<90x128xbf16>
    %c3 = arith.constant 3 : index
    %c0_18 = arith.constant 0 : index
    %c0_19 = arith.constant 0 : index
    %23 = vector.load %arg2[%c3, %c0_18, %c0_19] : memref<4x128x64xbf16, #tpu.memory_space<vmem>>, vector<1x128x64xbf16>
    %24 = vector.shape_cast %23 : vector<1x128x64xbf16> to vector<128x64xbf16>
    %cst_20 = arith.constant dense<0.000000e+00> : vector<90x64xf32>
    %25 = tpu.matmul %22, %24, %cst_20 {dimension_numbers = #tpu.dot_dimension_numbers<[1], [0], [0], [1], [0, 0, 1, 1], [], []>} : vector<90x128xbf16>, vector<128x64xbf16>, vector<90x64xf32> -> vector<90x64xf32>
    %26 = arith.addf %19, %25 : vector<90x64xf32>
    %c0_21 = arith.constant 0 : index
    %c0_22 = arith.constant 0 : index
    %27 = vector.load %arg3[%c0_21, %c0_22] : memref<1x64xf32, #tpu.memory_space<vmem>>, vector<1x64xf32>
    %28 = vector.broadcast %27 : vector<1x64xf32> to vector<90x64xf32>
    %29 = arith.addf %26, %28 : vector<90x64xf32>
    %cst_23 = arith.constant 0.000000e+00 : f32
    %30 = vector.broadcast %cst_23 : f32 to vector<90x64xf32>
    %31 = arith.maximumf %29, %30 : vector<90x64xf32>
    %c0_24 = arith.constant 0 : index
    %c0_25 = arith.constant 0 : index
    %c0_26 = arith.constant 0 : index
    %32 = vector.load %arg4[%c0_24, %c0_25, %c0_26] : memref<1x90x64xf32, #tpu.memory_space<vmem>>, vector<1x90x64xf32>
    %33 = vector.shape_cast %32 : vector<1x90x64xf32> to vector<90x64xf32>
    %34 = vector.shape_cast %31 : vector<90x64xf32> to vector<1x90x64xf32>
    tpu.vector_store %arg4[%c0_24, %c0_25, %c0_26], %34 {strides = array<i32>} : memref<1x90x64xf32, #tpu.memory_space<vmem>>, vector<1x90x64xf32>,
    return
  }
  func.func @transform_0(%arg0: i32) -> (i32, i32, i32) {
    %c0_i32 = arith.constant 0 : i32
    %c0_i32_0 = arith.constant 0 : i32
    %c0_i32_1 = arith.constant 0 : i32
    return %arg0, %c0_i32, %c0_i32_0 : i32, i32, i32
  }
  func.func @transform_1(%arg0: i32) -> (i32, i32, i32) {
    %c0_i32 = arith.constant 0 : i32
    %c0_i32_0 = arith.constant 0 : i32
    %c0_i32_1 = arith.constant 0 : i32
    %c0_i32_2 = arith.constant 0 : i32
    return %c0_i32, %c0_i32_0, %c0_i32_1 : i32, i32, i32
  }
  func.func @transform_2(%arg0: i32) -> (i32, i32) {
    %c0_i32 = arith.constant 0 : i32
    %c0_i32_0 = arith.constant 0 : i32
    %c0_i32_1 = arith.constant 0 : i32
    return %c0_i32, %c0_i32_0 : i32, i32
  }
  func.func @transform_3(%arg0: i32) -> (i32, i32, i32) {
    %c0_i32 = arith.constant 0 : i32
    %c0_i32_0 = arith.constant 0 : i32
    %c0_i32_1 = arith.constant 0 : i32
    return %arg0, %c0_i32, %c0_i32_0 : i32, i32, i32
  }
}

module attributes {stable_mosaic.version = 11 : i64} {
  func.func @_conv_taps_kernel(%arg0: i32, %arg1: memref<1x88x64xf32, #tpu.memory_space<vmem>>, %arg2: memref<9x64x64xbf16, #tpu.memory_space<vmem>>, %arg3: memref<1x64xf32, #tpu.memory_space<vmem>>, %arg4: memref<1x63x64xf32, #tpu.memory_space<vmem>>) attributes {dimension_semantics = [#tpu.dimension_semantics<parallel>], iteration_bounds = array<i64: 2>, scalar_prefetch = 0 : i64, scratch_operands = 0 : i64, tpu.core_type = #tpu.core_type<tc>, window_params = [{transform_indices = @transform_0, window_bounds = array<i64: 1, 88, 64>}, {pipeline_mode = #tpu.pipeline_mode<synchronous>, transform_indices = @transform_1, window_bounds = array<i64: 9, 64, 64>}, {pipeline_mode = #tpu.pipeline_mode<synchronous>, transform_indices = @transform_2, window_bounds = array<i64: 1, 64>}, {transform_indices = @transform_3, window_bounds = array<i64: 1, 63, 64>}]} {
    %c0 = arith.constant 0 : index
    %c0_0 = arith.constant 0 : index
    %c0_1 = arith.constant 0 : index
    %0 = vector.load %arg1[%c0, %c0_0, %c0_1] : memref<1x88x64xf32, #tpu.memory_space<vmem>>, vector<1x63x64xf32>
    %1 = vector.shape_cast %0 : vector<1x63x64xf32> to vector<63x64xf32>
    %2 = arith.truncf %1 : vector<63x64xf32> to vector<63x64xbf16>
    %c0_2 = arith.constant 0 : index
    %c0_3 = arith.constant 0 : index
    %c0_4 = arith.constant 0 : index
    %3 = vector.load %arg2[%c0_2, %c0_3, %c0_4] : memref<9x64x64xbf16, #tpu.memory_space<vmem>>, vector<1x64x64xbf16>
    %4 = vector.shape_cast %3 : vector<1x64x64xbf16> to vector<64x64xbf16>
    %cst = arith.constant dense<0.000000e+00> : vector<63x64xf32>
    %5 = tpu.matmul %2, %4, %cst {dimension_numbers = #tpu.dot_dimension_numbers<[1], [0], [0], [1], [0, 0, 1, 1], [], []>} : vector<63x64xbf16>, vector<64x64xbf16>, vector<63x64xf32> -> vector<63x64xf32>
    %c0_5 = arith.constant 0 : index
    %c1 = arith.constant 1 : index
    %c0_6 = arith.constant 0 : index
    %6 = vector.load %arg1[%c0_5, %c1, %c0_6] : memref<1x88x64xf32, #tpu.memory_space<vmem>>, vector<1x63x64xf32>
    %7 = vector.shape_cast %6 : vector<1x63x64xf32> to vector<63x64xf32>
    %8 = arith.truncf %7 : vector<63x64xf32> to vector<63x64xbf16>
    %c1_7 = arith.constant 1 : index
    %c0_8 = arith.constant 0 : index
    %c0_9 = arith.constant 0 : index
    %9 = vector.load %arg2[%c1_7, %c0_8, %c0_9] : memref<9x64x64xbf16, #tpu.memory_space<vmem>>, vector<1x64x64xbf16>
    %10 = vector.shape_cast %9 : vector<1x64x64xbf16> to vector<64x64xbf16>
    %cst_10 = arith.constant dense<0.000000e+00> : vector<63x64xf32>
    %11 = tpu.matmul %8, %10, %cst_10 {dimension_numbers = #tpu.dot_dimension_numbers<[1], [0], [0], [1], [0, 0, 1, 1], [], []>} : vector<63x64xbf16>, vector<64x64xbf16>, vector<63x64xf32> -> vector<63x64xf32>
    %12 = arith.addf %5, %11 : vector<63x64xf32>
    %c0_11 = arith.constant 0 : index
    %c2 = arith.constant 2 : index
    %c0_12 = arith.constant 0 : index
    %13 = vector.load %arg1[%c0_11, %c2, %c0_12] : memref<1x88x64xf32, #tpu.memory_space<vmem>>, vector<1x63x64xf32>
    %14 = vector.shape_cast %13 : vector<1x63x64xf32> to vector<63x64xf32>
    %15 = arith.truncf %14 : vector<63x64xf32> to vector<63x64xbf16>
    %c2_13 = arith.constant 2 : index
    %c0_14 = arith.constant 0 : index
    %c0_15 = arith.constant 0 : index
    %16 = vector.load %arg2[%c2_13, %c0_14, %c0_15] : memref<9x64x64xbf16, #tpu.memory_space<vmem>>, vector<1x64x64xbf16>
    %17 = vector.shape_cast %16 : vector<1x64x64xbf16> to vector<64x64xbf16>
    %cst_16 = arith.constant dense<0.000000e+00> : vector<63x64xf32>
    %18 = tpu.matmul %15, %17, %cst_16 {dimension_numbers = #tpu.dot_dimension_numbers<[1], [0], [0], [1], [0, 0, 1, 1], [], []>} : vector<63x64xbf16>, vector<64x64xbf16>, vector<63x64xf32> -> vector<63x64xf32>
    %19 = arith.addf %12, %18 : vector<63x64xf32>
    %c0_17 = arith.constant 0 : index
    %c9 = arith.constant 9 : index
    %c0_18 = arith.constant 0 : index
    %20 = vector.load %arg1[%c0_17, %c9, %c0_18] : memref<1x88x64xf32, #tpu.memory_space<vmem>>, vector<1x63x64xf32>
    %21 = vector.shape_cast %20 : vector<1x63x64xf32> to vector<63x64xf32>
    %22 = arith.truncf %21 : vector<63x64xf32> to vector<63x64xbf16>
    %c3 = arith.constant 3 : index
    %c0_19 = arith.constant 0 : index
    %c0_20 = arith.constant 0 : index
    %23 = vector.load %arg2[%c3, %c0_19, %c0_20] : memref<9x64x64xbf16, #tpu.memory_space<vmem>>, vector<1x64x64xbf16>
    %24 = vector.shape_cast %23 : vector<1x64x64xbf16> to vector<64x64xbf16>
    %cst_21 = arith.constant dense<0.000000e+00> : vector<63x64xf32>
    %25 = tpu.matmul %22, %24, %cst_21 {dimension_numbers = #tpu.dot_dimension_numbers<[1], [0], [0], [1], [0, 0, 1, 1], [], []>} : vector<63x64xbf16>, vector<64x64xbf16>, vector<63x64xf32> -> vector<63x64xf32>
    %26 = arith.addf %19, %25 : vector<63x64xf32>
    %c0_22 = arith.constant 0 : index
    %c10 = arith.constant 10 : index
    %c0_23 = arith.constant 0 : index
    %27 = vector.load %arg1[%c0_22, %c10, %c0_23] : memref<1x88x64xf32, #tpu.memory_space<vmem>>, vector<1x63x64xf32>
    %28 = vector.shape_cast %27 : vector<1x63x64xf32> to vector<63x64xf32>
    %29 = arith.truncf %28 : vector<63x64xf32> to vector<63x64xbf16>
    %c4 = arith.constant 4 : index
    %c0_24 = arith.constant 0 : index
    %c0_25 = arith.constant 0 : index
    %30 = vector.load %arg2[%c4, %c0_24, %c0_25] : memref<9x64x64xbf16, #tpu.memory_space<vmem>>, vector<1x64x64xbf16>
    %31 = vector.shape_cast %30 : vector<1x64x64xbf16> to vector<64x64xbf16>
    %cst_26 = arith.constant dense<0.000000e+00> : vector<63x64xf32>
    %32 = tpu.matmul %29, %31, %cst_26 {dimension_numbers = #tpu.dot_dimension_numbers<[1], [0], [0], [1], [0, 0, 1, 1], [], []>} : vector<63x64xbf16>, vector<64x64xbf16>, vector<63x64xf32> -> vector<63x64xf32>
    %33 = arith.addf %26, %32 : vector<63x64xf32>
    %c0_27 = arith.constant 0 : index
    %c11 = arith.constant 11 : index
    %c0_28 = arith.constant 0 : index
    %34 = vector.load %arg1[%c0_27, %c11, %c0_28] : memref<1x88x64xf32, #tpu.memory_space<vmem>>, vector<1x63x64xf32>
    %35 = vector.shape_cast %34 : vector<1x63x64xf32> to vector<63x64xf32>
    %36 = arith.truncf %35 : vector<63x64xf32> to vector<63x64xbf16>
    %c5 = arith.constant 5 : index
    %c0_29 = arith.constant 0 : index
    %c0_30 = arith.constant 0 : index
    %37 = vector.load %arg2[%c5, %c0_29, %c0_30] : memref<9x64x64xbf16, #tpu.memory_space<vmem>>, vector<1x64x64xbf16>
    %38 = vector.shape_cast %37 : vector<1x64x64xbf16> to vector<64x64xbf16>
    %cst_31 = arith.constant dense<0.000000e+00> : vector<63x64xf32>
    %39 = tpu.matmul %36, %38, %cst_31 {dimension_numbers = #tpu.dot_dimension_numbers<[1], [0], [0], [1], [0, 0, 1, 1], [], []>} : vector<63x64xbf16>, vector<64x64xbf16>, vector<63x64xf32> -> vector<63x64xf32>
    %40 = arith.addf %33, %39 : vector<63x64xf32>
    %c0_32 = arith.constant 0 : index
    %c18 = arith.constant 18 : index
    %c0_33 = arith.constant 0 : index
    %41 = vector.load %arg1[%c0_32, %c18, %c0_33] : memref<1x88x64xf32, #tpu.memory_space<vmem>>, vector<1x63x64xf32>
    %42 = vector.shape_cast %41 : vector<1x63x64xf32> to vector<63x64xf32>
    %43 = arith.truncf %42 : vector<63x64xf32> to vector<63x64xbf16>
    %c6 = arith.constant 6 : index
    %c0_34 = arith.constant 0 : index
    %c0_35 = arith.constant 0 : index
    %44 = vector.load %arg2[%c6, %c0_34, %c0_35] : memref<9x64x64xbf16, #tpu.memory_space<vmem>>, vector<1x64x64xbf16>
    %45 = vector.shape_cast %44 : vector<1x64x64xbf16> to vector<64x64xbf16>
    %cst_36 = arith.constant dense<0.000000e+00> : vector<63x64xf32>
    %46 = tpu.matmul %43, %45, %cst_36 {dimension_numbers = #tpu.dot_dimension_numbers<[1], [0], [0], [1], [0, 0, 1, 1], [], []>} : vector<63x64xbf16>, vector<64x64xbf16>, vector<63x64xf32> -> vector<63x64xf32>
    %47 = arith.addf %40, %46 : vector<63x64xf32>
    %c0_37 = arith.constant 0 : index
    %c19 = arith.constant 19 : index
    %c0_38 = arith.constant 0 : index
    %48 = vector.load %arg1[%c0_37, %c19, %c0_38] : memref<1x88x64xf32, #tpu.memory_space<vmem>>, vector<1x63x64xf32>
    %49 = vector.shape_cast %48 : vector<1x63x64xf32> to vector<63x64xf32>
    %50 = arith.truncf %49 : vector<63x64xf32> to vector<63x64xbf16>
    %c7 = arith.constant 7 : index
    %c0_39 = arith.constant 0 : index
    %c0_40 = arith.constant 0 : index
    %51 = vector.load %arg2[%c7, %c0_39, %c0_40] : memref<9x64x64xbf16, #tpu.memory_space<vmem>>, vector<1x64x64xbf16>
    %52 = vector.shape_cast %51 : vector<1x64x64xbf16> to vector<64x64xbf16>
    %cst_41 = arith.constant dense<0.000000e+00> : vector<63x64xf32>
    %53 = tpu.matmul %50, %52, %cst_41 {dimension_numbers = #tpu.dot_dimension_numbers<[1], [0], [0], [1], [0, 0, 1, 1], [], []>} : vector<63x64xbf16>, vector<64x64xbf16>, vector<63x64xf32> -> vector<63x64xf32>
    %54 = arith.addf %47, %53 : vector<63x64xf32>
    %c0_42 = arith.constant 0 : index
    %c20 = arith.constant 20 : index
    %c0_43 = arith.constant 0 : index
    %55 = vector.load %arg1[%c0_42, %c20, %c0_43] : memref<1x88x64xf32, #tpu.memory_space<vmem>>, vector<1x63x64xf32>
    %56 = vector.shape_cast %55 : vector<1x63x64xf32> to vector<63x64xf32>
    %57 = arith.truncf %56 : vector<63x64xf32> to vector<63x64xbf16>
    %c8 = arith.constant 8 : index
    %c0_44 = arith.constant 0 : index
    %c0_45 = arith.constant 0 : index
    %58 = vector.load %arg2[%c8, %c0_44, %c0_45] : memref<9x64x64xbf16, #tpu.memory_space<vmem>>, vector<1x64x64xbf16>
    %59 = vector.shape_cast %58 : vector<1x64x64xbf16> to vector<64x64xbf16>
    %cst_46 = arith.constant dense<0.000000e+00> : vector<63x64xf32>
    %60 = tpu.matmul %57, %59, %cst_46 {dimension_numbers = #tpu.dot_dimension_numbers<[1], [0], [0], [1], [0, 0, 1, 1], [], []>} : vector<63x64xbf16>, vector<64x64xbf16>, vector<63x64xf32> -> vector<63x64xf32>
    %61 = arith.addf %54, %60 : vector<63x64xf32>
    %c0_47 = arith.constant 0 : index
    %c0_48 = arith.constant 0 : index
    %62 = vector.load %arg3[%c0_47, %c0_48] : memref<1x64xf32, #tpu.memory_space<vmem>>, vector<1x64xf32>
    %63 = vector.broadcast %62 : vector<1x64xf32> to vector<63x64xf32>
    %64 = arith.addf %61, %63 : vector<63x64xf32>
    %cst_49 = arith.constant 0.000000e+00 : f32
    %65 = vector.broadcast %cst_49 : f32 to vector<63x64xf32>
    %66 = arith.maximumf %64, %65 : vector<63x64xf32>
    %c0_50 = arith.constant 0 : index
    %c0_51 = arith.constant 0 : index
    %c0_52 = arith.constant 0 : index
    %67 = vector.load %arg4[%c0_50, %c0_51, %c0_52] : memref<1x63x64xf32, #tpu.memory_space<vmem>>, vector<1x63x64xf32>
    %68 = vector.shape_cast %67 : vector<1x63x64xf32> to vector<63x64xf32>
    %69 = vector.shape_cast %66 : vector<63x64xf32> to vector<1x63x64xf32>
    tpu.vector_store %arg4[%c0_50, %c0_51, %c0_52], %69 {strides = array<i32>} : memref<1x63x64xf32, #tpu.memory_space<vmem>>, vector<1x63x64xf32>,
    return
  }
  func.func @transform_0(%arg0: i32) -> (i32, i32, i32) {
    %c0_i32 = arith.constant 0 : i32
    %c0_i32_0 = arith.constant 0 : i32
    %c0_i32_1 = arith.constant 0 : i32
    return %arg0, %c0_i32, %c0_i32_0 : i32, i32, i32
  }
  func.func @transform_1(%arg0: i32) -> (i32, i32, i32) {
    %c0_i32 = arith.constant 0 : i32
    %c0_i32_0 = arith.constant 0 : i32
    %c0_i32_1 = arith.constant 0 : i32
    %c0_i32_2 = arith.constant 0 : i32
    return %c0_i32, %c0_i32_0, %c0_i32_1 : i32, i32, i32
  }
  func.func @transform_2(%arg0: i32) -> (i32, i32) {
    %c0_i32 = arith.constant 0 : i32
    %c0_i32_0 = arith.constant 0 : i32
    %c0_i32_1 = arith.constant 0 : i32
    return %c0_i32, %c0_i32_0 : i32, i32
  }
  func.func @transform_3(%arg0: i32) -> (i32, i32, i32) {
    %c0_i32 = arith.constant 0 : i32
    %c0_i32_0 = arith.constant 0 : i32
    %c0_i32_1 = arith.constant 0 : i32
    return %arg0, %c0_i32, %c0_i32_0 : i32, i32, i32
  }
}

module attributes {stable_mosaic.version = 11 : i64} {
  func.func @_fc_fused_kernel(%arg0: i32, %arg1: memref<2x3136xf32, #tpu.memory_space<vmem>>, %arg2: memref<3136x32xbf16, #tpu.memory_space<vmem>>, %arg3: memref<1x32xf32, #tpu.memory_space<vmem>>, %arg4: memref<32x6xbf16, #tpu.memory_space<vmem>>, %arg5: memref<1x6xf32, #tpu.memory_space<vmem>>, %arg6: memref<2x6xf32, #tpu.memory_space<vmem>>) attributes {dimension_semantics = [#tpu.dimension_semantics<arbitrary>], iteration_bounds = array<i64: 1>, scalar_prefetch = 0 : i64, scratch_operands = 0 : i64, tpu.core_type = #tpu.core_type<tc>, window_params = [{pipeline_mode = #tpu.pipeline_mode<synchronous>, transform_indices = @transform_0, window_bounds = array<i64: 2, 3136>}, {pipeline_mode = #tpu.pipeline_mode<synchronous>, transform_indices = @transform_1, window_bounds = array<i64: 3136, 32>}, {pipeline_mode = #tpu.pipeline_mode<synchronous>, transform_indices = @transform_2, window_bounds = array<i64: 1, 32>}, {pipeline_mode = #tpu.pipeline_mode<synchronous>, transform_indices = @transform_3, window_bounds = array<i64: 32, 6>}, {pipeline_mode = #tpu.pipeline_mode<synchronous>, transform_indices = @transform_4, window_bounds = array<i64: 1, 6>}, {pipeline_mode = #tpu.pipeline_mode<synchronous>, transform_indices = @transform_5, window_bounds = array<i64: 2, 6>}]} {
    %c0 = arith.constant 0 : index
    %c0_0 = arith.constant 0 : index
    %0 = vector.load %arg1[%c0, %c0_0] : memref<2x3136xf32, #tpu.memory_space<vmem>>, vector<2x3136xf32>
    %1 = arith.truncf %0 : vector<2x3136xf32> to vector<2x3136xbf16>
    %c0_1 = arith.constant 0 : index
    %c0_2 = arith.constant 0 : index
    %2 = vector.load %arg2[%c0_1, %c0_2] : memref<3136x32xbf16, #tpu.memory_space<vmem>>, vector<3136x32xbf16>
    %cst = arith.constant dense<0.000000e+00> : vector<2x32xf32>
    %3 = tpu.matmul %1, %2, %cst {dimension_numbers = #tpu.dot_dimension_numbers<[1], [0], [0], [1], [0, 0, 1, 1], [], []>} : vector<2x3136xbf16>, vector<3136x32xbf16>, vector<2x32xf32> -> vector<2x32xf32>
    %c0_3 = arith.constant 0 : index
    %c0_4 = arith.constant 0 : index
    %4 = vector.load %arg3[%c0_3, %c0_4] : memref<1x32xf32, #tpu.memory_space<vmem>>, vector<1x32xf32>
    %5 = vector.broadcast %4 : vector<1x32xf32> to vector<2x32xf32>
    %6 = arith.addf %3, %5 : vector<2x32xf32>
    %cst_5 = arith.constant 0.000000e+00 : f32
    %7 = vector.broadcast %cst_5 : f32 to vector<2x32xf32>
    %8 = arith.maximumf %6, %7 : vector<2x32xf32>
    %9 = arith.truncf %8 : vector<2x32xf32> to vector<2x32xbf16>
    %c0_6 = arith.constant 0 : index
    %c0_7 = arith.constant 0 : index
    %10 = vector.load %arg4[%c0_6, %c0_7] : memref<32x6xbf16, #tpu.memory_space<vmem>>, vector<32x6xbf16>
    %cst_8 = arith.constant dense<0.000000e+00> : vector<2x6xf32>
    %11 = tpu.matmul %9, %10, %cst_8 {dimension_numbers = #tpu.dot_dimension_numbers<[1], [0], [0], [1], [0, 0, 1, 1], [], []>} : vector<2x32xbf16>, vector<32x6xbf16>, vector<2x6xf32> -> vector<2x6xf32>
    %c0_9 = arith.constant 0 : index
    %c0_10 = arith.constant 0 : index
    %12 = vector.load %arg5[%c0_9, %c0_10] : memref<1x6xf32, #tpu.memory_space<vmem>>, vector<1x6xf32>
    %13 = vector.broadcast %12 : vector<1x6xf32> to vector<2x6xf32>
    %14 = arith.addf %11, %13 : vector<2x6xf32>
    %c0_11 = arith.constant 0 : index
    %c0_12 = arith.constant 0 : index
    %15 = vector.load %arg6[%c0_11, %c0_12] : memref<2x6xf32, #tpu.memory_space<vmem>>, vector<2x6xf32>
    tpu.vector_store %arg6[%c0_11, %c0_12], %14 {strides = array<i32>} : memref<2x6xf32, #tpu.memory_space<vmem>>, vector<2x6xf32>,
    return
  }
  func.func @transform_0(%arg0: i32) -> (i32, i32) {
    %c0_i32 = arith.constant 0 : i32
    %c0_i32_0 = arith.constant 0 : i32
    %c0_i32_1 = arith.constant 0 : i32
    return %c0_i32, %c0_i32_0 : i32, i32
  }
  func.func @transform_1(%arg0: i32) -> (i32, i32) {
    %c0_i32 = arith.constant 0 : i32
    %c0_i32_0 = arith.constant 0 : i32
    %c0_i32_1 = arith.constant 0 : i32
    return %c0_i32, %c0_i32_0 : i32, i32
  }
  func.func @transform_2(%arg0: i32) -> (i32, i32) {
    %c0_i32 = arith.constant 0 : i32
    %c0_i32_0 = arith.constant 0 : i32
    %c0_i32_1 = arith.constant 0 : i32
    return %c0_i32, %c0_i32_0 : i32, i32
  }
  func.func @transform_3(%arg0: i32) -> (i32, i32) {
    %c0_i32 = arith.constant 0 : i32
    %c0_i32_0 = arith.constant 0 : i32
    %c0_i32_1 = arith.constant 0 : i32
    return %c0_i32, %c0_i32_0 : i32, i32
  }
  func.func @transform_4(%arg0: i32) -> (i32, i32) {
    %c0_i32 = arith.constant 0 : i32
    %c0_i32_0 = arith.constant 0 : i32
    %c0_i32_1 = arith.constant 0 : i32
    return %c0_i32, %c0_i32_0 : i32, i32
  }
  func.func @transform_5(%arg0: i32) -> (i32, i32) {
    %c0_i32 = arith.constant 0 : i32
    %c0_i32_0 = arith.constant 0 : i32
    %c0_i32_1 = arith.constant 0 : i32
    return %c0_i32, %c0_i32_0 : i32, i32
  }
}

</mosaic_0001>

<llo_original>
// kernel: dqn_forward.4
$region0: #{dqn_forward.4}
  #allocation0 [shape = 'u32[]', space=smem, size = 0x4, offset = 0x4, fixed_abs, tag = 'smem constant byte address 0x4 - core index']
  #allocation1 [shape = 'u32[144,128]{1,0:T(1,128)}', space=vmem, size = 0x12000, scoped, tag = 'internal scratch']
  %s0 = inlined_call_operand.vmem [shape: f32[2,448,64], index: 0, kind: input, shape index: {}]
  %s1 = inlined_call_operand.vmem [shape: bf16[4,64,32], index: 1, kind: input, shape index: {}]
  %s2 = inlined_call_operand.vmem [shape: f32[1,32], index: 2, kind: input, shape index: {}]
  %s3 = inlined_call_operand.vmem [shape: f32[2,420,32], index: 3, kind: output, shape index: {}]
  %s4 = sld [smem:[#allocation0]]
  $region45: #{dqn_forward.4} parent=0
    _
  %s6 = ssub.s32 1, %s4
  %s7 = scalar_select 0, %s6, %s4
  loop: start=0, step=1, limit=4
  $region2: #{dqn_forward.4} parent=0 // loop_pre_header
    _
  $region3: #{dqn_forward.4} parent=0 // loop_header
    %s9 = sphi 0, %s13
    %p10 = scmp.ge.s32.totalorder %s9, 4
    %s19 = sphi 0, %s21
    %s22 = sphi 0, %s19
    %s23 = sphi 0, %s22
    %s39 = sphi 0, %s23
    %s43 = sphi 0, %s43
    %s45 = sphi 0, %s43
    %s46 = sphi 0, %s45
    %s60 = sphi 0, %s46
    %s64 = sphi 0, %s64
    %s66 = sphi 0, %s64
    %s67 = sphi 0, %s66
    %s81 = sphi 0, %s67
    %s87 = sphi 0, %s89
    %s90 = sphi 0, %s87
    %s91 = sphi 0, %s90
    %s107 = sphi 0, %s91
  $region4: #{dqn_forward.4} parent=0 // loop_header_branch
    %12 = sbr.rel (%p10) target = $region8
  $region5: #{dqn_forward.4} parent=0 // loop_body
    %s14 = ssub.s32 %s9, 1
    %s15 = ssub.s32 %s9, 2
    %s16 = sadd.s32 %s9, 1
    %s17 = ssub.s32 %s9, %s16
    %p18 = scmp.eq.s32.totalorder %s17, 0
    %s20 = sadd.s32 %s19, 1
    %s21 = scalar_select %p18, %s19, %s20
    %p24 = pneg %p18
    %p25 = scmp.eq.s32.totalorder %s9, 1
    %p26 = por %p24, %p25
    %p27 = scmp.ne.s32.totalorder %s19, %s22
    %p28 = scmp.eq.s32.totalorder %s9, 0
    %p29 = por %p27, %p28
    %p30 = scmp.ne.s32.totalorder %s19, %s22
    %p31 = scmp.eq.s32.totalorder %s14, 1
    %p32 = por %p30, %p31
    %p33 = scmp.ne.s32.totalorder %s22, %s23
    %p34 = scmp.eq.s32.totalorder %s14, 0
    %p35 = por %p33, %p34
    %p36 = scmp.ne.s32.totalorder %s22, %s23
    %p37 = scmp.eq.s32.totalorder %s15, 1
    %p38 = por %p36, %p37
    %p40 = scmp.ne.s32.totalorder %s23, %s39
    %p41 = scmp.eq.s32.totalorder %s15, 0
    %p42 = por %p40, %p41
    %s44 = sadd.s32 %s43, 1
    %p47 = scmp.eq.s32.totalorder %s9, 1
    %p48 = scmp.ne.s32.totalorder %s43, %s45
    %p49 = scmp.eq.s32.totalorder %s9, 0
    %p50 = por %p48, %p49
    %p51 = scmp.ne.s32.totalorder %s43, %s45
    %p52 = scmp.eq.s32.totalorder %s14, 1
    %p53 = por %p51, %p52
    %p54 = scmp.ne.s32.totalorder %s45, %s46
    %p55 = scmp.eq.s32.totalorder %s14, 0
    %p56 = por %p54, %p55
    %p57 = scmp.ne.s32.totalorder %s45, %s46
    %p58 = scmp.eq.s32.totalorder %s15, 1
    %p59 = por %p57, %p58
    %p61 = scmp.ne.s32.totalorder %s46, %s60
    %p62 = scmp.eq.s32.totalorder %s15, 0
    %p63 = por %p61, %p62
    %s65 = sadd.s32 %s64, 1
    %p68 = scmp.eq.s32.totalorder %s9, 1
    %p69 = scmp.ne.s32.totalorder %s64, %s66
    %p70 = scmp.eq.s32.totalorder %s9, 0
    %p71 = por %p69, %p70
    %p72 = scmp.ne.s32.totalorder %s64, %s66
    %p73 = scmp.eq.s32.totalorder %s14, 1
    %p74 = por %p72, %p73
    %p75 = scmp.ne.s32.totalorder %s66, %s67
    %p76 = scmp.eq.s32.totalorder %s14, 0
    %p77 = por %p75, %p76
    %p78 = scmp.ne.s32.totalorder %s66, %s67
    %p79 = scmp.eq.s32.totalorder %s15, 1
    %p80 = por %p78, %p79
    %p82 = scmp.ne.s32.totalorder %s67, %s81
    %p83 = scmp.eq.s32.totalorder %s15, 0
    %p84 = por %p82, %p83
    %s85 = ssub.s32 %s9, %s16
    %p86 = scmp.eq.s32.totalorder %s85, 0
    %s88 = sadd.s32 %s87, 1
    %s89 = scalar_select %p86, %s87, %s88
    %p92 = pneg %p86
    %p93 = scmp.eq.s32.totalorder %s9, 1
    %p94 = por %p92, %p93
    %p95 = scmp.ne.s32.totalorder %s87, %s90
    %p96 = scmp.eq.s32.totalorder %s9, 0
    %p97 = por %p95, %p96
    %p98 = scmp.ne.s32.totalorder %s87, %s90
    %p99 = scmp.eq.s32.totalorder %s14, 1
    %p100 = por %p98, %p99
    %p101 = scmp.ne.s32.totalorder %s90, %s91
    %p102 = scmp.eq.s32.totalorder %s14, 0
    %p103 = por %p101, %p102
    %p104 = scmp.ne.s32.totalorder %s90, %s91
    %p105 = scmp.eq.s32.totalorder %s15, 1
    %p106 = por %p104, %p105
    %p108 = scmp.ne.s32.totalorder %s91, %s107
    %p109 = scmp.eq.s32.totalorder %s15, 0
    %p110 = por %p108, %p109
    %p111 = scmp.le.s32.totalorder 1, %s9
    %p112 = scmp.lt.s32.totalorder %s9, 3
    %p113 = pnand %p111, %p112
    %p114 = pneg %p113
    // Predicated region
    $region9: #{dqn_forward.4} parent=5 // pred_check
      _
    $region10: #{dqn_forward.4} parent=5 // pred_check_branch
      %116 = sbr.rel (%p113) target = $region12
    $region11: #{dqn_forward.4} parent=5 // pred_region
      %s117 = ssub.s32 %s9, 1
      // Predicated region
      $region13: #{dqn_forward.4} parent=11 // pred_check
        %p118 = pneg %p56
      $region14: #{dqn_forward.4} parent=11 // pred_check_branch
        %120 = sbr.rel (%p118) target = $region16
      $region15: #{dqn_forward.4} parent=11 // pred_region
        _
      $region16: #{dqn_forward.4} parent=11 // pred_fallthru
        _
      // Predicated region
      $region17: #{dqn_forward.4} parent=11 // pred_check
        %p121 = pneg %p77
      $region18: #{dqn_forward.4} parent=11 // pred_check_branch
        %123 = sbr.rel (%p121) target = $region20
      $region19: #{dqn_forward.4} parent=11 // pred_region
        _
      $region20: #{dqn_forward.4} parent=11 // pred_fallthru
        _
    $region12: #{dqn_forward.4} parent=5 // pred_fallthru
      _
    %p124 = scmp.lt.s32.totalorder %s9, 2
    // Predicated region
    $region21: #{dqn_forward.4} parent=5 // pred_check
      %p125 = pneg %p124
    $region22: #{dqn_forward.4} parent=5 // pred_check_branch
      %127 = sbr.rel (%p125) target = $region24
    $region23: #{dqn_forward.4} parent=5 // pred_region
      // Predicated region
      $region25: #{dqn_forward.4} parent=23 // pred_check
        %p128 = pneg %p29
      $region26: #{dqn_forward.4} parent=23 // pred_check_branch
        %130 = sbr.rel (%p128) target = $region28
      $region27: #{dqn_forward.4} parent=23 // pred_region
        %p131 = scmp.lt.s32.totalorder %s9, 1
        %s132 = scalar_select %p131, %s9, 1
        %s133 = smul.addr %s132, 56
        %s134 = smul.addr %s133, 8
        %s135 = scalar_lea.vmem %s0, %s134
      $region28: #{dqn_forward.4} parent=23 // pred_fallthru
        _
    $region24: #{dqn_forward.4} parent=5 // pred_fallthru
      _
    %p136 = scmp.le.s32.totalorder 1, %s9
    %p137 = scmp.lt.s32.totalorder %s9, 3
    %p138 = pnand %p136, %p137
    %p139 = pneg %p138
    // Predicated region
    $region29: #{dqn_forward.4} parent=5 // pred_check
      _
    $region30: #{dqn_forward.4} parent=5 // pred_check_branch
      %141 = sbr.rel (%p138) target = $region32
    $region31: #{dqn_forward.4} parent=5 // pred_region
      %s142 = ssub.s32 %s9, 1
      %p143 = scmp.lt.s32.totalorder %s14, 1
      %s144 = scalar_select %p143, %s14, 1
      %s145 = smul.addr %s144, 56
      %s146 = smul.addr %s145, 8
      %s147 = scalar_lea.vmem %s0, %s146
      %p148 = pneg %p35
      %p149 = pneg %p32
      %p150 = pneg %p56
      %p151 = pneg %p53
      %p152 = pneg %p77
      %p153 = pneg %p74
      %p154 = pneg %p103
      %p155 = pneg %p100
      %p156 = scmp.lt.s32.totalorder %s14, 1
      %s157 = scalar_select %p156, %s14, 1
      %s158 = smul.addr %s157, 53
      %s159 = smul.addr %s158, 8
      %s160 = scalar_lea.vmem %s3, %s159
      %p161 = scmp.lt.s32.totalorder %s14, 1
      %s162 = scalar_select %p161, %s14, 1
      %s163 = smul.addr %s162, 56
      %s164 = smul.addr %s163, 8
      %s165 = scalar_lea.vmem %s0, %s164
      %p166 = scmp.lt.s32.totalorder %s14, 1
      %s167 = scalar_select %p166, %s14, 1
      %s168 = smul.addr %s167, 53
      %s169 = smul.addr %s168, 8
      %s170 = scalar_lea.vmem %s3, %s169
      %v172 = vld [vmem:[%s165] sm:$0xff]
      %v173 = vld [vmem:[%s165 + $0x8] sm:$0xff]
      %v174 = vld [vmem:[%s165 + $0x10] sm:$0xff]
      %v175 = vld [vmem:[%s165 + $0x18] sm:$0xff]
      %v176 = vld [vmem:[%s165 + $0x20] sm:$0xff]
      %v177 = vld [vmem:[%s165 + $0x28] sm:$0xff]
      %v178 = vld [vmem:[%s165 + $0x30] sm:$0xff]
      %v179 = vld [vmem:[%s165 + $0x38] sm:$0xff]
      %v180 = vld [vmem:[%s165 + $0x40] sm:$0xff]
      %v181 = vld [vmem:[%s165 + $0x48] sm:$0xff]
      %v182 = vld [vmem:[%s165 + $0x50] sm:$0xff]
      %v183 = vld [vmem:[%s165 + $0x58] sm:$0xff]
      %v184 = vld [vmem:[%s165 + $0x60] sm:$0xff]
      %v185 = vld [vmem:[%s165 + $0x68] sm:$0xff]
      %v186 = vld [vmem:[%s165 + $0x70] sm:$0xff]
      %v187 = vld [vmem:[%s165 + $0x78] sm:$0xff]
      %v188 = vld [vmem:[%s165 + $0x80] sm:$0xff]
      %v189 = vld [vmem:[%s165 + $0x88] sm:$0xff]
      %v190 = vld [vmem:[%s165 + $0x90] sm:$0xff]
      %v191 = vld [vmem:[%s165 + $0x98] sm:$0xff]
      %v192 = vld [vmem:[%s165 + $0xa0] sm:$0xff]
      %v193 = vld [vmem:[%s165 + $0xa8] sm:$0xff]
      %v194 = vld [vmem:[%s165 + $0xb0] sm:$0xff]
      %v195 = vld [vmem:[%s165 + $0xb8] sm:$0xff]
      %v196 = vld [vmem:[%s165 + $0xc0] sm:$0xff]
      %v197 = vld [vmem:[%s165 + $0xc8] sm:$0xff]
      %v198 = vld [vmem:[%s165 + $0xd0] sm:$0xff]
      %v199 = vld [vmem:[%s165 + $0xd8] sm:$0xff]
      %v200 = vld [vmem:[%s165 + $0xe0] sm:$0xff]
      %v201 = vld [vmem:[%s165 + $0xe8] sm:$0xff]
      %v202 = vld [vmem:[%s165 + $0xf0] sm:$0xff]
      %v203 = vld [vmem:[%s165 + $0xf8] sm:$0xff]
      %v204 = vld [vmem:[%s165 + $0x100] sm:$0xff]
      %v205 = vld [vmem:[%s165 + $0x108] sm:$0xff]
      %v206 = vld [vmem:[%s165 + $0x110] sm:$0xff]
      %v207 = vld [vmem:[%s165 + $0x118] sm:$0xff]
      %v208 = vld [vmem:[%s165 + $0x120] sm:$0xff]
      %v209 = vld [vmem:[%s165 + $0x128] sm:$0xff]
      %v210 = vld [vmem:[%s165 + $0x130] sm:$0xff]
      %v211 = vld [vmem:[%s165 + $0x138] sm:$0xff]
      %v212 = vld [vmem:[%s165 + $0x140] sm:$0xff]
      %v213 = vld [vmem:[%s165 + $0x148] sm:$0xff]
      %v214 = vld [vmem:[%s165 + $0x150] sm:$0xff]
      %v215 = vld [vmem:[%s165 + $0x158] sm:$0xff]
      %v216 = vld [vmem:[%s165 + $0x160] sm:$0xff]
      %v217 = vld [vmem:[%s165 + $0x168] sm:$0xff]
      %v218 = vld [vmem:[%s165 + $0x170] sm:$0xff]
      %v219 = vld [vmem:[%s165 + $0x178] sm:$0xff]
      %v220 = vld [vmem:[%s165 + $0x180] sm:$0xff]
      %v221 = vld [vmem:[%s165 + $0x188] sm:$0xff]
      %v222 = vld [vmem:[%s165 + $0x190] sm:$0xff]
      %v223 = vld [vmem:[%s165 + $0x198] sm:$0xff]
      %v224 = vld [vmem:[%s165 + $0x1a0] sm:$0xf]
      %v225 = vpack.c.bf16 %v173, %v172
      %v226 = vpack.c.bf16 %v175, %v174
      %v227 = vpack.c.bf16 %v177, %v176
      %v228 = vpack.c.bf16 %v179, %v178
      %v229 = vpack.c.bf16 %v181, %v180
      %v230 = vpack.c.bf16 %v183, %v182
      %v231 = vpack.c.bf16 %v185, %v184
      %v232 = vpack.c.bf16 %v187, %v186
      %v233 = vpack.c.bf16 %v189, %v188
      %v234 = vpack.c.bf16 %v191, %v190
      %v235 = vpack.c.bf16 %v193, %v192
      %v236 = vpack.c.bf16 %v195, %v194
      %v237 = vpack.c.bf16 %v197, %v196
      %v238 = vpack.c.bf16 %v199, %v198
      %v239 = vpack.c.bf16 %v201, %v200
      %v240 = vpack.c.bf16 %v203, %v202
      %v241 = vpack.c.bf16 %v205, %v204
      %v242 = vpack.c.bf16 %v207, %v206
      %v243 = vpack.c.bf16 %v209, %v208
      %v244 = vpack.c.bf16 %v211, %v210
      %v245 = vpack.c.bf16 %v213, %v212
      %v246 = vpack.c.bf16 %v215, %v214
      %v247 = vpack.c.bf16 %v217, %v216
      %v248 = vpack.c.bf16 %v219, %v218
      %v249 = vpack.c.bf16 %v221, %v220
      %v250 = vpack.c.bf16 %v223, %v222
      %v251 = vpack.c.bf16 %v224, %v224
      %v252 = vld [vmem:[%s1] sm:$0xf]
      %v253 = vld [vmem:[%s1 + $0x4] sm:$0xf]
      %v254 = vld [vmem:[%s1 + $0x8] sm:$0xf]
      %v255 = vld [vmem:[%s1 + $0xc] sm:$0xf]
      %v256 = vld [vmem:[%s1 + $0x10] sm:$0xf]
      %v257 = vld [vmem:[%s1 + $0x14] sm:$0xf]
      %v258 = vld [vmem:[%s1 + $0x18] sm:$0xf]
      %v259 = vld [vmem:[%s1 + $0x1c] sm:$0xf]
      %v260 = vld [vmem:[%s165 + $0x1] sm:$0xff]
      %v261 = vld [vmem:[%s165 + $0x9] sm:$0xff]
      %v262 = vld [vmem:[%s165 + $0x11] sm:$0xff]
      %v263 = vld [vmem:[%s165 + $0x19] sm:$0xff]
      %v264 = vld [vmem:[%s165 + $0x21] sm:$0xff]
      %v265 = vld [vmem:[%s165 + $0x29] sm:$0xff]
      %v266 = vld [vmem:[%s165 + $0x31] sm:$0xff]
      %v267 = vld [vmem:[%s165 + $0x39] sm:$0xff]
      %v268 = vld [vmem:[%s165 + $0x41] sm:$0xff]
      %v269 = vld [vmem:[%s165 + $0x49] sm:$0xff]
      %v270 = vld [vmem:[%s165 + $0x51] sm:$0xff]
      %v271 = vld [vmem:[%s165 + $0x59] sm:$0xff]
      %v272 = vld [vmem:[%s165 + $0x61] sm:$0xff]
      %v273 = vld [vmem:[%s165 + $0x69] sm:$0xff]
      %v274 = vld [vmem:[%s165 + $0x71] sm:$0xff]
      %v275 = vld [vmem:[%s165 + $0x79] sm:$0xff]
      %v276 = vld [vmem:[%s165 + $0x81] sm:$0xff]
      %v277 = vld [vmem:[%s165 + $0x89] sm:$0xff]
      %v278 = vld [vmem:[%s165 + $0x91] sm:$0xff]
      %v279 = vld [vmem:[%s165 + $0x99] sm:$0xff]
      %v280 = vld [vmem:[%s165 + $0xa1] sm:$0xff]
      %v281 = vld [vmem:[%s165 + $0xa9] sm:$0xff]
      %v282 = vld [vmem:[%s165 + $0xb1] sm:$0xff]
      %v283 = vld [vmem:[%s165 + $0xb9] sm:$0xff]
      %v284 = vld [vmem:[%s165 + $0xc1] sm:$0xff]
      %v285 = vld [vmem:[%s165 + $0xc9] sm:$0xff]
      %v286 = vld [vmem:[%s165 + $0xd1] sm:$0xff]
      %v287 = vld [vmem:[%s165 + $0xd9] sm:$0xff]
      %v288 = vld [vmem:[%s165 + $0xe1] sm:$0xff]
      %v289 = vld [vmem:[%s165 + $0xe9] sm:$0xff]
      %v290 = vld [vmem:[%s165 + $0xf1] sm:$0xff]
      %v291 = vld [vmem:[%s165 + $0xf9] sm:$0xff]
      %v292 = vld [vmem:[%s165 + $0x101] sm:$0xff]
      %v293 = vld [vmem:[%s165 + $0x109] sm:$0xff]
      %v294 = vld [vmem:[%s165 + $0x111] sm:$0xff]
      %v295 = vld [vmem:[%s165 + $0x119] sm:$0xff]
      %v296 = vld [vmem:[%s165 + $0x121] sm:$0xff]
      %v297 = vld [vmem:[%s165 + $0x129] sm:$0xff]
      %v298 = vld [vmem:[%s165 + $0x131] sm:$0xff]
      %v299 = vld [vmem:[%s165 + $0x139] sm:$0xff]
      %v300 = vld [vmem:[%s165 + $0x141] sm:$0xff]
      %v301 = vld [vmem:[%s165 + $0x149] sm:$0xff]
      %v302 = vld [vmem:[%s165 + $0x151] sm:$0xff]
      %v303 = vld [vmem:[%s165 + $0x159] sm:$0xff]
      %v304 = vld [vmem:[%s165 + $0x161] sm:$0xff]
      %v305 = vld [vmem:[%s165 + $0x169] sm:$0xff]
      %v306 = vld [vmem:[%s165 + $0x171] sm:$0xff]
      %v307 = vld [vmem:[%s165 + $0x179] sm:$0xff]
      %v308 = vld [vmem:[%s165 + $0x181] sm:$0xff]
      %v309 = vld [vmem:[%s165 + $0x189] sm:$0xff]
      %v310 = vld [vmem:[%s165 + $0x191] sm:$0xff]
      %v311 = vld [vmem:[%s165 + $0x199] sm:$0xff]
      %v312 = vld [vmem:[%s165 + $0x1a1] sm:$0xf]
      %v313 = vpack.c.bf16 %v261, %v260
      %v314 = vpack.c.bf16 %v263, %v262
      %v315 = vpack.c.bf16 %v265, %v264
      %v316 = vpack.c.bf16 %v267, %v266
      %v317 = vpack.c.bf16 %v269, %v268
      %v318 = vpack.c.bf16 %v271, %v270
      %v319 = vpack.c.bf16 %v273, %v272
      %v320 = vpack.c.bf16 %v275, %v274
      %v321 = vpack.c.bf16 %v277, %v276
      %v322 = vpack.c.bf16 %v279, %v278
      %v323 = vpack.c.bf16 %v281, %v280
      %v324 = vpack.c.bf16 %v283, %v282
      %v325 = vpack.c.bf16 %v285, %v284
      %v326 = vpack.c.bf16 %v287, %v286
      %v327 = vpack.c.bf16 %v289, %v288
      %v328 = vpack.c.bf16 %v291, %v290
      %v329 = vpack.c.bf16 %v293, %v292
      %v330 = vpack.c.bf16 %v295, %v294
      %v331 = vpack.c.bf16 %v297, %v296
      %v332 = vpack.c.bf16 %v299, %v298
      %v333 = vpack.c.bf16 %v301, %v300
      %v334 = vpack.c.bf16 %v303, %v302
      %v335 = vpack.c.bf16 %v305, %v304
      %v336 = vpack.c.bf16 %v307, %v306
      %v337 = vpack.c.bf16 %v309, %v308
      %v338 = vpack.c.bf16 %v311, %v310
      %v339 = vpack.c.bf16 %v312, %v312
      %s340 = scalar_lea.vmem %s1, 32
      %v341 = vld [vmem:[%s340] sm:$0xf]
      %v342 = vld [vmem:[%s340 + $0x4] sm:$0xf]
      %v343 = vld [vmem:[%s340 + $0x8] sm:$0xf]
      %v344 = vld [vmem:[%s340 + $0xc] sm:$0xf]
      %v345 = vld [vmem:[%s340 + $0x10] sm:$0xf]
      %v346 = vld [vmem:[%s340 + $0x14] sm:$0xf]
      %v347 = vld [vmem:[%s340 + $0x18] sm:$0xf]
      %v348 = vld [vmem:[%s340 + $0x1c] sm:$0xf]
      %v357 = vunpack.c.l.b16 %v341
      %v358 = vunpack.c.l.b16 %v342
      %v359 = vunpack.c.l.b16 %v343
      %v360 = vunpack.c.l.b16 %v344
      %v361 = vunpack.c.l.b16 %v345
      %v362 = vunpack.c.l.b16 %v346
      %v363 = vunpack.c.l.b16 %v347
      %v364 = vunpack.c.l.b16 %v348
      %v365 = vpack.c.b16 %v358, %v357
      %v366 = vpack.c.b16 %v360, %v359
      %v367 = vpack.c.b16 %v362, %v361
      %v368 = vpack.c.b16 %v364, %v363
      %vm373 = vcmask 523264
      %v375 = vsel %vm373, %v313, 0
      %v378 = vsel %vm373, %v314, 0
      %v381 = vsel %vm373, %v315, 0
      %v384 = vsel %vm373, %v316, 0
      %v387 = vsel %vm373, %v317, 0
      %v390 = vsel %vm373, %v318, 0
      %v393 = vsel %vm373, %v319, 0
      %v396 = vsel %vm373, %v320, 0
      %v399 = vsel %vm373, %v321, 0
      %v402 = vsel %vm373, %v322, 0
      %v405 = vsel %vm373, %v323, 0
      %v408 = vsel %vm373, %v324, 0
      %v411 = vsel %vm373, %v325, 0
      %v414 = vsel %vm373, %v326, 0
      %v417 = vsel %vm373, %v327, 0
      %v420 = vsel %vm373, %v328, 0
      %v423 = vsel %vm373, %v329, 0
      %v426 = vsel %vm373, %v330, 0
      %v429 = vsel %vm373, %v331, 0
      %v432 = vsel %vm373, %v332, 0
      %v435 = vsel %vm373, %v333, 0
      %v438 = vsel %vm373, %v334, 0
      %v441 = vsel %vm373, %v335, 0
      %v444 = vsel %vm373, %v336, 0
      %v447 = vsel %vm373, %v337, 0
      %v450 = vsel %vm373, %v338, 0
      %v453 = vsel %vm373, %v339, 0
      %455 = vmatprep.subr.bf16.mxu0 0
      %456 = vmatpush1.bf16.msra.mxu0 0
      %457 = vmatprep.subr.bf16.mxu0 0
      %458 = vmatpush1.bf16.msra.mxu0 0
      %459 = vmatprep.subr.bf16.mxu0 0
      %460 = vmatpush1.bf16.msra.mxu0 0
      %461 = vmatprep.subr.bf16.mxu0 0
      %462 = vmatpush1.bf16.msra.mxu0 0
      %463 = vmatprep.subr.bf16.mxu0 0
      %464 = vmatpush1.bf16.msra.mxu0 %v368
      %465 = vmatprep.subr.bf16.mxu0 0
      %466 = vmatpush1.bf16.msra.mxu0 %v367
      %467 = vmatprep.subr.bf16.mxu0 0
      %468 = vmatpush1.bf16.msra.mxu0 %v366
      %469 = vmatprep.subr.bf16.mxu0 0
      %470 = vmatpush1.bf16.msra.mxu0 %v365
      %471 = vmatprep.subr.bf16.mxu0 0
      %472 = vmatpush2.bf16.msra.mxu0 0
      %473 = vmatprep.subr.bf16.mxu0 0
      %474 = vmatpush2.bf16.msra.mxu0 0
      %475 = vmatprep.subr.bf16.mxu0 0
      %476 = vmatpush2.bf16.msra.mxu0 0
      %477 = vmatprep.subr.bf16.mxu0 0
      %478 = vmatpush2.bf16.msra.mxu0 0
      %479 = vmatprep.subr.bf16.mxu0 0
      %480 = vmatpush2.bf16.msra.mxu0 0
      %481 = vmatprep.subr.bf16.mxu0 0
      %482 = vmatpush2.bf16.msra.mxu0 0
      %483 = vmatprep.subr.bf16.mxu0 0
      %484 = vmatpush2.bf16.msra.mxu0 0
      %485 = vmatprep.subr.bf16.mxu0 0
      %486 = vmatpush2.bf16.msra.mxu0 0
      %487 = vmatprep.mubr.bf16.mxu0 0
      %488 = vmatmul.mubr.bf16.gmra.mxu0 %v375
      %v489 = vpop.f32.mrf.mxu0
      %v490 = vadd.f32 0.0, %v489
      %v491 = vpop.f32.mrf.mxu0
      %v492 = vpop.f32.mrf.mxu0
      %v493 = vadd.f32 0.0, %v492
      %v494 = vpop.f32.mrf.mxu0
      %495 = vmatprep.mubr.bf16.mxu0 0
      %496 = vmatmul.mubr.bf16.gmra.mxu0 %v378
      %v497 = vpop.f32.mrf.mxu0
      %v498 = vadd.f32 0.0, %v497
      %v499 = vpop.f32.mrf.mxu0
      %v500 = vpop.f32.mrf.mxu0
      %v501 = vadd.f32 0.0, %v500
      %v502 = vpop.f32.mrf.mxu0
      %503 = vmatprep.mubr.bf16.mxu0 0
      %504 = vmatmul.mubr.bf16.gmra.mxu0 %v381
      %v505 = vpop.f32.mrf.mxu0
      %v506 = vadd.f32 0.0, %v505
      %v507 = vpop.f32.mrf.mxu0
      %v508 = vpop.f32.mrf.mxu0
      %v509 = vadd.f32 0.0, %v508
      %v510 = vpop.f32.mrf.mxu0
      %511 = vmatprep.mubr.bf16.mxu0 0
      %512 = vmatmul.mubr.bf16.gmra.mxu0 %v384
      %v513 = vpop.f32.mrf.mxu0
      %v514 = vadd.f32 0.0, %v513
      %v515 = vpop.f32.mrf.mxu0
      %v516 = vpop.f32.mrf.mxu0
      %v517 = vadd.f32 0.0, %v516
      %v518 = vpop.f32.mrf.mxu0
      %519 = vmatprep.mubr.bf16.mxu0 0
      %520 = vmatmul.mubr.bf16.gmra.mxu0 %v387
      %v521 = vpop.f32.mrf.mxu0
      %v522 = vadd.f32 0.0, %v521
      %v523 = vpop.f32.mrf.mxu0
      %v524 = vpop.f32.mrf.mxu0
      %v525 = vadd.f32 0.0, %v524
      %v526 = vpop.f32.mrf.mxu0
      %527 = vmatprep.mubr.bf16.mxu0 0
      %528 = vmatmul.mubr.bf16.gmra.mxu0 %v390
      %v529 = vpop.f32.mrf.mxu0
      %v530 = vadd.f32 0.0, %v529
      %v531 = vpop.f32.mrf.mxu0
      %v532 = vpop.f32.mrf.mxu0
      %v533 = vadd.f32 0.0, %v532
      %v534 = vpop.f32.mrf.mxu0
      %535 = vmatprep.mubr.bf16.mxu0 0
      %536 = vmatmul.mubr.bf16.gmra.mxu0 %v393
      %v537 = vpop.f32.mrf.mxu0
      %v538 = vadd.f32 0.0, %v537
      %v539 = vpop.f32.mrf.mxu0
      %v540 = vpop.f32.mrf.mxu0
      %v541 = vadd.f32 0.0, %v540
      %v542 = vpop.f32.mrf.mxu0
      %543 = vmatprep.mubr.bf16.mxu0 0
      %544 = vmatmul.mubr.bf16.gmra.mxu0 %v396
      %v545 = vpop.f32.mrf.mxu0
      %v546 = vadd.f32 0.0, %v545
      %v547 = vpop.f32.mrf.mxu0
      %v548 = vpop.f32.mrf.mxu0
      %v549 = vadd.f32 0.0, %v548
      %v550 = vpop.f32.mrf.mxu0
      %551 = vmatprep.mubr.bf16.mxu0 0
      %552 = vmatmul.mubr.bf16.gmra.mxu0 %v399
      %v553 = vpop.f32.mrf.mxu0
      %v554 = vadd.f32 0.0, %v553
      %v555 = vpop.f32.mrf.mxu0
      %v556 = vpop.f32.mrf.mxu0
      %v557 = vadd.f32 0.0, %v556
      %v558 = vpop.f32.mrf.mxu0
      %559 = vmatprep.mubr.bf16.mxu0 0
      %560 = vmatmul.mubr.bf16.gmra.mxu0 %v402
      %v561 = vpop.f32.mrf.mxu0
      %v562 = vadd.f32 0.0, %v561
      %v563 = vpop.f32.mrf.mxu0
      %v564 = vpop.f32.mrf.mxu0
      %v565 = vadd.f32 0.0, %v564
      %v566 = vpop.f32.mrf.mxu0
      %567 = vmatprep.mubr.bf16.mxu0 0
      %568 = vmatmul.mubr.bf16.gmra.mxu0 %v405
      %v569 = vpop.f32.mrf.mxu0
      %v570 = vadd.f32 0.0, %v569
      %v571 = vpop.f32.mrf.mxu0
      %v572 = vpop.f32.mrf.mxu0
      %v573 = vadd.f32 0.0, %v572
      %v574 = vpop.f32.mrf.mxu0
      %575 = vmatprep.mubr.bf16.mxu0 0
      %576 = vmatmul.mubr.bf16.gmra.mxu0 %v408
      %v577 = vpop.f32.mrf.mxu0
      %v578 = vadd.f32 0.0, %v577
      %v579 = vpop.f32.mrf.mxu0
      %v580 = vpop.f32.mrf.mxu0
      %v581 = vadd.f32 0.0, %v580
      %v582 = vpop.f32.mrf.mxu0
      %583 = vmatprep.mubr.bf16.mxu0 0
      %584 = vmatmul.mubr.bf16.gmra.mxu0 %v411
      %v585 = vpop.f32.mrf.mxu0
      %v586 = vadd.f32 0.0, %v585
      %v587 = vpop.f32.mrf.mxu0
      %v588 = vpop.f32.mrf.mxu0
      %v589 = vadd.f32 0.0, %v588
      %v590 = vpop.f32.mrf.mxu0
      %591 = vmatprep.mubr.bf16.mxu0 0
      %592 = vmatmul.mubr.bf16.gmra.mxu0 %v414
      %v593 = vpop.f32.mrf.mxu0
      %v594 = vadd.f32 0.0, %v593
      %v595 = vpop.f32.mrf.mxu0
      %v596 = vpop.f32.mrf.mxu0
      %v597 = vadd.f32 0.0, %v596
      %v598 = vpop.f32.mrf.mxu0
      %599 = vmatprep.mubr.bf16.mxu0 0
      %600 = vmatmul.mubr.bf16.gmra.mxu0 %v417
      %v601 = vpop.f32.mrf.mxu0
      %v602 = vadd.f32 0.0, %v601
      %v603 = vpop.f32.mrf.mxu0
      %v604 = vpop.f32.mrf.mxu0
      %v605 = vadd.f32 0.0, %v604
      %v606 = vpop.f32.mrf.mxu0
      %607 = vmatprep.mubr.bf16.mxu0 0
      %608 = vmatmul.mubr.bf16.gmra.mxu0 %v420
      %v609 = vpop.f32.mrf.mxu0
      %v610 = vadd.f32 0.0, %v609
      %v611 = vpop.f32.mrf.mxu0
      %v612 = vpop.f32.mrf.mxu0
      %v613 = vadd.f32 0.0, %v612
      %v614 = vpop.f32.mrf.mxu0
      %615 = vmatprep.mubr.bf16.mxu0 0
      %616 = vmatmul.mubr.bf16.gmra.mxu0 %v423
      %v617 = vpop.f32.mrf.mxu0
      %v618 = vadd.f32 0.0, %v617
      %v619 = vpop.f32.mrf.mxu0
      %v620 = vpop.f32.mrf.mxu0
      %v621 = vadd.f32 0.0, %v620
      %v622 = vpop.f32.mrf.mxu0
      %623 = vmatprep.mubr.bf16.mxu0 0
      %624 = vmatmul.mubr.bf16.gmra.mxu0 %v426
      %v625 = vpop.f32.mrf.mxu0
      %v626 = vadd.f32 0.0, %v625
      %v627 = vpop.f32.mrf.mxu0
      %v628 = vpop.f32.mrf.mxu0
      %v629 = vadd.f32 0.0, %v628
      %v630 = vpop.f32.mrf.mxu0
      %631 = vmatprep.mubr.bf16.mxu0 0
      %632 = vmatmul.mubr.bf16.gmra.mxu0 %v429
      %v633 = vpop.f32.mrf.mxu0
      %v634 = vadd.f32 0.0, %v633
      %v635 = vpop.f32.mrf.mxu0
      %v636 = vpop.f32.mrf.mxu0
      %v637 = vadd.f32 0.0, %v636
      %v638 = vpop.f32.mrf.mxu0
      %639 = vmatprep.mubr.bf16.mxu0 0
      %640 = vmatmul.mubr.bf16.gmra.mxu0 %v432
      %v641 = vpop.f32.mrf.mxu0
      %v642 = vadd.f32 0.0, %v641
      %v643 = vpop.f32.mrf.mxu0
      %v644 = vpop.f32.mrf.mxu0
      %v645 = vadd.f32 0.0, %v644
      %v646 = vpop.f32.mrf.mxu0
      %647 = vmatprep.mubr.bf16.mxu0 0
      %648 = vmatmul.mubr.bf16.gmra.mxu0 %v435
      %v649 = vpop.f32.mrf.mxu0
      %v650 = vadd.f32 0.0, %v649
      %v651 = vpop.f32.mrf.mxu0
      %v652 = vpop.f32.mrf.mxu0
      %v653 = vadd.f32 0.0, %v652
      %v654 = vpop.f32.mrf.mxu0
      %655 = vmatprep.mubr.bf16.mxu0 0
      %656 = vmatmul.mubr.bf16.gmra.mxu0 %v438
      %v657 = vpop.f32.mrf.mxu0
      %v658 = vadd.f32 0.0, %v657
      %v659 = vpop.f32.mrf.mxu0
      %v660 = vpop.f32.mrf.mxu0
      %v661 = vadd.f32 0.0, %v660
      %v662 = vpop.f32.mrf.mxu0
      %663 = vmatprep.mubr.bf16.mxu0 0
      %664 = vmatmul.mubr.bf16.gmra.mxu0 %v441
      %v665 = vpop.f32.mrf.mxu0
      %v666 = vadd.f32 0.0, %v665
      %v667 = vpop.f32.mrf.mxu0
      %v668 = vpop.f32.mrf.mxu0
      %v669 = vadd.f32 0.0, %v668
      %v670 = vpop.f32.mrf.mxu0
      %671 = vmatprep.mubr.bf16.mxu0 0
      %672 = vmatmul.mubr.bf16.gmra.mxu0 %v444
      %v673 = vpop.f32.mrf.mxu0
      %v674 = vadd.f32 0.0, %v673
      %v675 = vpop.f32.mrf.mxu0
      %v676 = vpop.f32.mrf.mxu0
      %v677 = vadd.f32 0.0, %v676
      %v678 = vpop.f32.mrf.mxu0
      %679 = vmatprep.mubr.bf16.mxu0 0
      %680 = vmatmul.mubr.bf16.gmra.mxu0 %v447
      %v681 = vpop.f32.mrf.mxu0
      %v682 = vadd.f32 0.0, %v681
      %v683 = vpop.f32.mrf.mxu0
      %v684 = vpop.f32.mrf.mxu0
      %v685 = vadd.f32 0.0, %v684
      %v686 = vpop.f32.mrf.mxu0
      %687 = vmatprep.mubr.bf16.mxu0 0
      %688 = vmatmul.mubr.bf16.gmra.mxu0 %v450
      %v689 = vpop.f32.mrf.mxu0
      %v690 = vadd.f32 0.0, %v689
      %v691 = vpop.f32.mrf.mxu0
      %v692 = vpop.f32.mrf.mxu0
      %v693 = vadd.f32 0.0, %v692
      %v694 = vpop.f32.mrf.mxu0
      %695 = vmatprep.mubr.bf16.mxu0 0
      %696 = vmatmul.mubr.bf16.gmra.mxu0 %v453
      %v697 = vpop.f32.mrf.mxu0
      %v698 = vadd.f32 0.0, %v697
      %v699 = vpop.f32.mrf.mxu0
      %v700 = vpop.f32.mrf.mxu0
      %v701 = vpop.f32.mrf.mxu0
      %702 = vdwg.mxu0
      %v711 = vunpack.c.l.b16 %v252
      %v712 = vunpack.c.l.b16 %v253
      %v713 = vunpack.c.l.b16 %v254
      %v714 = vunpack.c.l.b16 %v255
      %v715 = vunpack.c.l.b16 %v256
      %v716 = vunpack.c.l.b16 %v257
      %v717 = vunpack.c.l.b16 %v258
      %v718 = vunpack.c.l.b16 %v259
      %v719 = vpack.c.b16 %v712, %v711
      %v720 = vpack.c.b16 %v714, %v713
      %v721 = vpack.c.b16 %v716, %v715
      %v722 = vpack.c.b16 %v718, %v717
      %v728 = vsel %vm373, %v225, 0
      %v731 = vsel %vm373, %v226, 0
      %v734 = vsel %vm373, %v227, 0
      %v737 = vsel %vm373, %v228, 0
      %v740 = vsel %vm373, %v229, 0
      %v743 = vsel %vm373, %v230, 0
      %v746 = vsel %vm373, %v231, 0
      %v749 = vsel %vm373, %v232, 0
      %v752 = vsel %vm373, %v233, 0
      %v755 = vsel %vm373, %v234, 0
      %v758 = vsel %vm373, %v235, 0
      %v761 = vsel %vm373, %v236, 0
      %v764 = vsel %vm373, %v237, 0
      %v767 = vsel %vm373, %v238, 0
      %v770 = vsel %vm373, %v239, 0
      %v773 = vsel %vm373, %v240, 0
      %v776 = vsel %vm373, %v241, 0
      %v779 = vsel %vm373, %v242, 0
      %v782 = vsel %vm373, %v243, 0
      %v785 = vsel %vm373, %v244, 0
      %v788 = vsel %vm373, %v245, 0
      %v791 = vsel %vm373, %v246, 0
      %v794 = vsel %vm373, %v247, 0
      %v797 = vsel %vm373, %v248, 0
      %v800 = vsel %vm373, %v249, 0
      %v803 = vsel %vm373, %v250, 0
      %v806 = vsel %vm373, %v251, 0
      %808 = vmatprep.subr.bf16.mxu0 0
      %809 = vmatpush1.bf16.msra.mxu0 0
      %810 = vmatprep.subr.bf16.mxu0 0
      %811 = vmatpush1.bf16.msra.mxu0 0
      %812 = vmatprep.subr.bf16.mxu0 0
      %813 = vmatpush1.bf16.msra.mxu0 0
      %814 = vmatprep.subr.bf16.mxu0 0
      %815 = vmatpush1.bf16.msra.mxu0 0
      %816 = vmatprep.subr.bf16.mxu0 0
      %817 = vmatpush1.bf16.msra.mxu0 %v722
      %818 = vmatprep.subr.bf16.mxu0 0
      %819 = vmatpush1.bf16.msra.mxu0 %v721
      %820 = vmatprep.subr.bf16.mxu0 0
      %821 = vmatpush1.bf16.msra.mxu0 %v720
      %822 = vmatprep.subr.bf16.mxu0 0
      %823 = vmatpush1.bf16.msra.mxu0 %v719
      %824 = vmatprep.subr.bf16.mxu0 0
      %825 = vmatpush2.bf16.msra.mxu0 0
      %826 = vmatprep.subr.bf16.mxu0 0
      %827 = vmatpush2.bf16.msra.mxu0 0
      %828 = vmatprep.subr.bf16.mxu0 0
      %829 = vmatpush2.bf16.msra.mxu0 0
      %830 = vmatprep.subr.bf16.mxu0 0
      %831 = vmatpush2.bf16.msra.mxu0 0
      %832 = vmatprep.subr.bf16.mxu0 0
      %833 = vmatpush2.bf16.msra.mxu0 0
      %834 = vmatprep.subr.bf16.mxu0 0
      %835 = vmatpush2.bf16.msra.mxu0 0
      %836 = vmatprep.subr.bf16.mxu0 0
      %837 = vmatpush2.bf16.msra.mxu0 0
      %838 = vmatprep.subr.bf16.mxu0 0
      %839 = vmatpush2.bf16.msra.mxu0 0
      %840 = vmatprep.mubr.bf16.mxu0 0
      %841 = vmatmul.mubr.bf16.gmra.mxu0 %v728
      %v842 = vpop.f32.mrf.mxu0
      %v843 = vadd.f32 %v490, %v842
      %v844 = vpop.f32.mrf.mxu0
      %v845 = vpop.f32.mrf.mxu0
      %v846 = vadd.f32 %v493, %v845
      %v847 = vpop.f32.mrf.mxu0
      %848 = vmatprep.mubr.bf16.mxu0 0
      %849 = vmatmul.mubr.bf16.gmra.mxu0 %v731
      %v850 = vpop.f32.mrf.mxu0
      %v851 = vadd.f32 %v498, %v850
      %v852 = vpop.f32.mrf.mxu0
      %v853 = vpop.f32.mrf.mxu0
      %v854 = vadd.f32 %v501, %v853
      %v855 = vpop.f32.mrf.mxu0
      %856 = vmatprep.mubr.bf16.mxu0 0
      %857 = vmatmul.mubr.bf16.gmra.mxu0 %v734
      %v858 = vpop.f32.mrf.mxu0
      %v859 = vadd.f32 %v506, %v858
      %v860 = vpop.f32.mrf.mxu0
      %v861 = vpop.f32.mrf.mxu0
      %v862 = vadd.f32 %v509, %v861
      %v863 = vpop.f32.mrf.mxu0
      %864 = vmatprep.mubr.bf16.mxu0 0
      %865 = vmatmul.mubr.bf16.gmra.mxu0 %v737
      %v866 = vpop.f32.mrf.mxu0
      %v867 = vadd.f32 %v514, %v866
      %v868 = vpop.f32.mrf.mxu0
      %v869 = vpop.f32.mrf.mxu0
      %v870 = vadd.f32 %v517, %v869
      %v871 = vpop.f32.mrf.mxu0
      %872 = vmatprep.mubr.bf16.mxu0 0
      %873 = vmatmul.mubr.bf16.gmra.mxu0 %v740
      %v874 = vpop.f32.mrf.mxu0
      %v875 = vadd.f32 %v522, %v874
      %v876 = vpop.f32.mrf.mxu0
      %v877 = vpop.f32.mrf.mxu0
      %v878 = vadd.f32 %v525, %v877
      %v879 = vpop.f32.mrf.mxu0
      %880 = vmatprep.mubr.bf16.mxu0 0
      %881 = vmatmul.mubr.bf16.gmra.mxu0 %v743
      %v882 = vpop.f32.mrf.mxu0
      %v883 = vadd.f32 %v530, %v882
      %v884 = vpop.f32.mrf.mxu0
      %v885 = vpop.f32.mrf.mxu0
      %v886 = vadd.f32 %v533, %v885
      %v887 = vpop.f32.mrf.mxu0
      %888 = vmatprep.mubr.bf16.mxu0 0
      %889 = vmatmul.mubr.bf16.gmra.mxu0 %v746
      %v890 = vpop.f32.mrf.mxu0
      %v891 = vadd.f32 %v538, %v890
      %v892 = vpop.f32.mrf.mxu0
      %v893 = vpop.f32.mrf.mxu0
      %v894 = vadd.f32 %v541, %v893
      %v895 = vpop.f32.mrf.mxu0
      %896 = vmatprep.mubr.bf16.mxu0 0
      %897 = vmatmul.mubr.bf16.gmra.mxu0 %v749
      %v898 = vpop.f32.mrf.mxu0
      %v899 = vadd.f32 %v546, %v898
      %v900 = vpop.f32.mrf.mxu0
      %v901 = vpop.f32.mrf.mxu0
      %v902 = vadd.f32 %v549, %v901
      %v903 = vpop.f32.mrf.mxu0
      %904 = vmatprep.mubr.bf16.mxu0 0
      %905 = vmatmul.mubr.bf16.gmra.mxu0 %v752
      %v906 = vpop.f32.mrf.mxu0
      %v907 = vadd.f32 %v554, %v906
      %v908 = vpop.f32.mrf.mxu0
      %v909 = vpop.f32.mrf.mxu0
      %v910 = vadd.f32 %v557, %v909
      %v911 = vpop.f32.mrf.mxu0
      %912 = vmatprep.mubr.bf16.mxu0 0
      %913 = vmatmul.mubr.bf16.gmra.mxu0 %v755
      %v914 = vpop.f32.mrf.mxu0
      %v915 = vadd.f32 %v562, %v914
      %v916 = vpop.f32.mrf.mxu0
      %v917 = vpop.f32.mrf.mxu0
      %v918 = vadd.f32 %v565, %v917
      %v919 = vpop.f32.mrf.mxu0
      %920 = vmatprep.mubr.bf16.mxu0 0
      %921 = vmatmul.mubr.bf16.gmra.mxu0 %v758
      %v922 = vpop.f32.mrf.mxu0
      %v923 = vadd.f32 %v570, %v922
      %v924 = vpop.f32.mrf.mxu0
      %v925 = vpop.f32.mrf.mxu0
      %v926 = vadd.f32 %v573, %v925
      %v927 = vpop.f32.mrf.mxu0
      %928 = vmatprep.mubr.bf16.mxu0 0
      %929 = vmatmul.mubr.bf16.gmra.mxu0 %v761
      %v930 = vpop.f32.mrf.mxu0
      %v931 = vadd.f32 %v578, %v930
      %v932 = vpop.f32.mrf.mxu0
      %v933 = vpop.f32.mrf.mxu0
      %v934 = vadd.f32 %v581, %v933
      %v935 = vpop.f32.mrf.mxu0
      %936 = vmatprep.mubr.bf16.mxu0 0
      %937 = vmatmul.mubr.bf16.gmra.mxu0 %v764
      %v938 = vpop.f32.mrf.mxu0
      %v939 = vadd.f32 %v586, %v938
      %v940 = vpop.f32.mrf.mxu0
      %v941 = vpop.f32.mrf.mxu0
      %v942 = vadd.f32 %v589, %v941
      %v943 = vpop.f32.mrf.mxu0
      %944 = vmatprep.mubr.bf16.mxu0 0
      %945 = vmatmul.mubr.bf16.gmra.mxu0 %v767
      %v946 = vpop.f32.mrf.mxu0
      %v947 = vadd.f32 %v594, %v946
      %v948 = vpop.f32.mrf.mxu0
      %v949 = vpop.f32.mrf.mxu0
      %v950 = vadd.f32 %v597, %v949
      %v951 = vpop.f32.mrf.mxu0
      %952 = vmatprep.mubr.bf16.mxu0 0
      %953 = vmatmul.mubr.bf16.gmra.mxu0 %v770
      %v954 = vpop.f32.mrf.mxu0
      %v955 = vadd.f32 %v602, %v954
      %v956 = vpop.f32.mrf.mxu0
      %v957 = vpop.f32.mrf.mxu0
      %v958 = vadd.f32 %v605, %v957
      %v959 = vpop.f32.mrf.mxu0
      %960 = vmatprep.mubr.bf16.mxu0 0
      %961 = vmatmul.mubr.bf16.gmra.mxu0 %v773
      %v962 = vpop.f32.mrf.mxu0
      %v963 = vadd.f32 %v610, %v962
      %v964 = vpop.f32.mrf.mxu0
      %v965 = vpop.f32.mrf.mxu0
      %v966 = vadd.f32 %v613, %v965
      %v967 = vpop.f32.mrf.mxu0
      %968 = vmatprep.mubr.bf16.mxu0 0
      %969 = vmatmul.mubr.bf16.gmra.mxu0 %v776
      %v970 = vpop.f32.mrf.mxu0
      %v971 = vadd.f32 %v618, %v970
      %v972 = vpop.f32.mrf.mxu0
      %v973 = vpop.f32.mrf.mxu0
      %v974 = vadd.f32 %v621, %v973
      %v975 = vpop.f32.mrf.mxu0
      %976 = vmatprep.mubr.bf16.mxu0 0
      %977 = vmatmul.mubr.bf16.gmra.mxu0 %v779
      %v978 = vpop.f32.mrf.mxu0
      %v979 = vadd.f32 %v626, %v978
      %v980 = vpop.f32.mrf.mxu0
      %v981 = vpop.f32.mrf.mxu0
      %v982 = vadd.f32 %v629, %v981
      %v983 = vpop.f32.mrf.mxu0
      %984 = vmatprep.mubr.bf16.mxu0 0
      %985 = vmatmul.mubr.bf16.gmra.mxu0 %v782
      %v986 = vpop.f32.mrf.mxu0
      %v987 = vadd.f32 %v634, %v986
      %v988 = vpop.f32.mrf.mxu0
      %v989 = vpop.f32.mrf.mxu0
      %v990 = vadd.f32 %v637, %v989
      %v991 = vpop.f32.mrf.mxu0
      %992 = vmatprep.mubr.bf16.mxu0 0
      %993 = vmatmul.mubr.bf16.gmra.mxu0 %v785
      %v994 = vpop.f32.mrf.mxu0
      %v995 = vadd.f32 %v642, %v994
      %v996 = vpop.f32.mrf.mxu0
      %v997 = vpop.f32.mrf.mxu0
      %v998 = vadd.f32 %v645, %v997
      %v999 = vpop.f32.mrf.mxu0
      %1000 = vmatprep.mubr.bf16.mxu0 0
      %1001 = vmatmul.mubr.bf16.gmra.mxu0 %v788
      %v1002 = vpop.f32.mrf.mxu0
      %v1003 = vadd.f32 %v650, %v1002
      %v1004 = vpop.f32.mrf.mxu0
      %v1005 = vpop.f32.mrf.mxu0
      %v1006 = vadd.f32 %v653, %v1005
      %v1007 = vpop.f32.mrf.mxu0
      %1008 = vmatprep.mubr.bf16.mxu0 0
      %1009 = vmatmul.mubr.bf16.gmra.mxu0 %v791
      %v1010 = vpop.f32.mrf.mxu0
      %v1011 = vadd.f32 %v658, %v1010
      %v1012 = vpop.f32.mrf.mxu0
      %v1013 = vpop.f32.mrf.mxu0
      %v1014 = vadd.f32 %v661, %v1013
      %v1015 = vpop.f32.mrf.mxu0
      %1016 = vmatprep.mubr.bf16.mxu0 0
      %1017 = vmatmul.mubr.bf16.gmra.mxu0 %v794
      %v1018 = vpop.f32.mrf.mxu0
      %v1019 = vadd.f32 %v666, %v1018
      %v1020 = vpop.f32.mrf.mxu0
      %v1021 = vpop.f32.mrf.mxu0
      %v1022 = vadd.f32 %v669, %v1021
      %v1023 = vpop.f32.mrf.mxu0
      %1024 = vmatprep.mubr.bf16.mxu0 0
      %1025 = vmatmul.mubr.bf16.gmra.mxu0 %v797
      %v1026 = vpop.f32.mrf.mxu0
      %v1027 = vadd.f32 %v674, %v1026
      %v1028 = vpop.f32.mrf.mxu0
      %v1029 = vpop.f32.mrf.mxu0
      %v1030 = vadd.f32 %v677, %v1029
      %v1031 = vpop.f32.mrf.mxu0
      %1032 = vmatprep.mubr.bf16.mxu0 0
      %1033 = vmatmul.mubr.bf16.gmra.mxu0 %v800
      %v1034 = vpop.f32.mrf.mxu0
      %v1035 = vadd.f32 %v682, %v1034
      %v1036 = vpop.f32.mrf.mxu0
      %v1037 = vpop.f32.mrf.mxu0
      %v1038 = vadd.f32 %v685, %v1037
      %v1039 = vpop.f32.mrf.mxu0
      %1040 = vmatprep.mubr.bf16.mxu0 0
      %1041 = vmatmul.mubr.bf16.gmra.mxu0 %v803
      %v1042 = vpop.f32.mrf.mxu0
      %v1043 = vadd.f32 %v690, %v1042
      %v1044 = vpop.f32.mrf.mxu0
      %v1045 = vpop.f32.mrf.mxu0
      %v1046 = vadd.f32 %v693, %v1045
      %v1047 = vpop.f32.mrf.mxu0
      %1048 = vmatprep.mubr.bf16.mxu0 0
      %1049 = vmatmul.mubr.bf16.gmra.mxu0 %v806
      %v1050 = vpop.f32.mrf.mxu0
      %v1051 = vadd.f32 %v698, %v1050
      %v1052 = vpop.f32.mrf.mxu0
      %v1053 = vpop.f32.mrf.mxu0
      %v1054 = vpop.f32.mrf.mxu0
      %1055 = vdwg.mxu0
      %v1056 = vld [vmem:[%s165 + $0x15] sm:$0xff]
      %v1057 = vld [vmem:[%s165 + $0x1d] sm:$0xff]
      %v1058 = vld [vmem:[%s165 + $0x25] sm:$0xff]
      %v1059 = vld [vmem:[%s165 + $0x2d] sm:$0xff]
      %v1060 = vld [vmem:[%s165 + $0x35] sm:$0xff]
      %v1061 = vld [vmem:[%s165 + $0x3d] sm:$0xff]
      %v1062 = vld [vmem:[%s165 + $0x45] sm:$0xff]
      %v1063 = vld [vmem:[%s165 + $0x4d] sm:$0xff]
      %v1064 = vld [vmem:[%s165 + $0x55] sm:$0xff]
      %v1065 = vld [vmem:[%s165 + $0x5d] sm:$0xff]
      %v1066 = vld [vmem:[%s165 + $0x65] sm:$0xff]
      %v1067 = vld [vmem:[%s165 + $0x6d] sm:$0xff]
      %v1068 = vld [vmem:[%s165 + $0x75] sm:$0xff]
      %v1069 = vld [vmem:[%s165 + $0x7d] sm:$0xff]
      %v1070 = vld [vmem:[%s165 + $0x85] sm:$0xff]
      %v1071 = vld [vmem:[%s165 + $0x8d] sm:$0xff]
      %v1072 = vld [vmem:[%s165 + $0x95] sm:$0xff]
      %v1073 = vld [vmem:[%s165 + $0x9d] sm:$0xff]
      %v1074 = vld [vmem:[%s165 + $0xa5] sm:$0xff]
      %v1075 = vld [vmem:[%s165 + $0xad] sm:$0xff]
      %v1076 = vld [vmem:[%s165 + $0xb5] sm:$0xff]
      %v1077 = vld [vmem:[%s165 + $0xbd] sm:$0xff]
      %v1078 = vld [vmem:[%s165 + $0xc5] sm:$0xff]
      %v1079 = vld [vmem:[%s165 + $0xcd] sm:$0xff]
      %v1080 = vld [vmem:[%s165 + $0xd5] sm:$0xff]
      %v1081 = vld [vmem:[%s165 + $0xdd] sm:$0xff]
      %v1082 = vld [vmem:[%s165 + $0xe5] sm:$0xff]
      %v1083 = vld [vmem:[%s165 + $0xed] sm:$0xff]
      %v1084 = vld [vmem:[%s165 + $0xf5] sm:$0xff]
      %v1085 = vld [vmem:[%s165 + $0xfd] sm:$0xff]
      %v1086 = vld [vmem:[%s165 + $0x105] sm:$0xff]
      %v1087 = vld [vmem:[%s165 + $0x10d] sm:$0xff]
      %v1088 = vld [vmem:[%s165 + $0x115] sm:$0xff]
      %v1089 = vld [vmem:[%s165 + $0x11d] sm:$0xff]
      %v1090 = vld [vmem:[%s165 + $0x125] sm:$0xff]
      %v1091 = vld [vmem:[%s165 + $0x12d] sm:$0xff]
      %v1092 = vld [vmem:[%s165 + $0x135] sm:$0xff]
      %v1093 = vld [vmem:[%s165 + $0x13d] sm:$0xff]
      %v1094 = vld [vmem:[%s165 + $0x145] sm:$0xff]
      %v1095 = vld [vmem:[%s165 + $0x14d] sm:$0xff]
      %v1096 = vld [vmem:[%s165 + $0x155] sm:$0xff]
      %v1097 = vld [vmem:[%s165 + $0x15d] sm:$0xff]
      %v1098 = vld [vmem:[%s165 + $0x165] sm:$0xff]
      %v1099 = vld [vmem:[%s165 + $0x16d] sm:$0xff]
      %v1100 = vld [vmem:[%s165 + $0x175] sm:$0xff]
      %v1101 = vld [vmem:[%s165 + $0x17d] sm:$0xff]
      %v1102 = vld [vmem:[%s165 + $0x185] sm:$0xff]
      %v1103 = vld [vmem:[%s165 + $0x18d] sm:$0xff]
      %v1104 = vld [vmem:[%s165 + $0x195] sm:$0xff]
      %v1105 = vld [vmem:[%s165 + $0x19d] sm:$0xff]
      %v1106 = vld [vmem:[%s165 + $0x1a5] sm:$0xff]
      %v1107 = vld [vmem:[%s165 + $0x1ad] sm:$0xff]
      %v1108 = vld [vmem:[%s165 + $0x1b5] sm:$0xf]
      %v1109 = vpack.c.bf16 %v1057, %v1056
      %v1110 = vpack.c.bf16 %v1059, %v1058
      %v1111 = vpack.c.bf16 %v1061, %v1060
      %v1112 = vpack.c.bf16 %v1063, %v1062
      %v1113 = vpack.c.bf16 %v1065, %v1064
      %v1114 = vpack.c.bf16 %v1067, %v1066
      %v1115 = vpack.c.bf16 %v1069, %v1068
      %v1116 = vpack.c.bf16 %v1071, %v1070
      %v1117 = vpack.c.bf16 %v1073, %v1072
      %v1118 = vpack.c.bf16 %v1075, %v1074
      %v1119 = vpack.c.bf16 %v1077, %v1076
      %v1120 = vpack.c.bf16 %v1079, %v1078
      %v1121 = vpack.c.bf16 %v1081, %v1080
      %v1122 = vpack.c.bf16 %v1083, %v1082
      %v1123 = vpack.c.bf16 %v1085, %v1084
      %v1124 = vpack.c.bf16 %v1087, %v1086
      %v1125 = vpack.c.bf16 %v1089, %v1088
      %v1126 = vpack.c.bf16 %v1091, %v1090
      %v1127 = vpack.c.bf16 %v1093, %v1092
      %v1128 = vpack.c.bf16 %v1095, %v1094
      %v1129 = vpack.c.bf16 %v1097, %v1096
      %v1130 = vpack.c.bf16 %v1099, %v1098
      %v1131 = vpack.c.bf16 %v1101, %v1100
      %v1132 = vpack.c.bf16 %v1103, %v1102
      %v1133 = vpack.c.bf16 %v1105, %v1104
      %v1134 = vpack.c.bf16 %v1107, %v1106
      %v1135 = vpack.c.bf16 %v1108, %v1108
      %s1136 = scalar_lea.vmem %s1, 64
      %v1137 = vld [vmem:[%s1136] sm:$0xf]
      %v1138 = vld [vmem:[%s1136 + $0x4] sm:$0xf]
      %v1139 = vld [vmem:[%s1136 + $0x8] sm:$0xf]
      %v1140 = vld [vmem:[%s1136 + $0xc] sm:$0xf]
      %v1141 = vld [vmem:[%s1136 + $0x10] sm:$0xf]
      %v1142 = vld [vmem:[%s1136 + $0x14] sm:$0xf]
      %v1143 = vld [vmem:[%s1136 + $0x18] sm:$0xf]
      %v1144 = vld [vmem:[%s1136 + $0x1c] sm:$0xf]
      %v1153 = vunpack.c.l.b16 %v1137
      %v1154 = vunpack.c.l.b16 %v1138
      %v1155 = vunpack.c.l.b16 %v1139
      %v1156 = vunpack.c.l.b16 %v1140
      %v1157 = vunpack.c.l.b16 %v1141
      %v1158 = vunpack.c.l.b16 %v1142
      %v1159 = vunpack.c.l.b16 %v1143
      %v1160 = vunpack.c.l.b16 %v1144
      %v1161 = vpack.c.b16 %v1154, %v1153
      %v1162 = vpack.c.b16 %v1156, %v1155
      %v1163 = vpack.c.b16 %v1158, %v1157
      %v1164 = vpack.c.b16 %v1160, %v1159
      %v1170 = vsel %vm373, %v1109, 0
      %v1173 = vsel %vm373, %v1110, 0
      %v1176 = vsel %vm373, %v1111, 0
      %v1179 = vsel %vm373, %v1112, 0
      %v1182 = vsel %vm373, %v1113, 0
      %v1185 = vsel %vm373, %v1114, 0
      %v1188 = vsel %vm373, %v1115, 0
      %v1191 = vsel %vm373, %v1116, 0
      %v1194 = vsel %vm373, %v1117, 0
      %v1197 = vsel %vm373, %v1118, 0
      %v1200 = vsel %vm373, %v1119, 0
      %v1203 = vsel %vm373, %v1120, 0
      %v1206 = vsel %vm373, %v1121, 0
      %v1209 = vsel %vm373, %v1122, 0
      %v1212 = vsel %vm373, %v1123, 0
      %v1215 = vsel %vm373, %v1124, 0
      %v1218 = vsel %vm373, %v1125, 0
      %v1221 = vsel %vm373, %v1126, 0
      %v1224 = vsel %vm373, %v1127, 0
      %v1227 = vsel %vm373, %v1128, 0
      %v1230 = vsel %vm373, %v1129, 0
      %v1233 = vsel %vm373, %v1130, 0
      %v1236 = vsel %vm373, %v1131, 0
      %v1239 = vsel %vm373, %v1132, 0
      %v1242 = vsel %vm373, %v1133, 0
      %v1245 = vsel %vm373, %v1134, 0
      %v1248 = vsel %vm373, %v1135, 0
      %1250 = vmatprep.subr.bf16.mxu0 0
      %1251 = vmatpush1.bf16.msra.mxu0 0
      %1252 = vmatprep.subr.bf16.mxu0 0
      %1253 = vmatpush1.bf16.msra.mxu0 0
      %1254 = vmatprep.subr.bf16.mxu0 0
      %1255 = vmatpush1.bf16.msra.mxu0 0
      %1256 = vmatprep.subr.bf16.mxu0 0
      %1257 = vmatpush1.bf16.msra.mxu0 0
      %1258 = vmatprep.subr.bf16.mxu0 0
      %1259 = vmatpush1.bf16.msra.mxu0 %v1164
      %1260 = vmatprep.subr.bf16.mxu0 0
      %1261 = vmatpush1.bf16.msra.mxu0 %v1163
      %1262 = vmatprep.subr.bf16.mxu0 0
      %1263 = vmatpush1.bf16.msra.mxu0 %v1162
      %1264 = vmatprep.subr.bf16.mxu0 0
      %1265 = vmatpush1.bf16.msra.mxu0 %v1161
      %1266 = vmatprep.subr.bf16.mxu0 0
      %1267 = vmatpush2.bf16.msra.mxu0 0
      %1268 = vmatprep.subr.bf16.mxu0 0
      %1269 = vmatpush2.bf16.msra.mxu0 0
      %1270 = vmatprep.subr.bf16.mxu0 0
      %1271 = vmatpush2.bf16.msra.mxu0 0
      %1272 = vmatprep.subr.bf16.mxu0 0
      %1273 = vmatpush2.bf16.msra.mxu0 0
      %1274 = vmatprep.subr.bf16.mxu0 0
      %1275 = vmatpush2.bf16.msra.mxu0 0
      %1276 = vmatprep.subr.bf16.mxu0 0
      %1277 = vmatpush2.bf16.msra.mxu0 0
      %1278 = vmatprep.subr.bf16.mxu0 0
      %1279 = vmatpush2.bf16.msra.mxu0 0
      %1280 = vmatprep.subr.bf16.mxu0 0
      %1281 = vmatpush2.bf16.msra.mxu0 0
      %1282 = vmatprep.mubr.bf16.mxu0 0
      %1283 = vmatmul.mubr.bf16.gmra.mxu0 %v1170
      %v1284 = vpop.f32.mrf.mxu0
      %v1285 = vadd.f32 0.0, %v1284
      %v1286 = vpop.f32.mrf.mxu0
      %v1287 = vpop.f32.mrf.mxu0
      %v1288 = vadd.f32 0.0, %v1287
      %v1289 = vpop.f32.mrf.mxu0
      %1290 = vmatprep.mubr.bf16.mxu0 0
      %1291 = vmatmul.mubr.bf16.gmra.mxu0 %v1173
      %v1292 = vpop.f32.mrf.mxu0
      %v1293 = vadd.f32 0.0, %v1292
      %v1294 = vpop.f32.mrf.mxu0
      %v1295 = vpop.f32.mrf.mxu0
      %v1296 = vadd.f32 0.0, %v1295
      %v1297 = vpop.f32.mrf.mxu0
      %1298 = vmatprep.mubr.bf16.mxu0 0
      %1299 = vmatmul.mubr.bf16.gmra.mxu0 %v1176
      %v1300 = vpop.f32.mrf.mxu0
      %v1301 = vadd.f32 0.0, %v1300
      %v1302 = vpop.f32.mrf.mxu0
      %v1303 = vpop.f32.mrf.mxu0
      %v1304 = vadd.f32 0.0, %v1303
      %v1305 = vpop.f32.mrf.mxu0
      %1306 = vmatprep.mubr.bf16.mxu0 0
      %1307 = vmatmul.mubr.bf16.gmra.mxu0 %v1179
      %v1308 = vpop.f32.mrf.mxu0
      %v1309 = vadd.f32 0.0, %v1308
      %v1310 = vpop.f32.mrf.mxu0
      %v1311 = vpop.f32.mrf.mxu0
      %v1312 = vadd.f32 0.0, %v1311
      %v1313 = vpop.f32.mrf.mxu0
      %1314 = vmatprep.mubr.bf16.mxu0 0
      %1315 = vmatmul.mubr.bf16.gmra.mxu0 %v1182
      %v1316 = vpop.f32.mrf.mxu0
      %v1317 = vadd.f32 0.0, %v1316
      %v1318 = vpop.f32.mrf.mxu0
      %v1319 = vpop.f32.mrf.mxu0
      %v1320 = vadd.f32 0.0, %v1319
      %v1321 = vpop.f32.mrf.mxu0
      %1322 = vmatprep.mubr.bf16.mxu0 0
      %1323 = vmatmul.mubr.bf16.gmra.mxu0 %v1185
      %v1324 = vpop.f32.mrf.mxu0
      %v1325 = vadd.f32 0.0, %v1324
      %v1326 = vpop.f32.mrf.mxu0
      %v1327 = vpop.f32.mrf.mxu0
      %v1328 = vadd.f32 0.0, %v1327
      %v1329 = vpop.f32.mrf.mxu0
      %1330 = vmatprep.mubr.bf16.mxu0 0
      %1331 = vmatmul.mubr.bf16.gmra.mxu0 %v1188
      %v1332 = vpop.f32.mrf.mxu0
      %v1333 = vadd.f32 0.0, %v1332
      %v1334 = vpop.f32.mrf.mxu0
      %v1335 = vpop.f32.mrf.mxu0
      %v1336 = vadd.f32 0.0, %v1335
      %v1337 = vpop.f32.mrf.mxu0
      %1338 = vmatprep.mubr.bf16.mxu0 0
      %1339 = vmatmul.mubr.bf16.gmra.mxu0 %v1191
      %v1340 = vpop.f32.mrf.mxu0
      %v1341 = vadd.f32 0.0, %v1340
      %v1342 = vpop.f32.mrf.mxu0
      %v1343 = vpop.f32.mrf.mxu0
      %v1344 = vadd.f32 0.0, %v1343
      %v1345 = vpop.f32.mrf.mxu0
      %1346 = vmatprep.mubr.bf16.mxu0 0
      %1347 = vmatmul.mubr.bf16.gmra.mxu0 %v1194
      %v1348 = vpop.f32.mrf.mxu0
      %v1349 = vadd.f32 0.0, %v1348
      %v1350 = vpop.f32.mrf.mxu0
      %v1351 = vpop.f32.mrf.mxu0
      %v1352 = vadd.f32 0.0, %v1351
      %v1353 = vpop.f32.mrf.mxu0
      %1354 = vmatprep.mubr.bf16.mxu0 0
      %1355 = vmatmul.mubr.bf16.gmra.mxu0 %v1197
      %v1356 = vpop.f32.mrf.mxu0
      %v1357 = vadd.f32 0.0, %v1356
      %v1358 = vpop.f32.mrf.mxu0
      %v1359 = vpop.f32.mrf.mxu0
      %v1360 = vadd.f32 0.0, %v1359
      %v1361 = vpop.f32.mrf.mxu0
      %1362 = vmatprep.mubr.bf16.mxu0 0
      %1363 = vmatmul.mubr.bf16.gmra.mxu0 %v1200
      %v1364 = vpop.f32.mrf.mxu0
      %v1365 = vadd.f32 0.0, %v1364
      %v1366 = vpop.f32.mrf.mxu0
      %v1367 = vpop.f32.mrf.mxu0
      %v1368 = vadd.f32 0.0, %v1367
      %v1369 = vpop.f32.mrf.mxu0
      %1370 = vmatprep.mubr.bf16.mxu0 0
      %1371 = vmatmul.mubr.bf16.gmra.mxu0 %v1203
      %v1372 = vpop.f32.mrf.mxu0
      %v1373 = vadd.f32 0.0, %v1372
      %v1374 = vpop.f32.mrf.mxu0
      %v1375 = vpop.f32.mrf.mxu0
      %v1376 = vadd.f32 0.0, %v1375
      %v1377 = vpop.f32.mrf.mxu0
      %1378 = vmatprep.mubr.bf16.mxu0 0
      %1379 = vmatmul.mubr.bf16.gmra.mxu0 %v1206
      %v1380 = vpop.f32.mrf.mxu0
      %v1381 = vadd.f32 0.0, %v1380
      %v1382 = vpop.f32.mrf.mxu0
      %v1383 = vpop.f32.mrf.mxu0
      %v1384 = vadd.f32 0.0, %v1383
      %v1385 = vpop.f32.mrf.mxu0
      %1386 = vmatprep.mubr.bf16.mxu0 0
      %1387 = vmatmul.mubr.bf16.gmra.mxu0 %v1209
      %v1388 = vpop.f32.mrf.mxu0
      %v1389 = vadd.f32 0.0, %v1388
      %v1390 = vpop.f32.mrf.mxu0
      %v1391 = vpop.f32.mrf.mxu0
      %v1392 = vadd.f32 0.0, %v1391
      %v1393 = vpop.f32.mrf.mxu0
      %1394 = vmatprep.mubr.bf16.mxu0 0
      %1395 = vmatmul.mubr.bf16.gmra.mxu0 %v1212
      %v1396 = vpop.f32.mrf.mxu0
      %v1397 = vadd.f32 0.0, %v1396
      %v1398 = vpop.f32.mrf.mxu0
      %v1399 = vpop.f32.mrf.mxu0
      %v1400 = vadd.f32 0.0, %v1399
      %v1401 = vpop.f32.mrf.mxu0
      %1402 = vmatprep.mubr.bf16.mxu0 0
      %1403 = vmatmul.mubr.bf16.gmra.mxu0 %v1215
      %v1404 = vpop.f32.mrf.mxu0
      %v1405 = vadd.f32 0.0, %v1404
      %v1406 = vpop.f32.mrf.mxu0
      %v1407 = vpop.f32.mrf.mxu0
      %v1408 = vadd.f32 0.0, %v1407
      %v1409 = vpop.f32.mrf.mxu0
      %1410 = vmatprep.mubr.bf16.mxu0 0
      %1411 = vmatmul.mubr.bf16.gmra.mxu0 %v1218
      %v1412 = vpop.f32.mrf.mxu0
      %v1413 = vadd.f32 0.0, %v1412
      %v1414 = vpop.f32.mrf.mxu0
      %v1415 = vpop.f32.mrf.mxu0
      %v1416 = vadd.f32 0.0, %v1415
      %v1417 = vpop.f32.mrf.mxu0
      %1418 = vmatprep.mubr.bf16.mxu0 0
      %1419 = vmatmul.mubr.bf16.gmra.mxu0 %v1221
      %v1420 = vpop.f32.mrf.mxu0
      %v1421 = vadd.f32 0.0, %v1420
      %v1422 = vpop.f32.mrf.mxu0
      %v1423 = vpop.f32.mrf.mxu0
      %v1424 = vadd.f32 0.0, %v1423
      %v1425 = vpop.f32.mrf.mxu0
      %1426 = vmatprep.mubr.bf16.mxu0 0
      %1427 = vmatmul.mubr.bf16.gmra.mxu0 %v1224
      %v1428 = vpop.f32.mrf.mxu0
      %v1429 = vadd.f32 0.0, %v1428
      %v1430 = vpop.f32.mrf.mxu0
      %v1431 = vpop.f32.mrf.mxu0
      %v1432 = vadd.f32 0.0, %v1431
      %v1433 = vpop.f32.mrf.mxu0
      %1434 = vmatprep.mubr.bf16.mxu0 0
      %1435 = vmatmul.mubr.bf16.gmra.mxu0 %v1227
      %v1436 = vpop.f32.mrf.mxu0
      %v1437 = vadd.f32 0.0, %v1436
      %v1438 = vpop.f32.mrf.mxu0
      %v1439 = vpop.f32.mrf.mxu0
      %v1440 = vadd.f32 0.0, %v1439
      %v1441 = vpop.f32.mrf.mxu0
      %1442 = vmatprep.mubr.bf16.mxu0 0
      %1443 = vmatmul.mubr.bf16.gmra.mxu0 %v1230
      %v1444 = vpop.f32.mrf.mxu0
      %v1445 = vadd.f32 0.0, %v1444
      %v1446 = vpop.f32.mrf.mxu0
      %v1447 = vpop.f32.mrf.mxu0
      %v1448 = vadd.f32 0.0, %v1447
      %v1449 = vpop.f32.mrf.mxu0
      %1450 = vmatprep.mubr.bf16.mxu0 0
      %1451 = vmatmul.mubr.bf16.gmra.mxu0 %v1233
      %v1452 = vpop.f32.mrf.mxu0
      %v1453 = vadd.f32 0.0, %v1452
      %v1454 = vpop.f32.mrf.mxu0
      %v1455 = vpop.f32.mrf.mxu0
      %v1456 = vadd.f32 0.0, %v1455
      %v1457 = vpop.f32.mrf.mxu0
      %1458 = vmatprep.mubr.bf16.mxu0 0
      %1459 = vmatmul.mubr.bf16.gmra.mxu0 %v1236
      %v1460 = vpop.f32.mrf.mxu0
      %v1461 = vadd.f32 0.0, %v1460
      %v1462 = vpop.f32.mrf.mxu0
      %v1463 = vpop.f32.mrf.mxu0
      %v1464 = vadd.f32 0.0, %v1463
      %v1465 = vpop.f32.mrf.mxu0
      %1466 = vmatprep.mubr.bf16.mxu0 0
      %1467 = vmatmul.mubr.bf16.gmra.mxu0 %v1239
      %v1468 = vpop.f32.mrf.mxu0
      %v1469 = vadd.f32 0.0, %v1468
      %v1470 = vpop.f32.mrf.mxu0
      %v1471 = vpop.f32.mrf.mxu0
      %v1472 = vadd.f32 0.0, %v1471
      %v1473 = vpop.f32.mrf.mxu0
      %1474 = vmatprep.mubr.bf16.mxu0 0
      %1475 = vmatmul.mubr.bf16.gmra.mxu0 %v1242
      %v1476 = vpop.f32.mrf.mxu0
      %v1477 = vadd.f32 0.0, %v1476
      %v1478 = vpop.f32.mrf.mxu0
      %v1479 = vpop.f32.mrf.mxu0
      %v1480 = vadd.f32 0.0, %v1479
      %v1481 = vpop.f32.mrf.mxu0
      %1482 = vmatprep.mubr.bf16.mxu0 0
      %1483 = vmatmul.mubr.bf16.gmra.mxu0 %v1245
      %v1484 = vpop.f32.mrf.mxu0
      %v1485 = vadd.f32 0.0, %v1484
      %v1486 = vpop.f32.mrf.mxu0
      %v1487 = vpop.f32.mrf.mxu0
      %v1488 = vadd.f32 0.0, %v1487
      %v1489 = vpop.f32.mrf.mxu0
      %1490 = vmatprep.mubr.bf16.mxu0 0
      %1491 = vmatmul.mubr.bf16.gmra.mxu0 %v1248
      %v1492 = vpop.f32.mrf.mxu0
      %v1493 = vadd.f32 0.0, %v1492
      %v1494 = vpop.f32.mrf.mxu0
      %v1495 = vpop.f32.mrf.mxu0
      %v1496 = vpop.f32.mrf.mxu0
      %1497 = vdwg.mxu0
      %v1498 = vadd.f32 %v843, %v1285
      %v1499 = vadd.f32 %v846, %v1288
      %v1500 = vadd.f32 %v851, %v1293
      %v1501 = vadd.f32 %v854, %v1296
      %v1502 = vadd.f32 %v859, %v1301
      %v1503 = vadd.f32 %v862, %v1304
      %v1504 = vadd.f32 %v867, %v1309
      %v1505 = vadd.f32 %v870, %v1312
      %v1506 = vadd.f32 %v875, %v1317
      %v1507 = vadd.f32 %v878, %v1320
      %v1508 = vadd.f32 %v883, %v1325
      %v1509 = vadd.f32 %v886, %v1328
      %v1510 = vadd.f32 %v891, %v1333
      %v1511 = vadd.f32 %v894, %v1336
      %v1512 = vadd.f32 %v899, %v1341
      %v1513 = vadd.f32 %v902, %v1344
      %v1514 = vadd.f32 %v907, %v1349
      %v1515 = vadd.f32 %v910, %v1352
      %v1516 = vadd.f32 %v915, %v1357
      %v1517 = vadd.f32 %v918, %v1360
      %v1518 = vadd.f32 %v923, %v1365
      %v1519 = vadd.f32 %v926, %v1368
      %v1520 = vadd.f32 %v931, %v1373
      %v1521 = vadd.f32 %v934, %v1376
      %v1522 = vadd.f32 %v939, %v1381
      %v1523 = vadd.f32 %v942, %v1384
      %v1524 = vadd.f32 %v947, %v1389
      %v1525 = vadd.f32 %v950, %v1392
      %v1526 = vadd.f32 %v955, %v1397
      %v1527 = vadd.f32 %v958, %v1400
      %v1528 = vadd.f32 %v963, %v1405
      %v1529 = vadd.f32 %v966, %v1408
      %v1530 = vadd.f32 %v971, %v1413
      %v1531 = vadd.f32 %v974, %v1416
      %v1532 = vadd.f32 %v979, %v1421
      %v1533 = vadd.f32 %v982, %v1424
      %v1534 = vadd.f32 %v987, %v1429
      %v1535 = vadd.f32 %v990, %v1432
      %v1536 = vadd.f32 %v995, %v1437
      %v1537 = vadd.f32 %v998, %v1440
      %v1538 = vadd.f32 %v1003, %v1445
      %v1539 = vadd.f32 %v1006, %v1448
      %v1540 = vadd.f32 %v1011, %v1453
      %v1541 = vadd.f32 %v1014, %v1456
      %v1542 = vadd.f32 %v1019, %v1461
      %v1543 = vadd.f32 %v1022, %v1464
      %v1544 = vadd.f32 %v1027, %v1469
      %v1545 = vadd.f32 %v1030, %v1472
      %v1546 = vadd.f32 %v1035, %v1477
      %v1547 = vadd.f32 %v1038, %v1480
      %v1548 = vadd.f32 %v1043, %v1485
      %v1549 = vadd.f32 %v1046, %v1488
      %v1550 = vadd.f32 %v1051, %v1493
      %v1551 = vld [vmem:[%s165 + $0x16] sm:$0xff]
      %v1552 = vld [vmem:[%s165 + $0x1e] sm:$0xff]
      %v1553 = vld [vmem:[%s165 + $0x26] sm:$0xff]
      %v1554 = vld [vmem:[%s165 + $0x2e] sm:$0xff]
      %v1555 = vld [vmem:[%s165 + $0x36] sm:$0xff]
      %v1556 = vld [vmem:[%s165 + $0x3e] sm:$0xff]
      %v1557 = vld [vmem:[%s165 + $0x46] sm:$0xff]
      %v1558 = vld [vmem:[%s165 + $0x4e] sm:$0xff]
      %v1559 = vld [vmem:[%s165 + $0x56] sm:$0xff]
      %v1560 = vld [vmem:[%s165 + $0x5e] sm:$0xff]
      %v1561 = vld [vmem:[%s165 + $0x66] sm:$0xff]
      %v1562 = vld [vmem:[%s165 + $0x6e] sm:$0xff]
      %v1563 = vld [vmem:[%s165 + $0x76] sm:$0xff]
      %v1564 = vld [vmem:[%s165 + $0x7e] sm:$0xff]
      %v1565 = vld [vmem:[%s165 + $0x86] sm:$0xff]
      %v1566 = vld [vmem:[%s165 + $0x8e] sm:$0xff]
      %v1567 = vld [vmem:[%s165 + $0x96] sm:$0xff]
      %v1568 = vld [vmem:[%s165 + $0x9e] sm:$0xff]
      %v1569 = vld [vmem:[%s165 + $0xa6] sm:$0xff]
      %v1570 = vld [vmem:[%s165 + $0xae] sm:$0xff]
      %v1571 = vld [vmem:[%s165 + $0xb6] sm:$0xff]
      %v1572 = vld [vmem:[%s165 + $0xbe] sm:$0xff]
      %v1573 = vld [vmem:[%s165 + $0xc6] sm:$0xff]
      %v1574 = vld [vmem:[%s165 + $0xce] sm:$0xff]
      %v1575 = vld [vmem:[%s165 + $0xd6] sm:$0xff]
      %v1576 = vld [vmem:[%s165 + $0xde] sm:$0xff]
      %v1577 = vld [vmem:[%s165 + $0xe6] sm:$0xff]
      %v1578 = vld [vmem:[%s165 + $0xee] sm:$0xff]
      %v1579 = vld [vmem:[%s165 + $0xf6] sm:$0xff]
      %v1580 = vld [vmem:[%s165 + $0xfe] sm:$0xff]
      %v1581 = vld [vmem:[%s165 + $0x106] sm:$0xff]
      %v1582 = vld [vmem:[%s165 + $0x10e] sm:$0xff]
      %v1583 = vld [vmem:[%s165 + $0x116] sm:$0xff]
      %v1584 = vld [vmem:[%s165 + $0x11e] sm:$0xff]
      %v1585 = vld [vmem:[%s165 + $0x126] sm:$0xff]
      %v1586 = vld [vmem:[%s165 + $0x12e] sm:$0xff]
      %v1587 = vld [vmem:[%s165 + $0x136] sm:$0xff]
      %v1588 = vld [vmem:[%s165 + $0x13e] sm:$0xff]
      %v1589 = vld [vmem:[%s165 + $0x146] sm:$0xff]
      %v1590 = vld [vmem:[%s165 + $0x14e] sm:$0xff]
      %v1591 = vld [vmem:[%s165 + $0x156] sm:$0xff]
      %v1592 = vld [vmem:[%s165 + $0x15e] sm:$0xff]
      %v1593 = vld [vmem:[%s165 + $0x166] sm:$0xff]
      %v1594 = vld [vmem:[%s165 + $0x16e] sm:$0xff]
      %v1595 = vld [vmem:[%s165 + $0x176] sm:$0xff]
      %v1596 = vld [vmem:[%s165 + $0x17e] sm:$0xff]
      %v1597 = vld [vmem:[%s165 + $0x186] sm:$0xff]
      %v1598 = vld [vmem:[%s165 + $0x18e] sm:$0xff]
      %v1599 = vld [vmem:[%s165 + $0x196] sm:$0xff]
      %v1600 = vld [vmem:[%s165 + $0x19e] sm:$0xff]
      %v1601 = vld [vmem:[%s165 + $0x1a6] sm:$0xff]
      %v1602 = vld [vmem:[%s165 + $0x1ae] sm:$0xff]
      %v1603 = vld [vmem:[%s165 + $0x1b6] sm:$0xf]
      %v1604 = vpack.c.bf16 %v1552, %v1551
      %v1605 = vpack.c.bf16 %v1554, %v1553
      %v1606 = vpack.c.bf16 %v1556, %v1555
      %v1607 = vpack.c.bf16 %v1558, %v1557
      %v1608 = vpack.c.bf16 %v1560, %v1559
      %v1609 = vpack.c.bf16 %v1562, %v1561
      %v1610 = vpack.c.bf16 %v1564, %v1563
      %v1611 = vpack.c.bf16 %v1566, %v1565
      %v1612 = vpack.c.bf16 %v1568, %v1567
      %v1613 = vpack.c.bf16 %v1570, %v1569
      %v1614 = vpack.c.bf16 %v1572, %v1571
      %v1615 = vpack.c.bf16 %v1574, %v1573
      %v1616 = vpack.c.bf16 %v1576, %v1575
      %v1617 = vpack.c.bf16 %v1578, %v1577
      %v1618 = vpack.c.bf16 %v1580, %v1579
      %v1619 = vpack.c.bf16 %v1582, %v1581
      %v1620 = vpack.c.bf16 %v1584, %v1583
      %v1621 = vpack.c.bf16 %v1586, %v1585
      %v1622 = vpack.c.bf16 %v1588, %v1587
      %v1623 = vpack.c.bf16 %v1590, %v1589
      %v1624 = vpack.c.bf16 %v1592, %v1591
      %v1625 = vpack.c.bf16 %v1594, %v1593
      %v1626 = vpack.c.bf16 %v1596, %v1595
      %v1627 = vpack.c.bf16 %v1598, %v1597
      %v1628 = vpack.c.bf16 %v1600, %v1599
      %v1629 = vpack.c.bf16 %v1602, %v1601
      %v1630 = vpack.c.bf16 %v1603, %v1603
      %s1631 = scalar_lea.vmem %s1, 96
      %v1632 = vld [vmem:[%s1631] sm:$0xf]
      %v1633 = vld [vmem:[%s1631 + $0x4] sm:$0xf]
      %v1634 = vld [vmem:[%s1631 + $0x8] sm:$0xf]
      %v1635 = vld [vmem:[%s1631 + $0xc] sm:$0xf]
      %v1636 = vld [vmem:[%s1631 + $0x10] sm:$0xf]
      %v1637 = vld [vmem:[%s1631 + $0x14] sm:$0xf]
      %v1638 = vld [vmem:[%s1631 + $0x18] sm:$0xf]
      %v1639 = vld [vmem:[%s1631 + $0x1c] sm:$0xf]
      %v1648 = vunpack.c.l.b16 %v1632
      %v1649 = vunpack.c.l.b16 %v1633
      %v1650 = vunpack.c.l.b16 %v1634
      %v1651 = vunpack.c.l.b16 %v1635
      %v1652 = vunpack.c.l.b16 %v1636
      %v1653 = vunpack.c.l.b16 %v1637
      %v1654 = vunpack.c.l.b16 %v1638
      %v1655 = vunpack.c.l.b16 %v1639
      %v1656 = vpack.c.b16 %v1649, %v1648
      %v1657 = vpack.c.b16 %v1651, %v1650
      %v1658 = vpack.c.b16 %v1653, %v1652
      %v1659 = vpack.c.b16 %v1655, %v1654
      %v1665 = vsel %vm373, %v1604, 0
      %v1668 = vsel %vm373, %v1605, 0
      %v1671 = vsel %vm373, %v1606, 0
      %v1674 = vsel %vm373, %v1607, 0
      %v1677 = vsel %vm373, %v1608, 0
      %v1680 = vsel %vm373, %v1609, 0
      %v1683 = vsel %vm373, %v1610, 0
      %v1686 = vsel %vm373, %v1611, 0
      %v1689 = vsel %vm373, %v1612, 0
      %v1692 = vsel %vm373, %v1613, 0
      %v1695 = vsel %vm373, %v1614, 0
      %v1698 = vsel %vm373, %v1615, 0
      %v1701 = vsel %vm373, %v1616, 0
      %v1704 = vsel %vm373, %v1617, 0
      %v1707 = vsel %vm373, %v1618, 0
      %v1710 = vsel %vm373, %v1619, 0
      %v1713 = vsel %vm373, %v1620, 0
      %v1716 = vsel %vm373, %v1621, 0
      %v1719 = vsel %vm373, %v1622, 0
      %v1722 = vsel %vm373, %v1623, 0
      %v1725 = vsel %vm373, %v1624, 0
      %v1728 = vsel %vm373, %v1625, 0
      %v1731 = vsel %vm373, %v1626, 0
      %v1734 = vsel %vm373, %v1627, 0
      %v1737 = vsel %vm373, %v1628, 0
      %v1740 = vsel %vm373, %v1629, 0
      %v1743 = vsel %vm373, %v1630, 0
      %1745 = vmatprep.subr.bf16.mxu0 0
      %1746 = vmatpush1.bf16.msra.mxu0 0
      %1747 = vmatprep.subr.bf16.mxu0 0
      %1748 = vmatpush1.bf16.msra.mxu0 0
      %1749 = vmatprep.subr.bf16.mxu0 0
      %1750 = vmatpush1.bf16.msra.mxu0 0
      %1751 = vmatprep.subr.bf16.mxu0 0
      %1752 = vmatpush1.bf16.msra.mxu0 0
      %1753 = vmatprep.subr.bf16.mxu0 0
      %1754 = vmatpush1.bf16.msra.mxu0 %v1659
      %1755 = vmatprep.subr.bf16.mxu0 0
      %1756 = vmatpush1.bf16.msra.mxu0 %v1658
      %1757 = vmatprep.subr.bf16.mxu0 0
      %1758 = vmatpush1.bf16.msra.mxu0 %v1657
      %1759 = vmatprep.subr.bf16.mxu0 0
      %1760 = vmatpush1.bf16.msra.mxu0 %v1656
      %1761 = vmatprep.subr.bf16.mxu0 0
      %1762 = vmatpush2.bf16.msra.mxu0 0
      %1763 = vmatprep.subr.bf16.mxu0 0
      %1764 = vmatpush2.bf16.msra.mxu0 0
      %1765 = vmatprep.subr.bf16.mxu0 0
      %1766 = vmatpush2.bf16.msra.mxu0 0
      %1767 = vmatprep.subr.bf16.mxu0 0
      %1768 = vmatpush2.bf16.msra.mxu0 0
      %1769 = vmatprep.subr.bf16.mxu0 0
      %1770 = vmatpush2.bf16.msra.mxu0 0
      %1771 = vmatprep.subr.bf16.mxu0 0
      %1772 = vmatpush2.bf16.msra.mxu0 0
      %1773 = vmatprep.subr.bf16.mxu0 0
      %1774 = vmatpush2.bf16.msra.mxu0 0
      %1775 = vmatprep.subr.bf16.mxu0 0
      %1776 = vmatpush2.bf16.msra.mxu0 0
      %1777 = vmatprep.mubr.bf16.mxu0 0
      %1778 = vmatmul.mubr.bf16.gmra.mxu0 %v1665
      %v1779 = vpop.f32.mrf.mxu0
      %v1780 = vadd.f32 0.0, %v1779
      %v1781 = vpop.f32.mrf.mxu0
      %v1782 = vpop.f32.mrf.mxu0
      %v1783 = vadd.f32 0.0, %v1782
      %v1784 = vpop.f32.mrf.mxu0
      %1785 = vmatprep.mubr.bf16.mxu0 0
      %1786 = vmatmul.mubr.bf16.gmra.mxu0 %v1668
      %v1787 = vpop.f32.mrf.mxu0
      %v1788 = vadd.f32 0.0, %v1787
      %v1789 = vpop.f32.mrf.mxu0
      %v1790 = vpop.f32.mrf.mxu0
      %v1791 = vadd.f32 0.0, %v1790
      %v1792 = vpop.f32.mrf.mxu0
      %1793 = vmatprep.mubr.bf16.mxu0 0
      %1794 = vmatmul.mubr.bf16.gmra.mxu0 %v1671
      %v1795 = vpop.f32.mrf.mxu0
      %v1796 = vadd.f32 0.0, %v1795
      %v1797 = vpop.f32.mrf.mxu0
      %v1798 = vpop.f32.mrf.mxu0
      %v1799 = vadd.f32 0.0, %v1798
      %v1800 = vpop.f32.mrf.mxu0
      %1801 = vmatprep.mubr.bf16.mxu0 0
      %1802 = vmatmul.mubr.bf16.gmra.mxu0 %v1674
      %v1803 = vpop.f32.mrf.mxu0
      %v1804 = vadd.f32 0.0, %v1803
      %v1805 = vpop.f32.mrf.mxu0
      %v1806 = vpop.f32.mrf.mxu0
      %v1807 = vadd.f32 0.0, %v1806
      %v1808 = vpop.f32.mrf.mxu0
      %1809 = vmatprep.mubr.bf16.mxu0 0
      %1810 = vmatmul.mubr.bf16.gmra.mxu0 %v1677
      %v1811 = vpop.f32.mrf.mxu0
      %v1812 = vadd.f32 0.0, %v1811
      %v1813 = vpop.f32.mrf.mxu0
      %v1814 = vpop.f32.mrf.mxu0
      %v1815 = vadd.f32 0.0, %v1814
      %v1816 = vpop.f32.mrf.mxu0
      %1817 = vmatprep.mubr.bf16.mxu0 0
      %1818 = vmatmul.mubr.bf16.gmra.mxu0 %v1680
      %v1819 = vpop.f32.mrf.mxu0
      %v1820 = vadd.f32 0.0, %v1819
      %v1821 = vpop.f32.mrf.mxu0
      %v1822 = vpop.f32.mrf.mxu0
      %v1823 = vadd.f32 0.0, %v1822
      %v1824 = vpop.f32.mrf.mxu0
      %1825 = vmatprep.mubr.bf16.mxu0 0
      %1826 = vmatmul.mubr.bf16.gmra.mxu0 %v1683
      %v1827 = vpop.f32.mrf.mxu0
      %v1828 = vadd.f32 0.0, %v1827
      %v1829 = vpop.f32.mrf.mxu0
      %v1830 = vpop.f32.mrf.mxu0
      %v1831 = vadd.f32 0.0, %v1830
      %v1832 = vpop.f32.mrf.mxu0
      %1833 = vmatprep.mubr.bf16.mxu0 0
      %1834 = vmatmul.mubr.bf16.gmra.mxu0 %v1686
      %v1835 = vpop.f32.mrf.mxu0
      %v1836 = vadd.f32 0.0, %v1835
      %v1837 = vpop.f32.mrf.mxu0
      %v1838 = vpop.f32.mrf.mxu0
      %v1839 = vadd.f32 0.0, %v1838
      %v1840 = vpop.f32.mrf.mxu0
      %1841 = vmatprep.mubr.bf16.mxu0 0
      %1842 = vmatmul.mubr.bf16.gmra.mxu0 %v1689
      %v1843 = vpop.f32.mrf.mxu0
      %v1844 = vadd.f32 0.0, %v1843
      %v1845 = vpop.f32.mrf.mxu0
      %v1846 = vpop.f32.mrf.mxu0
      %v1847 = vadd.f32 0.0, %v1846
      %v1848 = vpop.f32.mrf.mxu0
      %1849 = vmatprep.mubr.bf16.mxu0 0
      %1850 = vmatmul.mubr.bf16.gmra.mxu0 %v1692
      %v1851 = vpop.f32.mrf.mxu0
      %v1852 = vadd.f32 0.0, %v1851
      %v1853 = vpop.f32.mrf.mxu0
      %v1854 = vpop.f32.mrf.mxu0
      %v1855 = vadd.f32 0.0, %v1854
      %v1856 = vpop.f32.mrf.mxu0
      %1857 = vmatprep.mubr.bf16.mxu0 0
      %1858 = vmatmul.mubr.bf16.gmra.mxu0 %v1695
      %v1859 = vpop.f32.mrf.mxu0
      %v1860 = vadd.f32 0.0, %v1859
      %v1861 = vpop.f32.mrf.mxu0
      %v1862 = vpop.f32.mrf.mxu0
      %v1863 = vadd.f32 0.0, %v1862
      %v1864 = vpop.f32.mrf.mxu0
      %1865 = vmatprep.mubr.bf16.mxu0 0
      %1866 = vmatmul.mubr.bf16.gmra.mxu0 %v1698
      %v1867 = vpop.f32.mrf.mxu0
      %v1868 = vadd.f32 0.0, %v1867
      %v1869 = vpop.f32.mrf.mxu0
      %v1870 = vpop.f32.mrf.mxu0
      %v1871 = vadd.f32 0.0, %v1870
      %v1872 = vpop.f32.mrf.mxu0
      %1873 = vmatprep.mubr.bf16.mxu0 0
      %1874 = vmatmul.mubr.bf16.gmra.mxu0 %v1701
      %v1875 = vpop.f32.mrf.mxu0
      %v1876 = vadd.f32 0.0, %v1875
      %v1877 = vpop.f32.mrf.mxu0
      %v1878 = vpop.f32.mrf.mxu0
      %v1879 = vadd.f32 0.0, %v1878
      %v1880 = vpop.f32.mrf.mxu0
      %1881 = vmatprep.mubr.bf16.mxu0 0
      %1882 = vmatmul.mubr.bf16.gmra.mxu0 %v1704
      %v1883 = vpop.f32.mrf.mxu0
      %v1884 = vadd.f32 0.0, %v1883
      %v1885 = vpop.f32.mrf.mxu0
      %v1886 = vpop.f32.mrf.mxu0
      %v1887 = vadd.f32 0.0, %v1886
      %v1888 = vpop.f32.mrf.mxu0
      %1889 = vmatprep.mubr.bf16.mxu0 0
      %1890 = vmatmul.mubr.bf16.gmra.mxu0 %v1707
      %v1891 = vpop.f32.mrf.mxu0
      %v1892 = vadd.f32 0.0, %v1891
      %v1893 = vpop.f32.mrf.mxu0
      %v1894 = vpop.f32.mrf.mxu0
      %v1895 = vadd.f32 0.0, %v1894
      %v1896 = vpop.f32.mrf.mxu0
      %1897 = vmatprep.mubr.bf16.mxu0 0
      %1898 = vmatmul.mubr.bf16.gmra.mxu0 %v1710
      %v1899 = vpop.f32.mrf.mxu0
      %v1900 = vadd.f32 0.0, %v1899
      %v1901 = vpop.f32.mrf.mxu0
      %v1902 = vpop.f32.mrf.mxu0
      %v1903 = vadd.f32 0.0, %v1902
      %v1904 = vpop.f32.mrf.mxu0
      %1905 = vmatprep.mubr.bf16.mxu0 0
      %1906 = vmatmul.mubr.bf16.gmra.mxu0 %v1713
      %v1907 = vpop.f32.mrf.mxu0
      %v1908 = vadd.f32 0.0, %v1907
      %v1909 = vpop.f32.mrf.mxu0
      %v1910 = vpop.f32.mrf.mxu0
      %v1911 = vadd.f32 0.0, %v1910
      %v1912 = vpop.f32.mrf.mxu0
      %1913 = vmatprep.mubr.bf16.mxu0 0
      %1914 = vmatmul.mubr.bf16.gmra.mxu0 %v1716
      %v1915 = vpop.f32.mrf.mxu0
      %v1916 = vadd.f32 0.0, %v1915
      %v1917 = vpop.f32.mrf.mxu0
      %v1918 = vpop.f32.mrf.mxu0
      %v1919 = vadd.f32 0.0, %v1918
      %v1920 = vpop.f32.mrf.mxu0
      %1921 = vmatprep.mubr.bf16.mxu0 0
      %1922 = vmatmul.mubr.bf16.gmra.mxu0 %v1719
      %v1923 = vpop.f32.mrf.mxu0
      %v1924 = vadd.f32 0.0, %v1923
      %v1925 = vpop.f32.mrf.mxu0
      %v1926 = vpop.f32.mrf.mxu0
      %v1927 = vadd.f32 0.0, %v1926
      %v1928 = vpop.f32.mrf.mxu0
      %1929 = vmatprep.mubr.bf16.mxu0 0
      %1930 = vmatmul.mubr.bf16.gmra.mxu0 %v1722
      %v1931 = vpop.f32.mrf.mxu0
      %v1932 = vadd.f32 0.0, %v1931
      %v1933 = vpop.f32.mrf.mxu0
      %v1934 = vpop.f32.mrf.mxu0
      %v1935 = vadd.f32 0.0, %v1934
      %v1936 = vpop.f32.mrf.mxu0
      %1937 = vmatprep.mubr.bf16.mxu0 0
      %1938 = vmatmul.mubr.bf16.gmra.mxu0 %v1725
      %v1939 = vpop.f32.mrf.mxu0
      %v1940 = vadd.f32 0.0, %v1939
      %v1941 = vpop.f32.mrf.mxu0
      %v1942 = vpop.f32.mrf.mxu0
      %v1943 = vadd.f32 0.0, %v1942
      %v1944 = vpop.f32.mrf.mxu0
      %1945 = vmatprep.mubr.bf16.mxu0 0
      %1946 = vmatmul.mubr.bf16.gmra.mxu0 %v1728
      %v1947 = vpop.f32.mrf.mxu0
      %v1948 = vadd.f32 0.0, %v1947
      %v1949 = vpop.f32.mrf.mxu0
      %v1950 = vpop.f32.mrf.mxu0
      %v1951 = vadd.f32 0.0, %v1950
      %v1952 = vpop.f32.mrf.mxu0
      %1953 = vmatprep.mubr.bf16.mxu0 0
      %1954 = vmatmul.mubr.bf16.gmra.mxu0 %v1731
      %v1955 = vpop.f32.mrf.mxu0
      %v1956 = vadd.f32 0.0, %v1955
      %v1957 = vpop.f32.mrf.mxu0
      %v1958 = vpop.f32.mrf.mxu0
      %v1959 = vadd.f32 0.0, %v1958
      %v1960 = vpop.f32.mrf.mxu0
      %1961 = vmatprep.mubr.bf16.mxu0 0
      %1962 = vmatmul.mubr.bf16.gmra.mxu0 %v1734
      %v1963 = vpop.f32.mrf.mxu0
      %v1964 = vadd.f32 0.0, %v1963
      %v1965 = vpop.f32.mrf.mxu0
      %v1966 = vpop.f32.mrf.mxu0
      %v1967 = vadd.f32 0.0, %v1966
      %v1968 = vpop.f32.mrf.mxu0
      %1969 = vmatprep.mubr.bf16.mxu0 0
      %1970 = vmatmul.mubr.bf16.gmra.mxu0 %v1737
      %v1971 = vpop.f32.mrf.mxu0
      %v1972 = vadd.f32 0.0, %v1971
      %v1973 = vpop.f32.mrf.mxu0
      %v1974 = vpop.f32.mrf.mxu0
      %v1975 = vadd.f32 0.0, %v1974
      %v1976 = vpop.f32.mrf.mxu0
      %1977 = vmatprep.mubr.bf16.mxu0 0
      %1978 = vmatmul.mubr.bf16.gmra.mxu0 %v1740
      %v1979 = vpop.f32.mrf.mxu0
      %v1980 = vadd.f32 0.0, %v1979
      %v1981 = vpop.f32.mrf.mxu0
      %v1982 = vpop.f32.mrf.mxu0
      %v1983 = vadd.f32 0.0, %v1982
      %v1984 = vpop.f32.mrf.mxu0
      %1985 = vmatprep.mubr.bf16.mxu0 0
      %1986 = vmatmul.mubr.bf16.gmra.mxu0 %v1743
      %v1987 = vpop.f32.mrf.mxu0
      %v1988 = vadd.f32 0.0, %v1987
      %v1989 = vpop.f32.mrf.mxu0
      %v1990 = vpop.f32.mrf.mxu0
      %v1991 = vpop.f32.mrf.mxu0
      %1992 = vdwg.mxu0
      %v1993 = vadd.f32 %v1498, %v1780
      %v1994 = vadd.f32 %v1499, %v1783
      %v1995 = vadd.f32 %v1500, %v1788
      %v1996 = vadd.f32 %v1501, %v1791
      %v1997 = vadd.f32 %v1502, %v1796
      %v1998 = vadd.f32 %v1503, %v1799
      %v1999 = vadd.f32 %v1504, %v1804
      %v2000 = vadd.f32 %v1505, %v1807
      %v2001 = vadd.f32 %v1506, %v1812
      %v2002 = vadd.f32 %v1507, %v1815
      %v2003 = vadd.f32 %v1508, %v1820
      %v2004 = vadd.f32 %v1509, %v1823
      %v2005 = vadd.f32 %v1510, %v1828
      %v2006 = vadd.f32 %v1511, %v1831
      %v2007 = vadd.f32 %v1512, %v1836
      %v2008 = vadd.f32 %v1513, %v1839
      %v2009 = vadd.f32 %v1514, %v1844
      %v2010 = vadd.f32 %v1515, %v1847
      %v2011 = vadd.f32 %v1516, %v1852
      %v2012 = vadd.f32 %v1517, %v1855
      %v2013 = vadd.f32 %v1518, %v1860
      %v2014 = vadd.f32 %v1519, %v1863
      %v2015 = vadd.f32 %v1520, %v1868
      %v2016 = vadd.f32 %v1521, %v1871
      %v2017 = vadd.f32 %v1522, %v1876
      %v2018 = vadd.f32 %v1523, %v1879
      %v2019 = vadd.f32 %v1524, %v1884
      %v2020 = vadd.f32 %v1525, %v1887
      %v2021 = vadd.f32 %v1526, %v1892
      %v2022 = vadd.f32 %v1527, %v1895
      %v2023 = vadd.f32 %v1528, %v1900
      %v2024 = vadd.f32 %v1529, %v1903
      %v2025 = vadd.f32 %v1530, %v1908
      %v2026 = vadd.f32 %v1531, %v1911
      %v2027 = vadd.f32 %v1532, %v1916
      %v2028 = vadd.f32 %v1533, %v1919
      %v2029 = vadd.f32 %v1534, %v1924
      %v2030 = vadd.f32 %v1535, %v1927
      %v2031 = vadd.f32 %v1536, %v1932
      %v2032 = vadd.f32 %v1537, %v1935
      %v2033 = vadd.f32 %v1538, %v1940
      %v2034 = vadd.f32 %v1539, %v1943
      %v2035 = vadd.f32 %v1540, %v1948
      %v2036 = vadd.f32 %v1541, %v1951
      %v2037 = vadd.f32 %v1542, %v1956
      %v2038 = vadd.f32 %v1543, %v1959
      %v2039 = vadd.f32 %v1544, %v1964
      %v2040 = vadd.f32 %v1545, %v1967
      %v2041 = vadd.f32 %v1546, %v1972
      %v2042 = vadd.f32 %v1547, %v1975
      %v2043 = vadd.f32 %v1548, %v1980
      %v2044 = vadd.f32 %v1549, %v1983
      %v2045 = vadd.f32 %v1550, %v1988
      %v2046 = vld [vmem:[%s2] sm:$0x1]
      %v2048 = vlaneseq
      %v2049 = vshrl.u32 %v2048, 7
      %v2050 = vsub.s32 0, %v2049
      %v2051 = vrot.slane %v2046, %v2050
      %v2053 = vadd.f32 %v1993, %v2051
      %v2054 = vadd.f32 %v1994, %v2051
      %v2055 = vadd.f32 %v1995, %v2051
      %v2056 = vadd.f32 %v1996, %v2051
      %v2057 = vadd.f32 %v1997, %v2051
      %v2058 = vadd.f32 %v1998, %v2051
      %v2059 = vadd.f32 %v1999, %v2051
      %v2060 = vadd.f32 %v2000, %v2051
      %v2061 = vadd.f32 %v2001, %v2051
      %v2062 = vadd.f32 %v2002, %v2051
      %v2063 = vadd.f32 %v2003, %v2051
      %v2064 = vadd.f32 %v2004, %v2051
      %v2065 = vadd.f32 %v2005, %v2051
      %v2066 = vadd.f32 %v2006, %v2051
      %v2067 = vadd.f32 %v2007, %v2051
      %v2068 = vadd.f32 %v2008, %v2051
      %v2069 = vadd.f32 %v2009, %v2051
      %v2070 = vadd.f32 %v2010, %v2051
      %v2071 = vadd.f32 %v2011, %v2051
      %v2072 = vadd.f32 %v2012, %v2051
      %v2073 = vadd.f32 %v2013, %v2051
      %v2074 = vadd.f32 %v2014, %v2051
      %v2075 = vadd.f32 %v2015, %v2051
      %v2076 = vadd.f32 %v2016, %v2051
      %v2077 = vadd.f32 %v2017, %v2051
      %v2078 = vadd.f32 %v2018, %v2051
      %v2079 = vadd.f32 %v2019, %v2051
      %v2080 = vadd.f32 %v2020, %v2051
      %v2081 = vadd.f32 %v2021, %v2051
      %v2082 = vadd.f32 %v2022, %v2051
      %v2083 = vadd.f32 %v2023, %v2051
      %v2084 = vadd.f32 %v2024, %v2051
      %v2085 = vadd.f32 %v2025, %v2051
      %v2086 = vadd.f32 %v2026, %v2051
      %v2087 = vadd.f32 %v2027, %v2051
      %v2088 = vadd.f32 %v2028, %v2051
      %v2089 = vadd.f32 %v2029, %v2051
      %v2090 = vadd.f32 %v2030, %v2051
      %v2091 = vadd.f32 %v2031, %v2051
      %v2092 = vadd.f32 %v2032, %v2051
      %v2093 = vadd.f32 %v2033, %v2051
      %v2094 = vadd.f32 %v2034, %v2051
      %v2095 = vadd.f32 %v2035, %v2051
      %v2096 = vadd.f32 %v2036, %v2051
      %v2097 = vadd.f32 %v2037, %v2051
      %v2098 = vadd.f32 %v2038, %v2051
      %v2099 = vadd.f32 %v2039, %v2051
      %v2100 = vadd.f32 %v2040, %v2051
      %v2101 = vadd.f32 %v2041, %v2051
      %v2102 = vadd.f32 %v2042, %v2051
      %v2103 = vadd.f32 %v2043, %v2051
      %v2104 = vadd.f32 %v2044, %v2051
      %v2105 = vadd.f32 %v2045, %v2051
      %v2106 = vmax.f32 %v2053, 0.0
      %v2107 = vmax.f32 %v2054, 0.0
      %v2108 = vmax.f32 %v2055, 0.0
      %v2109 = vmax.f32 %v2056, 0.0
      %v2110 = vmax.f32 %v2057, 0.0
      %v2111 = vmax.f32 %v2058, 0.0
      %v2112 = vmax.f32 %v2059, 0.0
      %v2113 = vmax.f32 %v2060, 0.0
      %v2114 = vmax.f32 %v2061, 0.0
      %v2115 = vmax.f32 %v2062, 0.0
      %v2116 = vmax.f32 %v2063, 0.0
      %v2117 = vmax.f32 %v2064, 0.0
      %v2118 = vmax.f32 %v2065, 0.0
      %v2119 = vmax.f32 %v2066, 0.0
      %v2120 = vmax.f32 %v2067, 0.0
      %v2121 = vmax.f32 %v2068, 0.0
      %v2122 = vmax.f32 %v2069, 0.0
      %v2123 = vmax.f32 %v2070, 0.0
      %v2124 = vmax.f32 %v2071, 0.0
      %v2125 = vmax.f32 %v2072, 0.0
      %v2126 = vmax.f32 %v2073, 0.0
      %v2127 = vmax.f32 %v2074, 0.0
      %v2128 = vmax.f32 %v2075, 0.0
      %v2129 = vmax.f32 %v2076, 0.0
      %v2130 = vmax.f32 %v2077, 0.0
      %v2131 = vmax.f32 %v2078, 0.0
      %v2132 = vmax.f32 %v2079, 0.0
      %v2133 = vmax.f32 %v2080, 0.0
      %v2134 = vmax.f32 %v2081, 0.0
      %v2135 = vmax.f32 %v2082, 0.0
      %v2136 = vmax.f32 %v2083, 0.0
      %v2137 = vmax.f32 %v2084, 0.0
      %v2138 = vmax.f32 %v2085, 0.0
      %v2139 = vmax.f32 %v2086, 0.0
      %v2140 = vmax.f32 %v2087, 0.0
      %v2141 = vmax.f32 %v2088, 0.0
      %v2142 = vmax.f32 %v2089, 0.0
      %v2143 = vmax.f32 %v2090, 0.0
      %v2144 = vmax.f32 %v2091, 0.0
      %v2145 = vmax.f32 %v2092, 0.0
      %v2146 = vmax.f32 %v2093, 0.0
      %v2147 = vmax.f32 %v2094, 0.0
      %v2148 = vmax.f32 %v2095, 0.0
      %v2149 = vmax.f32 %v2096, 0.0
      %v2150 = vmax.f32 %v2097, 0.0
      %v2151 = vmax.f32 %v2098, 0.0
      %v2152 = vmax.f32 %v2099, 0.0
      %v2153 = vmax.f32 %v2100, 0.0
      %v2154 = vmax.f32 %v2101, 0.0
      %v2155 = vmax.f32 %v2102, 0.0
      %v2156 = vmax.f32 %v2103, 0.0
      %v2157 = vmax.f32 %v2104, 0.0
      %v2158 = vmax.f32 %v2105, 0.0
      %vm2159 = vcmask 261120
      %2160 = vst.msk [vmem:[%s170] sm:$0xff] %vm2159, %v2106
      %2161 = vst.msk [vmem:[%s170 + $0x8] sm:$0xff] %vm2159, %v2107
      %2162 = vst.msk [vmem:[%s170 + $0x10] sm:$0xff] %vm2159, %v2108
      %2163 = vst.msk [vmem:[%s170 + $0x18] sm:$0xff] %vm2159, %v2109
      %2164 = vst.msk [vmem:[%s170 + $0x20] sm:$0xff] %vm2159, %v2110
      %2165 = vst.msk [vmem:[%s170 + $0x28] sm:$0xff] %vm2159, %v2111
      %2166 = vst.msk [vmem:[%s170 + $0x30] sm:$0xff] %vm2159, %v2112
      %2167 = vst.msk [vmem:[%s170 + $0x38] sm:$0xff] %vm2159, %v2113
      %2168 = vst.msk [vmem:[%s170 + $0x40] sm:$0xff] %vm2159, %v2114
      %2169 = vst.msk [vmem:[%s170 + $0x48] sm:$0xff] %vm2159, %v2115
      %2170 = vst.msk [vmem:[%s170 + $0x50] sm:$0xff] %vm2159, %v2116
      %2171 = vst.msk [vmem:[%s170 + $0x58] sm:$0xff] %vm2159, %v2117
      %2172 = vst.msk [vmem:[%s170 + $0x60] sm:$0xff] %vm2159, %v2118
      %2173 = vst.msk [vmem:[%s170 + $0x68] sm:$0xff] %vm2159, %v2119
      %2174 = vst.msk [vmem:[%s170 + $0x70] sm:$0xff] %vm2159, %v2120
      %2175 = vst.msk [vmem:[%s170 + $0x78] sm:$0xff] %vm2159, %v2121
      %2176 = vst.msk [vmem:[%s170 + $0x80] sm:$0xff] %vm2159, %v2122
      %2177 = vst.msk [vmem:[%s170 + $0x88] sm:$0xff] %vm2159, %v2123
      %2178 = vst.msk [vmem:[%s170 + $0x90] sm:$0xff] %vm2159, %v2124
      %2179 = vst.msk [vmem:[%s170 + $0x98] sm:$0xff] %vm2159, %v2125
      %2180 = vst.msk [vmem:[%s170 + $0xa0] sm:$0xff] %vm2159, %v2126
      %2181 = vst.msk [vmem:[%s170 + $0xa8] sm:$0xff] %vm2159, %v2127
      %2182 = vst.msk [vmem:[%s170 + $0xb0] sm:$0xff] %vm2159, %v2128
      %2183 = vst.msk [vmem:[%s170 + $0xb8] sm:$0xff] %vm2159, %v2129
      %2184 = vst.msk [vmem:[%s170 + $0xc0] sm:$0xff] %vm2159, %v2130
      %2185 = vst.msk [vmem:[%s170 + $0xc8] sm:$0xff] %vm2159, %v2131
      %2186 = vst.msk [vmem:[%s170 + $0xd0] sm:$0xff] %vm2159, %v2132
      %2187 = vst.msk [vmem:[%s170 + $0xd8] sm:$0xff] %vm2159, %v2133
      %2188 = vst.msk [vmem:[%s170 + $0xe0] sm:$0xff] %vm2159, %v2134
      %2189 = vst.msk [vmem:[%s170 + $0xe8] sm:$0xff] %vm2159, %v2135
      %2190 = vst.msk [vmem:[%s170 + $0xf0] sm:$0xff] %vm2159, %v2136
      %2191 = vst.msk [vmem:[%s170 + $0xf8] sm:$0xff] %vm2159, %v2137
      %2192 = vst.msk [vmem:[%s170 + $0x100] sm:$0xff] %vm2159, %v2138
      %2193 = vst.msk [vmem:[%s170 + $0x108] sm:$0xff] %vm2159, %v2139
      %2194 = vst.msk [vmem:[%s170 + $0x110] sm:$0xff] %vm2159, %v2140
      %2195 = vst.msk [vmem:[%s170 + $0x118] sm:$0xff] %vm2159, %v2141
      %2196 = vst.msk [vmem:[%s170 + $0x120] sm:$0xff] %vm2159, %v2142
      %2197 = vst.msk [vmem:[%s170 + $0x128] sm:$0xff] %vm2159, %v2143
      %2198 = vst.msk [vmem:[%s170 + $0x130] sm:$0xff] %vm2159, %v2144
      %2199 = vst.msk [vmem:[%s170 + $0x138] sm:$0xff] %vm2159, %v2145
      %2200 = vst.msk [vmem:[%s170 + $0x140] sm:$0xff] %vm2159, %v2146
      %2201 = vst.msk [vmem:[%s170 + $0x148] sm:$0xff] %vm2159, %v2147
      %2202 = vst.msk [vmem:[%s170 + $0x150] sm:$0xff] %vm2159, %v2148
      %2203 = vst.msk [vmem:[%s170 + $0x158] sm:$0xff] %vm2159, %v2149
      %2204 = vst.msk [vmem:[%s170 + $0x160] sm:$0xff] %vm2159, %v2150
      %2205 = vst.msk [vmem:[%s170 + $0x168] sm:$0xff] %vm2159, %v2151
      %2206 = vst.msk [vmem:[%s170 + $0x170] sm:$0xff] %vm2159, %v2152
      %2207 = vst.msk [vmem:[%s170 + $0x178] sm:$0xff] %vm2159, %v2153
      %2208 = vst.msk [vmem:[%s170 + $0x180] sm:$0xff] %vm2159, %v2154
      %2209 = vst.msk [vmem:[%s170 + $0x188] sm:$0xff] %vm2159, %v2155
      %2210 = vst.msk [vmem:[%s170 + $0x190] sm:$0xff] %vm2159, %v2156
      %2211 = vst.msk [vmem:[%s170 + $0x198] sm:$0xff] %vm2159, %v2157
      %vm2212 = vcmask 257024
      %2213 = vst.msk [vmem:[%s170 + $0x1a0] sm:$0xf] %vm2212, %v2158
      %p2214 = scmp.lt.s32.totalorder %s14, 1
      %s2215 = scalar_select %p2214, %s14, 1
      %s2216 = smul.addr %s2215, 53
      %s2217 = smul.addr %s2216, 8
      %s2218 = scalar_lea.vmem %s3, %s2217
      // Predicated region
      $region33: #{dqn_forward.4} parent=31 // pred_check
        %p2219 = pneg %p100
      $region34: #{dqn_forward.4} parent=31 // pred_check_branch
        %2221 = sbr.rel (%p2219) target = $region36
      $region35: #{dqn_forward.4} parent=31 // pred_region
        _
      $region36: #{dqn_forward.4} parent=31 // pred_fallthru
        _
    $region32: #{dqn_forward.4} parent=5 // pred_fallthru
      _
    %p2222 = scmp.le.s32.totalorder 2, %s9
    // Predicated region
    $region37: #{dqn_forward.4} parent=5 // pred_check
      %p2223 = pneg %p2222
    $region38: #{dqn_forward.4} parent=5 // pred_check_branch
      %2225 = sbr.rel (%p2223) target = $region40
    $region39: #{dqn_forward.4} parent=5 // pred_region
      %s2226 = ssub.s32 %s9, 2
      // Predicated region
      $region41: #{dqn_forward.4} parent=39 // pred_check
        %p2227 = pneg %p106
      $region42: #{dqn_forward.4} parent=39 // pred_check_branch
        %2229 = sbr.rel (%p2227) target = $region44
      $region43: #{dqn_forward.4} parent=39 // pred_region
        %p2230 = scmp.lt.s32.totalorder %s15, 1
        %s2231 = scalar_select %p2230, %s15, 1
        %s2232 = smul.addr %s2231, 53
        %s2233 = smul.addr %s2232, 8
        %s2234 = scalar_lea.vmem %s3, %s2233
      $region44: #{dqn_forward.4} parent=39 // pred_fallthru
        _
    $region40: #{dqn_forward.4} parent=5 // pred_fallthru
      _
  $region6: #{dqn_forward.4} parent=0 // loop_footer
    %s13 = sadd.s32 1, %s9
  $region7: #{dqn_forward.4} parent=0 // loop_footer_branch
    %8 = sbr.rel target = $region3
  $region8: #{dqn_forward.4} parent=0 // loop_exit
    _

// kernel: dqn_forward.5
$region0: #{dqn_forward.5}
  #allocation0 [shape = 'u32[]', space=smem, size = 0x4, offset = 0x4, fixed_abs, tag = 'smem constant byte address 0x4 - core index']
  #allocation1 [shape = 'u32[144,128]{1,0:T(1,128)}', space=vmem, size = 0x12000, scoped, tag = 'internal scratch']
  %s0 = inlined_call_operand.vmem [shape: f32[2,104,128], index: 0, kind: input, shape index: {}]
  %s1 = inlined_call_operand.vmem [shape: bf16[4,128,64], index: 1, kind: input, shape index: {}]
  %s2 = inlined_call_operand.vmem [shape: f32[1,64], index: 2, kind: input, shape index: {}]
  %s3 = inlined_call_operand.vmem [shape: f32[2,90,64], index: 3, kind: output, shape index: {}]
  %s4 = sld [smem:[#allocation0]]
  $region45: #{dqn_forward.5} parent=0
    _
  %s6 = ssub.s32 1, %s4
  %s7 = scalar_select 0, %s6, %s4
  loop: start=0, step=1, limit=4
  $region2: #{dqn_forward.5} parent=0 // loop_pre_header
    _
  $region3: #{dqn_forward.5} parent=0 // loop_header
    %s9 = sphi 0, %s13
    %p10 = scmp.ge.s32.totalorder %s9, 4
    %s19 = sphi 0, %s21
    %s22 = sphi 0, %s19
    %s23 = sphi 0, %s22
    %s39 = sphi 0, %s23
    %s43 = sphi 0, %s43
    %s45 = sphi 0, %s43
    %s46 = sphi 0, %s45
    %s60 = sphi 0, %s46
    %s64 = sphi 0, %s64
    %s66 = sphi 0, %s64
    %s67 = sphi 0, %s66
    %s81 = sphi 0, %s67
    %s87 = sphi 0, %s89
    %s90 = sphi 0, %s87
    %s91 = sphi 0, %s90
    %s107 = sphi 0, %s91
  $region4: #{dqn_forward.5} parent=0 // loop_header_branch
    %12 = sbr.rel (%p10) target = $region8
  $region5: #{dqn_forward.5} parent=0 // loop_body
    %s14 = ssub.s32 %s9, 1
    %s15 = ssub.s32 %s9, 2
    %s16 = sadd.s32 %s9, 1
    %s17 = ssub.s32 %s9, %s16
    %p18 = scmp.eq.s32.totalorder %s17, 0
    %s20 = sadd.s32 %s19, 1
    %s21 = scalar_select %p18, %s19, %s20
    %p24 = pneg %p18
    %p25 = scmp.eq.s32.totalorder %s9, 1
    %p26 = por %p24, %p25
    %p27 = scmp.ne.s32.totalorder %s19, %s22
    %p28 = scmp.eq.s32.totalorder %s9, 0
    %p29 = por %p27, %p28
    %p30 = scmp.ne.s32.totalorder %s19, %s22
    %p31 = scmp.eq.s32.totalorder %s14, 1
    %p32 = por %p30, %p31
    %p33 = scmp.ne.s32.totalorder %s22, %s23
    %p34 = scmp.eq.s32.totalorder %s14, 0
    %p35 = por %p33, %p34
    %p36 = scmp.ne.s32.totalorder %s22, %s23
    %p37 = scmp.eq.s32.totalorder %s15, 1
    %p38 = por %p36, %p37
    %p40 = scmp.ne.s32.totalorder %s23, %s39
    %p41 = scmp.eq.s32.totalorder %s15, 0
    %p42 = por %p40, %p41
    %s44 = sadd.s32 %s43, 1
    %p47 = scmp.eq.s32.totalorder %s9, 1
    %p48 = scmp.ne.s32.totalorder %s43, %s45
    %p49 = scmp.eq.s32.totalorder %s9, 0
    %p50 = por %p48, %p49
    %p51 = scmp.ne.s32.totalorder %s43, %s45
    %p52 = scmp.eq.s32.totalorder %s14, 1
    %p53 = por %p51, %p52
    %p54 = scmp.ne.s32.totalorder %s45, %s46
    %p55 = scmp.eq.s32.totalorder %s14, 0
    %p56 = por %p54, %p55
    %p57 = scmp.ne.s32.totalorder %s45, %s46
    %p58 = scmp.eq.s32.totalorder %s15, 1
    %p59 = por %p57, %p58
    %p61 = scmp.ne.s32.totalorder %s46, %s60
    %p62 = scmp.eq.s32.totalorder %s15, 0
    %p63 = por %p61, %p62
    %s65 = sadd.s32 %s64, 1
    %p68 = scmp.eq.s32.totalorder %s9, 1
    %p69 = scmp.ne.s32.totalorder %s64, %s66
    %p70 = scmp.eq.s32.totalorder %s9, 0
    %p71 = por %p69, %p70
    %p72 = scmp.ne.s32.totalorder %s64, %s66
    %p73 = scmp.eq.s32.totalorder %s14, 1
    %p74 = por %p72, %p73
    %p75 = scmp.ne.s32.totalorder %s66, %s67
    %p76 = scmp.eq.s32.totalorder %s14, 0
    %p77 = por %p75, %p76
    %p78 = scmp.ne.s32.totalorder %s66, %s67
    %p79 = scmp.eq.s32.totalorder %s15, 1
    %p80 = por %p78, %p79
    %p82 = scmp.ne.s32.totalorder %s67, %s81
    %p83 = scmp.eq.s32.totalorder %s15, 0
    %p84 = por %p82, %p83
    %s85 = ssub.s32 %s9, %s16
    %p86 = scmp.eq.s32.totalorder %s85, 0
    %s88 = sadd.s32 %s87, 1
    %s89 = scalar_select %p86, %s87, %s88
    %p92 = pneg %p86
    %p93 = scmp.eq.s32.totalorder %s9, 1
    %p94 = por %p92, %p93
    %p95 = scmp.ne.s32.totalorder %s87, %s90
    %p96 = scmp.eq.s32.totalorder %s9, 0
    %p97 = por %p95, %p96
    %p98 = scmp.ne.s32.totalorder %s87, %s90
    %p99 = scmp.eq.s32.totalorder %s14, 1
    %p100 = por %p98, %p99
    %p101 = scmp.ne.s32.totalorder %s90, %s91
    %p102 = scmp.eq.s32.totalorder %s14, 0
    %p103 = por %p101, %p102
    %p104 = scmp.ne.s32.totalorder %s90, %s91
    %p105 = scmp.eq.s32.totalorder %s15, 1
    %p106 = por %p104, %p105
    %p108 = scmp.ne.s32.totalorder %s91, %s107
    %p109 = scmp.eq.s32.totalorder %s15, 0
    %p110 = por %p108, %p109
    %p111 = scmp.le.s32.totalorder 1, %s9
    %p112 = scmp.lt.s32.totalorder %s9, 3
    %p113 = pnand %p111, %p112
    %p114 = pneg %p113
    // Predicated region
    $region9: #{dqn_forward.5} parent=5 // pred_check
      _
    $region10: #{dqn_forward.5} parent=5 // pred_check_branch
      %116 = sbr.rel (%p113) target = $region12
    $region11: #{dqn_forward.5} parent=5 // pred_region
      %s117 = ssub.s32 %s9, 1
      // Predicated region
      $region13: #{dqn_forward.5} parent=11 // pred_check
        %p118 = pneg %p56
      $region14: #{dqn_forward.5} parent=11 // pred_check_branch
        %120 = sbr.rel (%p118) target = $region16
      $region15: #{dqn_forward.5} parent=11 // pred_region
        _
      $region16: #{dqn_forward.5} parent=11 // pred_fallthru
        _
      // Predicated region
      $region17: #{dqn_forward.5} parent=11 // pred_check
        %p121 = pneg %p77
      $region18: #{dqn_forward.5} parent=11 // pred_check_branch
        %123 = sbr.rel (%p121) target = $region20
      $region19: #{dqn_forward.5} parent=11 // pred_region
        _
      $region20: #{dqn_forward.5} parent=11 // pred_fallthru
        _
    $region12: #{dqn_forward.5} parent=5 // pred_fallthru
      _
    %p124 = scmp.lt.s32.totalorder %s9, 2
    // Predicated region
    $region21: #{dqn_forward.5} parent=5 // pred_check
      %p125 = pneg %p124
    $region22: #{dqn_forward.5} parent=5 // pred_check_branch
      %127 = sbr.rel (%p125) target = $region24
    $region23: #{dqn_forward.5} parent=5 // pred_region
      // Predicated region
      $region25: #{dqn_forward.5} parent=23 // pred_check
        %p128 = pneg %p29
      $region26: #{dqn_forward.5} parent=23 // pred_check_branch
        %130 = sbr.rel (%p128) target = $region28
      $region27: #{dqn_forward.5} parent=23 // pred_region
        %p131 = scmp.lt.s32.totalorder %s9, 1
        %s132 = scalar_select %p131, %s9, 1
        %s133 = smul.addr %s132, 13
        %s134 = smul.addr %s133, 8
        %s135 = scalar_lea.vmem %s0, %s134
      $region28: #{dqn_forward.5} parent=23 // pred_fallthru
        _
    $region24: #{dqn_forward.5} parent=5 // pred_fallthru
      _
    %p136 = scmp.le.s32.totalorder 1, %s9
    %p137 = scmp.lt.s32.totalorder %s9, 3
    %p138 = pnand %p136, %p137
    %p139 = pneg %p138
    // Predicated region
    $region29: #{dqn_forward.5} parent=5 // pred_check
      _
    $region30: #{dqn_forward.5} parent=5 // pred_check_branch
      %141 = sbr.rel (%p138) target = $region32
    $region31: #{dqn_forward.5} parent=5 // pred_region
      %s142 = ssub.s32 %s9, 1
      %p143 = scmp.lt.s32.totalorder %s14, 1
      %s144 = scalar_select %p143, %s14, 1
      %s145 = smul.addr %s144, 13
      %s146 = smul.addr %s145, 8
      %s147 = scalar_lea.vmem %s0, %s146
      %p148 = pneg %p35
      %p149 = pneg %p32
      %p150 = pneg %p56
      %p151 = pneg %p53
      %p152 = pneg %p77
      %p153 = pneg %p74
      %p154 = pneg %p103
      %p155 = pneg %p100
      %p156 = scmp.lt.s32.totalorder %s14, 1
      %s157 = scalar_select %p156, %s14, 1
      %s158 = smul.addr %s157, 12
      %s159 = smul.addr %s158, 8
      %s160 = scalar_lea.vmem %s3, %s159
      %p161 = scmp.lt.s32.totalorder %s14, 1
      %s162 = scalar_select %p161, %s14, 1
      %s163 = smul.addr %s162, 13
      %s164 = smul.addr %s163, 8
      %s165 = scalar_lea.vmem %s0, %s164
      %p166 = scmp.lt.s32.totalorder %s14, 1
      %s167 = scalar_select %p166, %s14, 1
      %s168 = smul.addr %s167, 12
      %s169 = smul.addr %s168, 8
      %s170 = scalar_lea.vmem %s3, %s169
      %v172 = vld [vmem:[%s165] sm:$0xff]
      %v173 = vld [vmem:[%s165 + $0x8] sm:$0xff]
      %v174 = vld [vmem:[%s165 + $0x10] sm:$0xff]
      %v175 = vld [vmem:[%s165 + $0x18] sm:$0xff]
      %v176 = vld [vmem:[%s165 + $0x20] sm:$0xff]
      %v177 = vld [vmem:[%s165 + $0x28] sm:$0xff]
      %v178 = vld [vmem:[%s165 + $0x30] sm:$0xff]
      %v179 = vld [vmem:[%s165 + $0x38] sm:$0xff]
      %v180 = vld [vmem:[%s165 + $0x40] sm:$0xff]
      %v181 = vld [vmem:[%s165 + $0x48] sm:$0xff]
      %v182 = vld [vmem:[%s165 + $0x50] sm:$0xff]
      %v183 = vld [vmem:[%s165 + $0x58] sm:$0x3]
      %v184 = vpack.c.bf16 %v173, %v172
      %v185 = vpack.c.bf16 %v175, %v174
      %v186 = vpack.c.bf16 %v177, %v176
      %v187 = vpack.c.bf16 %v179, %v178
      %v188 = vpack.c.bf16 %v181, %v180
      %v189 = vpack.c.bf16 %v183, %v182
      %v190 = vld [vmem:[%s1] sm:$0xf]
      %v191 = vld [vmem:[%s1 + $0x4] sm:$0xf]
      %v192 = vld [vmem:[%s1 + $0x8] sm:$0xf]
      %v193 = vld [vmem:[%s1 + $0xc] sm:$0xf]
      %v194 = vld [vmem:[%s1 + $0x10] sm:$0xf]
      %v195 = vld [vmem:[%s1 + $0x14] sm:$0xf]
      %v196 = vld [vmem:[%s1 + $0x18] sm:$0xf]
      %v197 = vld [vmem:[%s1 + $0x1c] sm:$0xf]
      %v198 = vld [vmem:[%s1 + $0x20] sm:$0xf]
      %v199 = vld [vmem:[%s1 + $0x24] sm:$0xf]
      %v200 = vld [vmem:[%s1 + $0x28] sm:$0xf]
      %v201 = vld [vmem:[%s1 + $0x2c] sm:$0xf]
      %v202 = vld [vmem:[%s1 + $0x30] sm:$0xf]
      %v203 = vld [vmem:[%s1 + $0x34] sm:$0xf]
      %v204 = vld [vmem:[%s1 + $0x38] sm:$0xf]
      %v205 = vld [vmem:[%s1 + $0x3c] sm:$0xf]
      %v206 = vld [vmem:[%s165 + $0x1] sm:$0xff]
      %v207 = vld [vmem:[%s165 + $0x9] sm:$0xff]
      %v208 = vld [vmem:[%s165 + $0x11] sm:$0xff]
      %v209 = vld [vmem:[%s165 + $0x19] sm:$0xff]
      %v210 = vld [vmem:[%s165 + $0x21] sm:$0xff]
      %v211 = vld [vmem:[%s165 + $0x29] sm:$0xff]
      %v212 = vld [vmem:[%s165 + $0x31] sm:$0xff]
      %v213 = vld [vmem:[%s165 + $0x39] sm:$0xff]
      %v214 = vld [vmem:[%s165 + $0x41] sm:$0xff]
      %v215 = vld [vmem:[%s165 + $0x49] sm:$0xff]
      %v216 = vld [vmem:[%s165 + $0x51] sm:$0xff]
      %v217 = vld [vmem:[%s165 + $0x59] sm:$0x3]
      %v218 = vpack.c.bf16 %v207, %v206
      %v219 = vpack.c.bf16 %v209, %v208
      %v220 = vpack.c.bf16 %v211, %v210
      %v221 = vpack.c.bf16 %v213, %v212
      %v222 = vpack.c.bf16 %v215, %v214
      %v223 = vpack.c.bf16 %v217, %v216
      %s224 = scalar_lea.vmem %s1, 64
      %v225 = vld [vmem:[%s224] sm:$0xf]
      %v226 = vld [vmem:[%s224 + $0x4] sm:$0xf]
      %v227 = vld [vmem:[%s224 + $0x8] sm:$0xf]
      %v228 = vld [vmem:[%s224 + $0xc] sm:$0xf]
      %v229 = vld [vmem:[%s224 + $0x10] sm:$0xf]
      %v230 = vld [vmem:[%s224 + $0x14] sm:$0xf]
      %v231 = vld [vmem:[%s224 + $0x18] sm:$0xf]
      %v232 = vld [vmem:[%s224 + $0x1c] sm:$0xf]
      %v233 = vld [vmem:[%s224 + $0x20] sm:$0xf]
      %v234 = vld [vmem:[%s224 + $0x24] sm:$0xf]
      %v235 = vld [vmem:[%s224 + $0x28] sm:$0xf]
      %v236 = vld [vmem:[%s224 + $0x2c] sm:$0xf]
      %v237 = vld [vmem:[%s224 + $0x30] sm:$0xf]
      %v238 = vld [vmem:[%s224 + $0x34] sm:$0xf]
      %v239 = vld [vmem:[%s224 + $0x38] sm:$0xf]
      %v240 = vld [vmem:[%s224 + $0x3c] sm:$0xf]
      %v257 = vunpack.c.l.b16 %v225
      %v258 = vunpack.c.l.b16 %v226
      %v259 = vunpack.c.l.b16 %v227
      %v260 = vunpack.c.l.b16 %v228
      %v261 = vunpack.c.l.b16 %v229
      %v262 = vunpack.c.l.b16 %v230
      %v263 = vunpack.c.l.b16 %v231
      %v264 = vunpack.c.l.b16 %v232
      %v265 = vunpack.c.l.b16 %v233
      %v266 = vunpack.c.l.b16 %v234
      %v267 = vunpack.c.l.b16 %v235
      %v268 = vunpack.c.l.b16 %v236
      %v269 = vunpack.c.l.b16 %v237
      %v270 = vunpack.c.l.b16 %v238
      %v271 = vunpack.c.l.b16 %v239
      %v272 = vunpack.c.l.b16 %v240
      %v273 = vpack.c.b16 %v258, %v257
      %v274 = vpack.c.b16 %v260, %v259
      %v275 = vpack.c.b16 %v262, %v261
      %v276 = vpack.c.b16 %v264, %v263
      %v277 = vpack.c.b16 %v266, %v265
      %v278 = vpack.c.b16 %v268, %v267
      %v279 = vpack.c.b16 %v270, %v269
      %v280 = vpack.c.b16 %v272, %v271
      %289 = vmatprep.subr.bf16.mxu0 0
      %290 = vmatpush1.bf16.msra.mxu0 %v280
      %291 = vmatprep.subr.bf16.mxu0 0
      %292 = vmatpush1.bf16.msra.mxu0 %v279
      %293 = vmatprep.subr.bf16.mxu0 0
      %294 = vmatpush1.bf16.msra.mxu0 %v278
      %295 = vmatprep.subr.bf16.mxu0 0
      %296 = vmatpush1.bf16.msra.mxu0 %v277
      %297 = vmatprep.subr.bf16.mxu0 0
      %298 = vmatpush1.bf16.msra.mxu0 %v276
      %299 = vmatprep.subr.bf16.mxu0 0
      %300 = vmatpush1.bf16.msra.mxu0 %v275
      %301 = vmatprep.subr.bf16.mxu0 0
      %302 = vmatpush1.bf16.msra.mxu0 %v274
      %303 = vmatprep.subr.bf16.mxu0 0
      %304 = vmatpush1.bf16.msra.mxu0 %v273
      %305 = vmatprep.subr.bf16.mxu0 0
      %306 = vmatpush2.bf16.msra.mxu0 0
      %307 = vmatprep.subr.bf16.mxu0 0
      %308 = vmatpush2.bf16.msra.mxu0 0
      %309 = vmatprep.subr.bf16.mxu0 0
      %310 = vmatpush2.bf16.msra.mxu0 0
      %311 = vmatprep.subr.bf16.mxu0 0
      %312 = vmatpush2.bf16.msra.mxu0 0
      %313 = vmatprep.subr.bf16.mxu0 0
      %314 = vmatpush2.bf16.msra.mxu0 0
      %315 = vmatprep.subr.bf16.mxu0 0
      %316 = vmatpush2.bf16.msra.mxu0 0
      %317 = vmatprep.subr.bf16.mxu0 0
      %318 = vmatpush2.bf16.msra.mxu0 0
      %319 = vmatprep.subr.bf16.mxu0 0
      %320 = vmatpush2.bf16.msra.mxu0 0
      %321 = vmatprep.mubr.bf16.mxu0 0
      %322 = vmatmul.mubr.bf16.gmra.mxu0 %v218
      %v323 = vpop.f32.mrf.mxu0
      %v324 = vadd.f32 0.0, %v323
      %v325 = vpop.f32.mrf.mxu0
      %v326 = vpop.f32.mrf.mxu0
      %v327 = vadd.f32 0.0, %v326
      %v328 = vpop.f32.mrf.mxu0
      %329 = vmatprep.mubr.bf16.mxu0 0
      %330 = vmatmul.mubr.bf16.gmra.mxu0 %v219
      %v331 = vpop.f32.mrf.mxu0
      %v332 = vadd.f32 0.0, %v331
      %v333 = vpop.f32.mrf.mxu0
      %v334 = vpop.f32.mrf.mxu0
      %v335 = vadd.f32 0.0, %v334
      %v336 = vpop.f32.mrf.mxu0
      %337 = vmatprep.mubr.bf16.mxu0 0
      %338 = vmatmul.mubr.bf16.gmra.mxu0 %v220
      %v339 = vpop.f32.mrf.mxu0
      %v340 = vadd.f32 0.0, %v339
      %v341 = vpop.f32.mrf.mxu0
      %v342 = vpop.f32.mrf.mxu0
      %v343 = vadd.f32 0.0, %v342
      %v344 = vpop.f32.mrf.mxu0
      %345 = vmatprep.mubr.bf16.mxu0 0
      %346 = vmatmul.mubr.bf16.gmra.mxu0 %v221
      %v347 = vpop.f32.mrf.mxu0
      %v348 = vadd.f32 0.0, %v347
      %v349 = vpop.f32.mrf.mxu0
      %v350 = vpop.f32.mrf.mxu0
      %v351 = vadd.f32 0.0, %v350
      %v352 = vpop.f32.mrf.mxu0
      %353 = vmatprep.mubr.bf16.mxu0 0
      %354 = vmatmul.mubr.bf16.gmra.mxu0 %v222
      %v355 = vpop.f32.mrf.mxu0
      %v356 = vadd.f32 0.0, %v355
      %v357 = vpop.f32.mrf.mxu0
      %v358 = vpop.f32.mrf.mxu0
      %v359 = vadd.f32 0.0, %v358
      %v360 = vpop.f32.mrf.mxu0
      %361 = vmatprep.mubr.bf16.mxu0 0
      %362 = vmatmul.mubr.bf16.gmra.mxu0 %v223
      %v363 = vpop.f32.mrf.mxu0
      %v364 = vadd.f32 0.0, %v363
      %v365 = vpop.f32.mrf.mxu0
      %v366 = vpop.f32.mrf.mxu0
      %v367 = vadd.f32 0.0, %v366
      %v368 = vpop.f32.mrf.mxu0
      %369 = vdwg.mxu0
      %v386 = vunpack.c.l.b16 %v190
      %v387 = vunpack.c.l.b16 %v191
      %v388 = vunpack.c.l.b16 %v192
      %v389 = vunpack.c.l.b16 %v193
      %v390 = vunpack.c.l.b16 %v194
      %v391 = vunpack.c.l.b16 %v195
      %v392 = vunpack.c.l.b16 %v196
      %v393 = vunpack.c.l.b16 %v197
      %v394 = vunpack.c.l.b16 %v198
      %v395 = vunpack.c.l.b16 %v199
      %v396 = vunpack.c.l.b16 %v200
      %v397 = vunpack.c.l.b16 %v201
      %v398 = vunpack.c.l.b16 %v202
      %v399 = vunpack.c.l.b16 %v203
      %v400 = vunpack.c.l.b16 %v204
      %v401 = vunpack.c.l.b16 %v205
      %v402 = vpack.c.b16 %v387, %v386
      %v403 = vpack.c.b16 %v389, %v388
      %v404 = vpack.c.b16 %v391, %v390
      %v405 = vpack.c.b16 %v393, %v392
      %v406 = vpack.c.b16 %v395, %v394
      %v407 = vpack.c.b16 %v397, %v396
      %v408 = vpack.c.b16 %v399, %v398
      %v409 = vpack.c.b16 %v401, %v400
      %418 = vmatprep.subr.bf16.mxu0 0
      %419 = vmatpush1.bf16.msra.mxu0 %v409
      %420 = vmatprep.subr.bf16.mxu0 0
      %421 = vmatpush1.bf16.msra.mxu0 %v408
      %422 = vmatprep.subr.bf16.mxu0 0
      %423 = vmatpush1.bf16.msra.mxu0 %v407
      %424 = vmatprep.subr.bf16.mxu0 0
      %425 = vmatpush1.bf16.msra.mxu0 %v406
      %426 = vmatprep.subr.bf16.mxu0 0
      %427 = vmatpush1.bf16.msra.mxu0 %v405
      %428 = vmatprep.subr.bf16.mxu0 0
      %429 = vmatpush1.bf16.msra.mxu0 %v404
      %430 = vmatprep.subr.bf16.mxu0 0
      %431 = vmatpush1.bf16.msra.mxu0 %v403
      %432 = vmatprep.subr.bf16.mxu0 0
      %433 = vmatpush1.bf16.msra.mxu0 %v402
      %434 = vmatprep.subr.bf16.mxu0 0
      %435 = vmatpush2.bf16.msra.mxu0 0
      %436 = vmatprep.subr.bf16.mxu0 0
      %437 = vmatpush2.bf16.msra.mxu0 0
      %438 = vmatprep.subr.bf16.mxu0 0
      %439 = vmatpush2.bf16.msra.mxu0 0
      %440 = vmatprep.subr.bf16.mxu0 0
      %441 = vmatpush2.bf16.msra.mxu0 0
      %442 = vmatprep.subr.bf16.mxu0 0
      %443 = vmatpush2.bf16.msra.mxu0 0
      %444 = vmatprep.subr.bf16.mxu0 0
      %445 = vmatpush2.bf16.msra.mxu0 0
      %446 = vmatprep.subr.bf16.mxu0 0
      %447 = vmatpush2.bf16.msra.mxu0 0
      %448 = vmatprep.subr.bf16.mxu0 0
      %449 = vmatpush2.bf16.msra.mxu0 0
      %450 = vmatprep.mubr.bf16.mxu0 0
      %451 = vmatmul.mubr.bf16.gmra.mxu0 %v184
      %v452 = vpop.f32.mrf.mxu0
      %v453 = vadd.f32 %v324, %v452
      %v454 = vpop.f32.mrf.mxu0
      %v455 = vpop.f32.mrf.mxu0
      %v456 = vadd.f32 %v327, %v455
      %v457 = vpop.f32.mrf.mxu0
      %458 = vmatprep.mubr.bf16.mxu0 0
      %459 = vmatmul.mubr.bf16.gmra.mxu0 %v185
      %v460 = vpop.f32.mrf.mxu0
      %v461 = vadd.f32 %v332, %v460
      %v462 = vpop.f32.mrf.mxu0
      %v463 = vpop.f32.mrf.mxu0
      %v464 = vadd.f32 %v335, %v463
      %v465 = vpop.f32.mrf.mxu0
      %466 = vmatprep.mubr.bf16.mxu0 0
      %467 = vmatmul.mubr.bf16.gmra.mxu0 %v186
      %v468 = vpop.f32.mrf.mxu0
      %v469 = vadd.f32 %v340, %v468
      %v470 = vpop.f32.mrf.mxu0
      %v471 = vpop.f32.mrf.mxu0
      %v472 = vadd.f32 %v343, %v471
      %v473 = vpop.f32.mrf.mxu0
      %474 = vmatprep.mubr.bf16.mxu0 0
      %475 = vmatmul.mubr.bf16.gmra.mxu0 %v187
      %v476 = vpop.f32.mrf.mxu0
      %v477 = vadd.f32 %v348, %v476
      %v478 = vpop.f32.mrf.mxu0
      %v479 = vpop.f32.mrf.mxu0
      %v480 = vadd.f32 %v351, %v479
      %v481 = vpop.f32.mrf.mxu0
      %482 = vmatprep.mubr.bf16.mxu0 0
      %483 = vmatmul.mubr.bf16.gmra.mxu0 %v188
      %v484 = vpop.f32.mrf.mxu0
      %v485 = vadd.f32 %v356, %v484
      %v486 = vpop.f32.mrf.mxu0
      %v487 = vpop.f32.mrf.mxu0
      %v488 = vadd.f32 %v359, %v487
      %v489 = vpop.f32.mrf.mxu0
      %490 = vmatprep.mubr.bf16.mxu0 0
      %491 = vmatmul.mubr.bf16.gmra.mxu0 %v189
      %v492 = vpop.f32.mrf.mxu0
      %v493 = vadd.f32 %v364, %v492
      %v494 = vpop.f32.mrf.mxu0
      %v495 = vpop.f32.mrf.mxu0
      %v496 = vadd.f32 %v367, %v495
      %v497 = vpop.f32.mrf.mxu0
      %498 = vdwg.mxu0
      %v499 = vld [vmem:[%s165 + $0xa] sm:$0xff]
      %v500 = vld [vmem:[%s165 + $0x12] sm:$0xff]
      %v501 = vld [vmem:[%s165 + $0x1a] sm:$0xff]
      %v502 = vld [vmem:[%s165 + $0x22] sm:$0xff]
      %v503 = vld [vmem:[%s165 + $0x2a] sm:$0xff]
      %v504 = vld [vmem:[%s165 + $0x32] sm:$0xff]
      %v505 = vld [vmem:[%s165 + $0x3a] sm:$0xff]
      %v506 = vld [vmem:[%s165 + $0x42] sm:$0xff]
      %v507 = vld [vmem:[%s165 + $0x4a] sm:$0xff]
      %v508 = vld [vmem:[%s165 + $0x52] sm:$0xff]
      %v509 = vld [vmem:[%s165 + $0x5a] sm:$0xff]
      %v510 = vld [vmem:[%s165 + $0x62] sm:$0x3]
      %v511 = vpack.c.bf16 %v500, %v499
      %v512 = vpack.c.bf16 %v502, %v501
      %v513 = vpack.c.bf16 %v504, %v503
      %v514 = vpack.c.bf16 %v506, %v505
      %v515 = vpack.c.bf16 %v508, %v507
      %v516 = vpack.c.bf16 %v510, %v509
      %s517 = scalar_lea.vmem %s1, 128
      %v518 = vld [vmem:[%s517] sm:$0xf]
      %v519 = vld [vmem:[%s517 + $0x4] sm:$0xf]
      %v520 = vld [vmem:[%s517 + $0x8] sm:$0xf]
      %v521 = vld [vmem:[%s517 + $0xc] sm:$0xf]
      %v522 = vld [vmem:[%s517 + $0x10] sm:$0xf]
      %v523 = vld [vmem:[%s517 + $0x14] sm:$0xf]
      %v524 = vld [vmem:[%s517 + $0x18] sm:$0xf]
      %v525 = vld [vmem:[%s517 + $0x1c] sm:$0xf]
      %v526 = vld [vmem:[%s517 + $0x20] sm:$0xf]
      %v527 = vld [vmem:[%s517 + $0x24] sm:$0xf]
      %v528 = vld [vmem:[%s517 + $0x28] sm:$0xf]
      %v529 = vld [vmem:[%s517 + $0x2c] sm:$0xf]
      %v530 = vld [vmem:[%s517 + $0x30] sm:$0xf]
      %v531 = vld [vmem:[%s517 + $0x34] sm:$0xf]
      %v532 = vld [vmem:[%s517 + $0x38] sm:$0xf]
      %v533 = vld [vmem:[%s517 + $0x3c] sm:$0xf]
      %v550 = vunpack.c.l.b16 %v518
      %v551 = vunpack.c.l.b16 %v519
      %v552 = vunpack.c.l.b16 %v520
      %v553 = vunpack.c.l.b16 %v521
      %v554 = vunpack.c.l.b16 %v522
      %v555 = vunpack.c.l.b16 %v523
      %v556 = vunpack.c.l.b16 %v524
      %v557 = vunpack.c.l.b16 %v525
      %v558 = vunpack.c.l.b16 %v526
      %v559 = vunpack.c.l.b16 %v527
      %v560 = vunpack.c.l.b16 %v528
      %v561 = vunpack.c.l.b16 %v529
      %v562 = vunpack.c.l.b16 %v530
      %v563 = vunpack.c.l.b16 %v531
      %v564 = vunpack.c.l.b16 %v532
      %v565 = vunpack.c.l.b16 %v533
      %v566 = vpack.c.b16 %v551, %v550
      %v567 = vpack.c.b16 %v553, %v552
      %v568 = vpack.c.b16 %v555, %v554
      %v569 = vpack.c.b16 %v557, %v556
      %v570 = vpack.c.b16 %v559, %v558
      %v571 = vpack.c.b16 %v561, %v560
      %v572 = vpack.c.b16 %v563, %v562
      %v573 = vpack.c.b16 %v565, %v564
      %582 = vmatprep.subr.bf16.mxu0 0
      %583 = vmatpush1.bf16.msra.mxu0 %v573
      %584 = vmatprep.subr.bf16.mxu0 0
      %585 = vmatpush1.bf16.msra.mxu0 %v572
      %586 = vmatprep.subr.bf16.mxu0 0
      %587 = vmatpush1.bf16.msra.mxu0 %v571
      %588 = vmatprep.subr.bf16.mxu0 0
      %589 = vmatpush1.bf16.msra.mxu0 %v570
      %590 = vmatprep.subr.bf16.mxu0 0
      %591 = vmatpush1.bf16.msra.mxu0 %v569
      %592 = vmatprep.subr.bf16.mxu0 0
      %593 = vmatpush1.bf16.msra.mxu0 %v568
      %594 = vmatprep.subr.bf16.mxu0 0
      %595 = vmatpush1.bf16.msra.mxu0 %v567
      %596 = vmatprep.subr.bf16.mxu0 0
      %597 = vmatpush1.bf16.msra.mxu0 %v566
      %598 = vmatprep.subr.bf16.mxu0 0
      %599 = vmatpush2.bf16.msra.mxu0 0
      %600 = vmatprep.subr.bf16.mxu0 0
      %601 = vmatpush2.bf16.msra.mxu0 0
      %602 = vmatprep.subr.bf16.mxu0 0
      %603 = vmatpush2.bf16.msra.mxu0 0
      %604 = vmatprep.subr.bf16.mxu0 0
      %605 = vmatpush2.bf16.msra.mxu0 0
      %606 = vmatprep.subr.bf16.mxu0 0
      %607 = vmatpush2.bf16.msra.mxu0 0
      %608 = vmatprep.subr.bf16.mxu0 0
      %609 = vmatpush2.bf16.msra.mxu0 0
      %610 = vmatprep.subr.bf16.mxu0 0
      %611 = vmatpush2.bf16.msra.mxu0 0
      %612 = vmatprep.subr.bf16.mxu0 0
      %613 = vmatpush2.bf16.msra.mxu0 0
      %614 = vmatprep.mubr.bf16.mxu0 0
      %615 = vmatmul.mubr.bf16.gmra.mxu0 %v511
      %v616 = vpop.f32.mrf.mxu0
      %v617 = vadd.f32 0.0, %v616
      %v618 = vpop.f32.mrf.mxu0
      %v619 = vpop.f32.mrf.mxu0
      %v620 = vadd.f32 0.0, %v619
      %v621 = vpop.f32.mrf.mxu0
      %622 = vmatprep.mubr.bf16.mxu0 0
      %623 = vmatmul.mubr.bf16.gmra.mxu0 %v512
      %v624 = vpop.f32.mrf.mxu0
      %v625 = vadd.f32 0.0, %v624
      %v626 = vpop.f32.mrf.mxu0
      %v627 = vpop.f32.mrf.mxu0
      %v628 = vadd.f32 0.0, %v627
      %v629 = vpop.f32.mrf.mxu0
      %630 = vmatprep.mubr.bf16.mxu0 0
      %631 = vmatmul.mubr.bf16.gmra.mxu0 %v513
      %v632 = vpop.f32.mrf.mxu0
      %v633 = vadd.f32 0.0, %v632
      %v634 = vpop.f32.mrf.mxu0
      %v635 = vpop.f32.mrf.mxu0
      %v636 = vadd.f32 0.0, %v635
      %v637 = vpop.f32.mrf.mxu0
      %638 = vmatprep.mubr.bf16.mxu0 0
      %639 = vmatmul.mubr.bf16.gmra.mxu0 %v514
      %v640 = vpop.f32.mrf.mxu0
      %v641 = vadd.f32 0.0, %v640
      %v642 = vpop.f32.mrf.mxu0
      %v643 = vpop.f32.mrf.mxu0
      %v644 = vadd.f32 0.0, %v643
      %v645 = vpop.f32.mrf.mxu0
      %646 = vmatprep.mubr.bf16.mxu0 0
      %647 = vmatmul.mubr.bf16.gmra.mxu0 %v515
      %v648 = vpop.f32.mrf.mxu0
      %v649 = vadd.f32 0.0, %v648
      %v650 = vpop.f32.mrf.mxu0
      %v651 = vpop.f32.mrf.mxu0
      %v652 = vadd.f32 0.0, %v651
      %v653 = vpop.f32.mrf.mxu0
      %654 = vmatprep.mubr.bf16.mxu0 0
      %655 = vmatmul.mubr.bf16.gmra.mxu0 %v516
      %v656 = vpop.f32.mrf.mxu0
      %v657 = vadd.f32 0.0, %v656
      %v658 = vpop.f32.mrf.mxu0
      %v659 = vpop.f32.mrf.mxu0
      %v660 = vadd.f32 0.0, %v659
      %v661 = vpop.f32.mrf.mxu0
      %662 = vdwg.mxu0
      %v663 = vadd.f32 %v453, %v617
      %v664 = vadd.f32 %v456, %v620
      %v665 = vadd.f32 %v461, %v625
      %v666 = vadd.f32 %v464, %v628
      %v667 = vadd.f32 %v469, %v633
      %v668 = vadd.f32 %v472, %v636
      %v669 = vadd.f32 %v477, %v641
      %v670 = vadd.f32 %v480, %v644
      %v671 = vadd.f32 %v485, %v649
      %v672 = vadd.f32 %v488, %v652
      %v673 = vadd.f32 %v493, %v657
      %v674 = vadd.f32 %v496, %v660
      %v675 = vld [vmem:[%s165 + $0xb] sm:$0xff]
      %v676 = vld [vmem:[%s165 + $0x13] sm:$0xff]
      %v677 = vld [vmem:[%s165 + $0x1b] sm:$0xff]
      %v678 = vld [vmem:[%s165 + $0x23] sm:$0xff]
      %v679 = vld [vmem:[%s165 + $0x2b] sm:$0xff]
      %v680 = vld [vmem:[%s165 + $0x33] sm:$0xff]
      %v681 = vld [vmem:[%s165 + $0x3b] sm:$0xff]
      %v682 = vld [vmem:[%s165 + $0x43] sm:$0xff]
      %v683 = vld [vmem:[%s165 + $0x4b] sm:$0xff]
      %v684 = vld [vmem:[%s165 + $0x53] sm:$0xff]
      %v685 = vld [vmem:[%s165 + $0x5b] sm:$0xff]
      %v686 = vld [vmem:[%s165 + $0x63] sm:$0x3]
      %v687 = vpack.c.bf16 %v676, %v675
      %v688 = vpack.c.bf16 %v678, %v677
      %v689 = vpack.c.bf16 %v680, %v679
      %v690 = vpack.c.bf16 %v682, %v681
      %v691 = vpack.c.bf16 %v684, %v683
      %v692 = vpack.c.bf16 %v686, %v685
      %s693 = scalar_lea.vmem %s1, 192
      %v694 = vld [vmem:[%s693] sm:$0xf]
      %v695 = vld [vmem:[%s693 + $0x4] sm:$0xf]
      %v696 = vld [vmem:[%s693 + $0x8] sm:$0xf]
      %v697 = vld [vmem:[%s693 + $0xc] sm:$0xf]
      %v698 = vld [vmem:[%s693 + $0x10] sm:$0xf]
      %v699 = vld [vmem:[%s693 + $0x14] sm:$0xf]
      %v700 = vld [vmem:[%s693 + $0x18] sm:$0xf]
      %v701 = vld [vmem:[%s693 + $0x1c] sm:$0xf]
      %v702 = vld [vmem:[%s693 + $0x20] sm:$0xf]
      %v703 = vld [vmem:[%s693 + $0x24] sm:$0xf]
      %v704 = vld [vmem:[%s693 + $0x28] sm:$0xf]
      %v705 = vld [vmem:[%s693 + $0x2c] sm:$0xf]
      %v706 = vld [vmem:[%s693 + $0x30] sm:$0xf]
      %v707 = vld [vmem:[%s693 + $0x34] sm:$0xf]
      %v708 = vld [vmem:[%s693 + $0x38] sm:$0xf]
      %v709 = vld [vmem:[%s693 + $0x3c] sm:$0xf]
      %v726 = vunpack.c.l.b16 %v694
      %v727 = vunpack.c.l.b16 %v695
      %v728 = vunpack.c.l.b16 %v696
      %v729 = vunpack.c.l.b16 %v697
      %v730 = vunpack.c.l.b16 %v698
      %v731 = vunpack.c.l.b16 %v699
      %v732 = vunpack.c.l.b16 %v700
      %v733 = vunpack.c.l.b16 %v701
      %v734 = vunpack.c.l.b16 %v702
      %v735 = vunpack.c.l.b16 %v703
      %v736 = vunpack.c.l.b16 %v704
      %v737 = vunpack.c.l.b16 %v705
      %v738 = vunpack.c.l.b16 %v706
      %v739 = vunpack.c.l.b16 %v707
      %v740 = vunpack.c.l.b16 %v708
      %v741 = vunpack.c.l.b16 %v709
      %v742 = vpack.c.b16 %v727, %v726
      %v743 = vpack.c.b16 %v729, %v728
      %v744 = vpack.c.b16 %v731, %v730
      %v745 = vpack.c.b16 %v733, %v732
      %v746 = vpack.c.b16 %v735, %v734
      %v747 = vpack.c.b16 %v737, %v736
      %v748 = vpack.c.b16 %v739, %v738
      %v749 = vpack.c.b16 %v741, %v740
      %758 = vmatprep.subr.bf16.mxu0 0
      %759 = vmatpush1.bf16.msra.mxu0 %v749
      %760 = vmatprep.subr.bf16.mxu0 0
      %761 = vmatpush1.bf16.msra.mxu0 %v748
      %762 = vmatprep.subr.bf16.mxu0 0
      %763 = vmatpush1.bf16.msra.mxu0 %v747
      %764 = vmatprep.subr.bf16.mxu0 0
      %765 = vmatpush1.bf16.msra.mxu0 %v746
      %766 = vmatprep.subr.bf16.mxu0 0
      %767 = vmatpush1.bf16.msra.mxu0 %v745
      %768 = vmatprep.subr.bf16.mxu0 0
      %769 = vmatpush1.bf16.msra.mxu0 %v744
      %770 = vmatprep.subr.bf16.mxu0 0
      %771 = vmatpush1.bf16.msra.mxu0 %v743
      %772 = vmatprep.subr.bf16.mxu0 0
      %773 = vmatpush1.bf16.msra.mxu0 %v742
      %774 = vmatprep.subr.bf16.mxu0 0
      %775 = vmatpush2.bf16.msra.mxu0 0
      %776 = vmatprep.subr.bf16.mxu0 0
      %777 = vmatpush2.bf16.msra.mxu0 0
      %778 = vmatprep.subr.bf16.mxu0 0
      %779 = vmatpush2.bf16.msra.mxu0 0
      %780 = vmatprep.subr.bf16.mxu0 0
      %781 = vmatpush2.bf16.msra.mxu0 0
      %782 = vmatprep.subr.bf16.mxu0 0
      %783 = vmatpush2.bf16.msra.mxu0 0
      %784 = vmatprep.subr.bf16.mxu0 0
      %785 = vmatpush2.bf16.msra.mxu0 0
      %786 = vmatprep.subr.bf16.mxu0 0
      %787 = vmatpush2.bf16.msra.mxu0 0
      %788 = vmatprep.subr.bf16.mxu0 0
      %789 = vmatpush2.bf16.msra.mxu0 0
      %790 = vmatprep.mubr.bf16.mxu0 0
      %791 = vmatmul.mubr.bf16.gmra.mxu0 %v687
      %v792 = vpop.f32.mrf.mxu0
      %v793 = vadd.f32 0.0, %v792
      %v794 = vpop.f32.mrf.mxu0
      %v795 = vpop.f32.mrf.mxu0
      %v796 = vadd.f32 0.0, %v795
      %v797 = vpop.f32.mrf.mxu0
      %798 = vmatprep.mubr.bf16.mxu0 0
      %799 = vmatmul.mubr.bf16.gmra.mxu0 %v688
      %v800 = vpop.f32.mrf.mxu0
      %v801 = vadd.f32 0.0, %v800
      %v802 = vpop.f32.mrf.mxu0
      %v803 = vpop.f32.mrf.mxu0
      %v804 = vadd.f32 0.0, %v803
      %v805 = vpop.f32.mrf.mxu0
      %806 = vmatprep.mubr.bf16.mxu0 0
      %807 = vmatmul.mubr.bf16.gmra.mxu0 %v689
      %v808 = vpop.f32.mrf.mxu0
      %v809 = vadd.f32 0.0, %v808
      %v810 = vpop.f32.mrf.mxu0
      %v811 = vpop.f32.mrf.mxu0
      %v812 = vadd.f32 0.0, %v811
      %v813 = vpop.f32.mrf.mxu0
      %814 = vmatprep.mubr.bf16.mxu0 0
      %815 = vmatmul.mubr.bf16.gmra.mxu0 %v690
      %v816 = vpop.f32.mrf.mxu0
      %v817 = vadd.f32 0.0, %v816
      %v818 = vpop.f32.mrf.mxu0
      %v819 = vpop.f32.mrf.mxu0
      %v820 = vadd.f32 0.0, %v819
      %v821 = vpop.f32.mrf.mxu0
      %822 = vmatprep.mubr.bf16.mxu0 0
      %823 = vmatmul.mubr.bf16.gmra.mxu0 %v691
      %v824 = vpop.f32.mrf.mxu0
      %v825 = vadd.f32 0.0, %v824
      %v826 = vpop.f32.mrf.mxu0
      %v827 = vpop.f32.mrf.mxu0
      %v828 = vadd.f32 0.0, %v827
      %v829 = vpop.f32.mrf.mxu0
      %830 = vmatprep.mubr.bf16.mxu0 0
      %831 = vmatmul.mubr.bf16.gmra.mxu0 %v692
      %v832 = vpop.f32.mrf.mxu0
      %v833 = vadd.f32 0.0, %v832
      %v834 = vpop.f32.mrf.mxu0
      %v835 = vpop.f32.mrf.mxu0
      %v836 = vadd.f32 0.0, %v835
      %v837 = vpop.f32.mrf.mxu0
      %838 = vdwg.mxu0
      %v839 = vadd.f32 %v663, %v793
      %v840 = vadd.f32 %v664, %v796
      %v841 = vadd.f32 %v665, %v801
      %v842 = vadd.f32 %v666, %v804
      %v843 = vadd.f32 %v667, %v809
      %v844 = vadd.f32 %v668, %v812
      %v845 = vadd.f32 %v669, %v817
      %v846 = vadd.f32 %v670, %v820
      %v847 = vadd.f32 %v671, %v825
      %v848 = vadd.f32 %v672, %v828
      %v849 = vadd.f32 %v673, %v833
      %v850 = vadd.f32 %v674, %v836
      %v851 = vld [vmem:[%s2] sm:$0x1]
      %v853 = vlaneseq
      %v854 = vshrl.u32 %v853, 7
      %v855 = vsub.s32 0, %v854
      %v856 = vrot.slane %v851, %v855
      %v858 = vadd.f32 %v839, %v856
      %v859 = vadd.f32 %v840, %v856
      %v860 = vadd.f32 %v841, %v856
      %v861 = vadd.f32 %v842, %v856
      %v862 = vadd.f32 %v843, %v856
      %v863 = vadd.f32 %v844, %v856
      %v864 = vadd.f32 %v845, %v856
      %v865 = vadd.f32 %v846, %v856
      %v866 = vadd.f32 %v847, %v856
      %v867 = vadd.f32 %v848, %v856
      %v868 = vadd.f32 %v849, %v856
      %v869 = vadd.f32 %v850, %v856
      %v870 = vmax.f32 %v858, 0.0
      %v871 = vmax.f32 %v859, 0.0
      %v872 = vmax.f32 %v860, 0.0
      %v873 = vmax.f32 %v861, 0.0
      %v874 = vmax.f32 %v862, 0.0
      %v875 = vmax.f32 %v863, 0.0
      %v876 = vmax.f32 %v864, 0.0
      %v877 = vmax.f32 %v865, 0.0
      %v878 = vmax.f32 %v866, 0.0
      %v879 = vmax.f32 %v867, 0.0
      %v880 = vmax.f32 %v868, 0.0
      %v881 = vmax.f32 %v869, 0.0
      %vm882 = vcmask 523264
      %883 = vst.msk [vmem:[%s170] sm:$0xff] %vm882, %v870
      %884 = vst.msk [vmem:[%s170 + $0x8] sm:$0xff] %vm882, %v871
      %885 = vst.msk [vmem:[%s170 + $0x10] sm:$0xff] %vm882, %v872
      %886 = vst.msk [vmem:[%s170 + $0x18] sm:$0xff] %vm882, %v873
      %887 = vst.msk [vmem:[%s170 + $0x20] sm:$0xff] %vm882, %v874
      %888 = vst.msk [vmem:[%s170 + $0x28] sm:$0xff] %vm882, %v875
      %889 = vst.msk [vmem:[%s170 + $0x30] sm:$0xff] %vm882, %v876
      %890 = vst.msk [vmem:[%s170 + $0x38] sm:$0xff] %vm882, %v877
      %891 = vst.msk [vmem:[%s170 + $0x40] sm:$0xff] %vm882, %v878
      %892 = vst.msk [vmem:[%s170 + $0x48] sm:$0xff] %vm882, %v879
      %893 = vst.msk [vmem:[%s170 + $0x50] sm:$0xff] %vm882, %v880
      %vm894 = vcmask 517120
      %895 = vst.msk [vmem:[%s170 + $0x58] sm:$0x3] %vm894, %v881
      %p896 = scmp.lt.s32.totalorder %s14, 1
      %s897 = scalar_select %p896, %s14, 1
      %s898 = smul.addr %s897, 12
      %s899 = smul.addr %s898, 8
      %s900 = scalar_lea.vmem %s3, %s899
      // Predicated region
      $region33: #{dqn_forward.5} parent=31 // pred_check
        %p901 = pneg %p100
      $region34: #{dqn_forward.5} parent=31 // pred_check_branch
        %903 = sbr.rel (%p901) target = $region36
      $region35: #{dqn_forward.5} parent=31 // pred_region
        _
      $region36: #{dqn_forward.5} parent=31 // pred_fallthru
        _
    $region32: #{dqn_forward.5} parent=5 // pred_fallthru
      _
    %p904 = scmp.le.s32.totalorder 2, %s9
    // Predicated region
    $region37: #{dqn_forward.5} parent=5 // pred_check
      %p905 = pneg %p904
    $region38: #{dqn_forward.5} parent=5 // pred_check_branch
      %907 = sbr.rel (%p905) target = $region40
    $region39: #{dqn_forward.5} parent=5 // pred_region
      %s908 = ssub.s32 %s9, 2
      // Predicated region
      $region41: #{dqn_forward.5} parent=39 // pred_check
        %p909 = pneg %p106
      $region42: #{dqn_forward.5} parent=39 // pred_check_branch
        %911 = sbr.rel (%p909) target = $region44
      $region43: #{dqn_forward.5} parent=39 // pred_region
        %p912 = scmp.lt.s32.totalorder %s15, 1
        %s913 = scalar_select %p912, %s15, 1
        %s914 = smul.addr %s913, 12
        %s915 = smul.addr %s914, 8
        %s916 = scalar_lea.vmem %s3, %s915
      $region44: #{dqn_forward.5} parent=39 // pred_fallthru
        _
    $region40: #{dqn_forward.5} parent=5 // pred_fallthru
      _
  $region6: #{dqn_forward.5} parent=0 // loop_footer
    %s13 = sadd.s32 1, %s9
  $region7: #{dqn_forward.5} parent=0 // loop_footer_branch
    %8 = sbr.rel target = $region3
  $region8: #{dqn_forward.5} parent=0 // loop_exit
    _

// kernel: dqn_forward.6
$region0: #{dqn_forward.6}
  #allocation0 [shape = 'u32[]', space=smem, size = 0x4, offset = 0x4, fixed_abs, tag = 'smem constant byte address 0x4 - core index']
  #allocation1 [shape = 'u32[144,128]{1,0:T(1,128)}', space=vmem, size = 0x12000, scoped, tag = 'internal scratch']
  %s0 = inlined_call_operand.vmem [shape: f32[2,88,64], index: 0, kind: input, shape index: {}]
  %s1 = inlined_call_operand.vmem [shape: bf16[9,64,64], index: 1, kind: input, shape index: {}]
  %s2 = inlined_call_operand.vmem [shape: f32[1,64], index: 2, kind: input, shape index: {}]
  %s3 = inlined_call_operand.vmem [shape: f32[2,63,64], index: 3, kind: output, shape index: {}]
  %s4 = sld [smem:[#allocation0]]
  $region45: #{dqn_forward.6} parent=0
    _
  %s6 = ssub.s32 1, %s4
  %s7 = scalar_select 0, %s6, %s4
  loop: start=0, step=1, limit=4
  $region2: #{dqn_forward.6} parent=0 // loop_pre_header
    _
  $region3: #{dqn_forward.6} parent=0 // loop_header
    %s9 = sphi 0, %s13
    %p10 = scmp.ge.s32.totalorder %s9, 4
    %s19 = sphi 0, %s21
    %s22 = sphi 0, %s19
    %s23 = sphi 0, %s22
    %s39 = sphi 0, %s23
    %s43 = sphi 0, %s43
    %s45 = sphi 0, %s43
    %s46 = sphi 0, %s45
    %s60 = sphi 0, %s46
    %s64 = sphi 0, %s64
    %s66 = sphi 0, %s64
    %s67 = sphi 0, %s66
    %s81 = sphi 0, %s67
    %s87 = sphi 0, %s89
    %s90 = sphi 0, %s87
    %s91 = sphi 0, %s90
    %s107 = sphi 0, %s91
  $region4: #{dqn_forward.6} parent=0 // loop_header_branch
    %12 = sbr.rel (%p10) target = $region8
  $region5: #{dqn_forward.6} parent=0 // loop_body
    %s14 = ssub.s32 %s9, 1
    %s15 = ssub.s32 %s9, 2
    %s16 = sadd.s32 %s9, 1
    %s17 = ssub.s32 %s9, %s16
    %p18 = scmp.eq.s32.totalorder %s17, 0
    %s20 = sadd.s32 %s19, 1
    %s21 = scalar_select %p18, %s19, %s20
    %p24 = pneg %p18
    %p25 = scmp.eq.s32.totalorder %s9, 1
    %p26 = por %p24, %p25
    %p27 = scmp.ne.s32.totalorder %s19, %s22
    %p28 = scmp.eq.s32.totalorder %s9, 0
    %p29 = por %p27, %p28
    %p30 = scmp.ne.s32.totalorder %s19, %s22
    %p31 = scmp.eq.s32.totalorder %s14, 1
    %p32 = por %p30, %p31
    %p33 = scmp.ne.s32.totalorder %s22, %s23
    %p34 = scmp.eq.s32.totalorder %s14, 0
    %p35 = por %p33, %p34
    %p36 = scmp.ne.s32.totalorder %s22, %s23
    %p37 = scmp.eq.s32.totalorder %s15, 1
    %p38 = por %p36, %p37
    %p40 = scmp.ne.s32.totalorder %s23, %s39
    %p41 = scmp.eq.s32.totalorder %s15, 0
    %p42 = por %p40, %p41
    %s44 = sadd.s32 %s43, 1
    %p47 = scmp.eq.s32.totalorder %s9, 1
    %p48 = scmp.ne.s32.totalorder %s43, %s45
    %p49 = scmp.eq.s32.totalorder %s9, 0
    %p50 = por %p48, %p49
    %p51 = scmp.ne.s32.totalorder %s43, %s45
    %p52 = scmp.eq.s32.totalorder %s14, 1
    %p53 = por %p51, %p52
    %p54 = scmp.ne.s32.totalorder %s45, %s46
    %p55 = scmp.eq.s32.totalorder %s14, 0
    %p56 = por %p54, %p55
    %p57 = scmp.ne.s32.totalorder %s45, %s46
    %p58 = scmp.eq.s32.totalorder %s15, 1
    %p59 = por %p57, %p58
    %p61 = scmp.ne.s32.totalorder %s46, %s60
    %p62 = scmp.eq.s32.totalorder %s15, 0
    %p63 = por %p61, %p62
    %s65 = sadd.s32 %s64, 1
    %p68 = scmp.eq.s32.totalorder %s9, 1
    %p69 = scmp.ne.s32.totalorder %s64, %s66
    %p70 = scmp.eq.s32.totalorder %s9, 0
    %p71 = por %p69, %p70
    %p72 = scmp.ne.s32.totalorder %s64, %s66
    %p73 = scmp.eq.s32.totalorder %s14, 1
    %p74 = por %p72, %p73
    %p75 = scmp.ne.s32.totalorder %s66, %s67
    %p76 = scmp.eq.s32.totalorder %s14, 0
    %p77 = por %p75, %p76
    %p78 = scmp.ne.s32.totalorder %s66, %s67
    %p79 = scmp.eq.s32.totalorder %s15, 1
    %p80 = por %p78, %p79
    %p82 = scmp.ne.s32.totalorder %s67, %s81
    %p83 = scmp.eq.s32.totalorder %s15, 0
    %p84 = por %p82, %p83
    %s85 = ssub.s32 %s9, %s16
    %p86 = scmp.eq.s32.totalorder %s85, 0
    %s88 = sadd.s32 %s87, 1
    %s89 = scalar_select %p86, %s87, %s88
    %p92 = pneg %p86
    %p93 = scmp.eq.s32.totalorder %s9, 1
    %p94 = por %p92, %p93
    %p95 = scmp.ne.s32.totalorder %s87, %s90
    %p96 = scmp.eq.s32.totalorder %s9, 0
    %p97 = por %p95, %p96
    %p98 = scmp.ne.s32.totalorder %s87, %s90
    %p99 = scmp.eq.s32.totalorder %s14, 1
    %p100 = por %p98, %p99
    %p101 = scmp.ne.s32.totalorder %s90, %s91
    %p102 = scmp.eq.s32.totalorder %s14, 0
    %p103 = por %p101, %p102
    %p104 = scmp.ne.s32.totalorder %s90, %s91
    %p105 = scmp.eq.s32.totalorder %s15, 1
    %p106 = por %p104, %p105
    %p108 = scmp.ne.s32.totalorder %s91, %s107
    %p109 = scmp.eq.s32.totalorder %s15, 0
    %p110 = por %p108, %p109
    %p111 = scmp.le.s32.totalorder 1, %s9
    %p112 = scmp.lt.s32.totalorder %s9, 3
    %p113 = pnand %p111, %p112
    %p114 = pneg %p113
    // Predicated region
    $region9: #{dqn_forward.6} parent=5 // pred_check
      _
    $region10: #{dqn_forward.6} parent=5 // pred_check_branch
      %116 = sbr.rel (%p113) target = $region12
    $region11: #{dqn_forward.6} parent=5 // pred_region
      %s117 = ssub.s32 %s9, 1
      // Predicated region
      $region13: #{dqn_forward.6} parent=11 // pred_check
        %p118 = pneg %p56
      $region14: #{dqn_forward.6} parent=11 // pred_check_branch
        %120 = sbr.rel (%p118) target = $region16
      $region15: #{dqn_forward.6} parent=11 // pred_region
        _
      $region16: #{dqn_forward.6} parent=11 // pred_fallthru
        _
      // Predicated region
      $region17: #{dqn_forward.6} parent=11 // pred_check
        %p121 = pneg %p77
      $region18: #{dqn_forward.6} parent=11 // pred_check_branch
        %123 = sbr.rel (%p121) target = $region20
      $region19: #{dqn_forward.6} parent=11 // pred_region
        _
      $region20: #{dqn_forward.6} parent=11 // pred_fallthru
        _
    $region12: #{dqn_forward.6} parent=5 // pred_fallthru
      _
    %p124 = scmp.lt.s32.totalorder %s9, 2
    // Predicated region
    $region21: #{dqn_forward.6} parent=5 // pred_check
      %p125 = pneg %p124
    $region22: #{dqn_forward.6} parent=5 // pred_check_branch
      %127 = sbr.rel (%p125) target = $region24
    $region23: #{dqn_forward.6} parent=5 // pred_region
      // Predicated region
      $region25: #{dqn_forward.6} parent=23 // pred_check
        %p128 = pneg %p29
      $region26: #{dqn_forward.6} parent=23 // pred_check_branch
        %130 = sbr.rel (%p128) target = $region28
      $region27: #{dqn_forward.6} parent=23 // pred_region
        %p131 = scmp.lt.s32.totalorder %s9, 1
        %s132 = scalar_select %p131, %s9, 1
        %s133 = smul.addr %s132, 11
        %s134 = smul.addr %s133, 8
        %s135 = scalar_lea.vmem %s0, %s134
      $region28: #{dqn_forward.6} parent=23 // pred_fallthru
        _
    $region24: #{dqn_forward.6} parent=5 // pred_fallthru
      _
    %p136 = scmp.le.s32.totalorder 1, %s9
    %p137 = scmp.lt.s32.totalorder %s9, 3
    %p138 = pnand %p136, %p137
    %p139 = pneg %p138
    // Predicated region
    $region29: #{dqn_forward.6} parent=5 // pred_check
      _
    $region30: #{dqn_forward.6} parent=5 // pred_check_branch
      %141 = sbr.rel (%p138) target = $region32
    $region31: #{dqn_forward.6} parent=5 // pred_region
      %s142 = ssub.s32 %s9, 1
      %p143 = scmp.lt.s32.totalorder %s14, 1
      %s144 = scalar_select %p143, %s14, 1
      %s145 = smul.addr %s144, 11
      %s146 = smul.addr %s145, 8
      %s147 = scalar_lea.vmem %s0, %s146
      %p148 = pneg %p35
      %p149 = pneg %p32
      %p150 = pneg %p56
      %p151 = pneg %p53
      %p152 = pneg %p77
      %p153 = pneg %p74
      %p154 = pneg %p103
      %p155 = pneg %p100
      %p156 = scmp.lt.s32.totalorder %s14, 1
      %s157 = scalar_select %p156, %s14, 1
      %s158 = smul.addr %s157, 8
      %s159 = smul.addr %s158, 8
      %s160 = scalar_lea.vmem %s3, %s159
      %p161 = scmp.lt.s32.totalorder %s14, 1
      %s162 = scalar_select %p161, %s14, 1
      %s163 = smul.addr %s162, 11
      %s164 = smul.addr %s163, 8
      %s165 = scalar_lea.vmem %s0, %s164
      %p166 = scmp.lt.s32.totalorder %s14, 1
      %s167 = scalar_select %p166, %s14, 1
      %s168 = smul.addr %s167, 8
      %s169 = smul.addr %s168, 8
      %s170 = scalar_lea.vmem %s3, %s169
      %v172 = vld [vmem:[%s165] sm:$0xff]
      %v173 = vld [vmem:[%s165 + $0x8] sm:$0xff]
      %v174 = vld [vmem:[%s165 + $0x10] sm:$0xff]
      %v175 = vld [vmem:[%s165 + $0x18] sm:$0xff]
      %v176 = vld [vmem:[%s165 + $0x20] sm:$0xff]
      %v177 = vld [vmem:[%s165 + $0x28] sm:$0xff]
      %v178 = vld [vmem:[%s165 + $0x30] sm:$0xff]
      %v179 = vld [vmem:[%s165 + $0x38] sm:$0x7f]
      %v180 = vpack.c.bf16 %v173, %v172
      %v181 = vpack.c.bf16 %v175, %v174
      %v182 = vpack.c.bf16 %v177, %v176
      %v183 = vpack.c.bf16 %v179, %v178
      %v184 = vld [vmem:[%s1] sm:$0xf]
      %v185 = vld [vmem:[%s1 + $0x4] sm:$0xf]
      %v186 = vld [vmem:[%s1 + $0x8] sm:$0xf]
      %v187 = vld [vmem:[%s1 + $0xc] sm:$0xf]
      %v188 = vld [vmem:[%s1 + $0x10] sm:$0xf]
      %v189 = vld [vmem:[%s1 + $0x14] sm:$0xf]
      %v190 = vld [vmem:[%s1 + $0x18] sm:$0xf]
      %v191 = vld [vmem:[%s1 + $0x1c] sm:$0xf]
      %v192 = vld [vmem:[%s165 + $0x1] sm:$0xff]
      %v193 = vld [vmem:[%s165 + $0x9] sm:$0xff]
      %v194 = vld [vmem:[%s165 + $0x11] sm:$0xff]
      %v195 = vld [vmem:[%s165 + $0x19] sm:$0xff]
      %v196 = vld [vmem:[%s165 + $0x21] sm:$0xff]
      %v197 = vld [vmem:[%s165 + $0x29] sm:$0xff]
      %v198 = vld [vmem:[%s165 + $0x31] sm:$0xff]
      %v199 = vld [vmem:[%s165 + $0x39] sm:$0x7f]
      %v200 = vpack.c.bf16 %v193, %v192
      %v201 = vpack.c.bf16 %v195, %v194
      %v202 = vpack.c.bf16 %v197, %v196
      %v203 = vpack.c.bf16 %v199, %v198
      %s204 = scalar_lea.vmem %s1, 32
      %v205 = vld [vmem:[%s204] sm:$0xf]
      %v206 = vld [vmem:[%s204 + $0x4] sm:$0xf]
      %v207 = vld [vmem:[%s204 + $0x8] sm:$0xf]
      %v208 = vld [vmem:[%s204 + $0xc] sm:$0xf]
      %v209 = vld [vmem:[%s204 + $0x10] sm:$0xf]
      %v210 = vld [vmem:[%s204 + $0x14] sm:$0xf]
      %v211 = vld [vmem:[%s204 + $0x18] sm:$0xf]
      %v212 = vld [vmem:[%s204 + $0x1c] sm:$0xf]
      %v221 = vunpack.c.l.b16 %v205
      %v222 = vunpack.c.l.b16 %v206
      %v223 = vunpack.c.l.b16 %v207
      %v224 = vunpack.c.l.b16 %v208
      %v225 = vunpack.c.l.b16 %v209
      %v226 = vunpack.c.l.b16 %v210
      %v227 = vunpack.c.l.b16 %v211
      %v228 = vunpack.c.l.b16 %v212
      %v229 = vpack.c.b16 %v222, %v221
      %v230 = vpack.c.b16 %v224, %v223
      %v231 = vpack.c.b16 %v226, %v225
      %v232 = vpack.c.b16 %v228, %v227
      %vm237 = vcmask 523264
      %v239 = vsel %vm237, %v200, 0
      %v242 = vsel %vm237, %v201, 0
      %v245 = vsel %vm237, %v202, 0
      %v248 = vsel %vm237, %v203, 0
      %250 = vmatprep.subr.bf16.mxu0 0
      %251 = vmatpush1.bf16.msra.mxu0 0
      %252 = vmatprep.subr.bf16.mxu0 0
      %253 = vmatpush1.bf16.msra.mxu0 0
      %254 = vmatprep.subr.bf16.mxu0 0
      %255 = vmatpush1.bf16.msra.mxu0 0
      %256 = vmatprep.subr.bf16.mxu0 0
      %257 = vmatpush1.bf16.msra.mxu0 0
      %258 = vmatprep.subr.bf16.mxu0 0
      %259 = vmatpush1.bf16.msra.mxu0 %v232
      %260 = vmatprep.subr.bf16.mxu0 0
      %261 = vmatpush1.bf16.msra.mxu0 %v231
      %262 = vmatprep.subr.bf16.mxu0 0
      %263 = vmatpush1.bf16.msra.mxu0 %v230
      %264 = vmatprep.subr.bf16.mxu0 0
      %265 = vmatpush1.bf16.msra.mxu0 %v229
      %266 = vmatprep.subr.bf16.mxu0 0
      %267 = vmatpush2.bf16.msra.mxu0 0
      %268 = vmatprep.subr.bf16.mxu0 0
      %269 = vmatpush2.bf16.msra.mxu0 0
      %270 = vmatprep.subr.bf16.mxu0 0
      %271 = vmatpush2.bf16.msra.mxu0 0
      %272 = vmatprep.subr.bf16.mxu0 0
      %273 = vmatpush2.bf16.msra.mxu0 0
      %274 = vmatprep.subr.bf16.mxu0 0
      %275 = vmatpush2.bf16.msra.mxu0 0
      %276 = vmatprep.subr.bf16.mxu0 0
      %277 = vmatpush2.bf16.msra.mxu0 0
      %278 = vmatprep.subr.bf16.mxu0 0
      %279 = vmatpush2.bf16.msra.mxu0 0
      %280 = vmatprep.subr.bf16.mxu0 0
      %281 = vmatpush2.bf16.msra.mxu0 0
      %282 = vmatprep.mubr.bf16.mxu0 0
      %283 = vmatmul.mubr.bf16.gmra.mxu0 %v239
      %v284 = vpop.f32.mrf.mxu0
      %v285 = vadd.f32 0.0, %v284
      %v286 = vpop.f32.mrf.mxu0
      %v287 = vpop.f32.mrf.mxu0
      %v288 = vadd.f32 0.0, %v287
      %v289 = vpop.f32.mrf.mxu0
      %290 = vmatprep.mubr.bf16.mxu0 0
      %291 = vmatmul.mubr.bf16.gmra.mxu0 %v242
      %v292 = vpop.f32.mrf.mxu0
      %v293 = vadd.f32 0.0, %v292
      %v294 = vpop.f32.mrf.mxu0
      %v295 = vpop.f32.mrf.mxu0
      %v296 = vadd.f32 0.0, %v295
      %v297 = vpop.f32.mrf.mxu0
      %298 = vmatprep.mubr.bf16.mxu0 0
      %299 = vmatmul.mubr.bf16.gmra.mxu0 %v245
      %v300 = vpop.f32.mrf.mxu0
      %v301 = vadd.f32 0.0, %v300
      %v302 = vpop.f32.mrf.mxu0
      %v303 = vpop.f32.mrf.mxu0
      %v304 = vadd.f32 0.0, %v303
      %v305 = vpop.f32.mrf.mxu0
      %306 = vmatprep.mubr.bf16.mxu0 0
      %307 = vmatmul.mubr.bf16.gmra.mxu0 %v248
      %v308 = vpop.f32.mrf.mxu0
      %v309 = vadd.f32 0.0, %v308
      %v310 = vpop.f32.mrf.mxu0
      %v311 = vpop.f32.mrf.mxu0
      %v312 = vadd.f32 0.0, %v311
      %v313 = vpop.f32.mrf.mxu0
      %314 = vdwg.mxu0
      %v323 = vunpack.c.l.b16 %v184
      %v324 = vunpack.c.l.b16 %v185
      %v325 = vunpack.c.l.b16 %v186
      %v326 = vunpack.c.l.b16 %v187
      %v327 = vunpack.c.l.b16 %v188
      %v328 = vunpack.c.l.b16 %v189
      %v329 = vunpack.c.l.b16 %v190
      %v330 = vunpack.c.l.b16 %v191
      %v331 = vpack.c.b16 %v324, %v323
      %v332 = vpack.c.b16 %v326, %v325
      %v333 = vpack.c.b16 %v328, %v327
      %v334 = vpack.c.b16 %v330, %v329
      %v340 = vsel %vm237, %v180, 0
      %v343 = vsel %vm237, %v181, 0
      %v346 = vsel %vm237, %v182, 0
      %v349 = vsel %vm237, %v183, 0
      %351 = vmatprep.subr.bf16.mxu0 0
      %352 = vmatpush1.bf16.msra.mxu0 0
      %353 = vmatprep.subr.bf16.mxu0 0
      %354 = vmatpush1.bf16.msra.mxu0 0
      %355 = vmatprep.subr.bf16.mxu0 0
      %356 = vmatpush1.bf16.msra.mxu0 0
      %357 = vmatprep.subr.bf16.mxu0 0
      %358 = vmatpush1.bf16.msra.mxu0 0
      %359 = vmatprep.subr.bf16.mxu0 0
      %360 = vmatpush1.bf16.msra.mxu0 %v334
      %361 = vmatprep.subr.bf16.mxu0 0
      %362 = vmatpush1.bf16.msra.mxu0 %v333
      %363 = vmatprep.subr.bf16.mxu0 0
      %364 = vmatpush1.bf16.msra.mxu0 %v332
      %365 = vmatprep.subr.bf16.mxu0 0
      %366 = vmatpush1.bf16.msra.mxu0 %v331
      %367 = vmatprep.subr.bf16.mxu0 0
      %368 = vmatpush2.bf16.msra.mxu0 0
      %369 = vmatprep.subr.bf16.mxu0 0
      %370 = vmatpush2.bf16.msra.mxu0 0
      %371 = vmatprep.subr.bf16.mxu0 0
      %372 = vmatpush2.bf16.msra.mxu0 0
      %373 = vmatprep.subr.bf16.mxu0 0
      %374 = vmatpush2.bf16.msra.mxu0 0
      %375 = vmatprep.subr.bf16.mxu0 0
      %376 = vmatpush2.bf16.msra.mxu0 0
      %377 = vmatprep.subr.bf16.mxu0 0
      %378 = vmatpush2.bf16.msra.mxu0 0
      %379 = vmatprep.subr.bf16.mxu0 0
      %380 = vmatpush2.bf16.msra.mxu0 0
      %381 = vmatprep.subr.bf16.mxu0 0
      %382 = vmatpush2.bf16.msra.mxu0 0
      %383 = vmatprep.mubr.bf16.mxu0 0
      %384 = vmatmul.mubr.bf16.gmra.mxu0 %v340
      %v385 = vpop.f32.mrf.mxu0
      %v386 = vadd.f32 %v285, %v385
      %v387 = vpop.f32.mrf.mxu0
      %v388 = vpop.f32.mrf.mxu0
      %v389 = vadd.f32 %v288, %v388
      %v390 = vpop.f32.mrf.mxu0
      %391 = vmatprep.mubr.bf16.mxu0 0
      %392 = vmatmul.mubr.bf16.gmra.mxu0 %v343
      %v393 = vpop.f32.mrf.mxu0
      %v394 = vadd.f32 %v293, %v393
      %v395 = vpop.f32.mrf.mxu0
      %v396 = vpop.f32.mrf.mxu0
      %v397 = vadd.f32 %v296, %v396
      %v398 = vpop.f32.mrf.mxu0
      %399 = vmatprep.mubr.bf16.mxu0 0
      %400 = vmatmul.mubr.bf16.gmra.mxu0 %v346
      %v401 = vpop.f32.mrf.mxu0
      %v402 = vadd.f32 %v301, %v401
      %v403 = vpop.f32.mrf.mxu0
      %v404 = vpop.f32.mrf.mxu0
      %v405 = vadd.f32 %v304, %v404
      %v406 = vpop.f32.mrf.mxu0
      %407 = vmatprep.mubr.bf16.mxu0 0
      %408 = vmatmul.mubr.bf16.gmra.mxu0 %v349
      %v409 = vpop.f32.mrf.mxu0
      %v410 = vadd.f32 %v309, %v409
      %v411 = vpop.f32.mrf.mxu0
      %v412 = vpop.f32.mrf.mxu0
      %v413 = vadd.f32 %v312, %v412
      %v414 = vpop.f32.mrf.mxu0
      %415 = vdwg.mxu0
      %v416 = vld [vmem:[%s165 + $0x2] sm:$0xff]
      %v417 = vld [vmem:[%s165 + $0xa] sm:$0xff]
      %v418 = vld [vmem:[%s165 + $0x12] sm:$0xff]
      %v419 = vld [vmem:[%s165 + $0x1a] sm:$0xff]
      %v420 = vld [vmem:[%s165 + $0x22] sm:$0xff]
      %v421 = vld [vmem:[%s165 + $0x2a] sm:$0xff]
      %v422 = vld [vmem:[%s165 + $0x32] sm:$0xff]
      %v423 = vld [vmem:[%s165 + $0x3a] sm:$0x7f]
      %v424 = vpack.c.bf16 %v417, %v416
      %v425 = vpack.c.bf16 %v419, %v418
      %v426 = vpack.c.bf16 %v421, %v420
      %v427 = vpack.c.bf16 %v423, %v422
      %s428 = scalar_lea.vmem %s1, 64
      %v429 = vld [vmem:[%s428] sm:$0xf]
      %v430 = vld [vmem:[%s428 + $0x4] sm:$0xf]
      %v431 = vld [vmem:[%s428 + $0x8] sm:$0xf]
      %v432 = vld [vmem:[%s428 + $0xc] sm:$0xf]
      %v433 = vld [vmem:[%s428 + $0x10] sm:$0xf]
      %v434 = vld [vmem:[%s428 + $0x14] sm:$0xf]
      %v435 = vld [vmem:[%s428 + $0x18] sm:$0xf]
      %v436 = vld [vmem:[%s428 + $0x1c] sm:$0xf]
      %v445 = vunpack.c.l.b16 %v429
      %v446 = vunpack.c.l.b16 %v430
      %v447 = vunpack.c.l.b16 %v431
      %v448 = vunpack.c.l.b16 %v432
      %v449 = vunpack.c.l.b16 %v433
      %v450 = vunpack.c.l.b16 %v434
      %v451 = vunpack.c.l.b16 %v435
      %v452 = vunpack.c.l.b16 %v436
      %v453 = vpack.c.b16 %v446, %v445
      %v454 = vpack.c.b16 %v448, %v447
      %v455 = vpack.c.b16 %v450, %v449
      %v456 = vpack.c.b16 %v452, %v451
      %v462 = vsel %vm237, %v424, 0
      %v465 = vsel %vm237, %v425, 0
      %v468 = vsel %vm237, %v426, 0
      %v471 = vsel %vm237, %v427, 0
      %473 = vmatprep.subr.bf16.mxu0 0
      %474 = vmatpush1.bf16.msra.mxu0 0
      %475 = vmatprep.subr.bf16.mxu0 0
      %476 = vmatpush1.bf16.msra.mxu0 0
      %477 = vmatprep.subr.bf16.mxu0 0
      %478 = vmatpush1.bf16.msra.mxu0 0
      %479 = vmatprep.subr.bf16.mxu0 0
      %480 = vmatpush1.bf16.msra.mxu0 0
      %481 = vmatprep.subr.bf16.mxu0 0
      %482 = vmatpush1.bf16.msra.mxu0 %v456
      %483 = vmatprep.subr.bf16.mxu0 0
      %484 = vmatpush1.bf16.msra.mxu0 %v455
      %485 = vmatprep.subr.bf16.mxu0 0
      %486 = vmatpush1.bf16.msra.mxu0 %v454
      %487 = vmatprep.subr.bf16.mxu0 0
      %488 = vmatpush1.bf16.msra.mxu0 %v453
      %489 = vmatprep.subr.bf16.mxu0 0
      %490 = vmatpush2.bf16.msra.mxu0 0
      %491 = vmatprep.subr.bf16.mxu0 0
      %492 = vmatpush2.bf16.msra.mxu0 0
      %493 = vmatprep.subr.bf16.mxu0 0
      %494 = vmatpush2.bf16.msra.mxu0 0
      %495 = vmatprep.subr.bf16.mxu0 0
      %496 = vmatpush2.bf16.msra.mxu0 0
      %497 = vmatprep.subr.bf16.mxu0 0
      %498 = vmatpush2.bf16.msra.mxu0 0
      %499 = vmatprep.subr.bf16.mxu0 0
      %500 = vmatpush2.bf16.msra.mxu0 0
      %501 = vmatprep.subr.bf16.mxu0 0
      %502 = vmatpush2.bf16.msra.mxu0 0
      %503 = vmatprep.subr.bf16.mxu0 0
      %504 = vmatpush2.bf16.msra.mxu0 0
      %505 = vmatprep.mubr.bf16.mxu0 0
      %506 = vmatmul.mubr.bf16.gmra.mxu0 %v462
      %v507 = vpop.f32.mrf.mxu0
      %v508 = vadd.f32 0.0, %v507
      %v509 = vpop.f32.mrf.mxu0
      %v510 = vpop.f32.mrf.mxu0
      %v511 = vadd.f32 0.0, %v510
      %v512 = vpop.f32.mrf.mxu0
      %513 = vmatprep.mubr.bf16.mxu0 0
      %514 = vmatmul.mubr.bf16.gmra.mxu0 %v465
      %v515 = vpop.f32.mrf.mxu0
      %v516 = vadd.f32 0.0, %v515
      %v517 = vpop.f32.mrf.mxu0
      %v518 = vpop.f32.mrf.mxu0
      %v519 = vadd.f32 0.0, %v518
      %v520 = vpop.f32.mrf.mxu0
      %521 = vmatprep.mubr.bf16.mxu0 0
      %522 = vmatmul.mubr.bf16.gmra.mxu0 %v468
      %v523 = vpop.f32.mrf.mxu0
      %v524 = vadd.f32 0.0, %v523
      %v525 = vpop.f32.mrf.mxu0
      %v526 = vpop.f32.mrf.mxu0
      %v527 = vadd.f32 0.0, %v526
      %v528 = vpop.f32.mrf.mxu0
      %529 = vmatprep.mubr.bf16.mxu0 0
      %530 = vmatmul.mubr.bf16.gmra.mxu0 %v471
      %v531 = vpop.f32.mrf.mxu0
      %v532 = vadd.f32 0.0, %v531
      %v533 = vpop.f32.mrf.mxu0
      %v534 = vpop.f32.mrf.mxu0
      %v535 = vadd.f32 0.0, %v534
      %v536 = vpop.f32.mrf.mxu0
      %537 = vdwg.mxu0
      %v538 = vadd.f32 %v386, %v508
      %v539 = vadd.f32 %v389, %v511
      %v540 = vadd.f32 %v394, %v516
      %v541 = vadd.f32 %v397, %v519
      %v542 = vadd.f32 %v402, %v524
      %v543 = vadd.f32 %v405, %v527
      %v544 = vadd.f32 %v410, %v532
      %v545 = vadd.f32 %v413, %v535
      %v546 = vld [vmem:[%s165 + $0x9] sm:$0xff]
      %v547 = vld [vmem:[%s165 + $0x11] sm:$0xff]
      %v548 = vld [vmem:[%s165 + $0x19] sm:$0xff]
      %v549 = vld [vmem:[%s165 + $0x21] sm:$0xff]
      %v550 = vld [vmem:[%s165 + $0x29] sm:$0xff]
      %v551 = vld [vmem:[%s165 + $0x31] sm:$0xff]
      %v552 = vld [vmem:[%s165 + $0x39] sm:$0xff]
      %v553 = vld [vmem:[%s165 + $0x41] sm:$0x7f]
      %v554 = vpack.c.bf16 %v547, %v546
      %v555 = vpack.c.bf16 %v549, %v548
      %v556 = vpack.c.bf16 %v551, %v550
      %v557 = vpack.c.bf16 %v553, %v552
      %s558 = scalar_lea.vmem %s1, 96
      %v559 = vld [vmem:[%s558] sm:$0xf]
      %v560 = vld [vmem:[%s558 + $0x4] sm:$0xf]
      %v561 = vld [vmem:[%s558 + $0x8] sm:$0xf]
      %v562 = vld [vmem:[%s558 + $0xc] sm:$0xf]
      %v563 = vld [vmem:[%s558 + $0x10] sm:$0xf]
      %v564 = vld [vmem:[%s558 + $0x14] sm:$0xf]
      %v565 = vld [vmem:[%s558 + $0x18] sm:$0xf]
      %v566 = vld [vmem:[%s558 + $0x1c] sm:$0xf]
      %v575 = vunpack.c.l.b16 %v559
      %v576 = vunpack.c.l.b16 %v560
      %v577 = vunpack.c.l.b16 %v561
      %v578 = vunpack.c.l.b16 %v562
      %v579 = vunpack.c.l.b16 %v563
      %v580 = vunpack.c.l.b16 %v564
      %v581 = vunpack.c.l.b16 %v565
      %v582 = vunpack.c.l.b16 %v566
      %v583 = vpack.c.b16 %v576, %v575
      %v584 = vpack.c.b16 %v578, %v577
      %v585 = vpack.c.b16 %v580, %v579
      %v586 = vpack.c.b16 %v582, %v581
      %v592 = vsel %vm237, %v554, 0
      %v595 = vsel %vm237, %v555, 0
      %v598 = vsel %vm237, %v556, 0
      %v601 = vsel %vm237, %v557, 0
      %603 = vmatprep.subr.bf16.mxu0 0
      %604 = vmatpush1.bf16.msra.mxu0 0
      %605 = vmatprep.subr.bf16.mxu0 0
      %606 = vmatpush1.bf16.msra.mxu0 0
      %607 = vmatprep.subr.bf16.mxu0 0
      %608 = vmatpush1.bf16.msra.mxu0 0
      %609 = vmatprep.subr.bf16.mxu0 0
      %610 = vmatpush1.bf16.msra.mxu0 0
      %611 = vmatprep.subr.bf16.mxu0 0
      %612 = vmatpush1.bf16.msra.mxu0 %v586
      %613 = vmatprep.subr.bf16.mxu0 0
      %614 = vmatpush1.bf16.msra.mxu0 %v585
      %615 = vmatprep.subr.bf16.mxu0 0
      %616 = vmatpush1.bf16.msra.mxu0 %v584
      %617 = vmatprep.subr.bf16.mxu0 0
      %618 = vmatpush1.bf16.msra.mxu0 %v583
      %619 = vmatprep.subr.bf16.mxu0 0
      %620 = vmatpush2.bf16.msra.mxu0 0
      %621 = vmatprep.subr.bf16.mxu0 0
      %622 = vmatpush2.bf16.msra.mxu0 0
      %623 = vmatprep.subr.bf16.mxu0 0
      %624 = vmatpush2.bf16.msra.mxu0 0
      %625 = vmatprep.subr.bf16.mxu0 0
      %626 = vmatpush2.bf16.msra.mxu0 0
      %627 = vmatprep.subr.bf16.mxu0 0
      %628 = vmatpush2.bf16.msra.mxu0 0
      %629 = vmatprep.subr.bf16.mxu0 0
      %630 = vmatpush2.bf16.msra.mxu0 0
      %631 = vmatprep.subr.bf16.mxu0 0
      %632 = vmatpush2.bf16.msra.mxu0 0
      %633 = vmatprep.subr.bf16.mxu0 0
      %634 = vmatpush2.bf16.msra.mxu0 0
      %635 = vmatprep.mubr.bf16.mxu0 0
      %636 = vmatmul.mubr.bf16.gmra.mxu0 %v592
      %v637 = vpop.f32.mrf.mxu0
      %v638 = vadd.f32 0.0, %v637
      %v639 = vpop.f32.mrf.mxu0
      %v640 = vpop.f32.mrf.mxu0
      %v641 = vadd.f32 0.0, %v640
      %v642 = vpop.f32.mrf.mxu0
      %643 = vmatprep.mubr.bf16.mxu0 0
      %644 = vmatmul.mubr.bf16.gmra.mxu0 %v595
      %v645 = vpop.f32.mrf.mxu0
      %v646 = vadd.f32 0.0, %v645
      %v647 = vpop.f32.mrf.mxu0
      %v648 = vpop.f32.mrf.mxu0
      %v649 = vadd.f32 0.0, %v648
      %v650 = vpop.f32.mrf.mxu0
      %651 = vmatprep.mubr.bf16.mxu0 0
      %652 = vmatmul.mubr.bf16.gmra.mxu0 %v598
      %v653 = vpop.f32.mrf.mxu0
      %v654 = vadd.f32 0.0, %v653
      %v655 = vpop.f32.mrf.mxu0
      %v656 = vpop.f32.mrf.mxu0
      %v657 = vadd.f32 0.0, %v656
      %v658 = vpop.f32.mrf.mxu0
      %659 = vmatprep.mubr.bf16.mxu0 0
      %660 = vmatmul.mubr.bf16.gmra.mxu0 %v601
      %v661 = vpop.f32.mrf.mxu0
      %v662 = vadd.f32 0.0, %v661
      %v663 = vpop.f32.mrf.mxu0
      %v664 = vpop.f32.mrf.mxu0
      %v665 = vadd.f32 0.0, %v664
      %v666 = vpop.f32.mrf.mxu0
      %667 = vdwg.mxu0
      %v668 = vadd.f32 %v538, %v638
      %v669 = vadd.f32 %v539, %v641
      %v670 = vadd.f32 %v540, %v646
      %v671 = vadd.f32 %v541, %v649
      %v672 = vadd.f32 %v542, %v654
      %v673 = vadd.f32 %v543, %v657
      %v674 = vadd.f32 %v544, %v662
      %v675 = vadd.f32 %v545, %v665
      %v676 = vld [vmem:[%s165 + $0xa] sm:$0xff]
      %v677 = vld [vmem:[%s165 + $0x12] sm:$0xff]
      %v678 = vld [vmem:[%s165 + $0x1a] sm:$0xff]
      %v679 = vld [vmem:[%s165 + $0x22] sm:$0xff]
      %v680 = vld [vmem:[%s165 + $0x2a] sm:$0xff]
      %v681 = vld [vmem:[%s165 + $0x32] sm:$0xff]
      %v682 = vld [vmem:[%s165 + $0x3a] sm:$0xff]
      %v683 = vld [vmem:[%s165 + $0x42] sm:$0x7f]
      %v684 = vpack.c.bf16 %v677, %v676
      %v685 = vpack.c.bf16 %v679, %v678
      %v686 = vpack.c.bf16 %v681, %v680
      %v687 = vpack.c.bf16 %v683, %v682
      %s688 = scalar_lea.vmem %s1, 128
      %v689 = vld [vmem:[%s688] sm:$0xf]
      %v690 = vld [vmem:[%s688 + $0x4] sm:$0xf]
      %v691 = vld [vmem:[%s688 + $0x8] sm:$0xf]
      %v692 = vld [vmem:[%s688 + $0xc] sm:$0xf]
      %v693 = vld [vmem:[%s688 + $0x10] sm:$0xf]
      %v694 = vld [vmem:[%s688 + $0x14] sm:$0xf]
      %v695 = vld [vmem:[%s688 + $0x18] sm:$0xf]
      %v696 = vld [vmem:[%s688 + $0x1c] sm:$0xf]
      %v705 = vunpack.c.l.b16 %v689
      %v706 = vunpack.c.l.b16 %v690
      %v707 = vunpack.c.l.b16 %v691
      %v708 = vunpack.c.l.b16 %v692
      %v709 = vunpack.c.l.b16 %v693
      %v710 = vunpack.c.l.b16 %v694
      %v711 = vunpack.c.l.b16 %v695
      %v712 = vunpack.c.l.b16 %v696
      %v713 = vpack.c.b16 %v706, %v705
      %v714 = vpack.c.b16 %v708, %v707
      %v715 = vpack.c.b16 %v710, %v709
      %v716 = vpack.c.b16 %v712, %v711
      %v722 = vsel %vm237, %v684, 0
      %v725 = vsel %vm237, %v685, 0
      %v728 = vsel %vm237, %v686, 0
      %v731 = vsel %vm237, %v687, 0
      %733 = vmatprep.subr.bf16.mxu0 0
      %734 = vmatpush1.bf16.msra.mxu0 0
      %735 = vmatprep.subr.bf16.mxu0 0
      %736 = vmatpush1.bf16.msra.mxu0 0
      %737 = vmatprep.subr.bf16.mxu0 0
      %738 = vmatpush1.bf16.msra.mxu0 0
      %739 = vmatprep.subr.bf16.mxu0 0
      %740 = vmatpush1.bf16.msra.mxu0 0
      %741 = vmatprep.subr.bf16.mxu0 0
      %742 = vmatpush1.bf16.msra.mxu0 %v716
      %743 = vmatprep.subr.bf16.mxu0 0
      %744 = vmatpush1.bf16.msra.mxu0 %v715
      %745 = vmatprep.subr.bf16.mxu0 0
      %746 = vmatpush1.bf16.msra.mxu0 %v714
      %747 = vmatprep.subr.bf16.mxu0 0
      %748 = vmatpush1.bf16.msra.mxu0 %v713
      %749 = vmatprep.subr.bf16.mxu0 0
      %750 = vmatpush2.bf16.msra.mxu0 0
      %751 = vmatprep.subr.bf16.mxu0 0
      %752 = vmatpush2.bf16.msra.mxu0 0
      %753 = vmatprep.subr.bf16.mxu0 0
      %754 = vmatpush2.bf16.msra.mxu0 0
      %755 = vmatprep.subr.bf16.mxu0 0
      %756 = vmatpush2.bf16.msra.mxu0 0
      %757 = vmatprep.subr.bf16.mxu0 0
      %758 = vmatpush2.bf16.msra.mxu0 0
      %759 = vmatprep.subr.bf16.mxu0 0
      %760 = vmatpush2.bf16.msra.mxu0 0
      %761 = vmatprep.subr.bf16.mxu0 0
      %762 = vmatpush2.bf16.msra.mxu0 0
      %763 = vmatprep.subr.bf16.mxu0 0
      %764 = vmatpush2.bf16.msra.mxu0 0
      %765 = vmatprep.mubr.bf16.mxu0 0
      %766 = vmatmul.mubr.bf16.gmra.mxu0 %v722
      %v767 = vpop.f32.mrf.mxu0
      %v768 = vadd.f32 0.0, %v767
      %v769 = vpop.f32.mrf.mxu0
      %v770 = vpop.f32.mrf.mxu0
      %v771 = vadd.f32 0.0, %v770
      %v772 = vpop.f32.mrf.mxu0
      %773 = vmatprep.mubr.bf16.mxu0 0
      %774 = vmatmul.mubr.bf16.gmra.mxu0 %v725
      %v775 = vpop.f32.mrf.mxu0
      %v776 = vadd.f32 0.0, %v775
      %v777 = vpop.f32.mrf.mxu0
      %v778 = vpop.f32.mrf.mxu0
      %v779 = vadd.f32 0.0, %v778
      %v780 = vpop.f32.mrf.mxu0
      %781 = vmatprep.mubr.bf16.mxu0 0
      %782 = vmatmul.mubr.bf16.gmra.mxu0 %v728
      %v783 = vpop.f32.mrf.mxu0
      %v784 = vadd.f32 0.0, %v783
      %v785 = vpop.f32.mrf.mxu0
      %v786 = vpop.f32.mrf.mxu0
      %v787 = vadd.f32 0.0, %v786
      %v788 = vpop.f32.mrf.mxu0
      %789 = vmatprep.mubr.bf16.mxu0 0
      %790 = vmatmul.mubr.bf16.gmra.mxu0 %v731
      %v791 = vpop.f32.mrf.mxu0
      %v792 = vadd.f32 0.0, %v791
      %v793 = vpop.f32.mrf.mxu0
      %v794 = vpop.f32.mrf.mxu0
      %v795 = vadd.f32 0.0, %v794
      %v796 = vpop.f32.mrf.mxu0
      %797 = vdwg.mxu0
      %v798 = vadd.f32 %v668, %v768
      %v799 = vadd.f32 %v669, %v771
      %v800 = vadd.f32 %v670, %v776
      %v801 = vadd.f32 %v671, %v779
      %v802 = vadd.f32 %v672, %v784
      %v803 = vadd.f32 %v673, %v787
      %v804 = vadd.f32 %v674, %v792
      %v805 = vadd.f32 %v675, %v795
      %v806 = vld [vmem:[%s165 + $0xb] sm:$0xff]
      %v807 = vld [vmem:[%s165 + $0x13] sm:$0xff]
      %v808 = vld [vmem:[%s165 + $0x1b] sm:$0xff]
      %v809 = vld [vmem:[%s165 + $0x23] sm:$0xff]
      %v810 = vld [vmem:[%s165 + $0x2b] sm:$0xff]
      %v811 = vld [vmem:[%s165 + $0x33] sm:$0xff]
      %v812 = vld [vmem:[%s165 + $0x3b] sm:$0xff]
      %v813 = vld [vmem:[%s165 + $0x43] sm:$0x7f]
      %v814 = vpack.c.bf16 %v807, %v806
      %v815 = vpack.c.bf16 %v809, %v808
      %v816 = vpack.c.bf16 %v811, %v810
      %v817 = vpack.c.bf16 %v813, %v812
      %s818 = scalar_lea.vmem %s1, 160
      %v819 = vld [vmem:[%s818] sm:$0xf]
      %v820 = vld [vmem:[%s818 + $0x4] sm:$0xf]
      %v821 = vld [vmem:[%s818 + $0x8] sm:$0xf]
      %v822 = vld [vmem:[%s818 + $0xc] sm:$0xf]
      %v823 = vld [vmem:[%s818 + $0x10] sm:$0xf]
      %v824 = vld [vmem:[%s818 + $0x14] sm:$0xf]
      %v825 = vld [vmem:[%s818 + $0x18] sm:$0xf]
      %v826 = vld [vmem:[%s818 + $0x1c] sm:$0xf]
      %v835 = vunpack.c.l.b16 %v819
      %v836 = vunpack.c.l.b16 %v820
      %v837 = vunpack.c.l.b16 %v821
      %v838 = vunpack.c.l.b16 %v822
      %v839 = vunpack.c.l.b16 %v823
      %v840 = vunpack.c.l.b16 %v824
      %v841 = vunpack.c.l.b16 %v825
      %v842 = vunpack.c.l.b16 %v826
      %v843 = vpack.c.b16 %v836, %v835
      %v844 = vpack.c.b16 %v838, %v837
      %v845 = vpack.c.b16 %v840, %v839
      %v846 = vpack.c.b16 %v842, %v841
      %v852 = vsel %vm237, %v814, 0
      %v855 = vsel %vm237, %v815, 0
      %v858 = vsel %vm237, %v816, 0
      %v861 = vsel %vm237, %v817, 0
      %863 = vmatprep.subr.bf16.mxu0 0
      %864 = vmatpush1.bf16.msra.mxu0 0
      %865 = vmatprep.subr.bf16.mxu0 0
      %866 = vmatpush1.bf16.msra.mxu0 0
      %867 = vmatprep.subr.bf16.mxu0 0
      %868 = vmatpush1.bf16.msra.mxu0 0
      %869 = vmatprep.subr.bf16.mxu0 0
      %870 = vmatpush1.bf16.msra.mxu0 0
      %871 = vmatprep.subr.bf16.mxu0 0
      %872 = vmatpush1.bf16.msra.mxu0 %v846
      %873 = vmatprep.subr.bf16.mxu0 0
      %874 = vmatpush1.bf16.msra.mxu0 %v845
      %875 = vmatprep.subr.bf16.mxu0 0
      %876 = vmatpush1.bf16.msra.mxu0 %v844
      %877 = vmatprep.subr.bf16.mxu0 0
      %878 = vmatpush1.bf16.msra.mxu0 %v843
      %879 = vmatprep.subr.bf16.mxu0 0
      %880 = vmatpush2.bf16.msra.mxu0 0
      %881 = vmatprep.subr.bf16.mxu0 0
      %882 = vmatpush2.bf16.msra.mxu0 0
      %883 = vmatprep.subr.bf16.mxu0 0
      %884 = vmatpush2.bf16.msra.mxu0 0
      %885 = vmatprep.subr.bf16.mxu0 0
      %886 = vmatpush2.bf16.msra.mxu0 0
      %887 = vmatprep.subr.bf16.mxu0 0
      %888 = vmatpush2.bf16.msra.mxu0 0
      %889 = vmatprep.subr.bf16.mxu0 0
      %890 = vmatpush2.bf16.msra.mxu0 0
      %891 = vmatprep.subr.bf16.mxu0 0
      %892 = vmatpush2.bf16.msra.mxu0 0
      %893 = vmatprep.subr.bf16.mxu0 0
      %894 = vmatpush2.bf16.msra.mxu0 0
      %895 = vmatprep.mubr.bf16.mxu0 0
      %896 = vmatmul.mubr.bf16.gmra.mxu0 %v852
      %v897 = vpop.f32.mrf.mxu0
      %v898 = vadd.f32 0.0, %v897
      %v899 = vpop.f32.mrf.mxu0
      %v900 = vpop.f32.mrf.mxu0
      %v901 = vadd.f32 0.0, %v900
      %v902 = vpop.f32.mrf.mxu0
      %903 = vmatprep.mubr.bf16.mxu0 0
      %904 = vmatmul.mubr.bf16.gmra.mxu0 %v855
      %v905 = vpop.f32.mrf.mxu0
      %v906 = vadd.f32 0.0, %v905
      %v907 = vpop.f32.mrf.mxu0
      %v908 = vpop.f32.mrf.mxu0
      %v909 = vadd.f32 0.0, %v908
      %v910 = vpop.f32.mrf.mxu0
      %911 = vmatprep.mubr.bf16.mxu0 0
      %912 = vmatmul.mubr.bf16.gmra.mxu0 %v858
      %v913 = vpop.f32.mrf.mxu0
      %v914 = vadd.f32 0.0, %v913
      %v915 = vpop.f32.mrf.mxu0
      %v916 = vpop.f32.mrf.mxu0
      %v917 = vadd.f32 0.0, %v916
      %v918 = vpop.f32.mrf.mxu0
      %919 = vmatprep.mubr.bf16.mxu0 0
      %920 = vmatmul.mubr.bf16.gmra.mxu0 %v861
      %v921 = vpop.f32.mrf.mxu0
      %v922 = vadd.f32 0.0, %v921
      %v923 = vpop.f32.mrf.mxu0
      %v924 = vpop.f32.mrf.mxu0
      %v925 = vadd.f32 0.0, %v924
      %v926 = vpop.f32.mrf.mxu0
      %927 = vdwg.mxu0
      %v928 = vadd.f32 %v798, %v898
      %v929 = vadd.f32 %v799, %v901
      %v930 = vadd.f32 %v800, %v906
      %v931 = vadd.f32 %v801, %v909
      %v932 = vadd.f32 %v802, %v914
      %v933 = vadd.f32 %v803, %v917
      %v934 = vadd.f32 %v804, %v922
      %v935 = vadd.f32 %v805, %v925
      %v936 = vld [vmem:[%s165 + $0x12] sm:$0xff]
      %v937 = vld [vmem:[%s165 + $0x1a] sm:$0xff]
      %v938 = vld [vmem:[%s165 + $0x22] sm:$0xff]
      %v939 = vld [vmem:[%s165 + $0x2a] sm:$0xff]
      %v940 = vld [vmem:[%s165 + $0x32] sm:$0xff]
      %v941 = vld [vmem:[%s165 + $0x3a] sm:$0xff]
      %v942 = vld [vmem:[%s165 + $0x42] sm:$0xff]
      %v943 = vld [vmem:[%s165 + $0x4a] sm:$0x7f]
      %v944 = vpack.c.bf16 %v937, %v936
      %v945 = vpack.c.bf16 %v939, %v938
      %v946 = vpack.c.bf16 %v941, %v940
      %v947 = vpack.c.bf16 %v943, %v942
      %s948 = scalar_lea.vmem %s1, 192
      %v949 = vld [vmem:[%s948] sm:$0xf]
      %v950 = vld [vmem:[%s948 + $0x4] sm:$0xf]
      %v951 = vld [vmem:[%s948 + $0x8] sm:$0xf]
      %v952 = vld [vmem:[%s948 + $0xc] sm:$0xf]
      %v953 = vld [vmem:[%s948 + $0x10] sm:$0xf]
      %v954 = vld [vmem:[%s948 + $0x14] sm:$0xf]
      %v955 = vld [vmem:[%s948 + $0x18] sm:$0xf]
      %v956 = vld [vmem:[%s948 + $0x1c] sm:$0xf]
      %v965 = vunpack.c.l.b16 %v949
      %v966 = vunpack.c.l.b16 %v950
      %v967 = vunpack.c.l.b16 %v951
      %v968 = vunpack.c.l.b16 %v952
      %v969 = vunpack.c.l.b16 %v953
      %v970 = vunpack.c.l.b16 %v954
      %v971 = vunpack.c.l.b16 %v955
      %v972 = vunpack.c.l.b16 %v956
      %v973 = vpack.c.b16 %v966, %v965
      %v974 = vpack.c.b16 %v968, %v967
      %v975 = vpack.c.b16 %v970, %v969
      %v976 = vpack.c.b16 %v972, %v971
      %v982 = vsel %vm237, %v944, 0
      %v985 = vsel %vm237, %v945, 0
      %v988 = vsel %vm237, %v946, 0
      %v991 = vsel %vm237, %v947, 0
      %993 = vmatprep.subr.bf16.mxu0 0
      %994 = vmatpush1.bf16.msra.mxu0 0
      %995 = vmatprep.subr.bf16.mxu0 0
      %996 = vmatpush1.bf16.msra.mxu0 0
      %997 = vmatprep.subr.bf16.mxu0 0
      %998 = vmatpush1.bf16.msra.mxu0 0
      %999 = vmatprep.subr.bf16.mxu0 0
      %1000 = vmatpush1.bf16.msra.mxu0 0
      %1001 = vmatprep.subr.bf16.mxu0 0
      %1002 = vmatpush1.bf16.msra.mxu0 %v976
      %1003 = vmatprep.subr.bf16.mxu0 0
      %1004 = vmatpush1.bf16.msra.mxu0 %v975
      %1005 = vmatprep.subr.bf16.mxu0 0
      %1006 = vmatpush1.bf16.msra.mxu0 %v974
      %1007 = vmatprep.subr.bf16.mxu0 0
      %1008 = vmatpush1.bf16.msra.mxu0 %v973
      %1009 = vmatprep.subr.bf16.mxu0 0
      %1010 = vmatpush2.bf16.msra.mxu0 0
      %1011 = vmatprep.subr.bf16.mxu0 0
      %1012 = vmatpush2.bf16.msra.mxu0 0
      %1013 = vmatprep.subr.bf16.mxu0 0
      %1014 = vmatpush2.bf16.msra.mxu0 0
      %1015 = vmatprep.subr.bf16.mxu0 0
      %1016 = vmatpush2.bf16.msra.mxu0 0
      %1017 = vmatprep.subr.bf16.mxu0 0
      %1018 = vmatpush2.bf16.msra.mxu0 0
      %1019 = vmatprep.subr.bf16.mxu0 0
      %1020 = vmatpush2.bf16.msra.mxu0 0
      %1021 = vmatprep.subr.bf16.mxu0 0
      %1022 = vmatpush2.bf16.msra.mxu0 0
      %1023 = vmatprep.subr.bf16.mxu0 0
      %1024 = vmatpush2.bf16.msra.mxu0 0
      %1025 = vmatprep.mubr.bf16.mxu0 0
      %1026 = vmatmul.mubr.bf16.gmra.mxu0 %v982
      %v1027 = vpop.f32.mrf.mxu0
      %v1028 = vadd.f32 0.0, %v1027
      %v1029 = vpop.f32.mrf.mxu0
      %v1030 = vpop.f32.mrf.mxu0
      %v1031 = vadd.f32 0.0, %v1030
      %v1032 = vpop.f32.mrf.mxu0
      %1033 = vmatprep.mubr.bf16.mxu0 0
      %1034 = vmatmul.mubr.bf16.gmra.mxu0 %v985
      %v1035 = vpop.f32.mrf.mxu0
      %v1036 = vadd.f32 0.0, %v1035
      %v1037 = vpop.f32.mrf.mxu0
      %v1038 = vpop.f32.mrf.mxu0
      %v1039 = vadd.f32 0.0, %v1038
      %v1040 = vpop.f32.mrf.mxu0
      %1041 = vmatprep.mubr.bf16.mxu0 0
      %1042 = vmatmul.mubr.bf16.gmra.mxu0 %v988
      %v1043 = vpop.f32.mrf.mxu0
      %v1044 = vadd.f32 0.0, %v1043
      %v1045 = vpop.f32.mrf.mxu0
      %v1046 = vpop.f32.mrf.mxu0
      %v1047 = vadd.f32 0.0, %v1046
      %v1048 = vpop.f32.mrf.mxu0
      %1049 = vmatprep.mubr.bf16.mxu0 0
      %1050 = vmatmul.mubr.bf16.gmra.mxu0 %v991
      %v1051 = vpop.f32.mrf.mxu0
      %v1052 = vadd.f32 0.0, %v1051
      %v1053 = vpop.f32.mrf.mxu0
      %v1054 = vpop.f32.mrf.mxu0
      %v1055 = vadd.f32 0.0, %v1054
      %v1056 = vpop.f32.mrf.mxu0
      %1057 = vdwg.mxu0
      %v1058 = vadd.f32 %v928, %v1028
      %v1059 = vadd.f32 %v929, %v1031
      %v1060 = vadd.f32 %v930, %v1036
      %v1061 = vadd.f32 %v931, %v1039
      %v1062 = vadd.f32 %v932, %v1044
      %v1063 = vadd.f32 %v933, %v1047
      %v1064 = vadd.f32 %v934, %v1052
      %v1065 = vadd.f32 %v935, %v1055
      %v1066 = vld [vmem:[%s165 + $0x13] sm:$0xff]
      %v1067 = vld [vmem:[%s165 + $0x1b] sm:$0xff]
      %v1068 = vld [vmem:[%s165 + $0x23] sm:$0xff]
      %v1069 = vld [vmem:[%s165 + $0x2b] sm:$0xff]
      %v1070 = vld [vmem:[%s165 + $0x33] sm:$0xff]
      %v1071 = vld [vmem:[%s165 + $0x3b] sm:$0xff]
      %v1072 = vld [vmem:[%s165 + $0x43] sm:$0xff]
      %v1073 = vld [vmem:[%s165 + $0x4b] sm:$0x7f]
      %v1074 = vpack.c.bf16 %v1067, %v1066
      %v1075 = vpack.c.bf16 %v1069, %v1068
      %v1076 = vpack.c.bf16 %v1071, %v1070
      %v1077 = vpack.c.bf16 %v1073, %v1072
      %s1078 = scalar_lea.vmem %s1, 224
      %v1079 = vld [vmem:[%s1078] sm:$0xf]
      %v1080 = vld [vmem:[%s1078 + $0x4] sm:$0xf]
      %v1081 = vld [vmem:[%s1078 + $0x8] sm:$0xf]
      %v1082 = vld [vmem:[%s1078 + $0xc] sm:$0xf]
      %v1083 = vld [vmem:[%s1078 + $0x10] sm:$0xf]
      %v1084 = vld [vmem:[%s1078 + $0x14] sm:$0xf]
      %v1085 = vld [vmem:[%s1078 + $0x18] sm:$0xf]
      %v1086 = vld [vmem:[%s1078 + $0x1c] sm:$0xf]
      %v1095 = vunpack.c.l.b16 %v1079
      %v1096 = vunpack.c.l.b16 %v1080
      %v1097 = vunpack.c.l.b16 %v1081
      %v1098 = vunpack.c.l.b16 %v1082
      %v1099 = vunpack.c.l.b16 %v1083
      %v1100 = vunpack.c.l.b16 %v1084
      %v1101 = vunpack.c.l.b16 %v1085
      %v1102 = vunpack.c.l.b16 %v1086
      %v1103 = vpack.c.b16 %v1096, %v1095
      %v1104 = vpack.c.b16 %v1098, %v1097
      %v1105 = vpack.c.b16 %v1100, %v1099
      %v1106 = vpack.c.b16 %v1102, %v1101
      %v1112 = vsel %vm237, %v1074, 0
      %v1115 = vsel %vm237, %v1075, 0
      %v1118 = vsel %vm237, %v1076, 0
      %v1121 = vsel %vm237, %v1077, 0
      %1123 = vmatprep.subr.bf16.mxu0 0
      %1124 = vmatpush1.bf16.msra.mxu0 0
      %1125 = vmatprep.subr.bf16.mxu0 0
      %1126 = vmatpush1.bf16.msra.mxu0 0
      %1127 = vmatprep.subr.bf16.mxu0 0
      %1128 = vmatpush1.bf16.msra.mxu0 0
      %1129 = vmatprep.subr.bf16.mxu0 0
      %1130 = vmatpush1.bf16.msra.mxu0 0
      %1131 = vmatprep.subr.bf16.mxu0 0
      %1132 = vmatpush1.bf16.msra.mxu0 %v1106
      %1133 = vmatprep.subr.bf16.mxu0 0
      %1134 = vmatpush1.bf16.msra.mxu0 %v1105
      %1135 = vmatprep.subr.bf16.mxu0 0
      %1136 = vmatpush1.bf16.msra.mxu0 %v1104
      %1137 = vmatprep.subr.bf16.mxu0 0
      %1138 = vmatpush1.bf16.msra.mxu0 %v1103
      %1139 = vmatprep.subr.bf16.mxu0 0
      %1140 = vmatpush2.bf16.msra.mxu0 0
      %1141 = vmatprep.subr.bf16.mxu0 0
      %1142 = vmatpush2.bf16.msra.mxu0 0
      %1143 = vmatprep.subr.bf16.mxu0 0
      %1144 = vmatpush2.bf16.msra.mxu0 0
      %1145 = vmatprep.subr.bf16.mxu0 0
      %1146 = vmatpush2.bf16.msra.mxu0 0
      %1147 = vmatprep.subr.bf16.mxu0 0
      %1148 = vmatpush2.bf16.msra.mxu0 0
      %1149 = vmatprep.subr.bf16.mxu0 0
      %1150 = vmatpush2.bf16.msra.mxu0 0
      %1151 = vmatprep.subr.bf16.mxu0 0
      %1152 = vmatpush2.bf16.msra.mxu0 0
      %1153 = vmatprep.subr.bf16.mxu0 0
      %1154 = vmatpush2.bf16.msra.mxu0 0
      %1155 = vmatprep.mubr.bf16.mxu0 0
      %1156 = vmatmul.mubr.bf16.gmra.mxu0 %v1112
      %v1157 = vpop.f32.mrf.mxu0
      %v1158 = vadd.f32 0.0, %v1157
      %v1159 = vpop.f32.mrf.mxu0
      %v1160 = vpop.f32.mrf.mxu0
      %v1161 = vadd.f32 0.0, %v1160
      %v1162 = vpop.f32.mrf.mxu0
      %1163 = vmatprep.mubr.bf16.mxu0 0
      %1164 = vmatmul.mubr.bf16.gmra.mxu0 %v1115
      %v1165 = vpop.f32.mrf.mxu0
      %v1166 = vadd.f32 0.0, %v1165
      %v1167 = vpop.f32.mrf.mxu0
      %v1168 = vpop.f32.mrf.mxu0
      %v1169 = vadd.f32 0.0, %v1168
      %v1170 = vpop.f32.mrf.mxu0
      %1171 = vmatprep.mubr.bf16.mxu0 0
      %1172 = vmatmul.mubr.bf16.gmra.mxu0 %v1118
      %v1173 = vpop.f32.mrf.mxu0
      %v1174 = vadd.f32 0.0, %v1173
      %v1175 = vpop.f32.mrf.mxu0
      %v1176 = vpop.f32.mrf.mxu0
      %v1177 = vadd.f32 0.0, %v1176
      %v1178 = vpop.f32.mrf.mxu0
      %1179 = vmatprep.mubr.bf16.mxu0 0
      %1180 = vmatmul.mubr.bf16.gmra.mxu0 %v1121
      %v1181 = vpop.f32.mrf.mxu0
      %v1182 = vadd.f32 0.0, %v1181
      %v1183 = vpop.f32.mrf.mxu0
      %v1184 = vpop.f32.mrf.mxu0
      %v1185 = vadd.f32 0.0, %v1184
      %v1186 = vpop.f32.mrf.mxu0
      %1187 = vdwg.mxu0
      %v1188 = vadd.f32 %v1058, %v1158
      %v1189 = vadd.f32 %v1059, %v1161
      %v1190 = vadd.f32 %v1060, %v1166
      %v1191 = vadd.f32 %v1061, %v1169
      %v1192 = vadd.f32 %v1062, %v1174
      %v1193 = vadd.f32 %v1063, %v1177
      %v1194 = vadd.f32 %v1064, %v1182
      %v1195 = vadd.f32 %v1065, %v1185
      %v1196 = vld [vmem:[%s165 + $0x14] sm:$0xff]
      %v1197 = vld [vmem:[%s165 + $0x1c] sm:$0xff]
      %v1198 = vld [vmem:[%s165 + $0x24] sm:$0xff]
      %v1199 = vld [vmem:[%s165 + $0x2c] sm:$0xff]
      %v1200 = vld [vmem:[%s165 + $0x34] sm:$0xff]
      %v1201 = vld [vmem:[%s165 + $0x3c] sm:$0xff]
      %v1202 = vld [vmem:[%s165 + $0x44] sm:$0xff]
      %v1203 = vld [vmem:[%s165 + $0x4c] sm:$0x7f]
      %v1204 = vpack.c.bf16 %v1197, %v1196
      %v1205 = vpack.c.bf16 %v1199, %v1198
      %v1206 = vpack.c.bf16 %v1201, %v1200
      %v1207 = vpack.c.bf16 %v1203, %v1202
      %s1208 = scalar_lea.vmem %s1, 256
      %v1209 = vld [vmem:[%s1208] sm:$0xf]
      %v1210 = vld [vmem:[%s1208 + $0x4] sm:$0xf]
      %v1211 = vld [vmem:[%s1208 + $0x8] sm:$0xf]
      %v1212 = vld [vmem:[%s1208 + $0xc] sm:$0xf]
      %v1213 = vld [vmem:[%s1208 + $0x10] sm:$0xf]
      %v1214 = vld [vmem:[%s1208 + $0x14] sm:$0xf]
      %v1215 = vld [vmem:[%s1208 + $0x18] sm:$0xf]
      %v1216 = vld [vmem:[%s1208 + $0x1c] sm:$0xf]
      %v1225 = vunpack.c.l.b16 %v1209
      %v1226 = vunpack.c.l.b16 %v1210
      %v1227 = vunpack.c.l.b16 %v1211
      %v1228 = vunpack.c.l.b16 %v1212
      %v1229 = vunpack.c.l.b16 %v1213
      %v1230 = vunpack.c.l.b16 %v1214
      %v1231 = vunpack.c.l.b16 %v1215
      %v1232 = vunpack.c.l.b16 %v1216
      %v1233 = vpack.c.b16 %v1226, %v1225
      %v1234 = vpack.c.b16 %v1228, %v1227
      %v1235 = vpack.c.b16 %v1230, %v1229
      %v1236 = vpack.c.b16 %v1232, %v1231
      %v1242 = vsel %vm237, %v1204, 0
      %v1245 = vsel %vm237, %v1205, 0
      %v1248 = vsel %vm237, %v1206, 0
      %v1251 = vsel %vm237, %v1207, 0
      %1253 = vmatprep.subr.bf16.mxu0 0
      %1254 = vmatpush1.bf16.msra.mxu0 0
      %1255 = vmatprep.subr.bf16.mxu0 0
      %1256 = vmatpush1.bf16.msra.mxu0 0
      %1257 = vmatprep.subr.bf16.mxu0 0
      %1258 = vmatpush1.bf16.msra.mxu0 0
      %1259 = vmatprep.subr.bf16.mxu0 0
      %1260 = vmatpush1.bf16.msra.mxu0 0
      %1261 = vmatprep.subr.bf16.mxu0 0
      %1262 = vmatpush1.bf16.msra.mxu0 %v1236
      %1263 = vmatprep.subr.bf16.mxu0 0
      %1264 = vmatpush1.bf16.msra.mxu0 %v1235
      %1265 = vmatprep.subr.bf16.mxu0 0
      %1266 = vmatpush1.bf16.msra.mxu0 %v1234
      %1267 = vmatprep.subr.bf16.mxu0 0
      %1268 = vmatpush1.bf16.msra.mxu0 %v1233
      %1269 = vmatprep.subr.bf16.mxu0 0
      %1270 = vmatpush2.bf16.msra.mxu0 0
      %1271 = vmatprep.subr.bf16.mxu0 0
      %1272 = vmatpush2.bf16.msra.mxu0 0
      %1273 = vmatprep.subr.bf16.mxu0 0
      %1274 = vmatpush2.bf16.msra.mxu0 0
      %1275 = vmatprep.subr.bf16.mxu0 0
      %1276 = vmatpush2.bf16.msra.mxu0 0
      %1277 = vmatprep.subr.bf16.mxu0 0
      %1278 = vmatpush2.bf16.msra.mxu0 0
      %1279 = vmatprep.subr.bf16.mxu0 0
      %1280 = vmatpush2.bf16.msra.mxu0 0
      %1281 = vmatprep.subr.bf16.mxu0 0
      %1282 = vmatpush2.bf16.msra.mxu0 0
      %1283 = vmatprep.subr.bf16.mxu0 0
      %1284 = vmatpush2.bf16.msra.mxu0 0
      %1285 = vmatprep.mubr.bf16.mxu0 0
      %1286 = vmatmul.mubr.bf16.gmra.mxu0 %v1242
      %v1287 = vpop.f32.mrf.mxu0
      %v1288 = vadd.f32 0.0, %v1287
      %v1289 = vpop.f32.mrf.mxu0
      %v1290 = vpop.f32.mrf.mxu0
      %v1291 = vadd.f32 0.0, %v1290
      %v1292 = vpop.f32.mrf.mxu0
      %1293 = vmatprep.mubr.bf16.mxu0 0
      %1294 = vmatmul.mubr.bf16.gmra.mxu0 %v1245
      %v1295 = vpop.f32.mrf.mxu0
      %v1296 = vadd.f32 0.0, %v1295
      %v1297 = vpop.f32.mrf.mxu0
      %v1298 = vpop.f32.mrf.mxu0
      %v1299 = vadd.f32 0.0, %v1298
      %v1300 = vpop.f32.mrf.mxu0
      %1301 = vmatprep.mubr.bf16.mxu0 0
      %1302 = vmatmul.mubr.bf16.gmra.mxu0 %v1248
      %v1303 = vpop.f32.mrf.mxu0
      %v1304 = vadd.f32 0.0, %v1303
      %v1305 = vpop.f32.mrf.mxu0
      %v1306 = vpop.f32.mrf.mxu0
      %v1307 = vadd.f32 0.0, %v1306
      %v1308 = vpop.f32.mrf.mxu0
      %1309 = vmatprep.mubr.bf16.mxu0 0
      %1310 = vmatmul.mubr.bf16.gmra.mxu0 %v1251
      %v1311 = vpop.f32.mrf.mxu0
      %v1312 = vadd.f32 0.0, %v1311
      %v1313 = vpop.f32.mrf.mxu0
      %v1314 = vpop.f32.mrf.mxu0
      %v1315 = vadd.f32 0.0, %v1314
      %v1316 = vpop.f32.mrf.mxu0
      %1317 = vdwg.mxu0
      %v1318 = vadd.f32 %v1188, %v1288
      %v1319 = vadd.f32 %v1189, %v1291
      %v1320 = vadd.f32 %v1190, %v1296
      %v1321 = vadd.f32 %v1191, %v1299
      %v1322 = vadd.f32 %v1192, %v1304
      %v1323 = vadd.f32 %v1193, %v1307
      %v1324 = vadd.f32 %v1194, %v1312
      %v1325 = vadd.f32 %v1195, %v1315
      %v1326 = vld [vmem:[%s2] sm:$0x1]
      %v1328 = vlaneseq
      %v1329 = vshrl.u32 %v1328, 7
      %v1330 = vsub.s32 0, %v1329
      %v1331 = vrot.slane %v1326, %v1330
      %v1333 = vadd.f32 %v1318, %v1331
      %v1334 = vadd.f32 %v1319, %v1331
      %v1335 = vadd.f32 %v1320, %v1331
      %v1336 = vadd.f32 %v1321, %v1331
      %v1337 = vadd.f32 %v1322, %v1331
      %v1338 = vadd.f32 %v1323, %v1331
      %v1339 = vadd.f32 %v1324, %v1331
      %v1340 = vadd.f32 %v1325, %v1331
      %v1341 = vmax.f32 %v1333, 0.0
      %v1342 = vmax.f32 %v1334, 0.0
      %v1343 = vmax.f32 %v1335, 0.0
      %v1344 = vmax.f32 %v1336, 0.0
      %v1345 = vmax.f32 %v1337, 0.0
      %v1346 = vmax.f32 %v1338, 0.0
      %v1347 = vmax.f32 %v1339, 0.0
      %v1348 = vmax.f32 %v1340, 0.0
      %1349 = vst.msk [vmem:[%s170] sm:$0xff] %vm237, %v1341
      %1350 = vst.msk [vmem:[%s170 + $0x8] sm:$0xff] %vm237, %v1342
      %1351 = vst.msk [vmem:[%s170 + $0x10] sm:$0xff] %vm237, %v1343
      %1352 = vst.msk [vmem:[%s170 + $0x18] sm:$0xff] %vm237, %v1344
      %1353 = vst.msk [vmem:[%s170 + $0x20] sm:$0xff] %vm237, %v1345
      %1354 = vst.msk [vmem:[%s170 + $0x28] sm:$0xff] %vm237, %v1346
      %1355 = vst.msk [vmem:[%s170 + $0x30] sm:$0xff] %vm237, %v1347
      %vm1356 = vcmask 522240
      %1357 = vst.msk [vmem:[%s170 + $0x38] sm:$0x7f] %vm1356, %v1348
      %p1358 = scmp.lt.s32.totalorder %s14, 1
      %s1359 = scalar_select %p1358, %s14, 1
      %s1360 = smul.addr %s1359, 8
      %s1361 = smul.addr %s1360, 8
      %s1362 = scalar_lea.vmem %s3, %s1361
      // Predicated region
      $region33: #{dqn_forward.6} parent=31 // pred_check
        %p1363 = pneg %p100
      $region34: #{dqn_forward.6} parent=31 // pred_check_branch
        %1365 = sbr.rel (%p1363) target = $region36
      $region35: #{dqn_forward.6} parent=31 // pred_region
        _
      $region36: #{dqn_forward.6} parent=31 // pred_fallthru
        _
    $region32: #{dqn_forward.6} parent=5 // pred_fallthru
      _
    %p1366 = scmp.le.s32.totalorder 2, %s9
    // Predicated region
    $region37: #{dqn_forward.6} parent=5 // pred_check
      %p1367 = pneg %p1366
    $region38: #{dqn_forward.6} parent=5 // pred_check_branch
      %1369 = sbr.rel (%p1367) target = $region40
    $region39: #{dqn_forward.6} parent=5 // pred_region
      %s1370 = ssub.s32 %s9, 2
      // Predicated region
      $region41: #{dqn_forward.6} parent=39 // pred_check
        %p1371 = pneg %p106
      $region42: #{dqn_forward.6} parent=39 // pred_check_branch
        %1373 = sbr.rel (%p1371) target = $region44
      $region43: #{dqn_forward.6} parent=39 // pred_region
        %p1374 = scmp.lt.s32.totalorder %s15, 1
        %s1375 = scalar_select %p1374, %s15, 1
        %s1376 = smul.addr %s1375, 8
        %s1377 = smul.addr %s1376, 8
        %s1378 = scalar_lea.vmem %s3, %s1377
      $region44: #{dqn_forward.6} parent=39 // pred_fallthru
        _
    $region40: #{dqn_forward.6} parent=5 // pred_fallthru
      _
  $region6: #{dqn_forward.6} parent=0 // loop_footer
    %s13 = sadd.s32 1, %s9
  $region7: #{dqn_forward.6} parent=0 // loop_footer_branch
    %8 = sbr.rel target = $region3
  $region8: #{dqn_forward.6} parent=0 // loop_exit
    _

// kernel: dqn_forward.7
$region0: #{dqn_forward.7}
  #allocation0 [shape = 'u32[]', space=smem, size = 0x4, offset = 0x4, fixed_abs, tag = 'smem constant byte address 0x4 - core index']
  #allocation1 [shape = 'u32[144,128]{1,0:T(1,128)}', space=vmem, size = 0x12000, scoped, tag = 'internal scratch']
  %s0 = inlined_call_operand.vmem [shape: f32[2,3136], index: 0, kind: input, shape index: {}]
  %s1 = inlined_call_operand.vmem [shape: bf16[3136,32], index: 1, kind: input, shape index: {}]
  %s2 = inlined_call_operand.vmem [shape: f32[1,32], index: 2, kind: input, shape index: {}]
  %s3 = inlined_call_operand.vmem [shape: bf16[32,6], index: 3, kind: input, shape index: {}]
  %s4 = inlined_call_operand.vmem [shape: f32[1,6], index: 4, kind: input, shape index: {}]
  %s5 = inlined_call_operand.hbm [shape: f32[2,6], index: 5, kind: output, shape index: {}]
  %s6 = sld [smem:[#allocation0]]
  $region30: #{dqn_forward.7} parent=0
    _
  %s8 = ssub.s32 1, %s6
  %s9 = scalar_select 0, %s8, %s6
  $region1: #{dqn_forward.7} parent=0
    #allocation2 [shape = 'u8[1024]{0}', space=vmem, size = 0x400, scoped, tag = 'output window, operand 0, single buffered']
    #allocation3 [shape = 's32[1]{0}', space=sflag, size = 0x4, scoped, tag = 'scoped memory for dqn_forward.7']
    %10 = vsyncpa [#allocation3], 0
    // Predicated region
    $region2: #{dqn_forward.7} parent=1 // pred_check
      _
    $region3: #{dqn_forward.7} parent=1 // pred_check_branch
      %12 = sbr.rel (0) target = $region5
    $region4: #{dqn_forward.7} parent=1 // pred_region
      _
    $region5: #{dqn_forward.7} parent=1 // pred_fallthru
      _
    // Predicated region
    $region6: #{dqn_forward.7} parent=1 // pred_check
      _
    $region7: #{dqn_forward.7} parent=1 // pred_check_branch
      %14 = sbr.rel (0) target = $region9
    $region8: #{dqn_forward.7} parent=1 // pred_region
      _
    $region9: #{dqn_forward.7} parent=1 // pred_fallthru
      _
    // Predicated region
    $region10: #{dqn_forward.7} parent=1 // pred_check
      _
    $region11: #{dqn_forward.7} parent=1 // pred_check_branch
      %16 = sbr.rel (0) target = $region13
    $region12: #{dqn_forward.7} parent=1 // pred_region
      _
    $region13: #{dqn_forward.7} parent=1 // pred_fallthru
      _
    // Predicated region
    $region14: #{dqn_forward.7} parent=1 // pred_check
      _
    $region15: #{dqn_forward.7} parent=1 // pred_check_branch
      %18 = sbr.rel (0) target = $region17
    $region16: #{dqn_forward.7} parent=1 // pred_region
      _
    $region17: #{dqn_forward.7} parent=1 // pred_fallthru
      _
    // Predicated region
    $region18: #{dqn_forward.7} parent=1 // pred_check
      _
    $region19: #{dqn_forward.7} parent=1 // pred_check_branch
      %20 = sbr.rel (0) target = $region21
    $region20: #{dqn_forward.7} parent=1 // pred_region
      _
    $region21: #{dqn_forward.7} parent=1 // pred_fallthru
      _
    %v22 = vld [vmem:[%s0] sm:$0xff]
    %v23 = vld [vmem:[%s0 + $0x8] sm:$0xff]
    %v24 = vld [vmem:[%s0 + $0x10] sm:$0xff]
    %v25 = vld [vmem:[%s0 + $0x18] sm:$0xff]
    %v26 = vld [vmem:[%s0 + $0x20] sm:$0xff]
    %v27 = vld [vmem:[%s0 + $0x28] sm:$0xff]
    %v28 = vld [vmem:[%s0 + $0x30] sm:$0x3]
    %v36 = vcombine.high %v22, %v22
    %v38 = vunpack.c.l.s4 1983009808
    %v39 = vunpack.c.0.s8 %v38
    %v40 = vlaneseq
    %v41 = vshrl.u32 %v40, 7
    %v42 = vsub.s32 %v39, %v41
    %v43 = vrot.slane %v22, %v42
    %v45 = vunpack.c.l.s4 1983009808
    %v46 = vunpack.c.0.s8 %v45
    %v47 = vlaneseq
    %v48 = vshrl.u32 %v47, 7
    %v49 = vsub.s32 %v46, %v48
    %v50 = vrot.slane %v36, %v49
    %v51 = vcombine.high %v43, %v43
    %v52 = vcombine.high %v50, %v50
    %v53 = vcombine.high %v23, %v23
    %v55 = vunpack.c.l.s4 1983009808
    %v56 = vunpack.c.0.s8 %v55
    %v57 = vlaneseq
    %v58 = vshrl.u32 %v57, 7
    %v59 = vsub.s32 %v56, %v58
    %v60 = vrot.slane %v23, %v59
    %v62 = vunpack.c.l.s4 1983009808
    %v63 = vunpack.c.0.s8 %v62
    %v64 = vlaneseq
    %v65 = vshrl.u32 %v64, 7
    %v66 = vsub.s32 %v63, %v65
    %v67 = vrot.slane %v53, %v66
    %v68 = vcombine.high %v60, %v60
    %v69 = vcombine.high %v67, %v67
    %v70 = vcombine.high %v24, %v24
    %v72 = vunpack.c.l.s4 1983009808
    %v73 = vunpack.c.0.s8 %v72
    %v74 = vlaneseq
    %v75 = vshrl.u32 %v74, 7
    %v76 = vsub.s32 %v73, %v75
    %v77 = vrot.slane %v24, %v76
    %v79 = vunpack.c.l.s4 1983009808
    %v80 = vunpack.c.0.s8 %v79
    %v81 = vlaneseq
    %v82 = vshrl.u32 %v81, 7
    %v83 = vsub.s32 %v80, %v82
    %v84 = vrot.slane %v70, %v83
    %v85 = vcombine.high %v77, %v77
    %v86 = vcombine.high %v84, %v84
    %v87 = vcombine.high %v25, %v25
    %v89 = vunpack.c.l.s4 1983009808
    %v90 = vunpack.c.0.s8 %v89
    %v91 = vlaneseq
    %v92 = vshrl.u32 %v91, 7
    %v93 = vsub.s32 %v90, %v92
    %v94 = vrot.slane %v25, %v93
    %v96 = vunpack.c.l.s4 1983009808
    %v97 = vunpack.c.0.s8 %v96
    %v98 = vlaneseq
    %v99 = vshrl.u32 %v98, 7
    %v100 = vsub.s32 %v97, %v99
    %v101 = vrot.slane %v87, %v100
    %v102 = vcombine.high %v94, %v94
    %v103 = vcombine.high %v101, %v101
    %v104 = vcombine.high %v26, %v26
    %v106 = vunpack.c.l.s4 1983009808
    %v107 = vunpack.c.0.s8 %v106
    %v108 = vlaneseq
    %v109 = vshrl.u32 %v108, 7
    %v110 = vsub.s32 %v107, %v109
    %v111 = vrot.slane %v26, %v110
    %v113 = vunpack.c.l.s4 1983009808
    %v114 = vunpack.c.0.s8 %v113
    %v115 = vlaneseq
    %v116 = vshrl.u32 %v115, 7
    %v117 = vsub.s32 %v114, %v116
    %v118 = vrot.slane %v104, %v117
    %v119 = vcombine.high %v111, %v111
    %v120 = vcombine.high %v118, %v118
    %v121 = vcombine.high %v27, %v27
    %v123 = vunpack.c.l.s4 1983009808
    %v124 = vunpack.c.0.s8 %v123
    %v125 = vlaneseq
    %v126 = vshrl.u32 %v125, 7
    %v127 = vsub.s32 %v124, %v126
    %v128 = vrot.slane %v27, %v127
    %v130 = vunpack.c.l.s4 1983009808
    %v131 = vunpack.c.0.s8 %v130
    %v132 = vlaneseq
    %v133 = vshrl.u32 %v132, 7
    %v134 = vsub.s32 %v131, %v133
    %v135 = vrot.slane %v121, %v134
    %v136 = vcombine.high %v128, %v128
    %v137 = vcombine.high %v135, %v135
    %v139 = vunpack.c.l.s4 1983009808
    %v140 = vunpack.c.0.s8 %v139
    %v141 = vlaneseq
    %v142 = vshrl.u32 %v141, 7
    %v143 = vsub.s32 %v140, %v142
    %v144 = vrot.slane %v28, %v143
    %v170 = vpack.c.bf16 %v43, %v43
    %v171 = vpack.c.bf16 %v51, %v51
    %v172 = vpack.c.bf16 %v50, %v50
    %v173 = vpack.c.bf16 %v52, %v52
    %v174 = vpack.c.bf16 %v60, %v60
    %v175 = vpack.c.bf16 %v68, %v68
    %v176 = vpack.c.bf16 %v67, %v67
    %v177 = vpack.c.bf16 %v69, %v69
    %v178 = vpack.c.bf16 %v77, %v77
    %v179 = vpack.c.bf16 %v85, %v85
    %v180 = vpack.c.bf16 %v84, %v84
    %v181 = vpack.c.bf16 %v86, %v86
    %v182 = vpack.c.bf16 %v94, %v94
    %v183 = vpack.c.bf16 %v102, %v102
    %v184 = vpack.c.bf16 %v101, %v101
    %v185 = vpack.c.bf16 %v103, %v103
    %v186 = vpack.c.bf16 %v111, %v111
    %v187 = vpack.c.bf16 %v119, %v119
    %v188 = vpack.c.bf16 %v118, %v118
    %v189 = vpack.c.bf16 %v120, %v120
    %v190 = vpack.c.bf16 %v128, %v128
    %v191 = vpack.c.bf16 %v136, %v136
    %v192 = vpack.c.bf16 %v135, %v135
    %v193 = vpack.c.bf16 %v137, %v137
    %v194 = vpack.c.bf16 %v144, %v144
    %v195 = vld [vmem:[%s1] sm:$0xf]
    %v196 = vld [vmem:[%s1 + $0x4] sm:$0xf]
    %v197 = vld [vmem:[%s1 + $0x8] sm:$0xf]
    %v198 = vld [vmem:[%s1 + $0xc] sm:$0xf]
    %v199 = vld [vmem:[%s1 + $0x10] sm:$0xf]
    %v200 = vld [vmem:[%s1 + $0x14] sm:$0xf]
    %v201 = vld [vmem:[%s1 + $0x18] sm:$0xf]
    %v202 = vld [vmem:[%s1 + $0x1c] sm:$0xf]
    %v203 = vld [vmem:[%s1 + $0x20] sm:$0xf]
    %v204 = vld [vmem:[%s1 + $0x24] sm:$0xf]
    %v205 = vld [vmem:[%s1 + $0x28] sm:$0xf]
    %v206 = vld [vmem:[%s1 + $0x2c] sm:$0xf]
    %v207 = vld [vmem:[%s1 + $0x30] sm:$0xf]
    %v208 = vld [vmem:[%s1 + $0x34] sm:$0xf]
    %v209 = vld [vmem:[%s1 + $0x38] sm:$0xf]
    %v210 = vld [vmem:[%s1 + $0x3c] sm:$0xf]
    %v211 = vld [vmem:[%s1 + $0x40] sm:$0xf]
    %v212 = vld [vmem:[%s1 + $0x44] sm:$0xf]
    %v213 = vld [vmem:[%s1 + $0x48] sm:$0xf]
    %v214 = vld [vmem:[%s1 + $0x4c] sm:$0xf]
    %v215 = vld [vmem:[%s1 + $0x50] sm:$0xf]
    %v216 = vld [vmem:[%s1 + $0x54] sm:$0xf]
    %v217 = vld [vmem:[%s1 + $0x58] sm:$0xf]
    %v218 = vld [vmem:[%s1 + $0x5c] sm:$0xf]
    %v219 = vld [vmem:[%s1 + $0x60] sm:$0xf]
    %v220 = vld [vmem:[%s1 + $0x64] sm:$0xf]
    %v221 = vld [vmem:[%s1 + $0x68] sm:$0xf]
    %v222 = vld [vmem:[%s1 + $0x6c] sm:$0xf]
    %v223 = vld [vmem:[%s1 + $0x70] sm:$0xf]
    %v224 = vld [vmem:[%s1 + $0x74] sm:$0xf]
    %v225 = vld [vmem:[%s1 + $0x78] sm:$0xf]
    %v226 = vld [vmem:[%s1 + $0x7c] sm:$0xf]
    %v227 = vld [vmem:[%s1 + $0x80] sm:$0xf]
    %v228 = vld [vmem:[%s1 + $0x84] sm:$0xf]
    %v229 = vld [vmem:[%s1 + $0x88] sm:$0xf]
    %v230 = vld [vmem:[%s1 + $0x8c] sm:$0xf]
    %v231 = vld [vmem:[%s1 + $0x90] sm:$0xf]
    %v232 = vld [vmem:[%s1 + $0x94] sm:$0xf]
    %v233 = vld [vmem:[%s1 + $0x98] sm:$0xf]
    %v234 = vld [vmem:[%s1 + $0x9c] sm:$0xf]
    %v235 = vld [vmem:[%s1 + $0xa0] sm:$0xf]
    %v236 = vld [vmem:[%s1 + $0xa4] sm:$0xf]
    %v237 = vld [vmem:[%s1 + $0xa8] sm:$0xf]
    %v238 = vld [vmem:[%s1 + $0xac] sm:$0xf]
    %v239 = vld [vmem:[%s1 + $0xb0] sm:$0xf]
    %v240 = vld [vmem:[%s1 + $0xb4] sm:$0xf]
    %v241 = vld [vmem:[%s1 + $0xb8] sm:$0xf]
    %v242 = vld [vmem:[%s1 + $0xbc] sm:$0xf]
    %v243 = vld [vmem:[%s1 + $0xc0] sm:$0xf]
    %v244 = vld [vmem:[%s1 + $0xc4] sm:$0xf]
    %v245 = vld [vmem:[%s1 + $0xc8] sm:$0xf]
    %v246 = vld [vmem:[%s1 + $0xcc] sm:$0xf]
    %v247 = vld [vmem:[%s1 + $0xd0] sm:$0xf]
    %v248 = vld [vmem:[%s1 + $0xd4] sm:$0xf]
    %v249 = vld [vmem:[%s1 + $0xd8] sm:$0xf]
    %v250 = vld [vmem:[%s1 + $0xdc] sm:$0xf]
    %v251 = vld [vmem:[%s1 + $0xe0] sm:$0xf]
    %v252 = vld [vmem:[%s1 + $0xe4] sm:$0xf]
    %v253 = vld [vmem:[%s1 + $0xe8] sm:$0xf]
    %v254 = vld [vmem:[%s1 + $0xec] sm:$0xf]
    %v255 = vld [vmem:[%s1 + $0xf0] sm:$0xf]
    %v256 = vld [vmem:[%s1 + $0xf4] sm:$0xf]
    %v257 = vld [vmem:[%s1 + $0xf8] sm:$0xf]
    %v258 = vld [vmem:[%s1 + $0xfc] sm:$0xf]
    %v259 = vld [vmem:[%s1 + $0x100] sm:$0xf]
    %v260 = vld [vmem:[%s1 + $0x104] sm:$0xf]
    %v261 = vld [vmem:[%s1 + $0x108] sm:$0xf]
    %v262 = vld [vmem:[%s1 + $0x10c] sm:$0xf]
    %v263 = vld [vmem:[%s1 + $0x110] sm:$0xf]
    %v264 = vld [vmem:[%s1 + $0x114] sm:$0xf]
    %v265 = vld [vmem:[%s1 + $0x118] sm:$0xf]
    %v266 = vld [vmem:[%s1 + $0x11c] sm:$0xf]
    %v267 = vld [vmem:[%s1 + $0x120] sm:$0xf]
    %v268 = vld [vmem:[%s1 + $0x124] sm:$0xf]
    %v269 = vld [vmem:[%s1 + $0x128] sm:$0xf]
    %v270 = vld [vmem:[%s1 + $0x12c] sm:$0xf]
    %v271 = vld [vmem:[%s1 + $0x130] sm:$0xf]
    %v272 = vld [vmem:[%s1 + $0x134] sm:$0xf]
    %v273 = vld [vmem:[%s1 + $0x138] sm:$0xf]
    %v274 = vld [vmem:[%s1 + $0x13c] sm:$0xf]
    %v275 = vld [vmem:[%s1 + $0x140] sm:$0xf]
    %v276 = vld [vmem:[%s1 + $0x144] sm:$0xf]
    %v277 = vld [vmem:[%s1 + $0x148] sm:$0xf]
    %v278 = vld [vmem:[%s1 + $0x14c] sm:$0xf]
    %v279 = vld [vmem:[%s1 + $0x150] sm:$0xf]
    %v280 = vld [vmem:[%s1 + $0x154] sm:$0xf]
    %v281 = vld [vmem:[%s1 + $0x158] sm:$0xf]
    %v282 = vld [vmem:[%s1 + $0x15c] sm:$0xf]
    %v283 = vld [vmem:[%s1 + $0x160] sm:$0xf]
    %v284 = vld [vmem:[%s1 + $0x164] sm:$0xf]
    %v285 = vld [vmem:[%s1 + $0x168] sm:$0xf]
    %v286 = vld [vmem:[%s1 + $0x16c] sm:$0xf]
    %v287 = vld [vmem:[%s1 + $0x170] sm:$0xf]
    %v288 = vld [vmem:[%s1 + $0x174] sm:$0xf]
    %v289 = vld [vmem:[%s1 + $0x178] sm:$0xf]
    %v290 = vld [vmem:[%s1 + $0x17c] sm:$0xf]
    %v291 = vld [vmem:[%s1 + $0x180] sm:$0xf]
    %v292 = vld [vmem:[%s1 + $0x184] sm:$0xf]
    %v293 = vld [vmem:[%s1 + $0x188] sm:$0xf]
    %v294 = vld [vmem:[%s1 + $0x18c] sm:$0xf]
    %v295 = vld [vmem:[%s1 + $0x190] sm:$0xf]
    %v296 = vld [vmem:[%s1 + $0x194] sm:$0xf]
    %v297 = vld [vmem:[%s1 + $0x198] sm:$0xf]
    %v298 = vld [vmem:[%s1 + $0x19c] sm:$0xf]
    %v299 = vld [vmem:[%s1 + $0x1a0] sm:$0xf]
    %v300 = vld [vmem:[%s1 + $0x1a4] sm:$0xf]
    %v301 = vld [vmem:[%s1 + $0x1a8] sm:$0xf]
    %v302 = vld [vmem:[%s1 + $0x1ac] sm:$0xf]
    %v303 = vld [vmem:[%s1 + $0x1b0] sm:$0xf]
    %v304 = vld [vmem:[%s1 + $0x1b4] sm:$0xf]
    %v305 = vld [vmem:[%s1 + $0x1b8] sm:$0xf]
    %v306 = vld [vmem:[%s1 + $0x1bc] sm:$0xf]
    %v307 = vld [vmem:[%s1 + $0x1c0] sm:$0xf]
    %v308 = vld [vmem:[%s1 + $0x1c4] sm:$0xf]
    %v309 = vld [vmem:[%s1 + $0x1c8] sm:$0xf]
    %v310 = vld [vmem:[%s1 + $0x1cc] sm:$0xf]
    %v311 = vld [vmem:[%s1 + $0x1d0] sm:$0xf]
    %v312 = vld [vmem:[%s1 + $0x1d4] sm:$0xf]
    %v313 = vld [vmem:[%s1 + $0x1d8] sm:$0xf]
    %v314 = vld [vmem:[%s1 + $0x1dc] sm:$0xf]
    %v315 = vld [vmem:[%s1 + $0x1e0] sm:$0xf]
    %v316 = vld [vmem:[%s1 + $0x1e4] sm:$0xf]
    %v317 = vld [vmem:[%s1 + $0x1e8] sm:$0xf]
    %v318 = vld [vmem:[%s1 + $0x1ec] sm:$0xf]
    %v319 = vld [vmem:[%s1 + $0x1f0] sm:$0xf]
    %v320 = vld [vmem:[%s1 + $0x1f4] sm:$0xf]
    %v321 = vld [vmem:[%s1 + $0x1f8] sm:$0xf]
    %v322 = vld [vmem:[%s1 + $0x1fc] sm:$0xf]
    %v323 = vld [vmem:[%s1 + $0x200] sm:$0xf]
    %v324 = vld [vmem:[%s1 + $0x204] sm:$0xf]
    %v325 = vld [vmem:[%s1 + $0x208] sm:$0xf]
    %v326 = vld [vmem:[%s1 + $0x20c] sm:$0xf]
    %v327 = vld [vmem:[%s1 + $0x210] sm:$0xf]
    %v328 = vld [vmem:[%s1 + $0x214] sm:$0xf]
    %v329 = vld [vmem:[%s1 + $0x218] sm:$0xf]
    %v330 = vld [vmem:[%s1 + $0x21c] sm:$0xf]
    %v331 = vld [vmem:[%s1 + $0x220] sm:$0xf]
    %v332 = vld [vmem:[%s1 + $0x224] sm:$0xf]
    %v333 = vld [vmem:[%s1 + $0x228] sm:$0xf]
    %v334 = vld [vmem:[%s1 + $0x22c] sm:$0xf]
    %v335 = vld [vmem:[%s1 + $0x230] sm:$0xf]
    %v336 = vld [vmem:[%s1 + $0x234] sm:$0xf]
    %v337 = vld [vmem:[%s1 + $0x238] sm:$0xf]
    %v338 = vld [vmem:[%s1 + $0x23c] sm:$0xf]
    %v339 = vld [vmem:[%s1 + $0x240] sm:$0xf]
    %v340 = vld [vmem:[%s1 + $0x244] sm:$0xf]
    %v341 = vld [vmem:[%s1 + $0x248] sm:$0xf]
    %v342 = vld [vmem:[%s1 + $0x24c] sm:$0xf]
    %v343 = vld [vmem:[%s1 + $0x250] sm:$0xf]
    %v344 = vld [vmem:[%s1 + $0x254] sm:$0xf]
    %v345 = vld [vmem:[%s1 + $0x258] sm:$0xf]
    %v346 = vld [vmem:[%s1 + $0x25c] sm:$0xf]
    %v347 = vld [vmem:[%s1 + $0x260] sm:$0xf]
    %v348 = vld [vmem:[%s1 + $0x264] sm:$0xf]
    %v349 = vld [vmem:[%s1 + $0x268] sm:$0xf]
    %v350 = vld [vmem:[%s1 + $0x26c] sm:$0xf]
    %v351 = vld [vmem:[%s1 + $0x270] sm:$0xf]
    %v352 = vld [vmem:[%s1 + $0x274] sm:$0xf]
    %v353 = vld [vmem:[%s1 + $0x278] sm:$0xf]
    %v354 = vld [vmem:[%s1 + $0x27c] sm:$0xf]
    %v355 = vld [vmem:[%s1 + $0x280] sm:$0xf]
    %v356 = vld [vmem:[%s1 + $0x284] sm:$0xf]
    %v357 = vld [vmem:[%s1 + $0x288] sm:$0xf]
    %v358 = vld [vmem:[%s1 + $0x28c] sm:$0xf]
    %v359 = vld [vmem:[%s1 + $0x290] sm:$0xf]
    %v360 = vld [vmem:[%s1 + $0x294] sm:$0xf]
    %v361 = vld [vmem:[%s1 + $0x298] sm:$0xf]
    %v362 = vld [vmem:[%s1 + $0x29c] sm:$0xf]
    %v363 = vld [vmem:[%s1 + $0x2a0] sm:$0xf]
    %v364 = vld [vmem:[%s1 + $0x2a4] sm:$0xf]
    %v365 = vld [vmem:[%s1 + $0x2a8] sm:$0xf]
    %v366 = vld [vmem:[%s1 + $0x2ac] sm:$0xf]
    %v367 = vld [vmem:[%s1 + $0x2b0] sm:$0xf]
    %v368 = vld [vmem:[%s1 + $0x2b4] sm:$0xf]
    %v369 = vld [vmem:[%s1 + $0x2b8] sm:$0xf]
    %v370 = vld [vmem:[%s1 + $0x2bc] sm:$0xf]
    %v371 = vld [vmem:[%s1 + $0x2c0] sm:$0xf]
    %v372 = vld [vmem:[%s1 + $0x2c4] sm:$0xf]
    %v373 = vld [vmem:[%s1 + $0x2c8] sm:$0xf]
    %v374 = vld [vmem:[%s1 + $0x2cc] sm:$0xf]
    %v375 = vld [vmem:[%s1 + $0x2d0] sm:$0xf]
    %v376 = vld [vmem:[%s1 + $0x2d4] sm:$0xf]
    %v377 = vld [vmem:[%s1 + $0x2d8] sm:$0xf]
    %v378 = vld [vmem:[%s1 + $0x2dc] sm:$0xf]
    %v379 = vld [vmem:[%s1 + $0x2e0] sm:$0xf]
    %v380 = vld [vmem:[%s1 + $0x2e4] sm:$0xf]
    %v381 = vld [vmem:[%s1 + $0x2e8] sm:$0xf]
    %v382 = vld [vmem:[%s1 + $0x2ec] sm:$0xf]
    %v383 = vld [vmem:[%s1 + $0x2f0] sm:$0xf]
    %v384 = vld [vmem:[%s1 + $0x2f4] sm:$0xf]
    %v385 = vld [vmem:[%s1 + $0x2f8] sm:$0xf]
    %v386 = vld [vmem:[%s1 + $0x2fc] sm:$0xf]
    %v387 = vld [vmem:[%s1 + $0x300] sm:$0xf]
    %v388 = vld [vmem:[%s1 + $0x304] sm:$0xf]
    %v389 = vld [vmem:[%s1 + $0x308] sm:$0xf]
    %v390 = vld [vmem:[%s1 + $0x30c] sm:$0xf]
    %v391 = vld [vmem:[%s1 + $0x310] sm:$0xf]
    %v392 = vld [vmem:[%s1 + $0x314] sm:$0xf]
    %v393 = vld [vmem:[%s1 + $0x318] sm:$0xf]
    %v394 = vld [vmem:[%s1 + $0x31c] sm:$0xf]
    %v395 = vld [vmem:[%s1 + $0x320] sm:$0xf]
    %v396 = vld [vmem:[%s1 + $0x324] sm:$0xf]
    %v397 = vld [vmem:[%s1 + $0x328] sm:$0xf]
    %v398 = vld [vmem:[%s1 + $0x32c] sm:$0xf]
    %v399 = vld [vmem:[%s1 + $0x330] sm:$0xf]
    %v400 = vld [vmem:[%s1 + $0x334] sm:$0xf]
    %v401 = vld [vmem:[%s1 + $0x338] sm:$0xf]
    %v402 = vld [vmem:[%s1 + $0x33c] sm:$0xf]
    %v403 = vld [vmem:[%s1 + $0x340] sm:$0xf]
    %v404 = vld [vmem:[%s1 + $0x344] sm:$0xf]
    %v405 = vld [vmem:[%s1 + $0x348] sm:$0xf]
    %v406 = vld [vmem:[%s1 + $0x34c] sm:$0xf]
    %v407 = vld [vmem:[%s1 + $0x350] sm:$0xf]
    %v408 = vld [vmem:[%s1 + $0x354] sm:$0xf]
    %v409 = vld [vmem:[%s1 + $0x358] sm:$0xf]
    %v410 = vld [vmem:[%s1 + $0x35c] sm:$0xf]
    %v411 = vld [vmem:[%s1 + $0x360] sm:$0xf]
    %v412 = vld [vmem:[%s1 + $0x364] sm:$0xf]
    %v413 = vld [vmem:[%s1 + $0x368] sm:$0xf]
    %v414 = vld [vmem:[%s1 + $0x36c] sm:$0xf]
    %v415 = vld [vmem:[%s1 + $0x370] sm:$0xf]
    %v416 = vld [vmem:[%s1 + $0x374] sm:$0xf]
    %v417 = vld [vmem:[%s1 + $0x378] sm:$0xf]
    %v418 = vld [vmem:[%s1 + $0x37c] sm:$0xf]
    %v419 = vld [vmem:[%s1 + $0x380] sm:$0xf]
    %v420 = vld [vmem:[%s1 + $0x384] sm:$0xf]
    %v421 = vld [vmem:[%s1 + $0x388] sm:$0xf]
    %v422 = vld [vmem:[%s1 + $0x38c] sm:$0xf]
    %v423 = vld [vmem:[%s1 + $0x390] sm:$0xf]
    %v424 = vld [vmem:[%s1 + $0x394] sm:$0xf]
    %v425 = vld [vmem:[%s1 + $0x398] sm:$0xf]
    %v426 = vld [vmem:[%s1 + $0x39c] sm:$0xf]
    %v427 = vld [vmem:[%s1 + $0x3a0] sm:$0xf]
    %v428 = vld [vmem:[%s1 + $0x3a4] sm:$0xf]
    %v429 = vld [vmem:[%s1 + $0x3a8] sm:$0xf]
    %v430 = vld [vmem:[%s1 + $0x3ac] sm:$0xf]
    %v431 = vld [vmem:[%s1 + $0x3b0] sm:$0xf]
    %v432 = vld [vmem:[%s1 + $0x3b4] sm:$0xf]
    %v433 = vld [vmem:[%s1 + $0x3b8] sm:$0xf]
    %v434 = vld [vmem:[%s1 + $0x3bc] sm:$0xf]
    %v435 = vld [vmem:[%s1 + $0x3c0] sm:$0xf]
    %v436 = vld [vmem:[%s1 + $0x3c4] sm:$0xf]
    %v437 = vld [vmem:[%s1 + $0x3c8] sm:$0xf]
    %v438 = vld [vmem:[%s1 + $0x3cc] sm:$0xf]
    %v439 = vld [vmem:[%s1 + $0x3d0] sm:$0xf]
    %v440 = vld [vmem:[%s1 + $0x3d4] sm:$0xf]
    %v441 = vld [vmem:[%s1 + $0x3d8] sm:$0xf]
    %v442 = vld [vmem:[%s1 + $0x3dc] sm:$0xf]
    %v443 = vld [vmem:[%s1 + $0x3e0] sm:$0xf]
    %v444 = vld [vmem:[%s1 + $0x3e4] sm:$0xf]
    %v445 = vld [vmem:[%s1 + $0x3e8] sm:$0xf]
    %v446 = vld [vmem:[%s1 + $0x3ec] sm:$0xf]
    %v447 = vld [vmem:[%s1 + $0x3f0] sm:$0xf]
    %v448 = vld [vmem:[%s1 + $0x3f4] sm:$0xf]
    %v449 = vld [vmem:[%s1 + $0x3f8] sm:$0xf]
    %v450 = vld [vmem:[%s1 + $0x3fc] sm:$0xf]
    %v451 = vld [vmem:[%s1 + $0x400] sm:$0xf]
    %v452 = vld [vmem:[%s1 + $0x404] sm:$0xf]
    %v453 = vld [vmem:[%s1 + $0x408] sm:$0xf]
    %v454 = vld [vmem:[%s1 + $0x40c] sm:$0xf]
    %v455 = vld [vmem:[%s1 + $0x410] sm:$0xf]
    %v456 = vld [vmem:[%s1 + $0x414] sm:$0xf]
    %v457 = vld [vmem:[%s1 + $0x418] sm:$0xf]
    %v458 = vld [vmem:[%s1 + $0x41c] sm:$0xf]
    %v459 = vld [vmem:[%s1 + $0x420] sm:$0xf]
    %v460 = vld [vmem:[%s1 + $0x424] sm:$0xf]
    %v461 = vld [vmem:[%s1 + $0x428] sm:$0xf]
    %v462 = vld [vmem:[%s1 + $0x42c] sm:$0xf]
    %v463 = vld [vmem:[%s1 + $0x430] sm:$0xf]
    %v464 = vld [vmem:[%s1 + $0x434] sm:$0xf]
    %v465 = vld [vmem:[%s1 + $0x438] sm:$0xf]
    %v466 = vld [vmem:[%s1 + $0x43c] sm:$0xf]
    %v467 = vld [vmem:[%s1 + $0x440] sm:$0xf]
    %v468 = vld [vmem:[%s1 + $0x444] sm:$0xf]
    %v469 = vld [vmem:[%s1 + $0x448] sm:$0xf]
    %v470 = vld [vmem:[%s1 + $0x44c] sm:$0xf]
    %v471 = vld [vmem:[%s1 + $0x450] sm:$0xf]
    %v472 = vld [vmem:[%s1 + $0x454] sm:$0xf]
    %v473 = vld [vmem:[%s1 + $0x458] sm:$0xf]
    %v474 = vld [vmem:[%s1 + $0x45c] sm:$0xf]
    %v475 = vld [vmem:[%s1 + $0x460] sm:$0xf]
    %v476 = vld [vmem:[%s1 + $0x464] sm:$0xf]
    %v477 = vld [vmem:[%s1 + $0x468] sm:$0xf]
    %v478 = vld [vmem:[%s1 + $0x46c] sm:$0xf]
    %v479 = vld [vmem:[%s1 + $0x470] sm:$0xf]
    %v480 = vld [vmem:[%s1 + $0x474] sm:$0xf]
    %v481 = vld [vmem:[%s1 + $0x478] sm:$0xf]
    %v482 = vld [vmem:[%s1 + $0x47c] sm:$0xf]
    %v483 = vld [vmem:[%s1 + $0x480] sm:$0xf]
    %v484 = vld [vmem:[%s1 + $0x484] sm:$0xf]
    %v485 = vld [vmem:[%s1 + $0x488] sm:$0xf]
    %v486 = vld [vmem:[%s1 + $0x48c] sm:$0xf]
    %v487 = vld [vmem:[%s1 + $0x490] sm:$0xf]
    %v488 = vld [vmem:[%s1 + $0x494] sm:$0xf]
    %v489 = vld [vmem:[%s1 + $0x498] sm:$0xf]
    %v490 = vld [vmem:[%s1 + $0x49c] sm:$0xf]
    %v491 = vld [vmem:[%s1 + $0x4a0] sm:$0xf]
    %v492 = vld [vmem:[%s1 + $0x4a4] sm:$0xf]
    %v493 = vld [vmem:[%s1 + $0x4a8] sm:$0xf]
    %v494 = vld [vmem:[%s1 + $0x4ac] sm:$0xf]
    %v495 = vld [vmem:[%s1 + $0x4b0] sm:$0xf]
    %v496 = vld [vmem:[%s1 + $0x4b4] sm:$0xf]
    %v497 = vld [vmem:[%s1 + $0x4b8] sm:$0xf]
    %v498 = vld [vmem:[%s1 + $0x4bc] sm:$0xf]
    %v499 = vld [vmem:[%s1 + $0x4c0] sm:$0xf]
    %v500 = vld [vmem:[%s1 + $0x4c4] sm:$0xf]
    %v501 = vld [vmem:[%s1 + $0x4c8] sm:$0xf]
    %v502 = vld [vmem:[%s1 + $0x4cc] sm:$0xf]
    %v503 = vld [vmem:[%s1 + $0x4d0] sm:$0xf]
    %v504 = vld [vmem:[%s1 + $0x4d4] sm:$0xf]
    %v505 = vld [vmem:[%s1 + $0x4d8] sm:$0xf]
    %v506 = vld [vmem:[%s1 + $0x4dc] sm:$0xf]
    %v507 = vld [vmem:[%s1 + $0x4e0] sm:$0xf]
    %v508 = vld [vmem:[%s1 + $0x4e4] sm:$0xf]
    %v509 = vld [vmem:[%s1 + $0x4e8] sm:$0xf]
    %v510 = vld [vmem:[%s1 + $0x4ec] sm:$0xf]
    %v511 = vld [vmem:[%s1 + $0x4f0] sm:$0xf]
    %v512 = vld [vmem:[%s1 + $0x4f4] sm:$0xf]
    %v513 = vld [vmem:[%s1 + $0x4f8] sm:$0xf]
    %v514 = vld [vmem:[%s1 + $0x4fc] sm:$0xf]
    %v515 = vld [vmem:[%s1 + $0x500] sm:$0xf]
    %v516 = vld [vmem:[%s1 + $0x504] sm:$0xf]
    %v517 = vld [vmem:[%s1 + $0x508] sm:$0xf]
    %v518 = vld [vmem:[%s1 + $0x50c] sm:$0xf]
    %v519 = vld [vmem:[%s1 + $0x510] sm:$0xf]
    %v520 = vld [vmem:[%s1 + $0x514] sm:$0xf]
    %v521 = vld [vmem:[%s1 + $0x518] sm:$0xf]
    %v522 = vld [vmem:[%s1 + $0x51c] sm:$0xf]
    %v523 = vld [vmem:[%s1 + $0x520] sm:$0xf]
    %v524 = vld [vmem:[%s1 + $0x524] sm:$0xf]
    %v525 = vld [vmem:[%s1 + $0x528] sm:$0xf]
    %v526 = vld [vmem:[%s1 + $0x52c] sm:$0xf]
    %v527 = vld [vmem:[%s1 + $0x530] sm:$0xf]
    %v528 = vld [vmem:[%s1 + $0x534] sm:$0xf]
    %v529 = vld [vmem:[%s1 + $0x538] sm:$0xf]
    %v530 = vld [vmem:[%s1 + $0x53c] sm:$0xf]
    %v531 = vld [vmem:[%s1 + $0x540] sm:$0xf]
    %v532 = vld [vmem:[%s1 + $0x544] sm:$0xf]
    %v533 = vld [vmem:[%s1 + $0x548] sm:$0xf]
    %v534 = vld [vmem:[%s1 + $0x54c] sm:$0xf]
    %v535 = vld [vmem:[%s1 + $0x550] sm:$0xf]
    %v536 = vld [vmem:[%s1 + $0x554] sm:$0xf]
    %v537 = vld [vmem:[%s1 + $0x558] sm:$0xf]
    %v538 = vld [vmem:[%s1 + $0x55c] sm:$0xf]
    %v539 = vld [vmem:[%s1 + $0x560] sm:$0xf]
    %v540 = vld [vmem:[%s1 + $0x564] sm:$0xf]
    %v541 = vld [vmem:[%s1 + $0x568] sm:$0xf]
    %v542 = vld [vmem:[%s1 + $0x56c] sm:$0xf]
    %v543 = vld [vmem:[%s1 + $0x570] sm:$0xf]
    %v544 = vld [vmem:[%s1 + $0x574] sm:$0xf]
    %v545 = vld [vmem:[%s1 + $0x578] sm:$0xf]
    %v546 = vld [vmem:[%s1 + $0x57c] sm:$0xf]
    %v547 = vld [vmem:[%s1 + $0x580] sm:$0xf]
    %v548 = vld [vmem:[%s1 + $0x584] sm:$0xf]
    %v549 = vld [vmem:[%s1 + $0x588] sm:$0xf]
    %v550 = vld [vmem:[%s1 + $0x58c] sm:$0xf]
    %v551 = vld [vmem:[%s1 + $0x590] sm:$0xf]
    %v552 = vld [vmem:[%s1 + $0x594] sm:$0xf]
    %v553 = vld [vmem:[%s1 + $0x598] sm:$0xf]
    %v554 = vld [vmem:[%s1 + $0x59c] sm:$0xf]
    %v555 = vld [vmem:[%s1 + $0x5a0] sm:$0xf]
    %v556 = vld [vmem:[%s1 + $0x5a4] sm:$0xf]
    %v557 = vld [vmem:[%s1 + $0x5a8] sm:$0xf]
    %v558 = vld [vmem:[%s1 + $0x5ac] sm:$0xf]
    %v559 = vld [vmem:[%s1 + $0x5b0] sm:$0xf]
    %v560 = vld [vmem:[%s1 + $0x5b4] sm:$0xf]
    %v561 = vld [vmem:[%s1 + $0x5b8] sm:$0xf]
    %v562 = vld [vmem:[%s1 + $0x5bc] sm:$0xf]
    %v563 = vld [vmem:[%s1 + $0x5c0] sm:$0xf]
    %v564 = vld [vmem:[%s1 + $0x5c4] sm:$0xf]
    %v565 = vld [vmem:[%s1 + $0x5c8] sm:$0xf]
    %v566 = vld [vmem:[%s1 + $0x5cc] sm:$0xf]
    %v567 = vld [vmem:[%s1 + $0x5d0] sm:$0xf]
    %v568 = vld [vmem:[%s1 + $0x5d4] sm:$0xf]
    %v569 = vld [vmem:[%s1 + $0x5d8] sm:$0xf]
    %v570 = vld [vmem:[%s1 + $0x5dc] sm:$0xf]
    %v571 = vld [vmem:[%s1 + $0x5e0] sm:$0xf]
    %v572 = vld [vmem:[%s1 + $0x5e4] sm:$0xf]
    %v573 = vld [vmem:[%s1 + $0x5e8] sm:$0xf]
    %v574 = vld [vmem:[%s1 + $0x5ec] sm:$0xf]
    %v575 = vld [vmem:[%s1 + $0x5f0] sm:$0xf]
    %v576 = vld [vmem:[%s1 + $0x5f4] sm:$0xf]
    %v577 = vld [vmem:[%s1 + $0x5f8] sm:$0xf]
    %v578 = vld [vmem:[%s1 + $0x5fc] sm:$0xf]
    %v579 = vld [vmem:[%s1 + $0x600] sm:$0xf]
    %v580 = vld [vmem:[%s1 + $0x604] sm:$0xf]
    %v581 = vld [vmem:[%s1 + $0x608] sm:$0xf]
    %v582 = vld [vmem:[%s1 + $0x60c] sm:$0xf]
    %v583 = vld [vmem:[%s1 + $0x610] sm:$0xf]
    %v584 = vld [vmem:[%s1 + $0x614] sm:$0xf]
    %v585 = vld [vmem:[%s1 + $0x618] sm:$0xf]
    %v586 = vld [vmem:[%s1 + $0x61c] sm:$0xf]
    %v587 = vld [vmem:[%s2] sm:$0x1]
    %v589 = vlaneseq
    %v590 = vshrl.u32 %v589, 7
    %v591 = vsub.s32 0, %v590
    %v592 = vrot.slane %v587, %v591
    %v986 = vunpack.c.l.b16 %v195
    %v987 = vunpack.c.l.b16 %v196
    %v988 = vunpack.c.l.b16 %v197
    %v989 = vunpack.c.l.b16 %v198
    %v990 = vunpack.c.l.b16 %v199
    %v991 = vunpack.c.l.b16 %v200
    %v992 = vunpack.c.l.b16 %v201
    %v993 = vunpack.c.l.b16 %v202
    %v994 = vunpack.c.l.b16 %v203
    %v995 = vunpack.c.l.b16 %v204
    %v996 = vunpack.c.l.b16 %v205
    %v997 = vunpack.c.l.b16 %v206
    %v998 = vunpack.c.l.b16 %v207
    %v999 = vunpack.c.l.b16 %v208
    %v1000 = vunpack.c.l.b16 %v209
    %v1001 = vunpack.c.l.b16 %v210
    %v1002 = vunpack.c.l.b16 %v211
    %v1003 = vunpack.c.l.b16 %v212
    %v1004 = vunpack.c.l.b16 %v213
    %v1005 = vunpack.c.l.b16 %v214
    %v1006 = vunpack.c.l.b16 %v215
    %v1007 = vunpack.c.l.b16 %v216
    %v1008 = vunpack.c.l.b16 %v217
    %v1009 = vunpack.c.l.b16 %v218
    %v1010 = vunpack.c.l.b16 %v219
    %v1011 = vunpack.c.l.b16 %v220
    %v1012 = vunpack.c.l.b16 %v221
    %v1013 = vunpack.c.l.b16 %v222
    %v1014 = vunpack.c.l.b16 %v223
    %v1015 = vunpack.c.l.b16 %v224
    %v1016 = vunpack.c.l.b16 %v225
    %v1017 = vunpack.c.l.b16 %v226
    %v1018 = vunpack.c.l.b16 %v227
    %v1019 = vunpack.c.l.b16 %v228
    %v1020 = vunpack.c.l.b16 %v229
    %v1021 = vunpack.c.l.b16 %v230
    %v1022 = vunpack.c.l.b16 %v231
    %v1023 = vunpack.c.l.b16 %v232
    %v1024 = vunpack.c.l.b16 %v233
    %v1025 = vunpack.c.l.b16 %v234
    %v1026 = vunpack.c.l.b16 %v235
    %v1027 = vunpack.c.l.b16 %v236
    %v1028 = vunpack.c.l.b16 %v237
    %v1029 = vunpack.c.l.b16 %v238
    %v1030 = vunpack.c.l.b16 %v239
    %v1031 = vunpack.c.l.b16 %v240
    %v1032 = vunpack.c.l.b16 %v241
    %v1033 = vunpack.c.l.b16 %v242
    %v1034 = vunpack.c.l.b16 %v243
    %v1035 = vunpack.c.l.b16 %v244
    %v1036 = vunpack.c.l.b16 %v245
    %v1037 = vunpack.c.l.b16 %v246
    %v1038 = vunpack.c.l.b16 %v247
    %v1039 = vunpack.c.l.b16 %v248
    %v1040 = vunpack.c.l.b16 %v249
    %v1041 = vunpack.c.l.b16 %v250
    %v1042 = vunpack.c.l.b16 %v251
    %v1043 = vunpack.c.l.b16 %v252
    %v1044 = vunpack.c.l.b16 %v253
    %v1045 = vunpack.c.l.b16 %v254
    %v1046 = vunpack.c.l.b16 %v255
    %v1047 = vunpack.c.l.b16 %v256
    %v1048 = vunpack.c.l.b16 %v257
    %v1049 = vunpack.c.l.b16 %v258
    %v1050 = vunpack.c.l.b16 %v259
    %v1051 = vunpack.c.l.b16 %v260
    %v1052 = vunpack.c.l.b16 %v261
    %v1053 = vunpack.c.l.b16 %v262
    %v1054 = vunpack.c.l.b16 %v263
    %v1055 = vunpack.c.l.b16 %v264
    %v1056 = vunpack.c.l.b16 %v265
    %v1057 = vunpack.c.l.b16 %v266
    %v1058 = vunpack.c.l.b16 %v267
    %v1059 = vunpack.c.l.b16 %v268
    %v1060 = vunpack.c.l.b16 %v269
    %v1061 = vunpack.c.l.b16 %v270
    %v1062 = vunpack.c.l.b16 %v271
    %v1063 = vunpack.c.l.b16 %v272
    %v1064 = vunpack.c.l.b16 %v273
    %v1065 = vunpack.c.l.b16 %v274
    %v1066 = vunpack.c.l.b16 %v275
    %v1067 = vunpack.c.l.b16 %v276
    %v1068 = vunpack.c.l.b16 %v277
    %v1069 = vunpack.c.l.b16 %v278
    %v1070 = vunpack.c.l.b16 %v279
    %v1071 = vunpack.c.l.b16 %v280
    %v1072 = vunpack.c.l.b16 %v281
    %v1073 = vunpack.c.l.b16 %v282
    %v1074 = vunpack.c.l.b16 %v283
    %v1075 = vunpack.c.l.b16 %v284
    %v1076 = vunpack.c.l.b16 %v285
    %v1077 = vunpack.c.l.b16 %v286
    %v1078 = vunpack.c.l.b16 %v287
    %v1079 = vunpack.c.l.b16 %v288
    %v1080 = vunpack.c.l.b16 %v289
    %v1081 = vunpack.c.l.b16 %v290
    %v1082 = vunpack.c.l.b16 %v291
    %v1083 = vunpack.c.l.b16 %v292
    %v1084 = vunpack.c.l.b16 %v293
    %v1085 = vunpack.c.l.b16 %v294
    %v1086 = vunpack.c.l.b16 %v295
    %v1087 = vunpack.c.l.b16 %v296
    %v1088 = vunpack.c.l.b16 %v297
    %v1089 = vunpack.c.l.b16 %v298
    %v1090 = vunpack.c.l.b16 %v299
    %v1091 = vunpack.c.l.b16 %v300
    %v1092 = vunpack.c.l.b16 %v301
    %v1093 = vunpack.c.l.b16 %v302
    %v1094 = vunpack.c.l.b16 %v303
    %v1095 = vunpack.c.l.b16 %v304
    %v1096 = vunpack.c.l.b16 %v305
    %v1097 = vunpack.c.l.b16 %v306
    %v1098 = vunpack.c.l.b16 %v307
    %v1099 = vunpack.c.l.b16 %v308
    %v1100 = vunpack.c.l.b16 %v309
    %v1101 = vunpack.c.l.b16 %v310
    %v1102 = vunpack.c.l.b16 %v311
    %v1103 = vunpack.c.l.b16 %v312
    %v1104 = vunpack.c.l.b16 %v313
    %v1105 = vunpack.c.l.b16 %v314
    %v1106 = vunpack.c.l.b16 %v315
    %v1107 = vunpack.c.l.b16 %v316
    %v1108 = vunpack.c.l.b16 %v317
    %v1109 = vunpack.c.l.b16 %v318
    %v1110 = vunpack.c.l.b16 %v319
    %v1111 = vunpack.c.l.b16 %v320
    %v1112 = vunpack.c.l.b16 %v321
    %v1113 = vunpack.c.l.b16 %v322
    %v1114 = vunpack.c.l.b16 %v323
    %v1115 = vunpack.c.l.b16 %v324
    %v1116 = vunpack.c.l.b16 %v325
    %v1117 = vunpack.c.l.b16 %v326
    %v1118 = vunpack.c.l.b16 %v327
    %v1119 = vunpack.c.l.b16 %v328
    %v1120 = vunpack.c.l.b16 %v329
    %v1121 = vunpack.c.l.b16 %v330
    %v1122 = vunpack.c.l.b16 %v331
    %v1123 = vunpack.c.l.b16 %v332
    %v1124 = vunpack.c.l.b16 %v333
    %v1125 = vunpack.c.l.b16 %v334
    %v1126 = vunpack.c.l.b16 %v335
    %v1127 = vunpack.c.l.b16 %v336
    %v1128 = vunpack.c.l.b16 %v337
    %v1129 = vunpack.c.l.b16 %v338
    %v1130 = vunpack.c.l.b16 %v339
    %v1131 = vunpack.c.l.b16 %v340
    %v1132 = vunpack.c.l.b16 %v341
    %v1133 = vunpack.c.l.b16 %v342
    %v1134 = vunpack.c.l.b16 %v343
    %v1135 = vunpack.c.l.b16 %v344
    %v1136 = vunpack.c.l.b16 %v345
    %v1137 = vunpack.c.l.b16 %v346
    %v1138 = vunpack.c.l.b16 %v347
    %v1139 = vunpack.c.l.b16 %v348
    %v1140 = vunpack.c.l.b16 %v349
    %v1141 = vunpack.c.l.b16 %v350
    %v1142 = vunpack.c.l.b16 %v351
    %v1143 = vunpack.c.l.b16 %v352
    %v1144 = vunpack.c.l.b16 %v353
    %v1145 = vunpack.c.l.b16 %v354
    %v1146 = vunpack.c.l.b16 %v355
    %v1147 = vunpack.c.l.b16 %v356
    %v1148 = vunpack.c.l.b16 %v357
    %v1149 = vunpack.c.l.b16 %v358
    %v1150 = vunpack.c.l.b16 %v359
    %v1151 = vunpack.c.l.b16 %v360
    %v1152 = vunpack.c.l.b16 %v361
    %v1153 = vunpack.c.l.b16 %v362
    %v1154 = vunpack.c.l.b16 %v363
    %v1155 = vunpack.c.l.b16 %v364
    %v1156 = vunpack.c.l.b16 %v365
    %v1157 = vunpack.c.l.b16 %v366
    %v1158 = vunpack.c.l.b16 %v367
    %v1159 = vunpack.c.l.b16 %v368
    %v1160 = vunpack.c.l.b16 %v369
    %v1161 = vunpack.c.l.b16 %v370
    %v1162 = vunpack.c.l.b16 %v371
    %v1163 = vunpack.c.l.b16 %v372
    %v1164 = vunpack.c.l.b16 %v373
    %v1165 = vunpack.c.l.b16 %v374
    %v1166 = vunpack.c.l.b16 %v375
    %v1167 = vunpack.c.l.b16 %v376
    %v1168 = vunpack.c.l.b16 %v377
    %v1169 = vunpack.c.l.b16 %v378
    %v1170 = vunpack.c.l.b16 %v379
    %v1171 = vunpack.c.l.b16 %v380
    %v1172 = vunpack.c.l.b16 %v381
    %v1173 = vunpack.c.l.b16 %v382
    %v1174 = vunpack.c.l.b16 %v383
    %v1175 = vunpack.c.l.b16 %v384
    %v1176 = vunpack.c.l.b16 %v385
    %v1177 = vunpack.c.l.b16 %v386
    %v1178 = vunpack.c.l.b16 %v387
    %v1179 = vunpack.c.l.b16 %v388
    %v1180 = vunpack.c.l.b16 %v389
    %v1181 = vunpack.c.l.b16 %v390
    %v1182 = vunpack.c.l.b16 %v391
    %v1183 = vunpack.c.l.b16 %v392
    %v1184 = vunpack.c.l.b16 %v393
    %v1185 = vunpack.c.l.b16 %v394
    %v1186 = vunpack.c.l.b16 %v395
    %v1187 = vunpack.c.l.b16 %v396
    %v1188 = vunpack.c.l.b16 %v397
    %v1189 = vunpack.c.l.b16 %v398
    %v1190 = vunpack.c.l.b16 %v399
    %v1191 = vunpack.c.l.b16 %v400
    %v1192 = vunpack.c.l.b16 %v401
    %v1193 = vunpack.c.l.b16 %v402
    %v1194 = vunpack.c.l.b16 %v403
    %v1195 = vunpack.c.l.b16 %v404
    %v1196 = vunpack.c.l.b16 %v405
    %v1197 = vunpack.c.l.b16 %v406
    %v1198 = vunpack.c.l.b16 %v407
    %v1199 = vunpack.c.l.b16 %v408
    %v1200 = vunpack.c.l.b16 %v409
    %v1201 = vunpack.c.l.b16 %v410
    %v1202 = vunpack.c.l.b16 %v411
    %v1203 = vunpack.c.l.b16 %v412
    %v1204 = vunpack.c.l.b16 %v413
    %v1205 = vunpack.c.l.b16 %v414
    %v1206 = vunpack.c.l.b16 %v415
    %v1207 = vunpack.c.l.b16 %v416
    %v1208 = vunpack.c.l.b16 %v417
    %v1209 = vunpack.c.l.b16 %v418
    %v1210 = vunpack.c.l.b16 %v419
    %v1211 = vunpack.c.l.b16 %v420
    %v1212 = vunpack.c.l.b16 %v421
    %v1213 = vunpack.c.l.b16 %v422
    %v1214 = vunpack.c.l.b16 %v423
    %v1215 = vunpack.c.l.b16 %v424
    %v1216 = vunpack.c.l.b16 %v425
    %v1217 = vunpack.c.l.b16 %v426
    %v1218 = vunpack.c.l.b16 %v427
    %v1219 = vunpack.c.l.b16 %v428
    %v1220 = vunpack.c.l.b16 %v429
    %v1221 = vunpack.c.l.b16 %v430
    %v1222 = vunpack.c.l.b16 %v431
    %v1223 = vunpack.c.l.b16 %v432
    %v1224 = vunpack.c.l.b16 %v433
    %v1225 = vunpack.c.l.b16 %v434
    %v1226 = vunpack.c.l.b16 %v435
    %v1227 = vunpack.c.l.b16 %v436
    %v1228 = vunpack.c.l.b16 %v437
    %v1229 = vunpack.c.l.b16 %v438
    %v1230 = vunpack.c.l.b16 %v439
    %v1231 = vunpack.c.l.b16 %v440
    %v1232 = vunpack.c.l.b16 %v441
    %v1233 = vunpack.c.l.b16 %v442
    %v1234 = vunpack.c.l.b16 %v443
    %v1235 = vunpack.c.l.b16 %v444
    %v1236 = vunpack.c.l.b16 %v445
    %v1237 = vunpack.c.l.b16 %v446
    %v1238 = vunpack.c.l.b16 %v447
    %v1239 = vunpack.c.l.b16 %v448
    %v1240 = vunpack.c.l.b16 %v449
    %v1241 = vunpack.c.l.b16 %v450
    %v1242 = vunpack.c.l.b16 %v451
    %v1243 = vunpack.c.l.b16 %v452
    %v1244 = vunpack.c.l.b16 %v453
    %v1245 = vunpack.c.l.b16 %v454
    %v1246 = vunpack.c.l.b16 %v455
    %v1247 = vunpack.c.l.b16 %v456
    %v1248 = vunpack.c.l.b16 %v457
    %v1249 = vunpack.c.l.b16 %v458
    %v1250 = vunpack.c.l.b16 %v459
    %v1251 = vunpack.c.l.b16 %v460
    %v1252 = vunpack.c.l.b16 %v461
    %v1253 = vunpack.c.l.b16 %v462
    %v1254 = vunpack.c.l.b16 %v463
    %v1255 = vunpack.c.l.b16 %v464
    %v1256 = vunpack.c.l.b16 %v465
    %v1257 = vunpack.c.l.b16 %v466
    %v1258 = vunpack.c.l.b16 %v467
    %v1259 = vunpack.c.l.b16 %v468
    %v1260 = vunpack.c.l.b16 %v469
    %v1261 = vunpack.c.l.b16 %v470
    %v1262 = vunpack.c.l.b16 %v471
    %v1263 = vunpack.c.l.b16 %v472
    %v1264 = vunpack.c.l.b16 %v473
    %v1265 = vunpack.c.l.b16 %v474
    %v1266 = vunpack.c.l.b16 %v475
    %v1267 = vunpack.c.l.b16 %v476
    %v1268 = vunpack.c.l.b16 %v477
    %v1269 = vunpack.c.l.b16 %v478
    %v1270 = vunpack.c.l.b16 %v479
    %v1271 = vunpack.c.l.b16 %v480
    %v1272 = vunpack.c.l.b16 %v481
    %v1273 = vunpack.c.l.b16 %v482
    %v1274 = vunpack.c.l.b16 %v483
    %v1275 = vunpack.c.l.b16 %v484
    %v1276 = vunpack.c.l.b16 %v485
    %v1277 = vunpack.c.l.b16 %v486
    %v1278 = vunpack.c.l.b16 %v487
    %v1279 = vunpack.c.l.b16 %v488
    %v1280 = vunpack.c.l.b16 %v489
    %v1281 = vunpack.c.l.b16 %v490
    %v1282 = vunpack.c.l.b16 %v491
    %v1283 = vunpack.c.l.b16 %v492
    %v1284 = vunpack.c.l.b16 %v493
    %v1285 = vunpack.c.l.b16 %v494
    %v1286 = vunpack.c.l.b16 %v495
    %v1287 = vunpack.c.l.b16 %v496
    %v1288 = vunpack.c.l.b16 %v497
    %v1289 = vunpack.c.l.b16 %v498
    %v1290 = vunpack.c.l.b16 %v499
    %v1291 = vunpack.c.l.b16 %v500
    %v1292 = vunpack.c.l.b16 %v501
    %v1293 = vunpack.c.l.b16 %v502
    %v1294 = vunpack.c.l.b16 %v503
    %v1295 = vunpack.c.l.b16 %v504
    %v1296 = vunpack.c.l.b16 %v505
    %v1297 = vunpack.c.l.b16 %v506
    %v1298 = vunpack.c.l.b16 %v507
    %v1299 = vunpack.c.l.b16 %v508
    %v1300 = vunpack.c.l.b16 %v509
    %v1301 = vunpack.c.l.b16 %v510
    %v1302 = vunpack.c.l.b16 %v511
    %v1303 = vunpack.c.l.b16 %v512
    %v1304 = vunpack.c.l.b16 %v513
    %v1305 = vunpack.c.l.b16 %v514
    %v1306 = vunpack.c.l.b16 %v515
    %v1307 = vunpack.c.l.b16 %v516
    %v1308 = vunpack.c.l.b16 %v517
    %v1309 = vunpack.c.l.b16 %v518
    %v1310 = vunpack.c.l.b16 %v519
    %v1311 = vunpack.c.l.b16 %v520
    %v1312 = vunpack.c.l.b16 %v521
    %v1313 = vunpack.c.l.b16 %v522
    %v1314 = vunpack.c.l.b16 %v523
    %v1315 = vunpack.c.l.b16 %v524
    %v1316 = vunpack.c.l.b16 %v525
    %v1317 = vunpack.c.l.b16 %v526
    %v1318 = vunpack.c.l.b16 %v527
    %v1319 = vunpack.c.l.b16 %v528
    %v1320 = vunpack.c.l.b16 %v529
    %v1321 = vunpack.c.l.b16 %v530
    %v1322 = vunpack.c.l.b16 %v531
    %v1323 = vunpack.c.l.b16 %v532
    %v1324 = vunpack.c.l.b16 %v533
    %v1325 = vunpack.c.l.b16 %v534
    %v1326 = vunpack.c.l.b16 %v535
    %v1327 = vunpack.c.l.b16 %v536
    %v1328 = vunpack.c.l.b16 %v537
    %v1329 = vunpack.c.l.b16 %v538
    %v1330 = vunpack.c.l.b16 %v539
    %v1331 = vunpack.c.l.b16 %v540
    %v1332 = vunpack.c.l.b16 %v541
    %v1333 = vunpack.c.l.b16 %v542
    %v1334 = vunpack.c.l.b16 %v543
    %v1335 = vunpack.c.l.b16 %v544
    %v1336 = vunpack.c.l.b16 %v545
    %v1337 = vunpack.c.l.b16 %v546
    %v1338 = vunpack.c.l.b16 %v547
    %v1339 = vunpack.c.l.b16 %v548
    %v1340 = vunpack.c.l.b16 %v549
    %v1341 = vunpack.c.l.b16 %v550
    %v1342 = vunpack.c.l.b16 %v551
    %v1343 = vunpack.c.l.b16 %v552
    %v1344 = vunpack.c.l.b16 %v553
    %v1345 = vunpack.c.l.b16 %v554
    %v1346 = vunpack.c.l.b16 %v555
    %v1347 = vunpack.c.l.b16 %v556
    %v1348 = vunpack.c.l.b16 %v557
    %v1349 = vunpack.c.l.b16 %v558
    %v1350 = vunpack.c.l.b16 %v559
    %v1351 = vunpack.c.l.b16 %v560
    %v1352 = vunpack.c.l.b16 %v561
    %v1353 = vunpack.c.l.b16 %v562
    %v1354 = vunpack.c.l.b16 %v563
    %v1355 = vunpack.c.l.b16 %v564
    %v1356 = vunpack.c.l.b16 %v565
    %v1357 = vunpack.c.l.b16 %v566
    %v1358 = vunpack.c.l.b16 %v567
    %v1359 = vunpack.c.l.b16 %v568
    %v1360 = vunpack.c.l.b16 %v569
    %v1361 = vunpack.c.l.b16 %v570
    %v1362 = vunpack.c.l.b16 %v571
    %v1363 = vunpack.c.l.b16 %v572
    %v1364 = vunpack.c.l.b16 %v573
    %v1365 = vunpack.c.l.b16 %v574
    %v1366 = vunpack.c.l.b16 %v575
    %v1367 = vunpack.c.l.b16 %v576
    %v1368 = vunpack.c.l.b16 %v577
    %v1369 = vunpack.c.l.b16 %v578
    %v1370 = vunpack.c.l.b16 %v579
    %v1371 = vunpack.c.l.b16 %v580
    %v1372 = vunpack.c.l.b16 %v581
    %v1373 = vunpack.c.l.b16 %v582
    %v1374 = vunpack.c.l.b16 %v583
    %v1375 = vunpack.c.l.b16 %v584
    %v1376 = vunpack.c.l.b16 %v585
    %v1377 = vunpack.c.l.b16 %v586
    %v1378 = vpack.c.b16 %v987, %v986
    %v1379 = vpack.c.b16 %v989, %v988
    %v1380 = vpack.c.b16 %v991, %v990
    %v1381 = vpack.c.b16 %v993, %v992
    %v1382 = vpack.c.b16 %v995, %v994
    %v1383 = vpack.c.b16 %v997, %v996
    %v1384 = vpack.c.b16 %v999, %v998
    %v1385 = vpack.c.b16 %v1001, %v1000
    %v1386 = vpack.c.b16 %v1003, %v1002
    %v1387 = vpack.c.b16 %v1005, %v1004
    %v1388 = vpack.c.b16 %v1007, %v1006
    %v1389 = vpack.c.b16 %v1009, %v1008
    %v1390 = vpack.c.b16 %v1011, %v1010
    %v1391 = vpack.c.b16 %v1013, %v1012
    %v1392 = vpack.c.b16 %v1015, %v1014
    %v1393 = vpack.c.b16 %v1017, %v1016
    %v1394 = vpack.c.b16 %v1019, %v1018
    %v1395 = vpack.c.b16 %v1021, %v1020
    %v1396 = vpack.c.b16 %v1023, %v1022
    %v1397 = vpack.c.b16 %v1025, %v1024
    %v1398 = vpack.c.b16 %v1027, %v1026
    %v1399 = vpack.c.b16 %v1029, %v1028
    %v1400 = vpack.c.b16 %v1031, %v1030
    %v1401 = vpack.c.b16 %v1033, %v1032
    %v1402 = vpack.c.b16 %v1035, %v1034
    %v1403 = vpack.c.b16 %v1037, %v1036
    %v1404 = vpack.c.b16 %v1039, %v1038
    %v1405 = vpack.c.b16 %v1041, %v1040
    %v1406 = vpack.c.b16 %v1043, %v1042
    %v1407 = vpack.c.b16 %v1045, %v1044
    %v1408 = vpack.c.b16 %v1047, %v1046
    %v1409 = vpack.c.b16 %v1049, %v1048
    %v1410 = vpack.c.b16 %v1051, %v1050
    %v1411 = vpack.c.b16 %v1053, %v1052
    %v1412 = vpack.c.b16 %v1055, %v1054
    %v1413 = vpack.c.b16 %v1057, %v1056
    %v1414 = vpack.c.b16 %v1059, %v1058
    %v1415 = vpack.c.b16 %v1061, %v1060
    %v1416 = vpack.c.b16 %v1063, %v1062
    %v1417 = vpack.c.b16 %v1065, %v1064
    %v1418 = vpack.c.b16 %v1067, %v1066
    %v1419 = vpack.c.b16 %v1069, %v1068
    %v1420 = vpack.c.b16 %v1071, %v1070
    %v1421 = vpack.c.b16 %v1073, %v1072
    %v1422 = vpack.c.b16 %v1075, %v1074
    %v1423 = vpack.c.b16 %v1077, %v1076
    %v1424 = vpack.c.b16 %v1079, %v1078
    %v1425 = vpack.c.b16 %v1081, %v1080
    %v1426 = vpack.c.b16 %v1083, %v1082
    %v1427 = vpack.c.b16 %v1085, %v1084
    %v1428 = vpack.c.b16 %v1087, %v1086
    %v1429 = vpack.c.b16 %v1089, %v1088
    %v1430 = vpack.c.b16 %v1091, %v1090
    %v1431 = vpack.c.b16 %v1093, %v1092
    %v1432 = vpack.c.b16 %v1095, %v1094
    %v1433 = vpack.c.b16 %v1097, %v1096
    %v1434 = vpack.c.b16 %v1099, %v1098
    %v1435 = vpack.c.b16 %v1101, %v1100
    %v1436 = vpack.c.b16 %v1103, %v1102
    %v1437 = vpack.c.b16 %v1105, %v1104
    %v1438 = vpack.c.b16 %v1107, %v1106
    %v1439 = vpack.c.b16 %v1109, %v1108
    %v1440 = vpack.c.b16 %v1111, %v1110
    %v1441 = vpack.c.b16 %v1113, %v1112
    %v1442 = vpack.c.b16 %v1115, %v1114
    %v1443 = vpack.c.b16 %v1117, %v1116
    %v1444 = vpack.c.b16 %v1119, %v1118
    %v1445 = vpack.c.b16 %v1121, %v1120
    %v1446 = vpack.c.b16 %v1123, %v1122
    %v1447 = vpack.c.b16 %v1125, %v1124
    %v1448 = vpack.c.b16 %v1127, %v1126
    %v1449 = vpack.c.b16 %v1129, %v1128
    %v1450 = vpack.c.b16 %v1131, %v1130
    %v1451 = vpack.c.b16 %v1133, %v1132
    %v1452 = vpack.c.b16 %v1135, %v1134
    %v1453 = vpack.c.b16 %v1137, %v1136
    %v1454 = vpack.c.b16 %v1139, %v1138
    %v1455 = vpack.c.b16 %v1141, %v1140
    %v1456 = vpack.c.b16 %v1143, %v1142
    %v1457 = vpack.c.b16 %v1145, %v1144
    %v1458 = vpack.c.b16 %v1147, %v1146
    %v1459 = vpack.c.b16 %v1149, %v1148
    %v1460 = vpack.c.b16 %v1151, %v1150
    %v1461 = vpack.c.b16 %v1153, %v1152
    %v1462 = vpack.c.b16 %v1155, %v1154
    %v1463 = vpack.c.b16 %v1157, %v1156
    %v1464 = vpack.c.b16 %v1159, %v1158
    %v1465 = vpack.c.b16 %v1161, %v1160
    %v1466 = vpack.c.b16 %v1163, %v1162
    %v1467 = vpack.c.b16 %v1165, %v1164
    %v1468 = vpack.c.b16 %v1167, %v1166
    %v1469 = vpack.c.b16 %v1169, %v1168
    %v1470 = vpack.c.b16 %v1171, %v1170
    %v1471 = vpack.c.b16 %v1173, %v1172
    %v1472 = vpack.c.b16 %v1175, %v1174
    %v1473 = vpack.c.b16 %v1177, %v1176
    %v1474 = vpack.c.b16 %v1179, %v1178
    %v1475 = vpack.c.b16 %v1181, %v1180
    %v1476 = vpack.c.b16 %v1183, %v1182
    %v1477 = vpack.c.b16 %v1185, %v1184
    %v1478 = vpack.c.b16 %v1187, %v1186
    %v1479 = vpack.c.b16 %v1189, %v1188
    %v1480 = vpack.c.b16 %v1191, %v1190
    %v1481 = vpack.c.b16 %v1193, %v1192
    %v1482 = vpack.c.b16 %v1195, %v1194
    %v1483 = vpack.c.b16 %v1197, %v1196
    %v1484 = vpack.c.b16 %v1199, %v1198
    %v1485 = vpack.c.b16 %v1201, %v1200
    %v1486 = vpack.c.b16 %v1203, %v1202
    %v1487 = vpack.c.b16 %v1205, %v1204
    %v1488 = vpack.c.b16 %v1207, %v1206
    %v1489 = vpack.c.b16 %v1209, %v1208
    %v1490 = vpack.c.b16 %v1211, %v1210
    %v1491 = vpack.c.b16 %v1213, %v1212
    %v1492 = vpack.c.b16 %v1215, %v1214
    %v1493 = vpack.c.b16 %v1217, %v1216
    %v1494 = vpack.c.b16 %v1219, %v1218
    %v1495 = vpack.c.b16 %v1221, %v1220
    %v1496 = vpack.c.b16 %v1223, %v1222
    %v1497 = vpack.c.b16 %v1225, %v1224
    %v1498 = vpack.c.b16 %v1227, %v1226
    %v1499 = vpack.c.b16 %v1229, %v1228
    %v1500 = vpack.c.b16 %v1231, %v1230
    %v1501 = vpack.c.b16 %v1233, %v1232
    %v1502 = vpack.c.b16 %v1235, %v1234
    %v1503 = vpack.c.b16 %v1237, %v1236
    %v1504 = vpack.c.b16 %v1239, %v1238
    %v1505 = vpack.c.b16 %v1241, %v1240
    %v1506 = vpack.c.b16 %v1243, %v1242
    %v1507 = vpack.c.b16 %v1245, %v1244
    %v1508 = vpack.c.b16 %v1247, %v1246
    %v1509 = vpack.c.b16 %v1249, %v1248
    %v1510 = vpack.c.b16 %v1251, %v1250
    %v1511 = vpack.c.b16 %v1253, %v1252
    %v1512 = vpack.c.b16 %v1255, %v1254
    %v1513 = vpack.c.b16 %v1257, %v1256
    %v1514 = vpack.c.b16 %v1259, %v1258
    %v1515 = vpack.c.b16 %v1261, %v1260
    %v1516 = vpack.c.b16 %v1263, %v1262
    %v1517 = vpack.c.b16 %v1265, %v1264
    %v1518 = vpack.c.b16 %v1267, %v1266
    %v1519 = vpack.c.b16 %v1269, %v1268
    %v1520 = vpack.c.b16 %v1271, %v1270
    %v1521 = vpack.c.b16 %v1273, %v1272
    %v1522 = vpack.c.b16 %v1275, %v1274
    %v1523 = vpack.c.b16 %v1277, %v1276
    %v1524 = vpack.c.b16 %v1279, %v1278
    %v1525 = vpack.c.b16 %v1281, %v1280
    %v1526 = vpack.c.b16 %v1283, %v1282
    %v1527 = vpack.c.b16 %v1285, %v1284
    %v1528 = vpack.c.b16 %v1287, %v1286
    %v1529 = vpack.c.b16 %v1289, %v1288
    %v1530 = vpack.c.b16 %v1291, %v1290
    %v1531 = vpack.c.b16 %v1293, %v1292
    %v1532 = vpack.c.b16 %v1295, %v1294
    %v1533 = vpack.c.b16 %v1297, %v1296
    %v1534 = vpack.c.b16 %v1299, %v1298
    %v1535 = vpack.c.b16 %v1301, %v1300
    %v1536 = vpack.c.b16 %v1303, %v1302
    %v1537 = vpack.c.b16 %v1305, %v1304
    %v1538 = vpack.c.b16 %v1307, %v1306
    %v1539 = vpack.c.b16 %v1309, %v1308
    %v1540 = vpack.c.b16 %v1311, %v1310
    %v1541 = vpack.c.b16 %v1313, %v1312
    %v1542 = vpack.c.b16 %v1315, %v1314
    %v1543 = vpack.c.b16 %v1317, %v1316
    %v1544 = vpack.c.b16 %v1319, %v1318
    %v1545 = vpack.c.b16 %v1321, %v1320
    %v1546 = vpack.c.b16 %v1323, %v1322
    %v1547 = vpack.c.b16 %v1325, %v1324
    %v1548 = vpack.c.b16 %v1327, %v1326
    %v1549 = vpack.c.b16 %v1329, %v1328
    %v1550 = vpack.c.b16 %v1331, %v1330
    %v1551 = vpack.c.b16 %v1333, %v1332
    %v1552 = vpack.c.b16 %v1335, %v1334
    %v1553 = vpack.c.b16 %v1337, %v1336
    %v1554 = vpack.c.b16 %v1339, %v1338
    %v1555 = vpack.c.b16 %v1341, %v1340
    %v1556 = vpack.c.b16 %v1343, %v1342
    %v1557 = vpack.c.b16 %v1345, %v1344
    %v1558 = vpack.c.b16 %v1347, %v1346
    %v1559 = vpack.c.b16 %v1349, %v1348
    %v1560 = vpack.c.b16 %v1351, %v1350
    %v1561 = vpack.c.b16 %v1353, %v1352
    %v1562 = vpack.c.b16 %v1355, %v1354
    %v1563 = vpack.c.b16 %v1357, %v1356
    %v1564 = vpack.c.b16 %v1359, %v1358
    %v1565 = vpack.c.b16 %v1361, %v1360
    %v1566 = vpack.c.b16 %v1363, %v1362
    %v1567 = vpack.c.b16 %v1365, %v1364
    %v1568 = vpack.c.b16 %v1367, %v1366
    %v1569 = vpack.c.b16 %v1369, %v1368
    %v1570 = vpack.c.b16 %v1371, %v1370
    %v1571 = vpack.c.b16 %v1373, %v1372
    %v1572 = vpack.c.b16 %v1375, %v1374
    %v1573 = vpack.c.b16 %v1377, %v1376
    %vm1770 = vcmask 523264
    %v1772 = vsel %vm1770, %v194, 0
    %1774 = vmatprep.subr.bf16.mxu0 0
    %1775 = vmatpush1.bf16.msra.mxu0 %v1385
    %1776 = vmatprep.subr.bf16.mxu0 0
    %1777 = vmatpush1.bf16.msra.mxu0 %v1384
    %1778 = vmatprep.subr.bf16.mxu0 0
    %1779 = vmatpush1.bf16.msra.mxu0 %v1383
    %1780 = vmatprep.subr.bf16.mxu0 0
    %1781 = vmatpush1.bf16.msra.mxu0 %v1382
    %1782 = vmatprep.subr.bf16.mxu0 0
    %1783 = vmatpush1.bf16.msra.mxu0 %v1381
    %1784 = vmatprep.subr.bf16.mxu0 0
    %1785 = vmatpush1.bf16.msra.mxu0 %v1380
    %1786 = vmatprep.subr.bf16.mxu0 0
    %1787 = vmatpush1.bf16.msra.mxu0 %v1379
    %1788 = vmatprep.subr.bf16.mxu0 0
    %1789 = vmatpush1.bf16.msra.mxu0 %v1378
    %1790 = vmatprep.subr.bf16.mxu0 0
    %1791 = vmatpush2.bf16.msra.mxu0 %v1393
    %1792 = vmatprep.subr.bf16.mxu0 0
    %1793 = vmatpush2.bf16.msra.mxu0 %v1392
    %1794 = vmatprep.subr.bf16.mxu0 0
    %1795 = vmatpush2.bf16.msra.mxu0 %v1391
    %1796 = vmatprep.subr.bf16.mxu0 0
    %1797 = vmatpush2.bf16.msra.mxu0 %v1390
    %1798 = vmatprep.subr.bf16.mxu0 0
    %1799 = vmatpush2.bf16.msra.mxu0 %v1389
    %1800 = vmatprep.subr.bf16.mxu0 0
    %1801 = vmatpush2.bf16.msra.mxu0 %v1388
    %1802 = vmatprep.subr.bf16.mxu0 0
    %1803 = vmatpush2.bf16.msra.mxu0 %v1387
    %1804 = vmatprep.subr.bf16.mxu0 0
    %1805 = vmatpush2.bf16.msra.mxu0 %v1386
    %1806 = vmatprep.mubr.bf16.mxu0 %v171
    %1807 = vmatmul.mubr.bf16.gmra.mxu0 %v170
    %v1808 = vpop.f32.mrf.mxu0
    %v1809 = vadd.f32 %v592, %v1808
    %v1810 = vpop.f32.mrf.mxu0
    %v1811 = vpop.f32.mrf.mxu0
    %v1812 = vpop.f32.mrf.mxu0
    %1813 = vdwg.mxu0
    %1814 = vmatprep.subr.bf16.mxu0 0
    %1815 = vmatpush1.bf16.msra.mxu0 %v1401
    %1816 = vmatprep.subr.bf16.mxu0 0
    %1817 = vmatpush1.bf16.msra.mxu0 %v1400
    %1818 = vmatprep.subr.bf16.mxu0 0
    %1819 = vmatpush1.bf16.msra.mxu0 %v1399
    %1820 = vmatprep.subr.bf16.mxu0 0
    %1821 = vmatpush1.bf16.msra.mxu0 %v1398
    %1822 = vmatprep.subr.bf16.mxu0 0
    %1823 = vmatpush1.bf16.msra.mxu0 %v1397
    %1824 = vmatprep.subr.bf16.mxu0 0
    %1825 = vmatpush1.bf16.msra.mxu0 %v1396
    %1826 = vmatprep.subr.bf16.mxu0 0
    %1827 = vmatpush1.bf16.msra.mxu0 %v1395
    %1828 = vmatprep.subr.bf16.mxu0 0
    %1829 = vmatpush1.bf16.msra.mxu0 %v1394
    %1830 = vmatprep.subr.bf16.mxu0 0
    %1831 = vmatpush2.bf16.msra.mxu0 %v1409
    %1832 = vmatprep.subr.bf16.mxu0 0
    %1833 = vmatpush2.bf16.msra.mxu0 %v1408
    %1834 = vmatprep.subr.bf16.mxu0 0
    %1835 = vmatpush2.bf16.msra.mxu0 %v1407
    %1836 = vmatprep.subr.bf16.mxu0 0
    %1837 = vmatpush2.bf16.msra.mxu0 %v1406
    %1838 = vmatprep.subr.bf16.mxu0 0
    %1839 = vmatpush2.bf16.msra.mxu0 %v1405
    %1840 = vmatprep.subr.bf16.mxu0 0
    %1841 = vmatpush2.bf16.msra.mxu0 %v1404
    %1842 = vmatprep.subr.bf16.mxu0 0
    %1843 = vmatpush2.bf16.msra.mxu0 %v1403
    %1844 = vmatprep.subr.bf16.mxu0 0
    %1845 = vmatpush2.bf16.msra.mxu0 %v1402
    %1846 = vmatprep.mubr.bf16.mxu0 %v173
    %1847 = vmatmul.mubr.bf16.gmra.mxu0 %v172
    %v1848 = vpop.f32.mrf.mxu0
    %v1849 = vadd.f32 %v1809, %v1848
    %v1850 = vpop.f32.mrf.mxu0
    %v1851 = vpop.f32.mrf.mxu0
    %v1852 = vpop.f32.mrf.mxu0
    %1853 = vdwg.mxu0
    %1854 = vmatprep.subr.bf16.mxu0 0
    %1855 = vmatpush1.bf16.msra.mxu0 %v1417
    %1856 = vmatprep.subr.bf16.mxu0 0
    %1857 = vmatpush1.bf16.msra.mxu0 %v1416
    %1858 = vmatprep.subr.bf16.mxu0 0
    %1859 = vmatpush1.bf16.msra.mxu0 %v1415
    %1860 = vmatprep.subr.bf16.mxu0 0
    %1861 = vmatpush1.bf16.msra.mxu0 %v1414
    %1862 = vmatprep.subr.bf16.mxu0 0
    %1863 = vmatpush1.bf16.msra.mxu0 %v1413
    %1864 = vmatprep.subr.bf16.mxu0 0
    %1865 = vmatpush1.bf16.msra.mxu0 %v1412
    %1866 = vmatprep.subr.bf16.mxu0 0
    %1867 = vmatpush1.bf16.msra.mxu0 %v1411
    %1868 = vmatprep.subr.bf16.mxu0 0
    %1869 = vmatpush1.bf16.msra.mxu0 %v1410
    %1870 = vmatprep.subr.bf16.mxu0 0
    %1871 = vmatpush2.bf16.msra.mxu0 %v1425
    %1872 = vmatprep.subr.bf16.mxu0 0
    %1873 = vmatpush2.bf16.msra.mxu0 %v1424
    %1874 = vmatprep.subr.bf16.mxu0 0
    %1875 = vmatpush2.bf16.msra.mxu0 %v1423
    %1876 = vmatprep.subr.bf16.mxu0 0
    %1877 = vmatpush2.bf16.msra.mxu0 %v1422
    %1878 = vmatprep.subr.bf16.mxu0 0
    %1879 = vmatpush2.bf16.msra.mxu0 %v1421
    %1880 = vmatprep.subr.bf16.mxu0 0
    %1881 = vmatpush2.bf16.msra.mxu0 %v1420
    %1882 = vmatprep.subr.bf16.mxu0 0
    %1883 = vmatpush2.bf16.msra.mxu0 %v1419
    %1884 = vmatprep.subr.bf16.mxu0 0
    %1885 = vmatpush2.bf16.msra.mxu0 %v1418
    %1886 = vmatprep.mubr.bf16.mxu0 %v175
    %1887 = vmatmul.mubr.bf16.gmra.mxu0 %v174
    %v1888 = vpop.f32.mrf.mxu0
    %v1889 = vadd.f32 %v1849, %v1888
    %v1890 = vpop.f32.mrf.mxu0
    %v1891 = vpop.f32.mrf.mxu0
    %v1892 = vpop.f32.mrf.mxu0
    %1893 = vdwg.mxu0
    %1894 = vmatprep.subr.bf16.mxu0 0
    %1895 = vmatpush1.bf16.msra.mxu0 %v1433
    %1896 = vmatprep.subr.bf16.mxu0 0
    %1897 = vmatpush1.bf16.msra.mxu0 %v1432
    %1898 = vmatprep.subr.bf16.mxu0 0
    %1899 = vmatpush1.bf16.msra.mxu0 %v1431
    %1900 = vmatprep.subr.bf16.mxu0 0
    %1901 = vmatpush1.bf16.msra.mxu0 %v1430
    %1902 = vmatprep.subr.bf16.mxu0 0
    %1903 = vmatpush1.bf16.msra.mxu0 %v1429
    %1904 = vmatprep.subr.bf16.mxu0 0
    %1905 = vmatpush1.bf16.msra.mxu0 %v1428
    %1906 = vmatprep.subr.bf16.mxu0 0
    %1907 = vmatpush1.bf16.msra.mxu0 %v1427
    %1908 = vmatprep.subr.bf16.mxu0 0
    %1909 = vmatpush1.bf16.msra.mxu0 %v1426
    %1910 = vmatprep.subr.bf16.mxu0 0
    %1911 = vmatpush2.bf16.msra.mxu0 %v1441
    %1912 = vmatprep.subr.bf16.mxu0 0
    %1913 = vmatpush2.bf16.msra.mxu0 %v1440
    %1914 = vmatprep.subr.bf16.mxu0 0
    %1915 = vmatpush2.bf16.msra.mxu0 %v1439
    %1916 = vmatprep.subr.bf16.mxu0 0
    %1917 = vmatpush2.bf16.msra.mxu0 %v1438
    %1918 = vmatprep.subr.bf16.mxu0 0
    %1919 = vmatpush2.bf16.msra.mxu0 %v1437
    %1920 = vmatprep.subr.bf16.mxu0 0
    %1921 = vmatpush2.bf16.msra.mxu0 %v1436
    %1922 = vmatprep.subr.bf16.mxu0 0
    %1923 = vmatpush2.bf16.msra.mxu0 %v1435
    %1924 = vmatprep.subr.bf16.mxu0 0
    %1925 = vmatpush2.bf16.msra.mxu0 %v1434
    %1926 = vmatprep.mubr.bf16.mxu0 %v177
    %1927 = vmatmul.mubr.bf16.gmra.mxu0 %v176
    %v1928 = vpop.f32.mrf.mxu0
    %v1929 = vadd.f32 %v1889, %v1928
    %v1930 = vpop.f32.mrf.mxu0
    %v1931 = vpop.f32.mrf.mxu0
    %v1932 = vpop.f32.mrf.mxu0
    %1933 = vdwg.mxu0
    %1934 = vmatprep.subr.bf16.mxu0 0
    %1935 = vmatpush1.bf16.msra.mxu0 %v1449
    %1936 = vmatprep.subr.bf16.mxu0 0
    %1937 = vmatpush1.bf16.msra.mxu0 %v1448
    %1938 = vmatprep.subr.bf16.mxu0 0
    %1939 = vmatpush1.bf16.msra.mxu0 %v1447
    %1940 = vmatprep.subr.bf16.mxu0 0
    %1941 = vmatpush1.bf16.msra.mxu0 %v1446
    %1942 = vmatprep.subr.bf16.mxu0 0
    %1943 = vmatpush1.bf16.msra.mxu0 %v1445
    %1944 = vmatprep.subr.bf16.mxu0 0
    %1945 = vmatpush1.bf16.msra.mxu0 %v1444
    %1946 = vmatprep.subr.bf16.mxu0 0
    %1947 = vmatpush1.bf16.msra.mxu0 %v1443
    %1948 = vmatprep.subr.bf16.mxu0 0
    %1949 = vmatpush1.bf16.msra.mxu0 %v1442
    %1950 = vmatprep.subr.bf16.mxu0 0
    %1951 = vmatpush2.bf16.msra.mxu0 %v1457
    %1952 = vmatprep.subr.bf16.mxu0 0
    %1953 = vmatpush2.bf16.msra.mxu0 %v1456
    %1954 = vmatprep.subr.bf16.mxu0 0
    %1955 = vmatpush2.bf16.msra.mxu0 %v1455
    %1956 = vmatprep.subr.bf16.mxu0 0
    %1957 = vmatpush2.bf16.msra.mxu0 %v1454
    %1958 = vmatprep.subr.bf16.mxu0 0
    %1959 = vmatpush2.bf16.msra.mxu0 %v1453
    %1960 = vmatprep.subr.bf16.mxu0 0
    %1961 = vmatpush2.bf16.msra.mxu0 %v1452
    %1962 = vmatprep.subr.bf16.mxu0 0
    %1963 = vmatpush2.bf16.msra.mxu0 %v1451
    %1964 = vmatprep.subr.bf16.mxu0 0
    %1965 = vmatpush2.bf16.msra.mxu0 %v1450
    %1966 = vmatprep.mubr.bf16.mxu0 %v179
    %1967 = vmatmul.mubr.bf16.gmra.mxu0 %v178
    %v1968 = vpop.f32.mrf.mxu0
    %v1969 = vadd.f32 %v1929, %v1968
    %v1970 = vpop.f32.mrf.mxu0
    %v1971 = vpop.f32.mrf.mxu0
    %v1972 = vpop.f32.mrf.mxu0
    %1973 = vdwg.mxu0
    %1974 = vmatprep.subr.bf16.mxu0 0
    %1975 = vmatpush1.bf16.msra.mxu0 %v1465
    %1976 = vmatprep.subr.bf16.mxu0 0
    %1977 = vmatpush1.bf16.msra.mxu0 %v1464
    %1978 = vmatprep.subr.bf16.mxu0 0
    %1979 = vmatpush1.bf16.msra.mxu0 %v1463
    %1980 = vmatprep.subr.bf16.mxu0 0
    %1981 = vmatpush1.bf16.msra.mxu0 %v1462
    %1982 = vmatprep.subr.bf16.mxu0 0
    %1983 = vmatpush1.bf16.msra.mxu0 %v1461
    %1984 = vmatprep.subr.bf16.mxu0 0
    %1985 = vmatpush1.bf16.msra.mxu0 %v1460
    %1986 = vmatprep.subr.bf16.mxu0 0
    %1987 = vmatpush1.bf16.msra.mxu0 %v1459
    %1988 = vmatprep.subr.bf16.mxu0 0
    %1989 = vmatpush1.bf16.msra.mxu0 %v1458
    %1990 = vmatprep.subr.bf16.mxu0 0
    %1991 = vmatpush2.bf16.msra.mxu0 %v1473
    %1992 = vmatprep.subr.bf16.mxu0 0
    %1993 = vmatpush2.bf16.msra.mxu0 %v1472
    %1994 = vmatprep.subr.bf16.mxu0 0
    %1995 = vmatpush2.bf16.msra.mxu0 %v1471
    %1996 = vmatprep.subr.bf16.mxu0 0
    %1997 = vmatpush2.bf16.msra.mxu0 %v1470
    %1998 = vmatprep.subr.bf16.mxu0 0
    %1999 = vmatpush2.bf16.msra.mxu0 %v1469
    %2000 = vmatprep.subr.bf16.mxu0 0
    %2001 = vmatpush2.bf16.msra.mxu0 %v1468
    %2002 = vmatprep.subr.bf16.mxu0 0
    %2003 = vmatpush2.bf16.msra.mxu0 %v1467
    %2004 = vmatprep.subr.bf16.mxu0 0
    %2005 = vmatpush2.bf16.msra.mxu0 %v1466
    %2006 = vmatprep.mubr.bf16.mxu0 %v181
    %2007 = vmatmul.mubr.bf16.gmra.mxu0 %v180
    %v2008 = vpop.f32.mrf.mxu0
    %v2009 = vadd.f32 %v1969, %v2008
    %v2010 = vpop.f32.mrf.mxu0
    %v2011 = vpop.f32.mrf.mxu0
    %v2012 = vpop.f32.mrf.mxu0
    %2013 = vdwg.mxu0
    %2014 = vmatprep.subr.bf16.mxu0 0
    %2015 = vmatpush1.bf16.msra.mxu0 %v1481
    %2016 = vmatprep.subr.bf16.mxu0 0
    %2017 = vmatpush1.bf16.msra.mxu0 %v1480
    %2018 = vmatprep.subr.bf16.mxu0 0
    %2019 = vmatpush1.bf16.msra.mxu0 %v1479
    %2020 = vmatprep.subr.bf16.mxu0 0
    %2021 = vmatpush1.bf16.msra.mxu0 %v1478
    %2022 = vmatprep.subr.bf16.mxu0 0
    %2023 = vmatpush1.bf16.msra.mxu0 %v1477
    %2024 = vmatprep.subr.bf16.mxu0 0
    %2025 = vmatpush1.bf16.msra.mxu0 %v1476
    %2026 = vmatprep.subr.bf16.mxu0 0
    %2027 = vmatpush1.bf16.msra.mxu0 %v1475
    %2028 = vmatprep.subr.bf16.mxu0 0
    %2029 = vmatpush1.bf16.msra.mxu0 %v1474
    %2030 = vmatprep.subr.bf16.mxu0 0
    %2031 = vmatpush2.bf16.msra.mxu0 %v1489
    %2032 = vmatprep.subr.bf16.mxu0 0
    %2033 = vmatpush2.bf16.msra.mxu0 %v1488
    %2034 = vmatprep.subr.bf16.mxu0 0
    %2035 = vmatpush2.bf16.msra.mxu0 %v1487
    %2036 = vmatprep.subr.bf16.mxu0 0
    %2037 = vmatpush2.bf16.msra.mxu0 %v1486
    %2038 = vmatprep.subr.bf16.mxu0 0
    %2039 = vmatpush2.bf16.msra.mxu0 %v1485
    %2040 = vmatprep.subr.bf16.mxu0 0
    %2041 = vmatpush2.bf16.msra.mxu0 %v1484
    %2042 = vmatprep.subr.bf16.mxu0 0
    %2043 = vmatpush2.bf16.msra.mxu0 %v1483
    %2044 = vmatprep.subr.bf16.mxu0 0
    %2045 = vmatpush2.bf16.msra.mxu0 %v1482
    %2046 = vmatprep.mubr.bf16.mxu0 %v183
    %2047 = vmatmul.mubr.bf16.gmra.mxu0 %v182
    %v2048 = vpop.f32.mrf.mxu0
    %v2049 = vadd.f32 %v2009, %v2048
    %v2050 = vpop.f32.mrf.mxu0
    %v2051 = vpop.f32.mrf.mxu0
    %v2052 = vpop.f32.mrf.mxu0
    %2053 = vdwg.mxu0
    %2054 = vmatprep.subr.bf16.mxu0 0
    %2055 = vmatpush1.bf16.msra.mxu0 %v1497
    %2056 = vmatprep.subr.bf16.mxu0 0
    %2057 = vmatpush1.bf16.msra.mxu0 %v1496
    %2058 = vmatprep.subr.bf16.mxu0 0
    %2059 = vmatpush1.bf16.msra.mxu0 %v1495
    %2060 = vmatprep.subr.bf16.mxu0 0
    %2061 = vmatpush1.bf16.msra.mxu0 %v1494
    %2062 = vmatprep.subr.bf16.mxu0 0
    %2063 = vmatpush1.bf16.msra.mxu0 %v1493
    %2064 = vmatprep.subr.bf16.mxu0 0
    %2065 = vmatpush1.bf16.msra.mxu0 %v1492
    %2066 = vmatprep.subr.bf16.mxu0 0
    %2067 = vmatpush1.bf16.msra.mxu0 %v1491
    %2068 = vmatprep.subr.bf16.mxu0 0
    %2069 = vmatpush1.bf16.msra.mxu0 %v1490
    %2070 = vmatprep.subr.bf16.mxu0 0
    %2071 = vmatpush2.bf16.msra.mxu0 %v1505
    %2072 = vmatprep.subr.bf16.mxu0 0
    %2073 = vmatpush2.bf16.msra.mxu0 %v1504
    %2074 = vmatprep.subr.bf16.mxu0 0
    %2075 = vmatpush2.bf16.msra.mxu0 %v1503
    %2076 = vmatprep.subr.bf16.mxu0 0
    %2077 = vmatpush2.bf16.msra.mxu0 %v1502
    %2078 = vmatprep.subr.bf16.mxu0 0
    %2079 = vmatpush2.bf16.msra.mxu0 %v1501
    %2080 = vmatprep.subr.bf16.mxu0 0
    %2081 = vmatpush2.bf16.msra.mxu0 %v1500
    %2082 = vmatprep.subr.bf16.mxu0 0
    %2083 = vmatpush2.bf16.msra.mxu0 %v1499
    %2084 = vmatprep.subr.bf16.mxu0 0
    %2085 = vmatpush2.bf16.msra.mxu0 %v1498
    %2086 = vmatprep.mubr.bf16.mxu0 %v185
    %2087 = vmatmul.mubr.bf16.gmra.mxu0 %v184
    %v2088 = vpop.f32.mrf.mxu0
    %v2089 = vadd.f32 %v2049, %v2088
    %v2090 = vpop.f32.mrf.mxu0
    %v2091 = vpop.f32.mrf.mxu0
    %v2092 = vpop.f32.mrf.mxu0
    %2093 = vdwg.mxu0
    %2094 = vmatprep.subr.bf16.mxu0 0
    %2095 = vmatpush1.bf16.msra.mxu0 %v1513
    %2096 = vmatprep.subr.bf16.mxu0 0
    %2097 = vmatpush1.bf16.msra.mxu0 %v1512
    %2098 = vmatprep.subr.bf16.mxu0 0
    %2099 = vmatpush1.bf16.msra.mxu0 %v1511
    %2100 = vmatprep.subr.bf16.mxu0 0
    %2101 = vmatpush1.bf16.msra.mxu0 %v1510
    %2102 = vmatprep.subr.bf16.mxu0 0
    %2103 = vmatpush1.bf16.msra.mxu0 %v1509
    %2104 = vmatprep.subr.bf16.mxu0 0
    %2105 = vmatpush1.bf16.msra.mxu0 %v1508
    %2106 = vmatprep.subr.bf16.mxu0 0
    %2107 = vmatpush1.bf16.msra.mxu0 %v1507
    %2108 = vmatprep.subr.bf16.mxu0 0
    %2109 = vmatpush1.bf16.msra.mxu0 %v1506
    %2110 = vmatprep.subr.bf16.mxu0 0
    %2111 = vmatpush2.bf16.msra.mxu0 %v1521
    %2112 = vmatprep.subr.bf16.mxu0 0
    %2113 = vmatpush2.bf16.msra.mxu0 %v1520
    %2114 = vmatprep.subr.bf16.mxu0 0
    %2115 = vmatpush2.bf16.msra.mxu0 %v1519
    %2116 = vmatprep.subr.bf16.mxu0 0
    %2117 = vmatpush2.bf16.msra.mxu0 %v1518
    %2118 = vmatprep.subr.bf16.mxu0 0
    %2119 = vmatpush2.bf16.msra.mxu0 %v1517
    %2120 = vmatprep.subr.bf16.mxu0 0
    %2121 = vmatpush2.bf16.msra.mxu0 %v1516
    %2122 = vmatprep.subr.bf16.mxu0 0
    %2123 = vmatpush2.bf16.msra.mxu0 %v1515
    %2124 = vmatprep.subr.bf16.mxu0 0
    %2125 = vmatpush2.bf16.msra.mxu0 %v1514
    %2126 = vmatprep.mubr.bf16.mxu0 %v187
    %2127 = vmatmul.mubr.bf16.gmra.mxu0 %v186
    %v2128 = vpop.f32.mrf.mxu0
    %v2129 = vadd.f32 %v2089, %v2128
    %v2130 = vpop.f32.mrf.mxu0
    %v2131 = vpop.f32.mrf.mxu0
    %v2132 = vpop.f32.mrf.mxu0
    %2133 = vdwg.mxu0
    %2134 = vmatprep.subr.bf16.mxu0 0
    %2135 = vmatpush1.bf16.msra.mxu0 %v1529
    %2136 = vmatprep.subr.bf16.mxu0 0
    %2137 = vmatpush1.bf16.msra.mxu0 %v1528
    %2138 = vmatprep.subr.bf16.mxu0 0
    %2139 = vmatpush1.bf16.msra.mxu0 %v1527
    %2140 = vmatprep.subr.bf16.mxu0 0
    %2141 = vmatpush1.bf16.msra.mxu0 %v1526
    %2142 = vmatprep.subr.bf16.mxu0 0
    %2143 = vmatpush1.bf16.msra.mxu0 %v1525
    %2144 = vmatprep.subr.bf16.mxu0 0
    %2145 = vmatpush1.bf16.msra.mxu0 %v1524
    %2146 = vmatprep.subr.bf16.mxu0 0
    %2147 = vmatpush1.bf16.msra.mxu0 %v1523
    %2148 = vmatprep.subr.bf16.mxu0 0
    %2149 = vmatpush1.bf16.msra.mxu0 %v1522
    %2150 = vmatprep.subr.bf16.mxu0 0
    %2151 = vmatpush2.bf16.msra.mxu0 %v1537
    %2152 = vmatprep.subr.bf16.mxu0 0
    %2153 = vmatpush2.bf16.msra.mxu0 %v1536
    %2154 = vmatprep.subr.bf16.mxu0 0
    %2155 = vmatpush2.bf16.msra.mxu0 %v1535
    %2156 = vmatprep.subr.bf16.mxu0 0
    %2157 = vmatpush2.bf16.msra.mxu0 %v1534
    %2158 = vmatprep.subr.bf16.mxu0 0
    %2159 = vmatpush2.bf16.msra.mxu0 %v1533
    %2160 = vmatprep.subr.bf16.mxu0 0
    %2161 = vmatpush2.bf16.msra.mxu0 %v1532
    %2162 = vmatprep.subr.bf16.mxu0 0
    %2163 = vmatpush2.bf16.msra.mxu0 %v1531
    %2164 = vmatprep.subr.bf16.mxu0 0
    %2165 = vmatpush2.bf16.msra.mxu0 %v1530
    %2166 = vmatprep.mubr.bf16.mxu0 %v189
    %2167 = vmatmul.mubr.bf16.gmra.mxu0 %v188
    %v2168 = vpop.f32.mrf.mxu0
    %v2169 = vadd.f32 %v2129, %v2168
    %v2170 = vpop.f32.mrf.mxu0
    %v2171 = vpop.f32.mrf.mxu0
    %v2172 = vpop.f32.mrf.mxu0
    %2173 = vdwg.mxu0
    %2174 = vmatprep.subr.bf16.mxu0 0
    %2175 = vmatpush1.bf16.msra.mxu0 %v1545
    %2176 = vmatprep.subr.bf16.mxu0 0
    %2177 = vmatpush1.bf16.msra.mxu0 %v1544
    %2178 = vmatprep.subr.bf16.mxu0 0
    %2179 = vmatpush1.bf16.msra.mxu0 %v1543
    %2180 = vmatprep.subr.bf16.mxu0 0
    %2181 = vmatpush1.bf16.msra.mxu0 %v1542
    %2182 = vmatprep.subr.bf16.mxu0 0
    %2183 = vmatpush1.bf16.msra.mxu0 %v1541
    %2184 = vmatprep.subr.bf16.mxu0 0
    %2185 = vmatpush1.bf16.msra.mxu0 %v1540
    %2186 = vmatprep.subr.bf16.mxu0 0
    %2187 = vmatpush1.bf16.msra.mxu0 %v1539
    %2188 = vmatprep.subr.bf16.mxu0 0
    %2189 = vmatpush1.bf16.msra.mxu0 %v1538
    %2190 = vmatprep.subr.bf16.mxu0 0
    %2191 = vmatpush2.bf16.msra.mxu0 %v1553
    %2192 = vmatprep.subr.bf16.mxu0 0
    %2193 = vmatpush2.bf16.msra.mxu0 %v1552
    %2194 = vmatprep.subr.bf16.mxu0 0
    %2195 = vmatpush2.bf16.msra.mxu0 %v1551
    %2196 = vmatprep.subr.bf16.mxu0 0
    %2197 = vmatpush2.bf16.msra.mxu0 %v1550
    %2198 = vmatprep.subr.bf16.mxu0 0
    %2199 = vmatpush2.bf16.msra.mxu0 %v1549
    %2200 = vmatprep.subr.bf16.mxu0 0
    %2201 = vmatpush2.bf16.msra.mxu0 %v1548
    %2202 = vmatprep.subr.bf16.mxu0 0
    %2203 = vmatpush2.bf16.msra.mxu0 %v1547
    %2204 = vmatprep.subr.bf16.mxu0 0
    %2205 = vmatpush2.bf16.msra.mxu0 %v1546
    %2206 = vmatprep.mubr.bf16.mxu0 %v191
    %2207 = vmatmul.mubr.bf16.gmra.mxu0 %v190
    %v2208 = vpop.f32.mrf.mxu0
    %v2209 = vadd.f32 %v2169, %v2208
    %v2210 = vpop.f32.mrf.mxu0
    %v2211 = vpop.f32.mrf.mxu0
    %v2212 = vpop.f32.mrf.mxu0
    %2213 = vdwg.mxu0
    %2214 = vmatprep.subr.bf16.mxu0 0
    %2215 = vmatpush1.bf16.msra.mxu0 %v1561
    %2216 = vmatprep.subr.bf16.mxu0 0
    %2217 = vmatpush1.bf16.msra.mxu0 %v1560
    %2218 = vmatprep.subr.bf16.mxu0 0
    %2219 = vmatpush1.bf16.msra.mxu0 %v1559
    %2220 = vmatprep.subr.bf16.mxu0 0
    %2221 = vmatpush1.bf16.msra.mxu0 %v1558
    %2222 = vmatprep.subr.bf16.mxu0 0
    %2223 = vmatpush1.bf16.msra.mxu0 %v1557
    %2224 = vmatprep.subr.bf16.mxu0 0
    %2225 = vmatpush1.bf16.msra.mxu0 %v1556
    %2226 = vmatprep.subr.bf16.mxu0 0
    %2227 = vmatpush1.bf16.msra.mxu0 %v1555
    %2228 = vmatprep.subr.bf16.mxu0 0
    %2229 = vmatpush1.bf16.msra.mxu0 %v1554
    %2230 = vmatprep.subr.bf16.mxu0 0
    %2231 = vmatpush2.bf16.msra.mxu0 %v1569
    %2232 = vmatprep.subr.bf16.mxu0 0
    %2233 = vmatpush2.bf16.msra.mxu0 %v1568
    %2234 = vmatprep.subr.bf16.mxu0 0
    %2235 = vmatpush2.bf16.msra.mxu0 %v1567
    %2236 = vmatprep.subr.bf16.mxu0 0
    %2237 = vmatpush2.bf16.msra.mxu0 %v1566
    %2238 = vmatprep.subr.bf16.mxu0 0
    %2239 = vmatpush2.bf16.msra.mxu0 %v1565
    %2240 = vmatprep.subr.bf16.mxu0 0
    %2241 = vmatpush2.bf16.msra.mxu0 %v1564
    %2242 = vmatprep.subr.bf16.mxu0 0
    %2243 = vmatpush2.bf16.msra.mxu0 %v1563
    %2244 = vmatprep.subr.bf16.mxu0 0
    %2245 = vmatpush2.bf16.msra.mxu0 %v1562
    %2246 = vmatprep.mubr.bf16.mxu0 %v193
    %2247 = vmatmul.mubr.bf16.gmra.mxu0 %v192
    %v2248 = vpop.f32.mrf.mxu0
    %v2249 = vadd.f32 %v2209, %v2248
    %v2250 = vpop.f32.mrf.mxu0
    %v2251 = vpop.f32.mrf.mxu0
    %v2252 = vpop.f32.mrf.mxu0
    %2253 = vdwg.mxu0
    %2254 = vmatprep.subr.bf16.mxu0 0
    %2255 = vmatpush1.bf16.msra.mxu0 0
    %2256 = vmatprep.subr.bf16.mxu0 0
    %2257 = vmatpush1.bf16.msra.mxu0 0
    %2258 = vmatprep.subr.bf16.mxu0 0
    %2259 = vmatpush1.bf16.msra.mxu0 0
    %2260 = vmatprep.subr.bf16.mxu0 0
    %2261 = vmatpush1.bf16.msra.mxu0 0
    %2262 = vmatprep.subr.bf16.mxu0 0
    %2263 = vmatpush1.bf16.msra.mxu0 %v1573
    %2264 = vmatprep.subr.bf16.mxu0 0
    %2265 = vmatpush1.bf16.msra.mxu0 %v1572
    %2266 = vmatprep.subr.bf16.mxu0 0
    %2267 = vmatpush1.bf16.msra.mxu0 %v1571
    %2268 = vmatprep.subr.bf16.mxu0 0
    %2269 = vmatpush1.bf16.msra.mxu0 %v1570
    %2270 = vmatprep.subr.bf16.mxu0 0
    %2271 = vmatpush2.bf16.msra.mxu0 0
    %2272 = vmatprep.subr.bf16.mxu0 0
    %2273 = vmatpush2.bf16.msra.mxu0 0
    %2274 = vmatprep.subr.bf16.mxu0 0
    %2275 = vmatpush2.bf16.msra.mxu0 0
    %2276 = vmatprep.subr.bf16.mxu0 0
    %2277 = vmatpush2.bf16.msra.mxu0 0
    %2278 = vmatprep.subr.bf16.mxu0 0
    %2279 = vmatpush2.bf16.msra.mxu0 0
    %2280 = vmatprep.subr.bf16.mxu0 0
    %2281 = vmatpush2.bf16.msra.mxu0 0
    %2282 = vmatprep.subr.bf16.mxu0 0
    %2283 = vmatpush2.bf16.msra.mxu0 0
    %2284 = vmatprep.subr.bf16.mxu0 0
    %2285 = vmatpush2.bf16.msra.mxu0 0
    %2286 = vmatprep.mubr.bf16.mxu0 0
    %2287 = vmatmul.mubr.bf16.gmra.mxu0 %v1772
    %v2288 = vpop.f32.mrf.mxu0
    %v2289 = vadd.f32 %v2249, %v2288
    %v2290 = vpop.f32.mrf.mxu0
    %v2291 = vpop.f32.mrf.mxu0
    %v2292 = vpop.f32.mrf.mxu0
    %2293 = vdwg.mxu0
    %v2294 = vmax.f32 %v2289, 0.0
    %v2295 = vpack.c.bf16 %v2294, %v2294
    %v2296 = vld [vmem:[%s3] sm:$0xf]
    %v2297 = vld [vmem:[%s3 + $0x4] sm:$0xf]
    %v2298 = vld [vmem:[%s3 + $0x8] sm:$0xf]
    %v2299 = vld [vmem:[%s3 + $0xc] sm:$0xf]
    %v2300 = vld [vmem:[%s4] sm:$0x1]
    %v2302 = vlaneseq
    %v2303 = vshrl.u32 %v2302, 7
    %v2304 = vsub.s32 0, %v2303
    %v2305 = vrot.slane %v2300, %v2304
    %v2311 = vunpack.c.l.b16 %v2296
    %v2312 = vunpack.c.l.b16 %v2297
    %v2313 = vunpack.c.l.b16 %v2298
    %v2314 = vunpack.c.l.b16 %v2299
    %v2315 = vpack.c.b16 %v2312, %v2311
    %v2316 = vpack.c.b16 %v2314, %v2313
    %vm2319 = vcmask 261120
    %v2321 = vsel %vm2319, %v2295, 0
    %2323 = vmatprep.subr.bf16.mxu0 0
    %2324 = vmatpush1.bf16.msra.mxu0 0
    %2325 = vmatprep.subr.bf16.mxu0 0
    %2326 = vmatpush1.bf16.msra.mxu0 0
    %2327 = vmatprep.subr.bf16.mxu0 0
    %2328 = vmatpush1.bf16.msra.mxu0 0
    %2329 = vmatprep.subr.bf16.mxu0 0
    %2330 = vmatpush1.bf16.msra.mxu0 0
    %2331 = vmatprep.subr.bf16.mxu0 0
    %2332 = vmatpush1.bf16.msra.mxu0 0
    %2333 = vmatprep.subr.bf16.mxu0 0
    %2334 = vmatpush1.bf16.msra.mxu0 0
    %2335 = vmatprep.subr.bf16.mxu0 0
    %2336 = vmatpush1.bf16.msra.mxu0 %v2316
    %2337 = vmatprep.subr.bf16.mxu0 0
    %2338 = vmatpush1.bf16.msra.mxu0 %v2315
    %2339 = vmatprep.subr.bf16.mxu0 0
    %2340 = vmatpush2.bf16.msra.mxu0 0
    %2341 = vmatprep.subr.bf16.mxu0 0
    %2342 = vmatpush2.bf16.msra.mxu0 0
    %2343 = vmatprep.subr.bf16.mxu0 0
    %2344 = vmatpush2.bf16.msra.mxu0 0
    %2345 = vmatprep.subr.bf16.mxu0 0
    %2346 = vmatpush2.bf16.msra.mxu0 0
    %2347 = vmatprep.subr.bf16.mxu0 0
    %2348 = vmatpush2.bf16.msra.mxu0 0
    %2349 = vmatprep.subr.bf16.mxu0 0
    %2350 = vmatpush2.bf16.msra.mxu0 0
    %2351 = vmatprep.subr.bf16.mxu0 0
    %2352 = vmatpush2.bf16.msra.mxu0 0
    %2353 = vmatprep.subr.bf16.mxu0 0
    %2354 = vmatpush2.bf16.msra.mxu0 0
    %2355 = vmatprep.mubr.bf16.mxu0 0
    %2356 = vmatmul.mubr.bf16.gmra.mxu0 %v2321
    %v2357 = vpop.f32.mrf.mxu0
    %v2358 = vadd.f32 %v2305, %v2357
    %v2359 = vpop.f32.mrf.mxu0
    %v2360 = vpop.f32.mrf.mxu0
    %v2361 = vpop.f32.mrf.mxu0
    %2362 = vdwg.mxu0
    %vm2363 = vcmask 41984
    %2364 = vst.msk [vmem:[#allocation2] sm:$0x3] %vm2363, %v2358
    // Predicated region
    $region22: #{dqn_forward.7} parent=1 // pred_check
      _
    $region23: #{dqn_forward.7} parent=1 // pred_check_branch
      %2366 = sbr.rel (0) target = $region25
    $region24: #{dqn_forward.7} parent=1 // pred_region
      %s2368 = ssub.s32 32, 32
      %2369 = vsyncadd [#allocation3], %s2368
      %s2371 = sshll.u32 [#allocation2], 4
      %s2372 = int_to_ptr.vmem [resolvable:$true] %s2371
      %2374 = dma.vmem_to_hbm [thread:$0]  %s2372, 32, %s5, [#allocation3]
    $region25: #{dqn_forward.7} parent=1 // pred_fallthru
      _
    // Predicated region
    $region26: #{dqn_forward.7} parent=1 // pred_check
      _
    $region27: #{dqn_forward.7} parent=1 // pred_check_branch
      %2376 = sbr.rel (0) target = $region29
    $region28: #{dqn_forward.7} parent=1 // pred_region
      %2377 = dma.done [#allocation3], 32
    $region29: #{dqn_forward.7} parent=1 // pred_fallthru
      _
    %2378 = vsyncpa [#allocation3], 1

</llo_original>
